<compile_context>
chip_gen: v6e
topology: v6e:2x2x1
jax: 0.10.0
libtpu: 0.0.40
codegen_flags: <defaults>
</compile_context>

<pallas_src>
import functools
import math

import jax
import jax.numpy as jnp
from jax.experimental import pallas as pl
from jax.experimental.pallas import tpu as pltpu

# ----------------------- small synthetic model configuration -----------------------
E2W = ["Bar", "Position", "Pitch", "Duration"]   # CP token families
N_TOKENS = [4, 16, 32, 16]                       # vocab size per family
EMB_SIZES = [16, 16, 16, 16]                     # per-family embedding width
HIDDEN = 32
N_HEADS = 4
HEAD_DIM = HIDDEN // N_HEADS
FFN = 64
N_LAYERS = 2
MAX_POS = 64
LN_EPS = 1e-12                                   # HF BERT default
HEAD_PAD = 128                                   # lane-padded LM-head width
N_TOTAL = sum(N_TOKENS)                          # 68
E_TOTAL = sum(EMB_SIZES)                         # 64
TOK_OFFSETS = tuple(int(sum(N_TOKENS[:i])) for i in range(len(N_TOKENS)))


# ------------------------------ in-kernel math helpers ------------------------------
def _layernorm(x, g, b, eps):
    mu = jnp.mean(x, axis=-1, keepdims=True)
    var = jnp.mean(jnp.square(x - mu), axis=-1, keepdims=True)
    return (x - mu) * jax.lax.rsqrt(var + eps) * g + b


def _erf(x):
    # Abramowitz & Stegun 7.1.26 — max abs error ~1.5e-7 (f32-exact for gelu);
    # uses only exp / mul / add / select so it lowers on all TPU generations.
    a1, a2, a3, a4, a5 = 0.254829592, -0.284496736, 1.421413741, -1.453152027, 1.061405429
    p = 0.3275911
    ax = jnp.abs(x)
    t = 1.0 / (1.0 + p * ax)
    poly = ((((a5 * t + a4) * t + a3) * t + a2) * t + a1) * t
    y = 1.0 - poly * jnp.exp(-ax * ax)
    return jnp.where(x < 0.0, -y, y)


def _gelu_exact(x):
    # Exact (erf) gelu, matching HF BERT's default hidden_act="gelu".
    return 0.5 * x * (1.0 + _erf(x * 0.7071067811865476))


# --------------------------------- fused Pallas kernel ---------------------------------
def _fused_forward_kernel(tok_ref, mask_ref, pos_ref,
                          wtok_ref, inw_ref, inb_ref, eg_ref, ebeta_ref,
                          wqkv_ref, bqkv_ref, wo_ref, bo_ref,
                          ln1g_ref, ln1b_ref, w1_ref, b1_ref, w2_ref, b2_ref,
                          ln2g_ref, ln2b_ref, headw_ref, headb_ref,
                          out_ref,
                          *, batch, seq, n_heads, head_dim, n_layers, causal, eps,
                          tok_offsets):
    BS = batch * seq
    H = inw_ref.shape[1]
    NT = wtok_ref.shape[0]
    scale = 1.0 / math.sqrt(head_dim)

    # ---- CP embedding lookup as a single multi-one-hot matmul (no XLA gathers) ----
    tok = tok_ref[...]                                                  # (BS, 4) int32
    col = jax.lax.broadcasted_iota(jnp.int32, (BS, NT), 1)
    onehot = jnp.zeros((BS, NT), jnp.float32)
    for i, off in enumerate(tok_offsets):
        onehot = onehot + (col == (tok[:, i:i + 1] + off)).astype(jnp.float32)
    # onehot @ block-diagonal table == gather + concat of the 4 embedding tables.
    emb = jnp.dot(onehot, wtok_ref[...], preferred_element_type=jnp.float32)   # (BS, E)

    # in_linear + positional embedding + embedding LayerNorm.
    h = jnp.dot(emb, inw_ref[...], preferred_element_type=jnp.float32) + inb_ref[...]
    h = _layernorm(h + pos_ref[...], eg_ref[...], ebeta_ref[...], eps)          # (BS, H)

    # ---- additive attention bias per batch row (hoisted out of layer/head loops) ----
    maskv = mask_ref[...]                                               # (B, S) 1=keep
    if causal:
        qi = jax.lax.broadcasted_iota(jnp.int32, (seq, seq), 0)
        kj = jax.lax.broadcasted_iota(jnp.int32, (seq, seq), 1)
        causal_bias = jnp.where(kj <= qi, 0.0, -10000.0)                # (S, S)
    biases = []
    for b in range(batch):
        pad_bias = jnp.where(maskv[b:b + 1, :] > 0.5, 0.0, -10000.0)    # (1, S)
        biases.append(pad_bias + causal_bias if causal else pad_bias)

    # ---- transformer encoder layers ----
    for l in range(n_layers):
        wqkv = wqkv_ref[l]                                              # (H, 3H)
        wo = wo_ref[l]                                                  # (H, H)
        qkv = jnp.dot(h, wqkv, preferred_element_type=jnp.float32) + bqkv_ref[l]   # (BS, 3H)

        attn_parts = []
        for b in range(batch):
            r0 = b * seq
            qb = qkv[r0:r0 + seq, 0:H]
            kb = qkv[r0:r0 + seq, H:2 * H]
            vb = qkv[r0:r0 + seq, 2 * H:3 * H]
            acc = jnp.zeros((seq, H), jnp.float32)
            for hh in range(n_heads):
                lo = hh * head_dim
                s = jax.lax.dot_general(qb[:, lo:lo + head_dim], kb[:, lo:lo + head_dim],
                                        (((1,), (1,)), ((), ())),
                                        preferred_element_type=jnp.float32) * scale
                s = s + biases[b]
                s = s - jnp.max(s, axis=-1, keepdims=True)
                p = jnp.exp(s)
                p = p * pl.reciprocal(jnp.sum(p, axis=-1, keepdims=True), approx=True)
                ctx = jnp.dot(p, vb[:, lo:lo + head_dim],
                              preferred_element_type=jnp.float32)       # (S, D)
                # Per-head partial output projection — no lane concat of head contexts.
                acc = acc + jnp.dot(ctx, wo[lo:lo + head_dim, :],
                                    preferred_element_type=jnp.float32)
            attn_parts.append(acc)
        attn_out = jnp.concatenate(attn_parts, axis=0) + bo_ref[l]      # (BS, H)

        h1 = _layernorm(h + attn_out, ln1g_ref[l], ln1b_ref[l], eps)
        f = jnp.dot(h1, w1_ref[l], preferred_element_type=jnp.float32) + b1_ref[l]
        f = _gelu_exact(f)
        f = jnp.dot(f, w2_ref[l], preferred_element_type=jnp.float32) + b2_ref[l]
        h = _layernorm(h1 + f, ln2g_ref[l], ln2b_ref[l], eps)

    # ---- fused, lane-padded LM head: all four family projections in one matmul ----
    logits = jnp.dot(h, headw_ref[...], preferred_element_type=jnp.float32) + headb_ref[...]
    out_ref[...] = logits.astype(out_ref.dtype)                          # (BS, 128) lane-dense


# --------------------------------- kernel wrapper ---------------------------------
def _vspec(shape):
    nd = len(shape)
    return pl.BlockSpec(shape, lambda i, _nd=nd: (0,) * _nd)


def fused_forward(tokens, mask, pos_tiled, params, head_w, head_b, *, causal):
    B, S, n_fam = tokens.shape
    BS = B * S
    tok_flat = tokens.reshape(BS, n_fam).astype(jnp.int32)

    kernel = functools.partial(
        _fused_forward_kernel, batch=B, seq=S, n_heads=N_HEADS, head_dim=HEAD_DIM,
        n_layers=N_LAYERS, causal=causal, eps=LN_EPS, tok_offsets=TOK_OFFSETS)

    args = (tok_flat, mask, pos_tiled,
            params["wtok"], params["in_w"], params["in_b"],
            params["emb_ln_g"], params["emb_ln_b"],
            params["wqkv"], params["bqkv"], params["wo"], params["bo"],
            params["ln1_g"], params["ln1_b"], params["w1"], params["b1"],
            params["w2"], params["b2"], params["ln2_g"], params["ln2_b"],
            head_w, head_b)

    return pl.pallas_call(
        kernel,
        out_shape=jax.ShapeDtypeStruct((BS, HEAD_PAD), jnp.float32),
        grid=(1,),
        in_specs=[_vspec(a.shape) for a in args],
        out_specs=_vspec((BS, HEAD_PAD)),
        compiler_params=pltpu.CompilerParams(dimension_semantics=("arbitrary",)),
    )(*args)


# ----------------------------- parameter initialization -----------------------------
def init_params(key):
    keys = jax.random.split(key, 64)
    ki = iter(keys)

    def nrm(shape, scale=0.02):
        return (scale * jax.random.normal(next(ki), shape)).astype(jnp.float32)

    p = {}
    # Block-diagonal CP embedding table: rows = family-offset token id,
    # cols = concatenated per-family embedding lanes.  A multi-one-hot matmul
    # against it exactly reproduces the 4 nn.Embedding gathers + concat.
    wtok = jnp.zeros((N_TOTAL, E_TOTAL), jnp.float32)
    e_off = 0
    for i, (n, e) in enumerate(zip(N_TOKENS, EMB_SIZES)):
        wtok = wtok.at[TOK_OFFSETS[i]:TOK_OFFSETS[i] + n, e_off:e_off + e].set(nrm((n, e)))
        e_off += e
    p["wtok"] = wtok
    p["in_w"] = nrm((E_TOTAL, HIDDEN))
    p["in_b"] = jnp.zeros((1, HIDDEN), jnp.float32)
    p["pos_emb"] = nrm((MAX_POS, HIDDEN))
    p["emb_ln_g"] = jnp.ones((1, HIDDEN), jnp.float32)
    p["emb_ln_b"] = jnp.zeros((1, HIDDEN), jnp.float32)

    def stack(fn):
        return jnp.stack([fn() for _ in range(N_LAYERS)], axis=0)

    p["wqkv"] = stack(lambda: jnp.concatenate(
        [nrm((HIDDEN, HIDDEN)) for _ in range(3)], axis=1))              # (L, H, 3H)
    p["bqkv"] = jnp.zeros((N_LAYERS, 1, 3 * HIDDEN), jnp.float32)
    p["wo"] = stack(lambda: nrm((HIDDEN, HIDDEN)))
    p["bo"] = jnp.zeros((N_LAYERS, 1, HIDDEN), jnp.float32)
    p["ln1_g"] = jnp.ones((N_LAYERS, 1, HIDDEN), jnp.float32)
    p["ln1_b"] = jnp.zeros((N_LAYERS, 1, HIDDEN), jnp.float32)
    p["w1"] = stack(lambda: nrm((HIDDEN, FFN)))
    p["b1"] = jnp.zeros((N_LAYERS, 1, FFN), jnp.float32)
    p["w2"] = stack(lambda: nrm((FFN, HIDDEN)))
    p["b2"] = jnp.zeros((N_LAYERS, 1, HIDDEN), jnp.float32)
    p["ln2_g"] = jnp.ones((N_LAYERS, 1, HIDDEN), jnp.float32)
    p["ln2_b"] = jnp.zeros((N_LAYERS, 1, HIDDEN), jnp.float32)

    def fused_head():
        # Concatenate the four per-family projections and lane-pad to 128.
        w = jnp.concatenate([nrm((HIDDEN, n)) for n in N_TOKENS], axis=1)   # (H, 68)
        w = jnp.pad(w, ((0, 0), (0, HEAD_PAD - N_TOTAL)))
        b = jnp.zeros((1, HEAD_PAD), jnp.float32)
        return w, b

    p["mlm_w"], p["mlm_b"] = fused_head()
    p["clm_w"], p["clm_b"] = fused_head()
    return p


# ------------------------------------ forward ------------------------------------
@functools.partial(jax.jit, static_argnames=("mode",))
def midiformer_lm_forward(params, x, attn, mode="mlm"):
    # TODO(synk): pctm / nltm prompt tensors, dropout and the BERT pooler of the
    # original MidiFormer are not replicated (inference-path parity only).
    B, S, _ = x.shape
    mask = attn.astype(jnp.float32)                                      # (B, S)
    pos_tiled = jnp.tile(params["pos_emb"][:S], (B, 1))                  # (B*S, H)
    causal = (mode != "mlm")       # formerConfig.is_decoder=True for CLM -> causal
    head_w = params["mlm_w"] if mode == "mlm" else params["clm_w"]
    head_b = params["mlm_b"] if mode == "mlm" else params["clm_b"]

    logits = fused_forward(x, mask, pos_tiled, params, head_w, head_b, causal=causal)
    logits = logits.reshape(B, S, HEAD_PAD)
    logits = logits[:, 1:, :] if mode == "mlm" else logits[:, :-1, :]

    outs = []
    off = 0
    for n in N_TOKENS:
        outs.append(logits[..., off:off + n])
        off += n
    return outs


# -------------------------------------- main --------------------------------------
if __name__ == "__main__":
    key = jax.random.PRNGKey(0)
    pkey, xkey = jax.random.split(key, 2)
    params = init_params(pkey)

    B, S = 2, 8
    xkeys = jax.random.split(xkey, len(E2W))
    cols = [jax.random.randint(xkeys[i], (B, S, 1), 0, N_TOKENS[i], dtype=jnp.int32)
            for i in range(len(E2W))]
    x = jnp.concatenate(cols, axis=-1)                            # (B, S, 4) CP token ids
    attn = jnp.ones((B, S), jnp.float32).at[1, S - 1].set(0.0)    # mask last token of batch 1

    mlm_out = midiformer_lm_forward(params, x, attn, mode="mlm")
    clm_out = midiformer_lm_forward(params, x, attn, mode="clm")
    for o in mlm_out + clm_out:
        jax.block_until_ready(o)

    assert all(o.shape == (B, S - 1, N_TOKENS[i]) for i, o in enumerate(mlm_out))
    assert all(o.shape == (B, S - 1, N_TOKENS[i]) for i, o in enumerate(clm_out))
    assert all(bool(jnp.all(jnp.isfinite(o))) for o in mlm_out + clm_out)
    print("KERNEL_OK")
</pallas_src>

<mosaic_0001>
module attributes {stable_mosaic.version = 11 : i64} {
  func.func @_fused_forward_kernel(%arg0: i32, %arg1: memref<16x4xi32, #tpu.memory_space<vmem>>, %arg2: memref<2x8xf32, #tpu.memory_space<vmem>>, %arg3: memref<16x32xf32, #tpu.memory_space<vmem>>, %arg4: memref<68x64xf32, #tpu.memory_space<vmem>>, %arg5: memref<64x32xf32, #tpu.memory_space<vmem>>, %arg6: memref<1x32xf32, #tpu.memory_space<vmem>>, %arg7: memref<1x32xf32, #tpu.memory_space<vmem>>, %arg8: memref<1x32xf32, #tpu.memory_space<vmem>>, %arg9: memref<2x32x96xf32, #tpu.memory_space<vmem>>, %arg10: memref<2x1x96xf32, #tpu.memory_space<vmem>>, %arg11: memref<2x32x32xf32, #tpu.memory_space<vmem>>, %arg12: memref<2x1x32xf32, #tpu.memory_space<vmem>>, %arg13: memref<2x1x32xf32, #tpu.memory_space<vmem>>, %arg14: memref<2x1x32xf32, #tpu.memory_space<vmem>>, %arg15: memref<2x32x64xf32, #tpu.memory_space<vmem>>, %arg16: memref<2x1x64xf32, #tpu.memory_space<vmem>>, %arg17: memref<2x64x32xf32, #tpu.memory_space<vmem>>, %arg18: memref<2x1x32xf32, #tpu.memory_space<vmem>>, %arg19: memref<2x1x32xf32, #tpu.memory_space<vmem>>, %arg20: memref<2x1x32xf32, #tpu.memory_space<vmem>>, %arg21: memref<32x128xf32, #tpu.memory_space<vmem>>, %arg22: memref<1x128xf32, #tpu.memory_space<vmem>>, %arg23: memref<16x128xf32, #tpu.memory_space<vmem>>) attributes {dimension_semantics = [#tpu.dimension_semantics<arbitrary>], iteration_bounds = array<i64: 1>, scalar_prefetch = 0 : i64, scratch_operands = 0 : i64, tpu.core_type = #tpu.core_type<tc>, window_params = [{pipeline_mode = #tpu.pipeline_mode<synchronous>, transform_indices = @transform_0, window_bounds = array<i64: 16, 4>}, {pipeline_mode = #tpu.pipeline_mode<synchronous>, transform_indices = @transform_1, window_bounds = array<i64: 2, 8>}, {pipeline_mode = #tpu.pipeline_mode<synchronous>, transform_indices = @transform_2, window_bounds = array<i64: 16, 32>}, {pipeline_mode = #tpu.pipeline_mode<synchronous>, transform_indices = @transform_3, window_bounds = array<i64: 68, 64>}, {pipeline_mode = #tpu.pipeline_mode<synchronous>, transform_indices = @transform_4, window_bounds = array<i64: 64, 32>}, {pipeline_mode = #tpu.pipeline_mode<synchronous>, transform_indices = @transform_5, window_bounds = array<i64: 1, 32>}, {pipeline_mode = #tpu.pipeline_mode<synchronous>, transform_indices = @transform_6, window_bounds = array<i64: 1, 32>}, {pipeline_mode = #tpu.pipeline_mode<synchronous>, transform_indices = @transform_7, window_bounds = array<i64: 1, 32>}, {pipeline_mode = #tpu.pipeline_mode<synchronous>, transform_indices = @transform_8, window_bounds = array<i64: 2, 32, 96>}, {pipeline_mode = #tpu.pipeline_mode<synchronous>, transform_indices = @transform_9, window_bounds = array<i64: 2, 1, 96>}, {pipeline_mode = #tpu.pipeline_mode<synchronous>, transform_indices = @transform_10, window_bounds = array<i64: 2, 32, 32>}, {pipeline_mode = #tpu.pipeline_mode<synchronous>, transform_indices = @transform_11, window_bounds = array<i64: 2, 1, 32>}, {pipeline_mode = #tpu.pipeline_mode<synchronous>, transform_indices = @transform_12, window_bounds = array<i64: 2, 1, 32>}, {pipeline_mode = #tpu.pipeline_mode<synchronous>, transform_indices = @transform_13, window_bounds = array<i64: 2, 1, 32>}, {pipeline_mode = #tpu.pipeline_mode<synchronous>, transform_indices = @transform_14, window_bounds = array<i64: 2, 32, 64>}, {pipeline_mode = #tpu.pipeline_mode<synchronous>, transform_indices = @transform_15, window_bounds = array<i64: 2, 1, 64>}, {pipeline_mode = #tpu.pipeline_mode<synchronous>, transform_indices = @transform_16, window_bounds = array<i64: 2, 64, 32>}, {pipeline_mode = #tpu.pipeline_mode<synchronous>, transform_indices = @transform_17, window_bounds = array<i64: 2, 1, 32>}, {pipeline_mode = #tpu.pipeline_mode<synchronous>, transform_indices = @transform_18, window_bounds = array<i64: 2, 1, 32>}, {pipeline_mode = #tpu.pipeline_mode<synchronous>, transform_indices = @transform_19, window_bounds = array<i64: 2, 1, 32>}, {pipeline_mode = #tpu.pipeline_mode<synchronous>, transform_indices = @transform_20, window_bounds = array<i64: 32, 128>}, {pipeline_mode = #tpu.pipeline_mode<synchronous>, transform_indices = @transform_21, window_bounds = array<i64: 1, 128>}, {pipeline_mode = #tpu.pipeline_mode<synchronous>, transform_indices = @transform_22, window_bounds = array<i64: 16, 128>}]} {
    %c0 = arith.constant 0 : index
    %c0_0 = arith.constant 0 : index
    %0 = vector.load %arg1[%c0, %c0_0] : memref<16x4xi32, #tpu.memory_space<vmem>>, vector<16x4xi32>
    %1 = tpu.iota {dimensions = array<i32: 1>} : vector<16x68xi32>
    %cst = arith.constant 0.000000e+00 : f32
    %2 = vector.broadcast %cst : f32 to vector<16x68xf32>
    %3 = vector.extract_strided_slice %0 {offsets = [0, 0], sizes = [16, 1], strides = [1, 1]} : vector<16x4xi32> to vector<16x1xi32>
    %c0_i32 = arith.constant 0 : i32
    %4 = vector.broadcast %c0_i32 : i32 to vector<16x1xi32>
    %5 = arith.addi %3, %4 : vector<16x1xi32>
    %6 = vector.broadcast %5 : vector<16x1xi32> to vector<16x68xi32>
    %7 = arith.cmpi eq, %1, %6 : vector<16x68xi32>
    %8 = arith.extui %7 : vector<16x68xi1> to vector<16x68xi32>
    %9 = arith.sitofp %8 : vector<16x68xi32> to vector<16x68xf32>
    %10 = arith.addf %2, %9 : vector<16x68xf32>
    %11 = vector.extract_strided_slice %0 {offsets = [0, 1], sizes = [16, 1], strides = [1, 1]} : vector<16x4xi32> to vector<16x1xi32>
    %c4_i32 = arith.constant 4 : i32
    %12 = vector.broadcast %c4_i32 : i32 to vector<16x1xi32>
    %13 = arith.addi %11, %12 : vector<16x1xi32>
    %14 = vector.broadcast %13 : vector<16x1xi32> to vector<16x68xi32>
    %15 = arith.cmpi eq, %1, %14 : vector<16x68xi32>
    %16 = arith.extui %15 : vector<16x68xi1> to vector<16x68xi32>
    %17 = arith.sitofp %16 : vector<16x68xi32> to vector<16x68xf32>
    %18 = arith.addf %10, %17 : vector<16x68xf32>
    %19 = vector.extract_strided_slice %0 {offsets = [0, 2], sizes = [16, 1], strides = [1, 1]} : vector<16x4xi32> to vector<16x1xi32>
    %c20_i32 = arith.constant 20 : i32
    %20 = vector.broadcast %c20_i32 : i32 to vector<16x1xi32>
    %21 = arith.addi %19, %20 : vector<16x1xi32>
    %22 = vector.broadcast %21 : vector<16x1xi32> to vector<16x68xi32>
    %23 = arith.cmpi eq, %1, %22 : vector<16x68xi32>
    %24 = arith.extui %23 : vector<16x68xi1> to vector<16x68xi32>
    %25 = arith.sitofp %24 : vector<16x68xi32> to vector<16x68xf32>
    %26 = arith.addf %18, %25 : vector<16x68xf32>
    %27 = vector.extract_strided_slice %0 {offsets = [0, 3], sizes = [16, 1], strides = [1, 1]} : vector<16x4xi32> to vector<16x1xi32>
    %c52_i32 = arith.constant 52 : i32
    %28 = vector.broadcast %c52_i32 : i32 to vector<16x1xi32>
    %29 = arith.addi %27, %28 : vector<16x1xi32>
    %30 = vector.broadcast %29 : vector<16x1xi32> to vector<16x68xi32>
    %31 = arith.cmpi eq, %1, %30 : vector<16x68xi32>
    %32 = arith.extui %31 : vector<16x68xi1> to vector<16x68xi32>
    %33 = arith.sitofp %32 : vector<16x68xi32> to vector<16x68xf32>
    %34 = arith.addf %26, %33 : vector<16x68xf32>
    %c0_1 = arith.constant 0 : index
    %c0_2 = arith.constant 0 : index
    %35 = vector.load %arg4[%c0_1, %c0_2] : memref<68x64xf32, #tpu.memory_space<vmem>>, vector<68x64xf32>
    %cst_3 = arith.constant dense<0.000000e+00> : vector<16x64xf32>
    %36 = tpu.matmul %34, %35, %cst_3 {dimension_numbers = #tpu.dot_dimension_numbers<[1], [0], [0], [1], [0, 0, 1, 1], [], []>} : vector<16x68xf32>, vector<68x64xf32>, vector<16x64xf32> -> vector<16x64xf32>
    %c0_4 = arith.constant 0 : index
    %c0_5 = arith.constant 0 : index
    %37 = vector.load %arg5[%c0_4, %c0_5] : memref<64x32xf32, #tpu.memory_space<vmem>>, vector<64x32xf32>
    %cst_6 = arith.constant dense<0.000000e+00> : vector<16x32xf32>
    %38 = tpu.matmul %36, %37, %cst_6 {dimension_numbers = #tpu.dot_dimension_numbers<[1], [0], [0], [1], [0, 0, 1, 1], [], []>} : vector<16x64xf32>, vector<64x32xf32>, vector<16x32xf32> -> vector<16x32xf32>
    %c0_7 = arith.constant 0 : index
    %c0_8 = arith.constant 0 : index
    %39 = vector.load %arg6[%c0_7, %c0_8] : memref<1x32xf32, #tpu.memory_space<vmem>>, vector<1x32xf32>
    %40 = vector.broadcast %39 : vector<1x32xf32> to vector<16x32xf32>
    %41 = arith.addf %38, %40 : vector<16x32xf32>
    %c0_9 = arith.constant 0 : index
    %c0_10 = arith.constant 0 : index
    %42 = vector.load %arg3[%c0_9, %c0_10] : memref<16x32xf32, #tpu.memory_space<vmem>>, vector<16x32xf32>
    %43 = arith.addf %41, %42 : vector<16x32xf32>
    %c0_11 = arith.constant 0 : index
    %c0_12 = arith.constant 0 : index
    %44 = vector.load %arg7[%c0_11, %c0_12] : memref<1x32xf32, #tpu.memory_space<vmem>>, vector<1x32xf32>
    %c0_13 = arith.constant 0 : index
    %c0_14 = arith.constant 0 : index
    %45 = vector.load %arg8[%c0_13, %c0_14] : memref<1x32xf32, #tpu.memory_space<vmem>>, vector<1x32xf32>
    %cst_15 = arith.constant dense<0.000000e+00> : vector<16xf32>
    %46 = vector.multi_reduction <add>, %43, %cst_15 [1] : vector<16x32xf32> to vector<16xf32>
    %47 = vector.shape_cast %46 : vector<16xf32> to vector<16x1xf32>
    %cst_16 = arith.constant 3.200000e+01 : f32
    %48 = vector.broadcast %cst_16 : f32 to vector<16x1xf32>
    %49 = arith.divf %47, %48 : vector<16x1xf32>
    %50 = vector.broadcast %49 : vector<16x1xf32> to vector<16x32xf32>
    %51 = arith.subf %43, %50 : vector<16x32xf32>
    %52 = arith.mulf %51, %51 : vector<16x32xf32>
    %cst_17 = arith.constant dense<0.000000e+00> : vector<16xf32>
    %53 = vector.multi_reduction <add>, %52, %cst_17 [1] : vector<16x32xf32> to vector<16xf32>
    %54 = vector.shape_cast %53 : vector<16xf32> to vector<16x1xf32>
    %cst_18 = arith.constant 3.200000e+01 : f32
    %55 = vector.broadcast %cst_18 : f32 to vector<16x1xf32>
    %56 = arith.divf %54, %55 : vector<16x1xf32>
    %57 = vector.broadcast %49 : vector<16x1xf32> to vector<16x32xf32>
    %58 = arith.subf %43, %57 : vector<16x32xf32>
    %cst_19 = arith.constant 9.99999996E-13 : f32
    %59 = vector.broadcast %cst_19 : f32 to vector<16x1xf32>
    %60 = arith.addf %56, %59 : vector<16x1xf32>
    %61 = math.rsqrt %60 : vector<16x1xf32>
    %62 = vector.broadcast %61 : vector<16x1xf32> to vector<16x32xf32>
    %63 = arith.mulf %58, %62 : vector<16x32xf32>
    %64 = vector.broadcast %44 : vector<1x32xf32> to vector<16x32xf32>
    %65 = arith.mulf %63, %64 : vector<16x32xf32>
    %66 = vector.broadcast %45 : vector<1x32xf32> to vector<16x32xf32>
    %67 = arith.addf %65, %66 : vector<16x32xf32>
    %c0_20 = arith.constant 0 : index
    %c0_21 = arith.constant 0 : index
    %68 = vector.load %arg2[%c0_20, %c0_21] : memref<2x8xf32, #tpu.memory_space<vmem>>, vector<2x8xf32>
    %69 = vector.extract_strided_slice %68 {offsets = [0, 0], sizes = [1, 8], strides = [1, 1]} : vector<2x8xf32> to vector<1x8xf32>
    %cst_22 = arith.constant 5.000000e-01 : f32
    %70 = vector.broadcast %cst_22 : f32 to vector<1x8xf32>
    %71 = arith.cmpf ogt, %69, %70 : vector<1x8xf32>
    %cst_23 = arith.constant 0.000000e+00 : f32
    %cst_24 = arith.constant -1.000000e+04 : f32
    %72 = vector.broadcast %cst_23 : f32 to vector<1x8xf32>
    %73 = vector.broadcast %cst_24 : f32 to vector<1x8xf32>
    %74 = arith.select %71, %72, %73 : vector<1x8xi1>, vector<1x8xf32>
    %75 = vector.extract_strided_slice %68 {offsets = [1, 0], sizes = [1, 8], strides = [1, 1]} : vector<2x8xf32> to vector<1x8xf32>
    %cst_25 = arith.constant 5.000000e-01 : f32
    %76 = vector.broadcast %cst_25 : f32 to vector<1x8xf32>
    %77 = arith.cmpf ogt, %75, %76 : vector<1x8xf32>
    %cst_26 = arith.constant 0.000000e+00 : f32
    %cst_27 = arith.constant -1.000000e+04 : f32
    %78 = vector.broadcast %cst_26 : f32 to vector<1x8xf32>
    %79 = vector.broadcast %cst_27 : f32 to vector<1x8xf32>
    %80 = arith.select %77, %78, %79 : vector<1x8xi1>, vector<1x8xf32>
    %c0_28 = arith.constant 0 : index
    %c0_29 = arith.constant 0 : index
    %c0_30 = arith.constant 0 : index
    %81 = vector.load %arg9[%c0_28, %c0_29, %c0_30] : memref<2x32x96xf32, #tpu.memory_space<vmem>>, vector<1x32x96xf32>
    %82 = vector.shape_cast %81 : vector<1x32x96xf32> to vector<32x96xf32>
    %c0_31 = arith.constant 0 : index
    %c0_32 = arith.constant 0 : index
    %c0_33 = arith.constant 0 : index
    %83 = vector.load %arg11[%c0_31, %c0_32, %c0_33] : memref<2x32x32xf32, #tpu.memory_space<vmem>>, vector<1x32x32xf32>
    %84 = vector.shape_cast %83 : vector<1x32x32xf32> to vector<32x32xf32>
    %cst_34 = arith.constant dense<0.000000e+00> : vector<16x96xf32>
    %85 = tpu.matmul %67, %82, %cst_34 {dimension_numbers = #tpu.dot_dimension_numbers<[1], [0], [0], [1], [0, 0, 1, 1], [], []>} : vector<16x32xf32>, vector<32x96xf32>, vector<16x96xf32> -> vector<16x96xf32>
    %c0_35 = arith.constant 0 : index
    %c0_36 = arith.constant 0 : index
    %c0_37 = arith.constant 0 : index
    %86 = vector.load %arg10[%c0_35, %c0_36, %c0_37] : memref<2x1x96xf32, #tpu.memory_space<vmem>>, vector<1x1x96xf32>
    %87 = vector.shape_cast %86 : vector<1x1x96xf32> to vector<1x96xf32>
    %88 = vector.broadcast %87 : vector<1x96xf32> to vector<16x96xf32>
    %89 = arith.addf %85, %88 : vector<16x96xf32>
    %90 = vector.extract_strided_slice %89 {offsets = [0, 0], sizes = [8, 32], strides = [1, 1]} : vector<16x96xf32> to vector<8x32xf32>
    %91 = vector.extract_strided_slice %89 {offsets = [0, 32], sizes = [8, 32], strides = [1, 1]} : vector<16x96xf32> to vector<8x32xf32>
    %92 = vector.extract_strided_slice %89 {offsets = [0, 64], sizes = [8, 32], strides = [1, 1]} : vector<16x96xf32> to vector<8x32xf32>
    %cst_38 = arith.constant 0.000000e+00 : f32
    %93 = vector.broadcast %cst_38 : f32 to vector<8x32xf32>
    %94 = vector.extract_strided_slice %90 {offsets = [0, 0], sizes = [8, 8], strides = [1, 1]} : vector<8x32xf32> to vector<8x8xf32>
    %95 = vector.extract_strided_slice %91 {offsets = [0, 0], sizes = [8, 8], strides = [1, 1]} : vector<8x32xf32> to vector<8x8xf32>
    %cst_39 = arith.constant dense<0.000000e+00> : vector<8x8xf32>
    %96 = tpu.matmul %94, %95, %cst_39 {dimension_numbers = #tpu.dot_dimension_numbers<[1], [1], [0], [0], [0, 0, 1, 0], [], []>} : vector<8x8xf32>, vector<8x8xf32>, vector<8x8xf32> -> vector<8x8xf32>
    %cst_40 = arith.constant 0.353553385 : f32
    %97 = vector.broadcast %cst_40 : f32 to vector<8x8xf32>
    %98 = arith.mulf %96, %97 : vector<8x8xf32>
    %99 = vector.broadcast %74 : vector<1x8xf32> to vector<8x8xf32>
    %100 = arith.addf %98, %99 : vector<8x8xf32>
    %cst_41 = arith.constant dense<0xFF800000> : vector<8xf32>
    %101 = vector.multi_reduction <maximumf>, %100, %cst_41 [1] : vector<8x8xf32> to vector<8xf32>
    %102 = vector.shape_cast %101 : vector<8xf32> to vector<8x1xf32>
    %103 = vector.broadcast %102 : vector<8x1xf32> to vector<8x8xf32>
    %104 = arith.subf %100, %103 : vector<8x8xf32>
    %105 = math.exp %104 : vector<8x8xf32>
    %cst_42 = arith.constant dense<0.000000e+00> : vector<8xf32>
    %106 = vector.multi_reduction <add>, %105, %cst_42 [1] : vector<8x8xf32> to vector<8xf32>
    %107 = vector.shape_cast %106 : vector<8xf32> to vector<8x1xf32>
    %108 = tpu.reciprocal %107 {approx = true} : vector<8x1xf32> -> vector<8x1xf32>
    %109 = vector.broadcast %108 : vector<8x1xf32> to vector<8x8xf32>
    %110 = arith.mulf %105, %109 : vector<8x8xf32>
    %111 = vector.extract_strided_slice %92 {offsets = [0, 0], sizes = [8, 8], strides = [1, 1]} : vector<8x32xf32> to vector<8x8xf32>
    %cst_43 = arith.constant dense<0.000000e+00> : vector<8x8xf32>
    %112 = tpu.matmul %110, %111, %cst_43 {dimension_numbers = #tpu.dot_dimension_numbers<[1], [0], [0], [1], [0, 0, 1, 1], [], []>} : vector<8x8xf32>, vector<8x8xf32>, vector<8x8xf32> -> vector<8x8xf32>
    %113 = vector.extract_strided_slice %84 {offsets = [0, 0], sizes = [8, 32], strides = [1, 1]} : vector<32x32xf32> to vector<8x32xf32>
    %cst_44 = arith.constant dense<0.000000e+00> : vector<8x32xf32>
    %114 = tpu.matmul %112, %113, %cst_44 {dimension_numbers = #tpu.dot_dimension_numbers<[1], [0], [0], [1], [0, 0, 1, 1], [], []>} : vector<8x8xf32>, vector<8x32xf32>, vector<8x32xf32> -> vector<8x32xf32>
    %115 = arith.addf %93, %114 : vector<8x32xf32>
    %116 = vector.extract_strided_slice %90 {offsets = [0, 8], sizes = [8, 8], strides = [1, 1]} : vector<8x32xf32> to vector<8x8xf32>
    %117 = vector.extract_strided_slice %91 {offsets = [0, 8], sizes = [8, 8], strides = [1, 1]} : vector<8x32xf32> to vector<8x8xf32>
    %cst_45 = arith.constant dense<0.000000e+00> : vector<8x8xf32>
    %118 = tpu.matmul %116, %117, %cst_45 {dimension_numbers = #tpu.dot_dimension_numbers<[1], [1], [0], [0], [0, 0, 1, 0], [], []>} : vector<8x8xf32>, vector<8x8xf32>, vector<8x8xf32> -> vector<8x8xf32>
    %cst_46 = arith.constant 0.353553385 : f32
    %119 = vector.broadcast %cst_46 : f32 to vector<8x8xf32>
    %120 = arith.mulf %118, %119 : vector<8x8xf32>
    %121 = vector.broadcast %74 : vector<1x8xf32> to vector<8x8xf32>
    %122 = arith.addf %120, %121 : vector<8x8xf32>
    %cst_47 = arith.constant dense<0xFF800000> : vector<8xf32>
    %123 = vector.multi_reduction <maximumf>, %122, %cst_47 [1] : vector<8x8xf32> to vector<8xf32>
    %124 = vector.shape_cast %123 : vector<8xf32> to vector<8x1xf32>
    %125 = vector.broadcast %124 : vector<8x1xf32> to vector<8x8xf32>
    %126 = arith.subf %122, %125 : vector<8x8xf32>
    %127 = math.exp %126 : vector<8x8xf32>
    %cst_48 = arith.constant dense<0.000000e+00> : vector<8xf32>
    %128 = vector.multi_reduction <add>, %127, %cst_48 [1] : vector<8x8xf32> to vector<8xf32>
    %129 = vector.shape_cast %128 : vector<8xf32> to vector<8x1xf32>
    %130 = tpu.reciprocal %129 {approx = true} : vector<8x1xf32> -> vector<8x1xf32>
    %131 = vector.broadcast %130 : vector<8x1xf32> to vector<8x8xf32>
    %132 = arith.mulf %127, %131 : vector<8x8xf32>
    %133 = vector.extract_strided_slice %92 {offsets = [0, 8], sizes = [8, 8], strides = [1, 1]} : vector<8x32xf32> to vector<8x8xf32>
    %cst_49 = arith.constant dense<0.000000e+00> : vector<8x8xf32>
    %134 = tpu.matmul %132, %133, %cst_49 {dimension_numbers = #tpu.dot_dimension_numbers<[1], [0], [0], [1], [0, 0, 1, 1], [], []>} : vector<8x8xf32>, vector<8x8xf32>, vector<8x8xf32> -> vector<8x8xf32>
    %135 = vector.extract_strided_slice %84 {offsets = [8, 0], sizes = [8, 32], strides = [1, 1]} : vector<32x32xf32> to vector<8x32xf32>
    %cst_50 = arith.constant dense<0.000000e+00> : vector<8x32xf32>
    %136 = tpu.matmul %134, %135, %cst_50 {dimension_numbers = #tpu.dot_dimension_numbers<[1], [0], [0], [1], [0, 0, 1, 1], [], []>} : vector<8x8xf32>, vector<8x32xf32>, vector<8x32xf32> -> vector<8x32xf32>
    %137 = arith.addf %115, %136 : vector<8x32xf32>
    %138 = vector.extract_strided_slice %90 {offsets = [0, 16], sizes = [8, 8], strides = [1, 1]} : vector<8x32xf32> to vector<8x8xf32>
    %139 = vector.extract_strided_slice %91 {offsets = [0, 16], sizes = [8, 8], strides = [1, 1]} : vector<8x32xf32> to vector<8x8xf32>
    %cst_51 = arith.constant dense<0.000000e+00> : vector<8x8xf32>
    %140 = tpu.matmul %138, %139, %cst_51 {dimension_numbers = #tpu.dot_dimension_numbers<[1], [1], [0], [0], [0, 0, 1, 0], [], []>} : vector<8x8xf32>, vector<8x8xf32>, vector<8x8xf32> -> vector<8x8xf32>
    %cst_52 = arith.constant 0.353553385 : f32
    %141 = vector.broadcast %cst_52 : f32 to vector<8x8xf32>
    %142 = arith.mulf %140, %141 : vector<8x8xf32>
    %143 = vector.broadcast %74 : vector<1x8xf32> to vector<8x8xf32>
    %144 = arith.addf %142, %143 : vector<8x8xf32>
    %cst_53 = arith.constant dense<0xFF800000> : vector<8xf32>
    %145 = vector.multi_reduction <maximumf>, %144, %cst_53 [1] : vector<8x8xf32> to vector<8xf32>
    %146 = vector.shape_cast %145 : vector<8xf32> to vector<8x1xf32>
    %147 = vector.broadcast %146 : vector<8x1xf32> to vector<8x8xf32>
    %148 = arith.subf %144, %147 : vector<8x8xf32>
    %149 = math.exp %148 : vector<8x8xf32>
    %cst_54 = arith.constant dense<0.000000e+00> : vector<8xf32>
    %150 = vector.multi_reduction <add>, %149, %cst_54 [1] : vector<8x8xf32> to vector<8xf32>
    %151 = vector.shape_cast %150 : vector<8xf32> to vector<8x1xf32>
    %152 = tpu.reciprocal %151 {approx = true} : vector<8x1xf32> -> vector<8x1xf32>
    %153 = vector.broadcast %152 : vector<8x1xf32> to vector<8x8xf32>
    %154 = arith.mulf %149, %153 : vector<8x8xf32>
    %155 = vector.extract_strided_slice %92 {offsets = [0, 16], sizes = [8, 8], strides = [1, 1]} : vector<8x32xf32> to vector<8x8xf32>
    %cst_55 = arith.constant dense<0.000000e+00> : vector<8x8xf32>
    %156 = tpu.matmul %154, %155, %cst_55 {dimension_numbers = #tpu.dot_dimension_numbers<[1], [0], [0], [1], [0, 0, 1, 1], [], []>} : vector<8x8xf32>, vector<8x8xf32>, vector<8x8xf32> -> vector<8x8xf32>
    %157 = vector.extract_strided_slice %84 {offsets = [16, 0], sizes = [8, 32], strides = [1, 1]} : vector<32x32xf32> to vector<8x32xf32>
    %cst_56 = arith.constant dense<0.000000e+00> : vector<8x32xf32>
    %158 = tpu.matmul %156, %157, %cst_56 {dimension_numbers = #tpu.dot_dimension_numbers<[1], [0], [0], [1], [0, 0, 1, 1], [], []>} : vector<8x8xf32>, vector<8x32xf32>, vector<8x32xf32> -> vector<8x32xf32>
    %159 = arith.addf %137, %158 : vector<8x32xf32>
    %160 = vector.extract_strided_slice %90 {offsets = [0, 24], sizes = [8, 8], strides = [1, 1]} : vector<8x32xf32> to vector<8x8xf32>
    %161 = vector.extract_strided_slice %91 {offsets = [0, 24], sizes = [8, 8], strides = [1, 1]} : vector<8x32xf32> to vector<8x8xf32>
    %cst_57 = arith.constant dense<0.000000e+00> : vector<8x8xf32>
    %162 = tpu.matmul %160, %161, %cst_57 {dimension_numbers = #tpu.dot_dimension_numbers<[1], [1], [0], [0], [0, 0, 1, 0], [], []>} : vector<8x8xf32>, vector<8x8xf32>, vector<8x8xf32> -> vector<8x8xf32>
    %cst_58 = arith.constant 0.353553385 : f32
    %163 = vector.broadcast %cst_58 : f32 to vector<8x8xf32>
    %164 = arith.mulf %162, %163 : vector<8x8xf32>
    %165 = vector.broadcast %74 : vector<1x8xf32> to vector<8x8xf32>
    %166 = arith.addf %164, %165 : vector<8x8xf32>
    %cst_59 = arith.constant dense<0xFF800000> : vector<8xf32>
    %167 = vector.multi_reduction <maximumf>, %166, %cst_59 [1] : vector<8x8xf32> to vector<8xf32>
    %168 = vector.shape_cast %167 : vector<8xf32> to vector<8x1xf32>
    %169 = vector.broadcast %168 : vector<8x1xf32> to vector<8x8xf32>
    %170 = arith.subf %166, %169 : vector<8x8xf32>
    %171 = math.exp %170 : vector<8x8xf32>
    %cst_60 = arith.constant dense<0.000000e+00> : vector<8xf32>
    %172 = vector.multi_reduction <add>, %171, %cst_60 [1] : vector<8x8xf32> to vector<8xf32>
    %173 = vector.shape_cast %172 : vector<8xf32> to vector<8x1xf32>
    %174 = tpu.reciprocal %173 {approx = true} : vector<8x1xf32> -> vector<8x1xf32>
    %175 = vector.broadcast %174 : vector<8x1xf32> to vector<8x8xf32>
    %176 = arith.mulf %171, %175 : vector<8x8xf32>
    %177 = vector.extract_strided_slice %92 {offsets = [0, 24], sizes = [8, 8], strides = [1, 1]} : vector<8x32xf32> to vector<8x8xf32>
    %cst_61 = arith.constant dense<0.000000e+00> : vector<8x8xf32>
    %178 = tpu.matmul %176, %177, %cst_61 {dimension_numbers = #tpu.dot_dimension_numbers<[1], [0], [0], [1], [0, 0, 1, 1], [], []>} : vector<8x8xf32>, vector<8x8xf32>, vector<8x8xf32> -> vector<8x8xf32>
    %179 = vector.extract_strided_slice %84 {offsets = [24, 0], sizes = [8, 32], strides = [1, 1]} : vector<32x32xf32> to vector<8x32xf32>
    %cst_62 = arith.constant dense<0.000000e+00> : vector<8x32xf32>
    %180 = tpu.matmul %178, %179, %cst_62 {dimension_numbers = #tpu.dot_dimension_numbers<[1], [0], [0], [1], [0, 0, 1, 1], [], []>} : vector<8x8xf32>, vector<8x32xf32>, vector<8x32xf32> -> vector<8x32xf32>
    %181 = arith.addf %159, %180 : vector<8x32xf32>
    %182 = vector.extract_strided_slice %89 {offsets = [8, 0], sizes = [8, 32], strides = [1, 1]} : vector<16x96xf32> to vector<8x32xf32>
    %183 = vector.extract_strided_slice %89 {offsets = [8, 32], sizes = [8, 32], strides = [1, 1]} : vector<16x96xf32> to vector<8x32xf32>
    %184 = vector.extract_strided_slice %89 {offsets = [8, 64], sizes = [8, 32], strides = [1, 1]} : vector<16x96xf32> to vector<8x32xf32>
    %cst_63 = arith.constant 0.000000e+00 : f32
    %185 = vector.broadcast %cst_63 : f32 to vector<8x32xf32>
    %186 = vector.extract_strided_slice %182 {offsets = [0, 0], sizes = [8, 8], strides = [1, 1]} : vector<8x32xf32> to vector<8x8xf32>
    %187 = vector.extract_strided_slice %183 {offsets = [0, 0], sizes = [8, 8], strides = [1, 1]} : vector<8x32xf32> to vector<8x8xf32>
    %cst_64 = arith.constant dense<0.000000e+00> : vector<8x8xf32>
    %188 = tpu.matmul %186, %187, %cst_64 {dimension_numbers = #tpu.dot_dimension_numbers<[1], [1], [0], [0], [0, 0, 1, 0], [], []>} : vector<8x8xf32>, vector<8x8xf32>, vector<8x8xf32> -> vector<8x8xf32>
    %cst_65 = arith.constant 0.353553385 : f32
    %189 = vector.broadcast %cst_65 : f32 to vector<8x8xf32>
    %190 = arith.mulf %188, %189 : vector<8x8xf32>
    %191 = vector.broadcast %80 : vector<1x8xf32> to vector<8x8xf32>
    %192 = arith.addf %190, %191 : vector<8x8xf32>
    %cst_66 = arith.constant dense<0xFF800000> : vector<8xf32>
    %193 = vector.multi_reduction <maximumf>, %192, %cst_66 [1] : vector<8x8xf32> to vector<8xf32>
    %194 = vector.shape_cast %193 : vector<8xf32> to vector<8x1xf32>
    %195 = vector.broadcast %194 : vector<8x1xf32> to vector<8x8xf32>
    %196 = arith.subf %192, %195 : vector<8x8xf32>
    %197 = math.exp %196 : vector<8x8xf32>
    %cst_67 = arith.constant dense<0.000000e+00> : vector<8xf32>
    %198 = vector.multi_reduction <add>, %197, %cst_67 [1] : vector<8x8xf32> to vector<8xf32>
    %199 = vector.shape_cast %198 : vector<8xf32> to vector<8x1xf32>
    %200 = tpu.reciprocal %199 {approx = true} : vector<8x1xf32> -> vector<8x1xf32>
    %201 = vector.broadcast %200 : vector<8x1xf32> to vector<8x8xf32>
    %202 = arith.mulf %197, %201 : vector<8x8xf32>
    %203 = vector.extract_strided_slice %184 {offsets = [0, 0], sizes = [8, 8], strides = [1, 1]} : vector<8x32xf32> to vector<8x8xf32>
    %cst_68 = arith.constant dense<0.000000e+00> : vector<8x8xf32>
    %204 = tpu.matmul %202, %203, %cst_68 {dimension_numbers = #tpu.dot_dimension_numbers<[1], [0], [0], [1], [0, 0, 1, 1], [], []>} : vector<8x8xf32>, vector<8x8xf32>, vector<8x8xf32> -> vector<8x8xf32>
    %205 = vector.extract_strided_slice %84 {offsets = [0, 0], sizes = [8, 32], strides = [1, 1]} : vector<32x32xf32> to vector<8x32xf32>
    %cst_69 = arith.constant dense<0.000000e+00> : vector<8x32xf32>
    %206 = tpu.matmul %204, %205, %cst_69 {dimension_numbers = #tpu.dot_dimension_numbers<[1], [0], [0], [1], [0, 0, 1, 1], [], []>} : vector<8x8xf32>, vector<8x32xf32>, vector<8x32xf32> -> vector<8x32xf32>
    %207 = arith.addf %185, %206 : vector<8x32xf32>
    %208 = vector.extract_strided_slice %182 {offsets = [0, 8], sizes = [8, 8], strides = [1, 1]} : vector<8x32xf32> to vector<8x8xf32>
    %209 = vector.extract_strided_slice %183 {offsets = [0, 8], sizes = [8, 8], strides = [1, 1]} : vector<8x32xf32> to vector<8x8xf32>
    %cst_70 = arith.constant dense<0.000000e+00> : vector<8x8xf32>
    %210 = tpu.matmul %208, %209, %cst_70 {dimension_numbers = #tpu.dot_dimension_numbers<[1], [1], [0], [0], [0, 0, 1, 0], [], []>} : vector<8x8xf32>, vector<8x8xf32>, vector<8x8xf32> -> vector<8x8xf32>
    %cst_71 = arith.constant 0.353553385 : f32
    %211 = vector.broadcast %cst_71 : f32 to vector<8x8xf32>
    %212 = arith.mulf %210, %211 : vector<8x8xf32>
    %213 = vector.broadcast %80 : vector<1x8xf32> to vector<8x8xf32>
    %214 = arith.addf %212, %213 : vector<8x8xf32>
    %cst_72 = arith.constant dense<0xFF800000> : vector<8xf32>
    %215 = vector.multi_reduction <maximumf>, %214, %cst_72 [1] : vector<8x8xf32> to vector<8xf32>
    %216 = vector.shape_cast %215 : vector<8xf32> to vector<8x1xf32>
    %217 = vector.broadcast %216 : vector<8x1xf32> to vector<8x8xf32>
    %218 = arith.subf %214, %217 : vector<8x8xf32>
    %219 = math.exp %218 : vector<8x8xf32>
    %cst_73 = arith.constant dense<0.000000e+00> : vector<8xf32>
    %220 = vector.multi_reduction <add>, %219, %cst_73 [1] : vector<8x8xf32> to vector<8xf32>
    %221 = vector.shape_cast %220 : vector<8xf32> to vector<8x1xf32>
    %222 = tpu.reciprocal %221 {approx = true} : vector<8x1xf32> -> vector<8x1xf32>
    %223 = vector.broadcast %222 : vector<8x1xf32> to vector<8x8xf32>
    %224 = arith.mulf %219, %223 : vector<8x8xf32>
    %225 = vector.extract_strided_slice %184 {offsets = [0, 8], sizes = [8, 8], strides = [1, 1]} : vector<8x32xf32> to vector<8x8xf32>
    %cst_74 = arith.constant dense<0.000000e+00> : vector<8x8xf32>
    %226 = tpu.matmul %224, %225, %cst_74 {dimension_numbers = #tpu.dot_dimension_numbers<[1], [0], [0], [1], [0, 0, 1, 1], [], []>} : vector<8x8xf32>, vector<8x8xf32>, vector<8x8xf32> -> vector<8x8xf32>
    %227 = vector.extract_strided_slice %84 {offsets = [8, 0], sizes = [8, 32], strides = [1, 1]} : vector<32x32xf32> to vector<8x32xf32>
    %cst_75 = arith.constant dense<0.000000e+00> : vector<8x32xf32>
    %228 = tpu.matmul %226, %227, %cst_75 {dimension_numbers = #tpu.dot_dimension_numbers<[1], [0], [0], [1], [0, 0, 1, 1], [], []>} : vector<8x8xf32>, vector<8x32xf32>, vector<8x32xf32> -> vector<8x32xf32>
    %229 = arith.addf %207, %228 : vector<8x32xf32>
    %230 = vector.extract_strided_slice %182 {offsets = [0, 16], sizes = [8, 8], strides = [1, 1]} : vector<8x32xf32> to vector<8x8xf32>
    %231 = vector.extract_strided_slice %183 {offsets = [0, 16], sizes = [8, 8], strides = [1, 1]} : vector<8x32xf32> to vector<8x8xf32>
    %cst_76 = arith.constant dense<0.000000e+00> : vector<8x8xf32>
    %232 = tpu.matmul %230, %231, %cst_76 {dimension_numbers = #tpu.dot_dimension_numbers<[1], [1], [0], [0], [0, 0, 1, 0], [], []>} : vector<8x8xf32>, vector<8x8xf32>, vector<8x8xf32> -> vector<8x8xf32>
    %cst_77 = arith.constant 0.353553385 : f32
    %233 = vector.broadcast %cst_77 : f32 to vector<8x8xf32>
    %234 = arith.mulf %232, %233 : vector<8x8xf32>
    %235 = vector.broadcast %80 : vector<1x8xf32> to vector<8x8xf32>
    %236 = arith.addf %234, %235 : vector<8x8xf32>
    %cst_78 = arith.constant dense<0xFF800000> : vector<8xf32>
    %237 = vector.multi_reduction <maximumf>, %236, %cst_78 [1] : vector<8x8xf32> to vector<8xf32>
    %238 = vector.shape_cast %237 : vector<8xf32> to vector<8x1xf32>
    %239 = vector.broadcast %238 : vector<8x1xf32> to vector<8x8xf32>
    %240 = arith.subf %236, %239 : vector<8x8xf32>
    %241 = math.exp %240 : vector<8x8xf32>
    %cst_79 = arith.constant dense<0.000000e+00> : vector<8xf32>
    %242 = vector.multi_reduction <add>, %241, %cst_79 [1] : vector<8x8xf32> to vector<8xf32>
    %243 = vector.shape_cast %242 : vector<8xf32> to vector<8x1xf32>
    %244 = tpu.reciprocal %243 {approx = true} : vector<8x1xf32> -> vector<8x1xf32>
    %245 = vector.broadcast %244 : vector<8x1xf32> to vector<8x8xf32>
    %246 = arith.mulf %241, %245 : vector<8x8xf32>
    %247 = vector.extract_strided_slice %184 {offsets = [0, 16], sizes = [8, 8], strides = [1, 1]} : vector<8x32xf32> to vector<8x8xf32>
    %cst_80 = arith.constant dense<0.000000e+00> : vector<8x8xf32>
    %248 = tpu.matmul %246, %247, %cst_80 {dimension_numbers = #tpu.dot_dimension_numbers<[1], [0], [0], [1], [0, 0, 1, 1], [], []>} : vector<8x8xf32>, vector<8x8xf32>, vector<8x8xf32> -> vector<8x8xf32>
    %249 = vector.extract_strided_slice %84 {offsets = [16, 0], sizes = [8, 32], strides = [1, 1]} : vector<32x32xf32> to vector<8x32xf32>
    %cst_81 = arith.constant dense<0.000000e+00> : vector<8x32xf32>
    %250 = tpu.matmul %248, %249, %cst_81 {dimension_numbers = #tpu.dot_dimension_numbers<[1], [0], [0], [1], [0, 0, 1, 1], [], []>} : vector<8x8xf32>, vector<8x32xf32>, vector<8x32xf32> -> vector<8x32xf32>
    %251 = arith.addf %229, %250 : vector<8x32xf32>
    %252 = vector.extract_strided_slice %182 {offsets = [0, 24], sizes = [8, 8], strides = [1, 1]} : vector<8x32xf32> to vector<8x8xf32>
    %253 = vector.extract_strided_slice %183 {offsets = [0, 24], sizes = [8, 8], strides = [1, 1]} : vector<8x32xf32> to vector<8x8xf32>
    %cst_82 = arith.constant dense<0.000000e+00> : vector<8x8xf32>
    %254 = tpu.matmul %252, %253, %cst_82 {dimension_numbers = #tpu.dot_dimension_numbers<[1], [1], [0], [0], [0, 0, 1, 0], [], []>} : vector<8x8xf32>, vector<8x8xf32>, vector<8x8xf32> -> vector<8x8xf32>
    %cst_83 = arith.constant 0.353553385 : f32
    %255 = vector.broadcast %cst_83 : f32 to vector<8x8xf32>
    %256 = arith.mulf %254, %255 : vector<8x8xf32>
    %257 = vector.broadcast %80 : vector<1x8xf32> to vector<8x8xf32>
    %258 = arith.addf %256, %257 : vector<8x8xf32>
    %cst_84 = arith.constant dense<0xFF800000> : vector<8xf32>
    %259 = vector.multi_reduction <maximumf>, %258, %cst_84 [1] : vector<8x8xf32> to vector<8xf32>
    %260 = vector.shape_cast %259 : vector<8xf32> to vector<8x1xf32>
    %261 = vector.broadcast %260 : vector<8x1xf32> to vector<8x8xf32>
    %262 = arith.subf %258, %261 : vector<8x8xf32>
    %263 = math.exp %262 : vector<8x8xf32>
    %cst_85 = arith.constant dense<0.000000e+00> : vector<8xf32>
    %264 = vector.multi_reduction <add>, %263, %cst_85 [1] : vector<8x8xf32> to vector<8xf32>
    %265 = vector.shape_cast %264 : vector<8xf32> to vector<8x1xf32>
    %266 = tpu.reciprocal %265 {approx = true} : vector<8x1xf32> -> vector<8x1xf32>
    %267 = vector.broadcast %266 : vector<8x1xf32> to vector<8x8xf32>
    %268 = arith.mulf %263, %267 : vector<8x8xf32>
    %269 = vector.extract_strided_slice %184 {offsets = [0, 24], sizes = [8, 8], strides = [1, 1]} : vector<8x32xf32> to vector<8x8xf32>
    %cst_86 = arith.constant dense<0.000000e+00> : vector<8x8xf32>
    %270 = tpu.matmul %268, %269, %cst_86 {dimension_numbers = #tpu.dot_dimension_numbers<[1], [0], [0], [1], [0, 0, 1, 1], [], []>} : vector<8x8xf32>, vector<8x8xf32>, vector<8x8xf32> -> vector<8x8xf32>
    %271 = vector.extract_strided_slice %84 {offsets = [24, 0], sizes = [8, 32], strides = [1, 1]} : vector<32x32xf32> to vector<8x32xf32>
    %cst_87 = arith.constant dense<0.000000e+00> : vector<8x32xf32>
    %272 = tpu.matmul %270, %271, %cst_87 {dimension_numbers = #tpu.dot_dimension_numbers<[1], [0], [0], [1], [0, 0, 1, 1], [], []>} : vector<8x8xf32>, vector<8x32xf32>, vector<8x32xf32> -> vector<8x32xf32>
    %273 = arith.addf %251, %272 : vector<8x32xf32>
    %274 = tpu.concatenate %181, %273 in 0 : vector<8x32xf32>, vector<8x32xf32> -> vector<16x32xf32>
    %c0_88 = arith.constant 0 : index
    %c0_89 = arith.constant 0 : index
    %c0_90 = arith.constant 0 : index
    %275 = vector.load %arg12[%c0_88, %c0_89, %c0_90] : memref<2x1x32xf32, #tpu.memory_space<vmem>>, vector<1x1x32xf32>
    %276 = vector.shape_cast %275 : vector<1x1x32xf32> to vector<1x32xf32>
    %277 = vector.broadcast %276 : vector<1x32xf32> to vector<16x32xf32>
    %278 = arith.addf %274, %277 : vector<16x32xf32>
    %279 = arith.addf %67, %278 : vector<16x32xf32>
    %c0_91 = arith.constant 0 : index
    %c0_92 = arith.constant 0 : index
    %c0_93 = arith.constant 0 : index
    %280 = vector.load %arg13[%c0_91, %c0_92, %c0_93] : memref<2x1x32xf32, #tpu.memory_space<vmem>>, vector<1x1x32xf32>
    %281 = vector.shape_cast %280 : vector<1x1x32xf32> to vector<1x32xf32>
    %c0_94 = arith.constant 0 : index
    %c0_95 = arith.constant 0 : index
    %c0_96 = arith.constant 0 : index
    %282 = vector.load %arg14[%c0_94, %c0_95, %c0_96] : memref<2x1x32xf32, #tpu.memory_space<vmem>>, vector<1x1x32xf32>
    %283 = vector.shape_cast %282 : vector<1x1x32xf32> to vector<1x32xf32>
    %cst_97 = arith.constant dense<0.000000e+00> : vector<16xf32>
    %284 = vector.multi_reduction <add>, %279, %cst_97 [1] : vector<16x32xf32> to vector<16xf32>
    %285 = vector.shape_cast %284 : vector<16xf32> to vector<16x1xf32>
    %cst_98 = arith.constant 3.200000e+01 : f32
    %286 = vector.broadcast %cst_98 : f32 to vector<16x1xf32>
    %287 = arith.divf %285, %286 : vector<16x1xf32>
    %288 = vector.broadcast %287 : vector<16x1xf32> to vector<16x32xf32>
    %289 = arith.subf %279, %288 : vector<16x32xf32>
    %290 = arith.mulf %289, %289 : vector<16x32xf32>
    %cst_99 = arith.constant dense<0.000000e+00> : vector<16xf32>
    %291 = vector.multi_reduction <add>, %290, %cst_99 [1] : vector<16x32xf32> to vector<16xf32>
    %292 = vector.shape_cast %291 : vector<16xf32> to vector<16x1xf32>
    %cst_100 = arith.constant 3.200000e+01 : f32
    %293 = vector.broadcast %cst_100 : f32 to vector<16x1xf32>
    %294 = arith.divf %292, %293 : vector<16x1xf32>
    %295 = vector.broadcast %287 : vector<16x1xf32> to vector<16x32xf32>
    %296 = arith.subf %279, %295 : vector<16x32xf32>
    %cst_101 = arith.constant 9.99999996E-13 : f32
    %297 = vector.broadcast %cst_101 : f32 to vector<16x1xf32>
    %298 = arith.addf %294, %297 : vector<16x1xf32>
    %299 = math.rsqrt %298 : vector<16x1xf32>
    %300 = vector.broadcast %299 : vector<16x1xf32> to vector<16x32xf32>
    %301 = arith.mulf %296, %300 : vector<16x32xf32>
    %302 = vector.broadcast %281 : vector<1x32xf32> to vector<16x32xf32>
    %303 = arith.mulf %301, %302 : vector<16x32xf32>
    %304 = vector.broadcast %283 : vector<1x32xf32> to vector<16x32xf32>
    %305 = arith.addf %303, %304 : vector<16x32xf32>
    %c0_102 = arith.constant 0 : index
    %c0_103 = arith.constant 0 : index
    %c0_104 = arith.constant 0 : index
    %306 = vector.load %arg15[%c0_102, %c0_103, %c0_104] : memref<2x32x64xf32, #tpu.memory_space<vmem>>, vector<1x32x64xf32>
    %307 = vector.shape_cast %306 : vector<1x32x64xf32> to vector<32x64xf32>
    %cst_105 = arith.constant dense<0.000000e+00> : vector<16x64xf32>
    %308 = tpu.matmul %305, %307, %cst_105 {dimension_numbers = #tpu.dot_dimension_numbers<[1], [0], [0], [1], [0, 0, 1, 1], [], []>} : vector<16x32xf32>, vector<32x64xf32>, vector<16x64xf32> -> vector<16x64xf32>
    %c0_106 = arith.constant 0 : index
    %c0_107 = arith.constant 0 : index
    %c0_108 = arith.constant 0 : index
    %309 = vector.load %arg16[%c0_106, %c0_107, %c0_108] : memref<2x1x64xf32, #tpu.memory_space<vmem>>, vector<1x1x64xf32>
    %310 = vector.shape_cast %309 : vector<1x1x64xf32> to vector<1x64xf32>
    %311 = vector.broadcast %310 : vector<1x64xf32> to vector<16x64xf32>
    %312 = arith.addf %308, %311 : vector<16x64xf32>
    %cst_109 = arith.constant 5.000000e-01 : f32
    %313 = vector.broadcast %cst_109 : f32 to vector<16x64xf32>
    %314 = arith.mulf %313, %312 : vector<16x64xf32>
    %cst_110 = arith.constant 0.707106769 : f32
    %315 = vector.broadcast %cst_110 : f32 to vector<16x64xf32>
    %316 = arith.mulf %312, %315 : vector<16x64xf32>
    %317 = math.absf %316 : vector<16x64xf32>
    %cst_111 = arith.constant 0.327591091 : f32
    %318 = vector.broadcast %cst_111 : f32 to vector<16x64xf32>
    %319 = arith.mulf %318, %317 : vector<16x64xf32>
    %cst_112 = arith.constant 1.000000e+00 : f32
    %320 = vector.broadcast %cst_112 : f32 to vector<16x64xf32>
    %321 = arith.addf %320, %319 : vector<16x64xf32>
    %cst_113 = arith.constant 1.000000e+00 : f32
    %322 = vector.broadcast %cst_113 : f32 to vector<16x64xf32>
    %323 = arith.divf %322, %321 : vector<16x64xf32>
    %cst_114 = arith.constant 1.06140542 : f32
    %324 = vector.broadcast %cst_114 : f32 to vector<16x64xf32>
    %325 = arith.mulf %324, %323 : vector<16x64xf32>
    %cst_115 = arith.constant -1.45315206 : f32
    %326 = vector.broadcast %cst_115 : f32 to vector<16x64xf32>
    %327 = arith.addf %325, %326 : vector<16x64xf32>
    %328 = arith.mulf %327, %323 : vector<16x64xf32>
    %cst_116 = arith.constant 1.42141378 : f32
    %329 = vector.broadcast %cst_116 : f32 to vector<16x64xf32>
    %330 = arith.addf %328, %329 : vector<16x64xf32>
    %331 = arith.mulf %330, %323 : vector<16x64xf32>
    %cst_117 = arith.constant -0.284496725 : f32
    %332 = vector.broadcast %cst_117 : f32 to vector<16x64xf32>
    %333 = arith.addf %331, %332 : vector<16x64xf32>
    %334 = arith.mulf %333, %323 : vector<16x64xf32>
    %cst_118 = arith.constant 0.254829586 : f32
    %335 = vector.broadcast %cst_118 : f32 to vector<16x64xf32>
    %336 = arith.addf %334, %335 : vector<16x64xf32>
    %337 = arith.mulf %336, %323 : vector<16x64xf32>
    %cst_119 = arith.constant 0.000000e+00 : f32
    %338 = vector.broadcast %cst_119 : f32 to vector<16x64xf32>
    %339 = arith.subf %338, %317 : vector<16x64xf32>
    %340 = arith.mulf %339, %317 : vector<16x64xf32>
    %341 = math.exp %340 : vector<16x64xf32>
    %342 = arith.mulf %337, %341 : vector<16x64xf32>
    %cst_120 = arith.constant 1.000000e+00 : f32
    %343 = vector.broadcast %cst_120 : f32 to vector<16x64xf32>
    %344 = arith.subf %343, %342 : vector<16x64xf32>
    %cst_121 = arith.constant 0.000000e+00 : f32
    %345 = vector.broadcast %cst_121 : f32 to vector<16x64xf32>
    %346 = arith.cmpf olt, %316, %345 : vector<16x64xf32>
    %cst_122 = arith.constant 0.000000e+00 : f32
    %347 = vector.broadcast %cst_122 : f32 to vector<16x64xf32>
    %348 = arith.subf %347, %344 : vector<16x64xf32>
    %349 = arith.select %346, %348, %344 : vector<16x64xi1>, vector<16x64xf32>
    %cst_123 = arith.constant 1.000000e+00 : f32
    %350 = vector.broadcast %cst_123 : f32 to vector<16x64xf32>
    %351 = arith.addf %350, %349 : vector<16x64xf32>
    %352 = arith.mulf %314, %351 : vector<16x64xf32>
    %c0_124 = arith.constant 0 : index
    %c0_125 = arith.constant 0 : index
    %c0_126 = arith.constant 0 : index
    %353 = vector.load %arg17[%c0_124, %c0_125, %c0_126] : memref<2x64x32xf32, #tpu.memory_space<vmem>>, vector<1x64x32xf32>
    %354 = vector.shape_cast %353 : vector<1x64x32xf32> to vector<64x32xf32>
    %cst_127 = arith.constant dense<0.000000e+00> : vector<16x32xf32>
    %355 = tpu.matmul %352, %354, %cst_127 {dimension_numbers = #tpu.dot_dimension_numbers<[1], [0], [0], [1], [0, 0, 1, 1], [], []>} : vector<16x64xf32>, vector<64x32xf32>, vector<16x32xf32> -> vector<16x32xf32>
    %c0_128 = arith.constant 0 : index
    %c0_129 = arith.constant 0 : index
    %c0_130 = arith.constant 0 : index
    %356 = vector.load %arg18[%c0_128, %c0_129, %c0_130] : memref<2x1x32xf32, #tpu.memory_space<vmem>>, vector<1x1x32xf32>
    %357 = vector.shape_cast %356 : vector<1x1x32xf32> to vector<1x32xf32>
    %358 = vector.broadcast %357 : vector<1x32xf32> to vector<16x32xf32>
    %359 = arith.addf %355, %358 : vector<16x32xf32>
    %360 = arith.addf %305, %359 : vector<16x32xf32>
    %c0_131 = arith.constant 0 : index
    %c0_132 = arith.constant 0 : index
    %c0_133 = arith.constant 0 : index
    %361 = vector.load %arg19[%c0_131, %c0_132, %c0_133] : memref<2x1x32xf32, #tpu.memory_space<vmem>>, vector<1x1x32xf32>
    %362 = vector.shape_cast %361 : vector<1x1x32xf32> to vector<1x32xf32>
    %c0_134 = arith.constant 0 : index
    %c0_135 = arith.constant 0 : index
    %c0_136 = arith.constant 0 : index
    %363 = vector.load %arg20[%c0_134, %c0_135, %c0_136] : memref<2x1x32xf32, #tpu.memory_space<vmem>>, vector<1x1x32xf32>
    %364 = vector.shape_cast %363 : vector<1x1x32xf32> to vector<1x32xf32>
    %cst_137 = arith.constant dense<0.000000e+00> : vector<16xf32>
    %365 = vector.multi_reduction <add>, %360, %cst_137 [1] : vector<16x32xf32> to vector<16xf32>
    %366 = vector.shape_cast %365 : vector<16xf32> to vector<16x1xf32>
    %cst_138 = arith.constant 3.200000e+01 : f32
    %367 = vector.broadcast %cst_138 : f32 to vector<16x1xf32>
    %368 = arith.divf %366, %367 : vector<16x1xf32>
    %369 = vector.broadcast %368 : vector<16x1xf32> to vector<16x32xf32>
    %370 = arith.subf %360, %369 : vector<16x32xf32>
    %371 = arith.mulf %370, %370 : vector<16x32xf32>
    %cst_139 = arith.constant dense<0.000000e+00> : vector<16xf32>
    %372 = vector.multi_reduction <add>, %371, %cst_139 [1] : vector<16x32xf32> to vector<16xf32>
    %373 = vector.shape_cast %372 : vector<16xf32> to vector<16x1xf32>
    %cst_140 = arith.constant 3.200000e+01 : f32
    %374 = vector.broadcast %cst_140 : f32 to vector<16x1xf32>
    %375 = arith.divf %373, %374 : vector<16x1xf32>
    %376 = vector.broadcast %368 : vector<16x1xf32> to vector<16x32xf32>
    %377 = arith.subf %360, %376 : vector<16x32xf32>
    %cst_141 = arith.constant 9.99999996E-13 : f32
    %378 = vector.broadcast %cst_141 : f32 to vector<16x1xf32>
    %379 = arith.addf %375, %378 : vector<16x1xf32>
    %380 = math.rsqrt %379 : vector<16x1xf32>
    %381 = vector.broadcast %380 : vector<16x1xf32> to vector<16x32xf32>
    %382 = arith.mulf %377, %381 : vector<16x32xf32>
    %383 = vector.broadcast %362 : vector<1x32xf32> to vector<16x32xf32>
    %384 = arith.mulf %382, %383 : vector<16x32xf32>
    %385 = vector.broadcast %364 : vector<1x32xf32> to vector<16x32xf32>
    %386 = arith.addf %384, %385 : vector<16x32xf32>
    %c1 = arith.constant 1 : index
    %c0_142 = arith.constant 0 : index
    %c0_143 = arith.constant 0 : index
    %387 = vector.load %arg9[%c1, %c0_142, %c0_143] : memref<2x32x96xf32, #tpu.memory_space<vmem>>, vector<1x32x96xf32>
    %388 = vector.shape_cast %387 : vector<1x32x96xf32> to vector<32x96xf32>
    %c1_144 = arith.constant 1 : index
    %c0_145 = arith.constant 0 : index
    %c0_146 = arith.constant 0 : index
    %389 = vector.load %arg11[%c1_144, %c0_145, %c0_146] : memref<2x32x32xf32, #tpu.memory_space<vmem>>, vector<1x32x32xf32>
    %390 = vector.shape_cast %389 : vector<1x32x32xf32> to vector<32x32xf32>
    %cst_147 = arith.constant dense<0.000000e+00> : vector<16x96xf32>
    %391 = tpu.matmul %386, %388, %cst_147 {dimension_numbers = #tpu.dot_dimension_numbers<[1], [0], [0], [1], [0, 0, 1, 1], [], []>} : vector<16x32xf32>, vector<32x96xf32>, vector<16x96xf32> -> vector<16x96xf32>
    %c1_148 = arith.constant 1 : index
    %c0_149 = arith.constant 0 : index
    %c0_150 = arith.constant 0 : index
    %392 = vector.load %arg10[%c1_148, %c0_149, %c0_150] : memref<2x1x96xf32, #tpu.memory_space<vmem>>, vector<1x1x96xf32>
    %393 = vector.shape_cast %392 : vector<1x1x96xf32> to vector<1x96xf32>
    %394 = vector.broadcast %393 : vector<1x96xf32> to vector<16x96xf32>
    %395 = arith.addf %391, %394 : vector<16x96xf32>
    %396 = vector.extract_strided_slice %395 {offsets = [0, 0], sizes = [8, 32], strides = [1, 1]} : vector<16x96xf32> to vector<8x32xf32>
    %397 = vector.extract_strided_slice %395 {offsets = [0, 32], sizes = [8, 32], strides = [1, 1]} : vector<16x96xf32> to vector<8x32xf32>
    %398 = vector.extract_strided_slice %395 {offsets = [0, 64], sizes = [8, 32], strides = [1, 1]} : vector<16x96xf32> to vector<8x32xf32>
    %cst_151 = arith.constant 0.000000e+00 : f32
    %399 = vector.broadcast %cst_151 : f32 to vector<8x32xf32>
    %400 = vector.extract_strided_slice %396 {offsets = [0, 0], sizes = [8, 8], strides = [1, 1]} : vector<8x32xf32> to vector<8x8xf32>
    %401 = vector.extract_strided_slice %397 {offsets = [0, 0], sizes = [8, 8], strides = [1, 1]} : vector<8x32xf32> to vector<8x8xf32>
    %cst_152 = arith.constant dense<0.000000e+00> : vector<8x8xf32>
    %402 = tpu.matmul %400, %401, %cst_152 {dimension_numbers = #tpu.dot_dimension_numbers<[1], [1], [0], [0], [0, 0, 1, 0], [], []>} : vector<8x8xf32>, vector<8x8xf32>, vector<8x8xf32> -> vector<8x8xf32>
    %cst_153 = arith.constant 0.353553385 : f32
    %403 = vector.broadcast %cst_153 : f32 to vector<8x8xf32>
    %404 = arith.mulf %402, %403 : vector<8x8xf32>
    %405 = vector.broadcast %74 : vector<1x8xf32> to vector<8x8xf32>
    %406 = arith.addf %404, %405 : vector<8x8xf32>
    %cst_154 = arith.constant dense<0xFF800000> : vector<8xf32>
    %407 = vector.multi_reduction <maximumf>, %406, %cst_154 [1] : vector<8x8xf32> to vector<8xf32>
    %408 = vector.shape_cast %407 : vector<8xf32> to vector<8x1xf32>
    %409 = vector.broadcast %408 : vector<8x1xf32> to vector<8x8xf32>
    %410 = arith.subf %406, %409 : vector<8x8xf32>
    %411 = math.exp %410 : vector<8x8xf32>
    %cst_155 = arith.constant dense<0.000000e+00> : vector<8xf32>
    %412 = vector.multi_reduction <add>, %411, %cst_155 [1] : vector<8x8xf32> to vector<8xf32>
    %413 = vector.shape_cast %412 : vector<8xf32> to vector<8x1xf32>
    %414 = tpu.reciprocal %413 {approx = true} : vector<8x1xf32> -> vector<8x1xf32>
    %415 = vector.broadcast %414 : vector<8x1xf32> to vector<8x8xf32>
    %416 = arith.mulf %411, %415 : vector<8x8xf32>
    %417 = vector.extract_strided_slice %398 {offsets = [0, 0], sizes = [8, 8], strides = [1, 1]} : vector<8x32xf32> to vector<8x8xf32>
    %cst_156 = arith.constant dense<0.000000e+00> : vector<8x8xf32>
    %418 = tpu.matmul %416, %417, %cst_156 {dimension_numbers = #tpu.dot_dimension_numbers<[1], [0], [0], [1], [0, 0, 1, 1], [], []>} : vector<8x8xf32>, vector<8x8xf32>, vector<8x8xf32> -> vector<8x8xf32>
    %419 = vector.extract_strided_slice %390 {offsets = [0, 0], sizes = [8, 32], strides = [1, 1]} : vector<32x32xf32> to vector<8x32xf32>
    %cst_157 = arith.constant dense<0.000000e+00> : vector<8x32xf32>
    %420 = tpu.matmul %418, %419, %cst_157 {dimension_numbers = #tpu.dot_dimension_numbers<[1], [0], [0], [1], [0, 0, 1, 1], [], []>} : vector<8x8xf32>, vector<8x32xf32>, vector<8x32xf32> -> vector<8x32xf32>
    %421 = arith.addf %399, %420 : vector<8x32xf32>
    %422 = vector.extract_strided_slice %396 {offsets = [0, 8], sizes = [8, 8], strides = [1, 1]} : vector<8x32xf32> to vector<8x8xf32>
    %423 = vector.extract_strided_slice %397 {offsets = [0, 8], sizes = [8, 8], strides = [1, 1]} : vector<8x32xf32> to vector<8x8xf32>
    %cst_158 = arith.constant dense<0.000000e+00> : vector<8x8xf32>
    %424 = tpu.matmul %422, %423, %cst_158 {dimension_numbers = #tpu.dot_dimension_numbers<[1], [1], [0], [0], [0, 0, 1, 0], [], []>} : vector<8x8xf32>, vector<8x8xf32>, vector<8x8xf32> -> vector<8x8xf32>
    %cst_159 = arith.constant 0.353553385 : f32
    %425 = vector.broadcast %cst_159 : f32 to vector<8x8xf32>
    %426 = arith.mulf %424, %425 : vector<8x8xf32>
    %427 = vector.broadcast %74 : vector<1x8xf32> to vector<8x8xf32>
    %428 = arith.addf %426, %427 : vector<8x8xf32>
    %cst_160 = arith.constant dense<0xFF800000> : vector<8xf32>
    %429 = vector.multi_reduction <maximumf>, %428, %cst_160 [1] : vector<8x8xf32> to vector<8xf32>
    %430 = vector.shape_cast %429 : vector<8xf32> to vector<8x1xf32>
    %431 = vector.broadcast %430 : vector<8x1xf32> to vector<8x8xf32>
    %432 = arith.subf %428, %431 : vector<8x8xf32>
    %433 = math.exp %432 : vector<8x8xf32>
    %cst_161 = arith.constant dense<0.000000e+00> : vector<8xf32>
    %434 = vector.multi_reduction <add>, %433, %cst_161 [1] : vector<8x8xf32> to vector<8xf32>
    %435 = vector.shape_cast %434 : vector<8xf32> to vector<8x1xf32>
    %436 = tpu.reciprocal %435 {approx = true} : vector<8x1xf32> -> vector<8x1xf32>
    %437 = vector.broadcast %436 : vector<8x1xf32> to vector<8x8xf32>
    %438 = arith.mulf %433, %437 : vector<8x8xf32>
    %439 = vector.extract_strided_slice %398 {offsets = [0, 8], sizes = [8, 8], strides = [1, 1]} : vector<8x32xf32> to vector<8x8xf32>
    %cst_162 = arith.constant dense<0.000000e+00> : vector<8x8xf32>
    %440 = tpu.matmul %438, %439, %cst_162 {dimension_numbers = #tpu.dot_dimension_numbers<[1], [0], [0], [1], [0, 0, 1, 1], [], []>} : vector<8x8xf32>, vector<8x8xf32>, vector<8x8xf32> -> vector<8x8xf32>
    %441 = vector.extract_strided_slice %390 {offsets = [8, 0], sizes = [8, 32], strides = [1, 1]} : vector<32x32xf32> to vector<8x32xf32>
    %cst_163 = arith.constant dense<0.000000e+00> : vector<8x32xf32>
    %442 = tpu.matmul %440, %441, %cst_163 {dimension_numbers = #tpu.dot_dimension_numbers<[1], [0], [0], [1], [0, 0, 1, 1], [], []>} : vector<8x8xf32>, vector<8x32xf32>, vector<8x32xf32> -> vector<8x32xf32>
    %443 = arith.addf %421, %442 : vector<8x32xf32>
    %444 = vector.extract_strided_slice %396 {offsets = [0, 16], sizes = [8, 8], strides = [1, 1]} : vector<8x32xf32> to vector<8x8xf32>
    %445 = vector.extract_strided_slice %397 {offsets = [0, 16], sizes = [8, 8], strides = [1, 1]} : vector<8x32xf32> to vector<8x8xf32>
    %cst_164 = arith.constant dense<0.000000e+00> : vector<8x8xf32>
    %446 = tpu.matmul %444, %445, %cst_164 {dimension_numbers = #tpu.dot_dimension_numbers<[1], [1], [0], [0], [0, 0, 1, 0], [], []>} : vector<8x8xf32>, vector<8x8xf32>, vector<8x8xf32> -> vector<8x8xf32>
    %cst_165 = arith.constant 0.353553385 : f32
    %447 = vector.broadcast %cst_165 : f32 to vector<8x8xf32>
    %448 = arith.mulf %446, %447 : vector<8x8xf32>
    %449 = vector.broadcast %74 : vector<1x8xf32> to vector<8x8xf32>
    %450 = arith.addf %448, %449 : vector<8x8xf32>
    %cst_166 = arith.constant dense<0xFF800000> : vector<8xf32>
    %451 = vector.multi_reduction <maximumf>, %450, %cst_166 [1] : vector<8x8xf32> to vector<8xf32>
    %452 = vector.shape_cast %451 : vector<8xf32> to vector<8x1xf32>
    %453 = vector.broadcast %452 : vector<8x1xf32> to vector<8x8xf32>
    %454 = arith.subf %450, %453 : vector<8x8xf32>
    %455 = math.exp %454 : vector<8x8xf32>
    %cst_167 = arith.constant dense<0.000000e+00> : vector<8xf32>
    %456 = vector.multi_reduction <add>, %455, %cst_167 [1] : vector<8x8xf32> to vector<8xf32>
    %457 = vector.shape_cast %456 : vector<8xf32> to vector<8x1xf32>
    %458 = tpu.reciprocal %457 {approx = true} : vector<8x1xf32> -> vector<8x1xf32>
    %459 = vector.broadcast %458 : vector<8x1xf32> to vector<8x8xf32>
    %460 = arith.mulf %455, %459 : vector<8x8xf32>
    %461 = vector.extract_strided_slice %398 {offsets = [0, 16], sizes = [8, 8], strides = [1, 1]} : vector<8x32xf32> to vector<8x8xf32>
    %cst_168 = arith.constant dense<0.000000e+00> : vector<8x8xf32>
    %462 = tpu.matmul %460, %461, %cst_168 {dimension_numbers = #tpu.dot_dimension_numbers<[1], [0], [0], [1], [0, 0, 1, 1], [], []>} : vector<8x8xf32>, vector<8x8xf32>, vector<8x8xf32> -> vector<8x8xf32>
    %463 = vector.extract_strided_slice %390 {offsets = [16, 0], sizes = [8, 32], strides = [1, 1]} : vector<32x32xf32> to vector<8x32xf32>
    %cst_169 = arith.constant dense<0.000000e+00> : vector<8x32xf32>
    %464 = tpu.matmul %462, %463, %cst_169 {dimension_numbers = #tpu.dot_dimension_numbers<[1], [0], [0], [1], [0, 0, 1, 1], [], []>} : vector<8x8xf32>, vector<8x32xf32>, vector<8x32xf32> -> vector<8x32xf32>
    %465 = arith.addf %443, %464 : vector<8x32xf32>
    %466 = vector.extract_strided_slice %396 {offsets = [0, 24], sizes = [8, 8], strides = [1, 1]} : vector<8x32xf32> to vector<8x8xf32>
    %467 = vector.extract_strided_slice %397 {offsets = [0, 24], sizes = [8, 8], strides = [1, 1]} : vector<8x32xf32> to vector<8x8xf32>
    %cst_170 = arith.constant dense<0.000000e+00> : vector<8x8xf32>
    %468 = tpu.matmul %466, %467, %cst_170 {dimension_numbers = #tpu.dot_dimension_numbers<[1], [1], [0], [0], [0, 0, 1, 0], [], []>} : vector<8x8xf32>, vector<8x8xf32>, vector<8x8xf32> -> vector<8x8xf32>
    %cst_171 = arith.constant 0.353553385 : f32
    %469 = vector.broadcast %cst_171 : f32 to vector<8x8xf32>
    %470 = arith.mulf %468, %469 : vector<8x8xf32>
    %471 = vector.broadcast %74 : vector<1x8xf32> to vector<8x8xf32>
    %472 = arith.addf %470, %471 : vector<8x8xf32>
    %cst_172 = arith.constant dense<0xFF800000> : vector<8xf32>
    %473 = vector.multi_reduction <maximumf>, %472, %cst_172 [1] : vector<8x8xf32> to vector<8xf32>
    %474 = vector.shape_cast %473 : vector<8xf32> to vector<8x1xf32>
    %475 = vector.broadcast %474 : vector<8x1xf32> to vector<8x8xf32>
    %476 = arith.subf %472, %475 : vector<8x8xf32>
    %477 = math.exp %476 : vector<8x8xf32>
    %cst_173 = arith.constant dense<0.000000e+00> : vector<8xf32>
    %478 = vector.multi_reduction <add>, %477, %cst_173 [1] : vector<8x8xf32> to vector<8xf32>
    %479 = vector.shape_cast %478 : vector<8xf32> to vector<8x1xf32>
    %480 = tpu.reciprocal %479 {approx = true} : vector<8x1xf32> -> vector<8x1xf32>
    %481 = vector.broadcast %480 : vector<8x1xf32> to vector<8x8xf32>
    %482 = arith.mulf %477, %481 : vector<8x8xf32>
    %483 = vector.extract_strided_slice %398 {offsets = [0, 24], sizes = [8, 8], strides = [1, 1]} : vector<8x32xf32> to vector<8x8xf32>
    %cst_174 = arith.constant dense<0.000000e+00> : vector<8x8xf32>
    %484 = tpu.matmul %482, %483, %cst_174 {dimension_numbers = #tpu.dot_dimension_numbers<[1], [0], [0], [1], [0, 0, 1, 1], [], []>} : vector<8x8xf32>, vector<8x8xf32>, vector<8x8xf32> -> vector<8x8xf32>
    %485 = vector.extract_strided_slice %390 {offsets = [24, 0], sizes = [8, 32], strides = [1, 1]} : vector<32x32xf32> to vector<8x32xf32>
    %cst_175 = arith.constant dense<0.000000e+00> : vector<8x32xf32>
    %486 = tpu.matmul %484, %485, %cst_175 {dimension_numbers = #tpu.dot_dimension_numbers<[1], [0], [0], [1], [0, 0, 1, 1], [], []>} : vector<8x8xf32>, vector<8x32xf32>, vector<8x32xf32> -> vector<8x32xf32>
    %487 = arith.addf %465, %486 : vector<8x32xf32>
    %488 = vector.extract_strided_slice %395 {offsets = [8, 0], sizes = [8, 32], strides = [1, 1]} : vector<16x96xf32> to vector<8x32xf32>
    %489 = vector.extract_strided_slice %395 {offsets = [8, 32], sizes = [8, 32], strides = [1, 1]} : vector<16x96xf32> to vector<8x32xf32>
    %490 = vector.extract_strided_slice %395 {offsets = [8, 64], sizes = [8, 32], strides = [1, 1]} : vector<16x96xf32> to vector<8x32xf32>
    %cst_176 = arith.constant 0.000000e+00 : f32
    %491 = vector.broadcast %cst_176 : f32 to vector<8x32xf32>
    %492 = vector.extract_strided_slice %488 {offsets = [0, 0], sizes = [8, 8], strides = [1, 1]} : vector<8x32xf32> to vector<8x8xf32>
    %493 = vector.extract_strided_slice %489 {offsets = [0, 0], sizes = [8, 8], strides = [1, 1]} : vector<8x32xf32> to vector<8x8xf32>
    %cst_177 = arith.constant dense<0.000000e+00> : vector<8x8xf32>
    %494 = tpu.matmul %492, %493, %cst_177 {dimension_numbers = #tpu.dot_dimension_numbers<[1], [1], [0], [0], [0, 0, 1, 0], [], []>} : vector<8x8xf32>, vector<8x8xf32>, vector<8x8xf32> -> vector<8x8xf32>
    %cst_178 = arith.constant 0.353553385 : f32
    %495 = vector.broadcast %cst_178 : f32 to vector<8x8xf32>
    %496 = arith.mulf %494, %495 : vector<8x8xf32>
    %497 = vector.broadcast %80 : vector<1x8xf32> to vector<8x8xf32>
    %498 = arith.addf %496, %497 : vector<8x8xf32>
    %cst_179 = arith.constant dense<0xFF800000> : vector<8xf32>
    %499 = vector.multi_reduction <maximumf>, %498, %cst_179 [1] : vector<8x8xf32> to vector<8xf32>
    %500 = vector.shape_cast %499 : vector<8xf32> to vector<8x1xf32>
    %501 = vector.broadcast %500 : vector<8x1xf32> to vector<8x8xf32>
    %502 = arith.subf %498, %501 : vector<8x8xf32>
    %503 = math.exp %502 : vector<8x8xf32>
    %cst_180 = arith.constant dense<0.000000e+00> : vector<8xf32>
    %504 = vector.multi_reduction <add>, %503, %cst_180 [1] : vector<8x8xf32> to vector<8xf32>
    %505 = vector.shape_cast %504 : vector<8xf32> to vector<8x1xf32>
    %506 = tpu.reciprocal %505 {approx = true} : vector<8x1xf32> -> vector<8x1xf32>
    %507 = vector.broadcast %506 : vector<8x1xf32> to vector<8x8xf32>
    %508 = arith.mulf %503, %507 : vector<8x8xf32>
    %509 = vector.extract_strided_slice %490 {offsets = [0, 0], sizes = [8, 8], strides = [1, 1]} : vector<8x32xf32> to vector<8x8xf32>
    %cst_181 = arith.constant dense<0.000000e+00> : vector<8x8xf32>
    %510 = tpu.matmul %508, %509, %cst_181 {dimension_numbers = #tpu.dot_dimension_numbers<[1], [0], [0], [1], [0, 0, 1, 1], [], []>} : vector<8x8xf32>, vector<8x8xf32>, vector<8x8xf32> -> vector<8x8xf32>
    %511 = vector.extract_strided_slice %390 {offsets = [0, 0], sizes = [8, 32], strides = [1, 1]} : vector<32x32xf32> to vector<8x32xf32>
    %cst_182 = arith.constant dense<0.000000e+00> : vector<8x32xf32>
    %512 = tpu.matmul %510, %511, %cst_182 {dimension_numbers = #tpu.dot_dimension_numbers<[1], [0], [0], [1], [0, 0, 1, 1], [], []>} : vector<8x8xf32>, vector<8x32xf32>, vector<8x32xf32> -> vector<8x32xf32>
    %513 = arith.addf %491, %512 : vector<8x32xf32>
    %514 = vector.extract_strided_slice %488 {offsets = [0, 8], sizes = [8, 8], strides = [1, 1]} : vector<8x32xf32> to vector<8x8xf32>
    %515 = vector.extract_strided_slice %489 {offsets = [0, 8], sizes = [8, 8], strides = [1, 1]} : vector<8x32xf32> to vector<8x8xf32>
    %cst_183 = arith.constant dense<0.000000e+00> : vector<8x8xf32>
    %516 = tpu.matmul %514, %515, %cst_183 {dimension_numbers = #tpu.dot_dimension_numbers<[1], [1], [0], [0], [0, 0, 1, 0], [], []>} : vector<8x8xf32>, vector<8x8xf32>, vector<8x8xf32> -> vector<8x8xf32>
    %cst_184 = arith.constant 0.353553385 : f32
    %517 = vector.broadcast %cst_184 : f32 to vector<8x8xf32>
    %518 = arith.mulf %516, %517 : vector<8x8xf32>
    %519 = vector.broadcast %80 : vector<1x8xf32> to vector<8x8xf32>
    %520 = arith.addf %518, %519 : vector<8x8xf32>
    %cst_185 = arith.constant dense<0xFF800000> : vector<8xf32>
    %521 = vector.multi_reduction <maximumf>, %520, %cst_185 [1] : vector<8x8xf32> to vector<8xf32>
    %522 = vector.shape_cast %521 : vector<8xf32> to vector<8x1xf32>
    %523 = vector.broadcast %522 : vector<8x1xf32> to vector<8x8xf32>
    %524 = arith.subf %520, %523 : vector<8x8xf32>
    %525 = math.exp %524 : vector<8x8xf32>
    %cst_186 = arith.constant dense<0.000000e+00> : vector<8xf32>
    %526 = vector.multi_reduction <add>, %525, %cst_186 [1] : vector<8x8xf32> to vector<8xf32>
    %527 = vector.shape_cast %526 : vector<8xf32> to vector<8x1xf32>
    %528 = tpu.reciprocal %527 {approx = true} : vector<8x1xf32> -> vector<8x1xf32>
    %529 = vector.broadcast %528 : vector<8x1xf32> to vector<8x8xf32>
    %530 = arith.mulf %525, %529 : vector<8x8xf32>
    %531 = vector.extract_strided_slice %490 {offsets = [0, 8], sizes = [8, 8], strides = [1, 1]} : vector<8x32xf32> to vector<8x8xf32>
    %cst_187 = arith.constant dense<0.000000e+00> : vector<8x8xf32>
    %532 = tpu.matmul %530, %531, %cst_187 {dimension_numbers = #tpu.dot_dimension_numbers<[1], [0], [0], [1], [0, 0, 1, 1], [], []>} : vector<8x8xf32>, vector<8x8xf32>, vector<8x8xf32> -> vector<8x8xf32>
    %533 = vector.extract_strided_slice %390 {offsets = [8, 0], sizes = [8, 32], strides = [1, 1]} : vector<32x32xf32> to vector<8x32xf32>
    %cst_188 = arith.constant dense<0.000000e+00> : vector<8x32xf32>
    %534 = tpu.matmul %532, %533, %cst_188 {dimension_numbers = #tpu.dot_dimension_numbers<[1], [0], [0], [1], [0, 0, 1, 1], [], []>} : vector<8x8xf32>, vector<8x32xf32>, vector<8x32xf32> -> vector<8x32xf32>
    %535 = arith.addf %513, %534 : vector<8x32xf32>
    %536 = vector.extract_strided_slice %488 {offsets = [0, 16], sizes = [8, 8], strides = [1, 1]} : vector<8x32xf32> to vector<8x8xf32>
    %537 = vector.extract_strided_slice %489 {offsets = [0, 16], sizes = [8, 8], strides = [1, 1]} : vector<8x32xf32> to vector<8x8xf32>
    %cst_189 = arith.constant dense<0.000000e+00> : vector<8x8xf32>
    %538 = tpu.matmul %536, %537, %cst_189 {dimension_numbers = #tpu.dot_dimension_numbers<[1], [1], [0], [0], [0, 0, 1, 0], [], []>} : vector<8x8xf32>, vector<8x8xf32>, vector<8x8xf32> -> vector<8x8xf32>
    %cst_190 = arith.constant 0.353553385 : f32
    %539 = vector.broadcast %cst_190 : f32 to vector<8x8xf32>
    %540 = arith.mulf %538, %539 : vector<8x8xf32>
    %541 = vector.broadcast %80 : vector<1x8xf32> to vector<8x8xf32>
    %542 = arith.addf %540, %541 : vector<8x8xf32>
    %cst_191 = arith.constant dense<0xFF800000> : vector<8xf32>
    %543 = vector.multi_reduction <maximumf>, %542, %cst_191 [1] : vector<8x8xf32> to vector<8xf32>
    %544 = vector.shape_cast %543 : vector<8xf32> to vector<8x1xf32>
    %545 = vector.broadcast %544 : vector<8x1xf32> to vector<8x8xf32>
    %546 = arith.subf %542, %545 : vector<8x8xf32>
    %547 = math.exp %546 : vector<8x8xf32>
    %cst_192 = arith.constant dense<0.000000e+00> : vector<8xf32>
    %548 = vector.multi_reduction <add>, %547, %cst_192 [1] : vector<8x8xf32> to vector<8xf32>
    %549 = vector.shape_cast %548 : vector<8xf32> to vector<8x1xf32>
    %550 = tpu.reciprocal %549 {approx = true} : vector<8x1xf32> -> vector<8x1xf32>
    %551 = vector.broadcast %550 : vector<8x1xf32> to vector<8x8xf32>
    %552 = arith.mulf %547, %551 : vector<8x8xf32>
    %553 = vector.extract_strided_slice %490 {offsets = [0, 16], sizes = [8, 8], strides = [1, 1]} : vector<8x32xf32> to vector<8x8xf32>
    %cst_193 = arith.constant dense<0.000000e+00> : vector<8x8xf32>
    %554 = tpu.matmul %552, %553, %cst_193 {dimension_numbers = #tpu.dot_dimension_numbers<[1], [0], [0], [1], [0, 0, 1, 1], [], []>} : vector<8x8xf32>, vector<8x8xf32>, vector<8x8xf32> -> vector<8x8xf32>
    %555 = vector.extract_strided_slice %390 {offsets = [16, 0], sizes = [8, 32], strides = [1, 1]} : vector<32x32xf32> to vector<8x32xf32>
    %cst_194 = arith.constant dense<0.000000e+00> : vector<8x32xf32>
    %556 = tpu.matmul %554, %555, %cst_194 {dimension_numbers = #tpu.dot_dimension_numbers<[1], [0], [0], [1], [0, 0, 1, 1], [], []>} : vector<8x8xf32>, vector<8x32xf32>, vector<8x32xf32> -> vector<8x32xf32>
    %557 = arith.addf %535, %556 : vector<8x32xf32>
    %558 = vector.extract_strided_slice %488 {offsets = [0, 24], sizes = [8, 8], strides = [1, 1]} : vector<8x32xf32> to vector<8x8xf32>
    %559 = vector.extract_strided_slice %489 {offsets = [0, 24], sizes = [8, 8], strides = [1, 1]} : vector<8x32xf32> to vector<8x8xf32>
    %cst_195 = arith.constant dense<0.000000e+00> : vector<8x8xf32>
    %560 = tpu.matmul %558, %559, %cst_195 {dimension_numbers = #tpu.dot_dimension_numbers<[1], [1], [0], [0], [0, 0, 1, 0], [], []>} : vector<8x8xf32>, vector<8x8xf32>, vector<8x8xf32> -> vector<8x8xf32>
    %cst_196 = arith.constant 0.353553385 : f32
    %561 = vector.broadcast %cst_196 : f32 to vector<8x8xf32>
    %562 = arith.mulf %560, %561 : vector<8x8xf32>
    %563 = vector.broadcast %80 : vector<1x8xf32> to vector<8x8xf32>
    %564 = arith.addf %562, %563 : vector<8x8xf32>
    %cst_197 = arith.constant dense<0xFF800000> : vector<8xf32>
    %565 = vector.multi_reduction <maximumf>, %564, %cst_197 [1] : vector<8x8xf32> to vector<8xf32>
    %566 = vector.shape_cast %565 : vector<8xf32> to vector<8x1xf32>
    %567 = vector.broadcast %566 : vector<8x1xf32> to vector<8x8xf32>
    %568 = arith.subf %564, %567 : vector<8x8xf32>
    %569 = math.exp %568 : vector<8x8xf32>
    %cst_198 = arith.constant dense<0.000000e+00> : vector<8xf32>
    %570 = vector.multi_reduction <add>, %569, %cst_198 [1] : vector<8x8xf32> to vector<8xf32>
    %571 = vector.shape_cast %570 : vector<8xf32> to vector<8x1xf32>
    %572 = tpu.reciprocal %571 {approx = true} : vector<8x1xf32> -> vector<8x1xf32>
    %573 = vector.broadcast %572 : vector<8x1xf32> to vector<8x8xf32>
    %574 = arith.mulf %569, %573 : vector<8x8xf32>
    %575 = vector.extract_strided_slice %490 {offsets = [0, 24], sizes = [8, 8], strides = [1, 1]} : vector<8x32xf32> to vector<8x8xf32>
    %cst_199 = arith.constant dense<0.000000e+00> : vector<8x8xf32>
    %576 = tpu.matmul %574, %575, %cst_199 {dimension_numbers = #tpu.dot_dimension_numbers<[1], [0], [0], [1], [0, 0, 1, 1], [], []>} : vector<8x8xf32>, vector<8x8xf32>, vector<8x8xf32> -> vector<8x8xf32>
    %577 = vector.extract_strided_slice %390 {offsets = [24, 0], sizes = [8, 32], strides = [1, 1]} : vector<32x32xf32> to vector<8x32xf32>
    %cst_200 = arith.constant dense<0.000000e+00> : vector<8x32xf32>
    %578 = tpu.matmul %576, %577, %cst_200 {dimension_numbers = #tpu.dot_dimension_numbers<[1], [0], [0], [1], [0, 0, 1, 1], [], []>} : vector<8x8xf32>, vector<8x32xf32>, vector<8x32xf32> -> vector<8x32xf32>
    %579 = arith.addf %557, %578 : vector<8x32xf32>
    %580 = tpu.concatenate %487, %579 in 0 : vector<8x32xf32>, vector<8x32xf32> -> vector<16x32xf32>
    %c1_201 = arith.constant 1 : index
    %c0_202 = arith.constant 0 : index
    %c0_203 = arith.constant 0 : index
    %581 = vector.load %arg12[%c1_201, %c0_202, %c0_203] : memref<2x1x32xf32, #tpu.memory_space<vmem>>, vector<1x1x32xf32>
    %582 = vector.shape_cast %581 : vector<1x1x32xf32> to vector<1x32xf32>
    %583 = vector.broadcast %582 : vector<1x32xf32> to vector<16x32xf32>
    %584 = arith.addf %580, %583 : vector<16x32xf32>
    %585 = arith.addf %386, %584 : vector<16x32xf32>
    %c1_204 = arith.constant 1 : index
    %c0_205 = arith.constant 0 : index
    %c0_206 = arith.constant 0 : index
    %586 = vector.load %arg13[%c1_204, %c0_205, %c0_206] : memref<2x1x32xf32, #tpu.memory_space<vmem>>, vector<1x1x32xf32>
    %587 = vector.shape_cast %586 : vector<1x1x32xf32> to vector<1x32xf32>
    %c1_207 = arith.constant 1 : index
    %c0_208 = arith.constant 0 : index
    %c0_209 = arith.constant 0 : index
    %588 = vector.load %arg14[%c1_207, %c0_208, %c0_209] : memref<2x1x32xf32, #tpu.memory_space<vmem>>, vector<1x1x32xf32>
    %589 = vector.shape_cast %588 : vector<1x1x32xf32> to vector<1x32xf32>
    %cst_210 = arith.constant dense<0.000000e+00> : vector<16xf32>
    %590 = vector.multi_reduction <add>, %585, %cst_210 [1] : vector<16x32xf32> to vector<16xf32>
    %591 = vector.shape_cast %590 : vector<16xf32> to vector<16x1xf32>
    %cst_211 = arith.constant 3.200000e+01 : f32
    %592 = vector.broadcast %cst_211 : f32 to vector<16x1xf32>
    %593 = arith.divf %591, %592 : vector<16x1xf32>
    %594 = vector.broadcast %593 : vector<16x1xf32> to vector<16x32xf32>
    %595 = arith.subf %585, %594 : vector<16x32xf32>
    %596 = arith.mulf %595, %595 : vector<16x32xf32>
    %cst_212 = arith.constant dense<0.000000e+00> : vector<16xf32>
    %597 = vector.multi_reduction <add>, %596, %cst_212 [1] : vector<16x32xf32> to vector<16xf32>
    %598 = vector.shape_cast %597 : vector<16xf32> to vector<16x1xf32>
    %cst_213 = arith.constant 3.200000e+01 : f32
    %599 = vector.broadcast %cst_213 : f32 to vector<16x1xf32>
    %600 = arith.divf %598, %599 : vector<16x1xf32>
    %601 = vector.broadcast %593 : vector<16x1xf32> to vector<16x32xf32>
    %602 = arith.subf %585, %601 : vector<16x32xf32>
    %cst_214 = arith.constant 9.99999996E-13 : f32
    %603 = vector.broadcast %cst_214 : f32 to vector<16x1xf32>
    %604 = arith.addf %600, %603 : vector<16x1xf32>
    %605 = math.rsqrt %604 : vector<16x1xf32>
    %606 = vector.broadcast %605 : vector<16x1xf32> to vector<16x32xf32>
    %607 = arith.mulf %602, %606 : vector<16x32xf32>
    %608 = vector.broadcast %587 : vector<1x32xf32> to vector<16x32xf32>
    %609 = arith.mulf %607, %608 : vector<16x32xf32>
    %610 = vector.broadcast %589 : vector<1x32xf32> to vector<16x32xf32>
    %611 = arith.addf %609, %610 : vector<16x32xf32>
    %c1_215 = arith.constant 1 : index
    %c0_216 = arith.constant 0 : index
    %c0_217 = arith.constant 0 : index
    %612 = vector.load %arg15[%c1_215, %c0_216, %c0_217] : memref<2x32x64xf32, #tpu.memory_space<vmem>>, vector<1x32x64xf32>
    %613 = vector.shape_cast %612 : vector<1x32x64xf32> to vector<32x64xf32>
    %cst_218 = arith.constant dense<0.000000e+00> : vector<16x64xf32>
    %614 = tpu.matmul %611, %613, %cst_218 {dimension_numbers = #tpu.dot_dimension_numbers<[1], [0], [0], [1], [0, 0, 1, 1], [], []>} : vector<16x32xf32>, vector<32x64xf32>, vector<16x64xf32> -> vector<16x64xf32>
    %c1_219 = arith.constant 1 : index
    %c0_220 = arith.constant 0 : index
    %c0_221 = arith.constant 0 : index
    %615 = vector.load %arg16[%c1_219, %c0_220, %c0_221] : memref<2x1x64xf32, #tpu.memory_space<vmem>>, vector<1x1x64xf32>
    %616 = vector.shape_cast %615 : vector<1x1x64xf32> to vector<1x64xf32>
    %617 = vector.broadcast %616 : vector<1x64xf32> to vector<16x64xf32>
    %618 = arith.addf %614, %617 : vector<16x64xf32>
    %cst_222 = arith.constant 5.000000e-01 : f32
    %619 = vector.broadcast %cst_222 : f32 to vector<16x64xf32>
    %620 = arith.mulf %619, %618 : vector<16x64xf32>
    %cst_223 = arith.constant 0.707106769 : f32
    %621 = vector.broadcast %cst_223 : f32 to vector<16x64xf32>
    %622 = arith.mulf %618, %621 : vector<16x64xf32>
    %623 = math.absf %622 : vector<16x64xf32>
    %cst_224 = arith.constant 0.327591091 : f32
    %624 = vector.broadcast %cst_224 : f32 to vector<16x64xf32>
    %625 = arith.mulf %624, %623 : vector<16x64xf32>
    %cst_225 = arith.constant 1.000000e+00 : f32
    %626 = vector.broadcast %cst_225 : f32 to vector<16x64xf32>
    %627 = arith.addf %626, %625 : vector<16x64xf32>
    %cst_226 = arith.constant 1.000000e+00 : f32
    %628 = vector.broadcast %cst_226 : f32 to vector<16x64xf32>
    %629 = arith.divf %628, %627 : vector<16x64xf32>
    %cst_227 = arith.constant 1.06140542 : f32
    %630 = vector.broadcast %cst_227 : f32 to vector<16x64xf32>
    %631 = arith.mulf %630, %629 : vector<16x64xf32>
    %cst_228 = arith.constant -1.45315206 : f32
    %632 = vector.broadcast %cst_228 : f32 to vector<16x64xf32>
    %633 = arith.addf %631, %632 : vector<16x64xf32>
    %634 = arith.mulf %633, %629 : vector<16x64xf32>
    %cst_229 = arith.constant 1.42141378 : f32
    %635 = vector.broadcast %cst_229 : f32 to vector<16x64xf32>
    %636 = arith.addf %634, %635 : vector<16x64xf32>
    %637 = arith.mulf %636, %629 : vector<16x64xf32>
    %cst_230 = arith.constant -0.284496725 : f32
    %638 = vector.broadcast %cst_230 : f32 to vector<16x64xf32>
    %639 = arith.addf %637, %638 : vector<16x64xf32>
    %640 = arith.mulf %639, %629 : vector<16x64xf32>
    %cst_231 = arith.constant 0.254829586 : f32
    %641 = vector.broadcast %cst_231 : f32 to vector<16x64xf32>
    %642 = arith.addf %640, %641 : vector<16x64xf32>
    %643 = arith.mulf %642, %629 : vector<16x64xf32>
    %cst_232 = arith.constant 0.000000e+00 : f32
    %644 = vector.broadcast %cst_232 : f32 to vector<16x64xf32>
    %645 = arith.subf %644, %623 : vector<16x64xf32>
    %646 = arith.mulf %645, %623 : vector<16x64xf32>
    %647 = math.exp %646 : vector<16x64xf32>
    %648 = arith.mulf %643, %647 : vector<16x64xf32>
    %cst_233 = arith.constant 1.000000e+00 : f32
    %649 = vector.broadcast %cst_233 : f32 to vector<16x64xf32>
    %650 = arith.subf %649, %648 : vector<16x64xf32>
    %cst_234 = arith.constant 0.000000e+00 : f32
    %651 = vector.broadcast %cst_234 : f32 to vector<16x64xf32>
    %652 = arith.cmpf olt, %622, %651 : vector<16x64xf32>
    %cst_235 = arith.constant 0.000000e+00 : f32
    %653 = vector.broadcast %cst_235 : f32 to vector<16x64xf32>
    %654 = arith.subf %653, %650 : vector<16x64xf32>
    %655 = arith.select %652, %654, %650 : vector<16x64xi1>, vector<16x64xf32>
    %cst_236 = arith.constant 1.000000e+00 : f32
    %656 = vector.broadcast %cst_236 : f32 to vector<16x64xf32>
    %657 = arith.addf %656, %655 : vector<16x64xf32>
    %658 = arith.mulf %620, %657 : vector<16x64xf32>
    %c1_237 = arith.constant 1 : index
    %c0_238 = arith.constant 0 : index
    %c0_239 = arith.constant 0 : index
    %659 = vector.load %arg17[%c1_237, %c0_238, %c0_239] : memref<2x64x32xf32, #tpu.memory_space<vmem>>, vector<1x64x32xf32>
    %660 = vector.shape_cast %659 : vector<1x64x32xf32> to vector<64x32xf32>
    %cst_240 = arith.constant dense<0.000000e+00> : vector<16x32xf32>
    %661 = tpu.matmul %658, %660, %cst_240 {dimension_numbers = #tpu.dot_dimension_numbers<[1], [0], [0], [1], [0, 0, 1, 1], [], []>} : vector<16x64xf32>, vector<64x32xf32>, vector<16x32xf32> -> vector<16x32xf32>
    %c1_241 = arith.constant 1 : index
    %c0_242 = arith.constant 0 : index
    %c0_243 = arith.constant 0 : index
    %662 = vector.load %arg18[%c1_241, %c0_242, %c0_243] : memref<2x1x32xf32, #tpu.memory_space<vmem>>, vector<1x1x32xf32>
    %663 = vector.shape_cast %662 : vector<1x1x32xf32> to vector<1x32xf32>
    %664 = vector.broadcast %663 : vector<1x32xf32> to vector<16x32xf32>
    %665 = arith.addf %661, %664 : vector<16x32xf32>
    %666 = arith.addf %611, %665 : vector<16x32xf32>
    %c1_244 = arith.constant 1 : index
    %c0_245 = arith.constant 0 : index
    %c0_246 = arith.constant 0 : index
    %667 = vector.load %arg19[%c1_244, %c0_245, %c0_246] : memref<2x1x32xf32, #tpu.memory_space<vmem>>, vector<1x1x32xf32>
    %668 = vector.shape_cast %667 : vector<1x1x32xf32> to vector<1x32xf32>
    %c1_247 = arith.constant 1 : index
    %c0_248 = arith.constant 0 : index
    %c0_249 = arith.constant 0 : index
    %669 = vector.load %arg20[%c1_247, %c0_248, %c0_249] : memref<2x1x32xf32, #tpu.memory_space<vmem>>, vector<1x1x32xf32>
    %670 = vector.shape_cast %669 : vector<1x1x32xf32> to vector<1x32xf32>
    %cst_250 = arith.constant dense<0.000000e+00> : vector<16xf32>
    %671 = vector.multi_reduction <add>, %666, %cst_250 [1] : vector<16x32xf32> to vector<16xf32>
    %672 = vector.shape_cast %671 : vector<16xf32> to vector<16x1xf32>
    %cst_251 = arith.constant 3.200000e+01 : f32
    %673 = vector.broadcast %cst_251 : f32 to vector<16x1xf32>
    %674 = arith.divf %672, %673 : vector<16x1xf32>
    %675 = vector.broadcast %674 : vector<16x1xf32> to vector<16x32xf32>
    %676 = arith.subf %666, %675 : vector<16x32xf32>
    %677 = arith.mulf %676, %676 : vector<16x32xf32>
    %cst_252 = arith.constant dense<0.000000e+00> : vector<16xf32>
    %678 = vector.multi_reduction <add>, %677, %cst_252 [1] : vector<16x32xf32> to vector<16xf32>
    %679 = vector.shape_cast %678 : vector<16xf32> to vector<16x1xf32>
    %cst_253 = arith.constant 3.200000e+01 : f32
    %680 = vector.broadcast %cst_253 : f32 to vector<16x1xf32>
    %681 = arith.divf %679, %680 : vector<16x1xf32>
    %682 = vector.broadcast %674 : vector<16x1xf32> to vector<16x32xf32>
    %683 = arith.subf %666, %682 : vector<16x32xf32>
    %cst_254 = arith.constant 9.99999996E-13 : f32
    %684 = vector.broadcast %cst_254 : f32 to vector<16x1xf32>
    %685 = arith.addf %681, %684 : vector<16x1xf32>
    %686 = math.rsqrt %685 : vector<16x1xf32>
    %687 = vector.broadcast %686 : vector<16x1xf32> to vector<16x32xf32>
    %688 = arith.mulf %683, %687 : vector<16x32xf32>
    %689 = vector.broadcast %668 : vector<1x32xf32> to vector<16x32xf32>
    %690 = arith.mulf %688, %689 : vector<16x32xf32>
    %691 = vector.broadcast %670 : vector<1x32xf32> to vector<16x32xf32>
    %692 = arith.addf %690, %691 : vector<16x32xf32>
    %c0_255 = arith.constant 0 : index
    %c0_256 = arith.constant 0 : index
    %693 = vector.load %arg21[%c0_255, %c0_256] : memref<32x128xf32, #tpu.memory_space<vmem>>, vector<32x128xf32>
    %cst_257 = arith.constant dense<0.000000e+00> : vector<16x128xf32>
    %694 = tpu.matmul %692, %693, %cst_257 {dimension_numbers = #tpu.dot_dimension_numbers<[1], [0], [0], [1], [0, 0, 1, 1], [], []>} : vector<16x32xf32>, vector<32x128xf32>, vector<16x128xf32> -> vector<16x128xf32>
    %c0_258 = arith.constant 0 : index
    %c0_259 = arith.constant 0 : index
    %695 = vector.load %arg22[%c0_258, %c0_259] : memref<1x128xf32, #tpu.memory_space<vmem>>, vector<1x128xf32>
    %696 = vector.broadcast %695 : vector<1x128xf32> to vector<16x128xf32>
    %697 = arith.addf %694, %696 : vector<16x128xf32>
    %c0_260 = arith.constant 0 : index
    %c0_261 = arith.constant 0 : index
    %698 = vector.load %arg23[%c0_260, %c0_261] : memref<16x128xf32, #tpu.memory_space<vmem>>, vector<16x128xf32>
    tpu.vector_store %arg23[%c0_260, %c0_261], %697 {strides = array<i32>} : memref<16x128xf32, #tpu.memory_space<vmem>>, vector<16x128xf32>,
    return
  }
  func.func @transform_0(%arg0: i32) -> (i32, i32) {
    %c0_i32 = arith.constant 0 : i32
    %c0_i32_0 = arith.constant 0 : i32
    %c0_i32_1 = arith.constant 0 : i32
    return %c0_i32, %c0_i32_0 : i32, i32
  }
  func.func @transform_1(%arg0: i32) -> (i32, i32) {
    %c0_i32 = arith.constant 0 : i32
    %c0_i32_0 = arith.constant 0 : i32
    %c0_i32_1 = arith.constant 0 : i32
    return %c0_i32, %c0_i32_0 : i32, i32
  }
  func.func @transform_2(%arg0: i32) -> (i32, i32) {
    %c0_i32 = arith.constant 0 : i32
    %c0_i32_0 = arith.constant 0 : i32
    %c0_i32_1 = arith.constant 0 : i32
    return %c0_i32, %c0_i32_0 : i32, i32
  }
  func.func @transform_3(%arg0: i32) -> (i32, i32) {
    %c0_i32 = arith.constant 0 : i32
    %c0_i32_0 = arith.constant 0 : i32
    %c0_i32_1 = arith.constant 0 : i32
    return %c0_i32, %c0_i32_0 : i32, i32
  }
  func.func @transform_4(%arg0: i32) -> (i32, i32) {
    %c0_i32 = arith.constant 0 : i32
    %c0_i32_0 = arith.constant 0 : i32
    %c0_i32_1 = arith.constant 0 : i32
    return %c0_i32, %c0_i32_0 : i32, i32
  }
  func.func @transform_5(%arg0: i32) -> (i32, i32) {
    %c0_i32 = arith.constant 0 : i32
    %c0_i32_0 = arith.constant 0 : i32
    %c0_i32_1 = arith.constant 0 : i32
    return %c0_i32, %c0_i32_0 : i32, i32
  }
  func.func @transform_6(%arg0: i32) -> (i32, i32) {
    %c0_i32 = arith.constant 0 : i32
    %c0_i32_0 = arith.constant 0 : i32
    %c0_i32_1 = arith.constant 0 : i32
    return %c0_i32, %c0_i32_0 : i32, i32
  }
  func.func @transform_7(%arg0: i32) -> (i32, i32) {
    %c0_i32 = arith.constant 0 : i32
    %c0_i32_0 = arith.constant 0 : i32
    %c0_i32_1 = arith.constant 0 : i32
    return %c0_i32, %c0_i32_0 : i32, i32
  }
  func.func @transform_8(%arg0: i32) -> (i32, i32, i32) {
    %c0_i32 = arith.constant 0 : i32
    %c0_i32_0 = arith.constant 0 : i32
    %c0_i32_1 = arith.constant 0 : i32
    %c0_i32_2 = arith.constant 0 : i32
    return %c0_i32, %c0_i32_0, %c0_i32_1 : i32, i32, i32
  }
  func.func @transform_9(%arg0: i32) -> (i32, i32, i32) {
    %c0_i32 = arith.constant 0 : i32
    %c0_i32_0 = arith.constant 0 : i32
    %c0_i32_1 = arith.constant 0 : i32
    %c0_i32_2 = arith.constant 0 : i32
    return %c0_i32, %c0_i32_0, %c0_i32_1 : i32, i32, i32
  }
  func.func @transform_10(%arg0: i32) -> (i32, i32, i32) {
    %c0_i32 = arith.constant 0 : i32
    %c0_i32_0 = arith.constant 0 : i32
    %c0_i32_1 = arith.constant 0 : i32
    %c0_i32_2 = arith.constant 0 : i32
    return %c0_i32, %c0_i32_0, %c0_i32_1 : i32, i32, i32
  }
  func.func @transform_11(%arg0: i32) -> (i32, i32, i32) {
    %c0_i32 = arith.constant 0 : i32
    %c0_i32_0 = arith.constant 0 : i32
    %c0_i32_1 = arith.constant 0 : i32
    %c0_i32_2 = arith.constant 0 : i32
    return %c0_i32, %c0_i32_0, %c0_i32_1 : i32, i32, i32
  }
  func.func @transform_12(%arg0: i32) -> (i32, i32, i32) {
    %c0_i32 = arith.constant 0 : i32
    %c0_i32_0 = arith.constant 0 : i32
    %c0_i32_1 = arith.constant 0 : i32
    %c0_i32_2 = arith.constant 0 : i32
    return %c0_i32, %c0_i32_0, %c0_i32_1 : i32, i32, i32
  }
  func.func @transform_13(%arg0: i32) -> (i32, i32, i32) {
    %c0_i32 = arith.constant 0 : i32
    %c0_i32_0 = arith.constant 0 : i32
    %c0_i32_1 = arith.constant 0 : i32
    %c0_i32_2 = arith.constant 0 : i32
    return %c0_i32, %c0_i32_0, %c0_i32_1 : i32, i32, i32
  }
  func.func @transform_14(%arg0: i32) -> (i32, i32, i32) {
    %c0_i32 = arith.constant 0 : i32
    %c0_i32_0 = arith.constant 0 : i32
    %c0_i32_1 = arith.constant 0 : i32
    %c0_i32_2 = arith.constant 0 : i32
    return %c0_i32, %c0_i32_0, %c0_i32_1 : i32, i32, i32
  }
  func.func @transform_15(%arg0: i32) -> (i32, i32, i32) {
    %c0_i32 = arith.constant 0 : i32
    %c0_i32_0 = arith.constant 0 : i32
    %c0_i32_1 = arith.constant 0 : i32
    %c0_i32_2 = arith.constant 0 : i32
    return %c0_i32, %c0_i32_0, %c0_i32_1 : i32, i32, i32
  }
  func.func @transform_16(%arg0: i32) -> (i32, i32, i32) {
    %c0_i32 = arith.constant 0 : i32
    %c0_i32_0 = arith.constant 0 : i32
    %c0_i32_1 = arith.constant 0 : i32
    %c0_i32_2 = arith.constant 0 : i32
    return %c0_i32, %c0_i32_0, %c0_i32_1 : i32, i32, i32
  }
  func.func @transform_17(%arg0: i32) -> (i32, i32, i32) {
    %c0_i32 = arith.constant 0 : i32
    %c0_i32_0 = arith.constant 0 : i32
    %c0_i32_1 = arith.constant 0 : i32
    %c0_i32_2 = arith.constant 0 : i32
    return %c0_i32, %c0_i32_0, %c0_i32_1 : i32, i32, i32
  }
  func.func @transform_18(%arg0: i32) -> (i32, i32, i32) {
    %c0_i32 = arith.constant 0 : i32
    %c0_i32_0 = arith.constant 0 : i32
    %c0_i32_1 = arith.constant 0 : i32
    %c0_i32_2 = arith.constant 0 : i32
    return %c0_i32, %c0_i32_0, %c0_i32_1 : i32, i32, i32
  }
  func.func @transform_19(%arg0: i32) -> (i32, i32, i32) {
    %c0_i32 = arith.constant 0 : i32
    %c0_i32_0 = arith.constant 0 : i32
    %c0_i32_1 = arith.constant 0 : i32
    %c0_i32_2 = arith.constant 0 : i32
    return %c0_i32, %c0_i32_0, %c0_i32_1 : i32, i32, i32
  }
  func.func @transform_20(%arg0: i32) -> (i32, i32) {
    %c0_i32 = arith.constant 0 : i32
    %c0_i32_0 = arith.constant 0 : i32
    %c0_i32_1 = arith.constant 0 : i32
    return %c0_i32, %c0_i32_0 : i32, i32
  }
  func.func @transform_21(%arg0: i32) -> (i32, i32) {
    %c0_i32 = arith.constant 0 : i32
    %c0_i32_0 = arith.constant 0 : i32
    %c0_i32_1 = arith.constant 0 : i32
    return %c0_i32, %c0_i32_0 : i32, i32
  }
  func.func @transform_22(%arg0: i32) -> (i32, i32) {
    %c0_i32 = arith.constant 0 : i32
    %c0_i32_0 = arith.constant 0 : i32
    %c0_i32_1 = arith.constant 0 : i32
    return %c0_i32, %c0_i32_0 : i32, i32
  }
}

</mosaic_0001>

<llo_original>
// kernel: midiformer_lm_forward.1
$region0: #{midiformer_lm_forward.1}
  #allocation0 [shape = 'u32[]', space=smem, size = 0x4, offset = 0x4, fixed_abs, tag = 'smem constant byte address 0x4 - core index']
  #allocation1 [shape = 'u32[144,128]{1,0:T(1,128)}', space=vmem, size = 0x12000, scoped, tag = 'internal scratch']
  %s0 = inlined_call_operand.vmem [shape: s32[16,4], index: 0, kind: input, shape index: {}]
  %s1 = inlined_call_operand.vmem [shape: f32[2,8], index: 1, kind: input, shape index: {}]
  %s2 = inlined_call_operand.vmem [shape: f32[16,32], index: 2, kind: input, shape index: {}]
  %s3 = inlined_call_operand.vmem [shape: f32[68,64], index: 3, kind: input, shape index: {}]
  %s4 = inlined_call_operand.vmem [shape: f32[64,32], index: 4, kind: input, shape index: {}]
  %s5 = inlined_call_operand.vmem [shape: f32[1,32], index: 5, kind: input, shape index: {}]
  %s6 = inlined_call_operand.vmem [shape: f32[1,32], index: 6, kind: input, shape index: {}]
  %s7 = inlined_call_operand.vmem [shape: f32[1,32], index: 7, kind: input, shape index: {}]
  %s8 = inlined_call_operand.vmem [shape: f32[2,32,96], index: 8, kind: input, shape index: {}]
  %s9 = inlined_call_operand.vmem [shape: f32[2,1,96], index: 9, kind: input, shape index: {}]
  %s10 = inlined_call_operand.vmem [shape: f32[2,32,32], index: 10, kind: input, shape index: {}]
  %s11 = inlined_call_operand.vmem [shape: f32[2,1,32], index: 11, kind: input, shape index: {}]
  %s12 = inlined_call_operand.vmem [shape: f32[2,1,32], index: 12, kind: input, shape index: {}]
  %s13 = inlined_call_operand.vmem [shape: f32[2,1,32], index: 13, kind: input, shape index: {}]
  %s14 = inlined_call_operand.vmem [shape: f32[2,32,64], index: 14, kind: input, shape index: {}]
  %s15 = inlined_call_operand.vmem [shape: f32[2,1,64], index: 15, kind: input, shape index: {}]
  %s16 = inlined_call_operand.vmem [shape: f32[2,64,32], index: 16, kind: input, shape index: {}]
  %s17 = inlined_call_operand.vmem [shape: f32[2,1,32], index: 17, kind: input, shape index: {}]
  %s18 = inlined_call_operand.vmem [shape: f32[2,1,32], index: 18, kind: input, shape index: {}]
  %s19 = inlined_call_operand.vmem [shape: f32[2,1,32], index: 19, kind: input, shape index: {}]
  %s20 = inlined_call_operand.vmem [shape: f32[32,128], index: 20, kind: input, shape index: {}]
  %s21 = inlined_call_operand.vmem [shape: f32[1,128], index: 21, kind: input, shape index: {}]
  %s22 = inlined_call_operand.vmem [shape: f32[16,128], index: 22, kind: output, shape index: {}]
  %s23 = sld [smem:[#allocation0]]
  $region98: #{midiformer_lm_forward.1} parent=0
    _
  %s25 = ssub.s32 1, %s23
  %s26 = scalar_select 0, %s25, %s23
  // Predicated region
  $region2: #{midiformer_lm_forward.1} parent=0 // pred_check
    _
  $region3: #{midiformer_lm_forward.1} parent=0 // pred_check_branch
    %28 = sbr.rel (0) target = $region5
  $region4: #{midiformer_lm_forward.1} parent=0 // pred_region
    _
  $region5: #{midiformer_lm_forward.1} parent=0 // pred_fallthru
    _
  // Predicated region
  $region6: #{midiformer_lm_forward.1} parent=0 // pred_check
    _
  $region7: #{midiformer_lm_forward.1} parent=0 // pred_check_branch
    %30 = sbr.rel (0) target = $region9
  $region8: #{midiformer_lm_forward.1} parent=0 // pred_region
    _
  $region9: #{midiformer_lm_forward.1} parent=0 // pred_fallthru
    _
  // Predicated region
  $region10: #{midiformer_lm_forward.1} parent=0 // pred_check
    _
  $region11: #{midiformer_lm_forward.1} parent=0 // pred_check_branch
    %32 = sbr.rel (0) target = $region13
  $region12: #{midiformer_lm_forward.1} parent=0 // pred_region
    _
  $region13: #{midiformer_lm_forward.1} parent=0 // pred_fallthru
    _
  // Predicated region
  $region14: #{midiformer_lm_forward.1} parent=0 // pred_check
    _
  $region15: #{midiformer_lm_forward.1} parent=0 // pred_check_branch
    %34 = sbr.rel (0) target = $region17
  $region16: #{midiformer_lm_forward.1} parent=0 // pred_region
    _
  $region17: #{midiformer_lm_forward.1} parent=0 // pred_fallthru
    _
  // Predicated region
  $region18: #{midiformer_lm_forward.1} parent=0 // pred_check
    _
  $region19: #{midiformer_lm_forward.1} parent=0 // pred_check_branch
    %36 = sbr.rel (0) target = $region21
  $region20: #{midiformer_lm_forward.1} parent=0 // pred_region
    _
  $region21: #{midiformer_lm_forward.1} parent=0 // pred_fallthru
    _
  // Predicated region
  $region22: #{midiformer_lm_forward.1} parent=0 // pred_check
    _
  $region23: #{midiformer_lm_forward.1} parent=0 // pred_check_branch
    %38 = sbr.rel (0) target = $region25
  $region24: #{midiformer_lm_forward.1} parent=0 // pred_region
    _
  $region25: #{midiformer_lm_forward.1} parent=0 // pred_fallthru
    _
  // Predicated region
  $region26: #{midiformer_lm_forward.1} parent=0 // pred_check
    _
  $region27: #{midiformer_lm_forward.1} parent=0 // pred_check_branch
    %40 = sbr.rel (0) target = $region29
  $region28: #{midiformer_lm_forward.1} parent=0 // pred_region
    _
  $region29: #{midiformer_lm_forward.1} parent=0 // pred_fallthru
    _
  // Predicated region
  $region30: #{midiformer_lm_forward.1} parent=0 // pred_check
    _
  $region31: #{midiformer_lm_forward.1} parent=0 // pred_check_branch
    %42 = sbr.rel (0) target = $region33
  $region32: #{midiformer_lm_forward.1} parent=0 // pred_region
    _
  $region33: #{midiformer_lm_forward.1} parent=0 // pred_fallthru
    _
  // Predicated region
  $region34: #{midiformer_lm_forward.1} parent=0 // pred_check
    _
  $region35: #{midiformer_lm_forward.1} parent=0 // pred_check_branch
    %44 = sbr.rel (0) target = $region37
  $region36: #{midiformer_lm_forward.1} parent=0 // pred_region
    _
  $region37: #{midiformer_lm_forward.1} parent=0 // pred_fallthru
    _
  // Predicated region
  $region38: #{midiformer_lm_forward.1} parent=0 // pred_check
    _
  $region39: #{midiformer_lm_forward.1} parent=0 // pred_check_branch
    %46 = sbr.rel (0) target = $region41
  $region40: #{midiformer_lm_forward.1} parent=0 // pred_region
    _
  $region41: #{midiformer_lm_forward.1} parent=0 // pred_fallthru
    _
  // Predicated region
  $region42: #{midiformer_lm_forward.1} parent=0 // pred_check
    _
  $region43: #{midiformer_lm_forward.1} parent=0 // pred_check_branch
    %48 = sbr.rel (0) target = $region45
  $region44: #{midiformer_lm_forward.1} parent=0 // pred_region
    _
  $region45: #{midiformer_lm_forward.1} parent=0 // pred_fallthru
    _
  // Predicated region
  $region46: #{midiformer_lm_forward.1} parent=0 // pred_check
    _
  $region47: #{midiformer_lm_forward.1} parent=0 // pred_check_branch
    %50 = sbr.rel (0) target = $region49
  $region48: #{midiformer_lm_forward.1} parent=0 // pred_region
    _
  $region49: #{midiformer_lm_forward.1} parent=0 // pred_fallthru
    _
  // Predicated region
  $region50: #{midiformer_lm_forward.1} parent=0 // pred_check
    _
  $region51: #{midiformer_lm_forward.1} parent=0 // pred_check_branch
    %52 = sbr.rel (0) target = $region53
  $region52: #{midiformer_lm_forward.1} parent=0 // pred_region
    _
  $region53: #{midiformer_lm_forward.1} parent=0 // pred_fallthru
    _
  // Predicated region
  $region54: #{midiformer_lm_forward.1} parent=0 // pred_check
    _
  $region55: #{midiformer_lm_forward.1} parent=0 // pred_check_branch
    %54 = sbr.rel (0) target = $region57
  $region56: #{midiformer_lm_forward.1} parent=0 // pred_region
    _
  $region57: #{midiformer_lm_forward.1} parent=0 // pred_fallthru
    _
  // Predicated region
  $region58: #{midiformer_lm_forward.1} parent=0 // pred_check
    _
  $region59: #{midiformer_lm_forward.1} parent=0 // pred_check_branch
    %56 = sbr.rel (0) target = $region61
  $region60: #{midiformer_lm_forward.1} parent=0 // pred_region
    _
  $region61: #{midiformer_lm_forward.1} parent=0 // pred_fallthru
    _
  // Predicated region
  $region62: #{midiformer_lm_forward.1} parent=0 // pred_check
    _
  $region63: #{midiformer_lm_forward.1} parent=0 // pred_check_branch
    %58 = sbr.rel (0) target = $region65
  $region64: #{midiformer_lm_forward.1} parent=0 // pred_region
    _
  $region65: #{midiformer_lm_forward.1} parent=0 // pred_fallthru
    _
  // Predicated region
  $region66: #{midiformer_lm_forward.1} parent=0 // pred_check
    _
  $region67: #{midiformer_lm_forward.1} parent=0 // pred_check_branch
    %60 = sbr.rel (0) target = $region69
  $region68: #{midiformer_lm_forward.1} parent=0 // pred_region
    _
  $region69: #{midiformer_lm_forward.1} parent=0 // pred_fallthru
    _
  // Predicated region
  $region70: #{midiformer_lm_forward.1} parent=0 // pred_check
    _
  $region71: #{midiformer_lm_forward.1} parent=0 // pred_check_branch
    %62 = sbr.rel (0) target = $region73
  $region72: #{midiformer_lm_forward.1} parent=0 // pred_region
    _
  $region73: #{midiformer_lm_forward.1} parent=0 // pred_fallthru
    _
  // Predicated region
  $region74: #{midiformer_lm_forward.1} parent=0 // pred_check
    _
  $region75: #{midiformer_lm_forward.1} parent=0 // pred_check_branch
    %64 = sbr.rel (0) target = $region77
  $region76: #{midiformer_lm_forward.1} parent=0 // pred_region
    _
  $region77: #{midiformer_lm_forward.1} parent=0 // pred_fallthru
    _
  // Predicated region
  $region78: #{midiformer_lm_forward.1} parent=0 // pred_check
    _
  $region79: #{midiformer_lm_forward.1} parent=0 // pred_check_branch
    %66 = sbr.rel (0) target = $region81
  $region80: #{midiformer_lm_forward.1} parent=0 // pred_region
    _
  $region81: #{midiformer_lm_forward.1} parent=0 // pred_fallthru
    _
  // Predicated region
  $region82: #{midiformer_lm_forward.1} parent=0 // pred_check
    _
  $region83: #{midiformer_lm_forward.1} parent=0 // pred_check_branch
    %68 = sbr.rel (0) target = $region85
  $region84: #{midiformer_lm_forward.1} parent=0 // pred_region
    _
  $region85: #{midiformer_lm_forward.1} parent=0 // pred_fallthru
    _
  // Predicated region
  $region86: #{midiformer_lm_forward.1} parent=0 // pred_check
    _
  $region87: #{midiformer_lm_forward.1} parent=0 // pred_check_branch
    %70 = sbr.rel (0) target = $region89
  $region88: #{midiformer_lm_forward.1} parent=0 // pred_region
    _
  $region89: #{midiformer_lm_forward.1} parent=0 // pred_fallthru
    _
  %v71 = vld [vmem:[%s0] sm:$0xff]
  %v72 = vld [vmem:[%s0 + $0x8] sm:$0xff]
  %v73 = vlaneseq
  %v74 = vand.u32 %v73, 127
  %75 = vset.pattern.permute.xlu0 0
  %76 = vperm.xlu0 %75, %v71
  %v77 = vpop.permute.xlu0 %76
  %78 = vset.pattern.permute.xlu0 0
  %79 = vperm.xlu0 %78, %v72
  %v80 = vpop.permute.xlu0 %79
  %vm81 = vcmp.eq.s32.totalorder %v74, %v77
  %vm82 = vcmp.eq.s32.totalorder %v74, %v80
  %v83 = vsel %vm81, 1, 0
  %v84 = vsel %vm82, 1, 0
  %v85 = vcvt.s32.f32 %v83
  %v86 = vcvt.s32.f32 %v84
  %v87 = vadd.f32 %v85, 0.0
  %v88 = vadd.f32 %v86, 0.0
  %v89 = vadd.s32 %v71, 4
  %v90 = vadd.s32 %v72, 4
  %91 = vset.pattern.permute.xlu0 1
  %92 = vperm.xlu0 %91, %v89
  %v93 = vpop.permute.xlu0 %92
  %94 = vset.pattern.permute.xlu0 1
  %95 = vperm.xlu0 %94, %v90
  %v96 = vpop.permute.xlu0 %95
  %vm97 = vcmp.eq.s32.totalorder %v74, %v93
  %vm98 = vcmp.eq.s32.totalorder %v74, %v96
  %v99 = vsel %vm97, 1, 0
  %v100 = vsel %vm98, 1, 0
  %v101 = vcvt.s32.f32 %v99
  %v102 = vcvt.s32.f32 %v100
  %v103 = vadd.f32 %v87, %v101
  %v104 = vadd.f32 %v88, %v102
  %v105 = vadd.s32 %v71, 20
  %v106 = vadd.s32 %v72, 20
  %107 = vset.pattern.permute.xlu0 2
  %108 = vperm.xlu0 %107, %v105
  %v109 = vpop.permute.xlu0 %108
  %110 = vset.pattern.permute.xlu0 2
  %111 = vperm.xlu0 %110, %v106
  %v112 = vpop.permute.xlu0 %111
  %vm113 = vcmp.eq.s32.totalorder %v74, %v109
  %vm114 = vcmp.eq.s32.totalorder %v74, %v112
  %v115 = vsel %vm113, 1, 0
  %v116 = vsel %vm114, 1, 0
  %v117 = vcvt.s32.f32 %v115
  %v118 = vcvt.s32.f32 %v116
  %v119 = vadd.f32 %v103, %v117
  %v120 = vadd.f32 %v104, %v118
  %v121 = vadd.s32 %v71, 52
  %v122 = vadd.s32 %v72, 52
  %123 = vset.pattern.permute.xlu0 3
  %124 = vperm.xlu0 %123, %v121
  %v125 = vpop.permute.xlu0 %124
  %126 = vset.pattern.permute.xlu0 3
  %127 = vperm.xlu0 %126, %v122
  %v128 = vpop.permute.xlu0 %127
  %vm129 = vcmp.eq.s32.totalorder %v74, %v125
  %vm130 = vcmp.eq.s32.totalorder %v74, %v128
  %v131 = vsel %vm129, 1, 0
  %v132 = vsel %vm130, 1, 0
  %v133 = vcvt.s32.f32 %v131
  %v134 = vcvt.s32.f32 %v132
  %v135 = vadd.f32 %v119, %v133
  %v136 = vadd.f32 %v120, %v134
  %v137 = vld [vmem:[%s3] sm:$0xff]
  %v138 = vld [vmem:[%s3 + $0x8] sm:$0xff]
  %v139 = vld [vmem:[%s3 + $0x10] sm:$0xff]
  %v140 = vld [vmem:[%s3 + $0x18] sm:$0xff]
  %v141 = vld [vmem:[%s3 + $0x20] sm:$0xff]
  %v142 = vld [vmem:[%s3 + $0x28] sm:$0xff]
  %v143 = vld [vmem:[%s3 + $0x30] sm:$0xff]
  %v144 = vld [vmem:[%s3 + $0x38] sm:$0xff]
  %v145 = vld [vmem:[%s3 + $0x40] sm:$0xf]
  %vm146 = vcmask 556032
  %v148 = vsel %vm146, %v135, 0
  %v151 = vsel %vm146, %v136, 0
  %vm153 = vcmask 1043456
  %v155 = vsel %vm153, %v145, 0
  %157 = vmatprep.subr.mxu0 0.0
  %158 = vmatpush1.msra.mxu0 0.0
  %159 = vmatprep.subr.mxu0 0.0
  %160 = vmatpush1.msra.mxu0 0.0
  %161 = vmatprep.subr.mxu0 0.0
  %162 = vmatpush1.msra.mxu0 0.0
  %163 = vmatprep.subr.mxu0 0.0
  %164 = vmatpush1.msra.mxu0 0.0
  %165 = vmatprep.subr.mxu0 0.0
  %166 = vmatpush1.msra.mxu0 0.0
  %167 = vmatprep.subr.mxu0 0.0
  %168 = vmatpush1.msra.mxu0 0.0
  %169 = vmatprep.subr.mxu0 0.0
  %170 = vmatpush1.msra.mxu0 0.0
  %171 = vmatprep.subr.mxu0 0.0
  %172 = vmatpush1.msra.mxu0 %v155
  %173 = vmatprep.subr.mxu0 0.0
  %174 = vmatpush1.msra.mxu0 %v144
  %175 = vmatprep.subr.mxu0 0.0
  %176 = vmatpush1.msra.mxu0 %v143
  %177 = vmatprep.subr.mxu0 0.0
  %178 = vmatpush1.msra.mxu0 %v142
  %179 = vmatprep.subr.mxu0 0.0
  %180 = vmatpush1.msra.mxu0 %v141
  %181 = vmatprep.subr.mxu0 0.0
  %182 = vmatpush1.msra.mxu0 %v140
  %183 = vmatprep.subr.mxu0 0.0
  %184 = vmatpush1.msra.mxu0 %v139
  %185 = vmatprep.subr.mxu0 0.0
  %186 = vmatpush1.msra.mxu0 %v138
  %187 = vmatprep.subr.mxu0 0.0
  %188 = vmatpush1.msra.mxu0 %v137
  %189 = vmatprep.subr.mxu0 0.0
  %190 = vmatpush2.msra.mxu0 0.0
  %191 = vmatprep.subr.mxu0 0.0
  %192 = vmatpush2.msra.mxu0 0.0
  %193 = vmatprep.subr.mxu0 0.0
  %194 = vmatpush2.msra.mxu0 0.0
  %195 = vmatprep.subr.mxu0 0.0
  %196 = vmatpush2.msra.mxu0 0.0
  %197 = vmatprep.subr.mxu0 0.0
  %198 = vmatpush2.msra.mxu0 0.0
  %199 = vmatprep.subr.mxu0 0.0
  %200 = vmatpush2.msra.mxu0 0.0
  %201 = vmatprep.subr.mxu0 0.0
  %202 = vmatpush2.msra.mxu0 0.0
  %203 = vmatprep.subr.mxu0 0.0
  %204 = vmatpush2.msra.mxu0 0.0
  %205 = vmatprep.subr.mxu0 0.0
  %206 = vmatpush2.msra.mxu0 0.0
  %207 = vmatprep.subr.mxu0 0.0
  %208 = vmatpush2.msra.mxu0 0.0
  %209 = vmatprep.subr.mxu0 0.0
  %210 = vmatpush2.msra.mxu0 0.0
  %211 = vmatprep.subr.mxu0 0.0
  %212 = vmatpush2.msra.mxu0 0.0
  %213 = vmatprep.subr.mxu0 0.0
  %214 = vmatpush2.msra.mxu0 0.0
  %215 = vmatprep.subr.mxu0 0.0
  %216 = vmatpush2.msra.mxu0 0.0
  %217 = vmatprep.subr.mxu0 0.0
  %218 = vmatpush2.msra.mxu0 0.0
  %219 = vmatprep.subr.mxu0 0.0
  %220 = vmatpush2.msra.mxu0 0.0
  %221 = vmatprep.mubr.f32.mxu0 0.0
  %222 = vmatmul.mubr.f32.gmra.mxu0 %v148
  %v223 = vpop.f32.mrf.mxu0
  %v224 = vadd.f32 0.0, %v223
  %v225 = vpop.f32.mrf.mxu0
  %226 = vmatprep.mubr.f32.mxu0 0.0
  %227 = vmatmul.mubr.f32.gmra.mxu0 %v151
  %v228 = vpop.f32.mrf.mxu0
  %v229 = vadd.f32 0.0, %v228
  %v230 = vpop.f32.mrf.mxu0
  %231 = vdwg.mxu0
  %v232 = vld [vmem:[%s4] sm:$0xff]
  %v233 = vld [vmem:[%s4 + $0x8] sm:$0xff]
  %v234 = vld [vmem:[%s4 + $0x10] sm:$0xff]
  %v235 = vld [vmem:[%s4 + $0x18] sm:$0xff]
  %v236 = vld [vmem:[%s4 + $0x20] sm:$0xff]
  %v237 = vld [vmem:[%s4 + $0x28] sm:$0xff]
  %v238 = vld [vmem:[%s4 + $0x30] sm:$0xff]
  %v239 = vld [vmem:[%s4 + $0x38] sm:$0xff]
  %v240 = vld [vmem:[%s5] sm:$0x1]
  %v242 = vlaneseq
  %v243 = vshrl.u32 %v242, 7
  %v244 = vsub.s32 0, %v243
  %v245 = vrot.slane %v240, %v244
  %vm247 = vcmask 523264
  %v249 = vsel %vm247, %v224, 0
  %v252 = vsel %vm247, %v229, 0
  %254 = vmatprep.subr.mxu0 0.0
  %255 = vmatpush1.msra.mxu0 0.0
  %256 = vmatprep.subr.mxu0 0.0
  %257 = vmatpush1.msra.mxu0 0.0
  %258 = vmatprep.subr.mxu0 0.0
  %259 = vmatpush1.msra.mxu0 0.0
  %260 = vmatprep.subr.mxu0 0.0
  %261 = vmatpush1.msra.mxu0 0.0
  %262 = vmatprep.subr.mxu0 0.0
  %263 = vmatpush1.msra.mxu0 0.0
  %264 = vmatprep.subr.mxu0 0.0
  %265 = vmatpush1.msra.mxu0 0.0
  %266 = vmatprep.subr.mxu0 0.0
  %267 = vmatpush1.msra.mxu0 0.0
  %268 = vmatprep.subr.mxu0 0.0
  %269 = vmatpush1.msra.mxu0 0.0
  %270 = vmatprep.subr.mxu0 0.0
  %271 = vmatpush1.msra.mxu0 %v239
  %272 = vmatprep.subr.mxu0 0.0
  %273 = vmatpush1.msra.mxu0 %v238
  %274 = vmatprep.subr.mxu0 0.0
  %275 = vmatpush1.msra.mxu0 %v237
  %276 = vmatprep.subr.mxu0 0.0
  %277 = vmatpush1.msra.mxu0 %v236
  %278 = vmatprep.subr.mxu0 0.0
  %279 = vmatpush1.msra.mxu0 %v235
  %280 = vmatprep.subr.mxu0 0.0
  %281 = vmatpush1.msra.mxu0 %v234
  %282 = vmatprep.subr.mxu0 0.0
  %283 = vmatpush1.msra.mxu0 %v233
  %284 = vmatprep.subr.mxu0 0.0
  %285 = vmatpush1.msra.mxu0 %v232
  %286 = vmatprep.subr.mxu0 0.0
  %287 = vmatpush2.msra.mxu0 0.0
  %288 = vmatprep.subr.mxu0 0.0
  %289 = vmatpush2.msra.mxu0 0.0
  %290 = vmatprep.subr.mxu0 0.0
  %291 = vmatpush2.msra.mxu0 0.0
  %292 = vmatprep.subr.mxu0 0.0
  %293 = vmatpush2.msra.mxu0 0.0
  %294 = vmatprep.subr.mxu0 0.0
  %295 = vmatpush2.msra.mxu0 0.0
  %296 = vmatprep.subr.mxu0 0.0
  %297 = vmatpush2.msra.mxu0 0.0
  %298 = vmatprep.subr.mxu0 0.0
  %299 = vmatpush2.msra.mxu0 0.0
  %300 = vmatprep.subr.mxu0 0.0
  %301 = vmatpush2.msra.mxu0 0.0
  %302 = vmatprep.subr.mxu0 0.0
  %303 = vmatpush2.msra.mxu0 0.0
  %304 = vmatprep.subr.mxu0 0.0
  %305 = vmatpush2.msra.mxu0 0.0
  %306 = vmatprep.subr.mxu0 0.0
  %307 = vmatpush2.msra.mxu0 0.0
  %308 = vmatprep.subr.mxu0 0.0
  %309 = vmatpush2.msra.mxu0 0.0
  %310 = vmatprep.subr.mxu0 0.0
  %311 = vmatpush2.msra.mxu0 0.0
  %312 = vmatprep.subr.mxu0 0.0
  %313 = vmatpush2.msra.mxu0 0.0
  %314 = vmatprep.subr.mxu0 0.0
  %315 = vmatpush2.msra.mxu0 0.0
  %316 = vmatprep.subr.mxu0 0.0
  %317 = vmatpush2.msra.mxu0 0.0
  %318 = vmatprep.mubr.f32.mxu0 0.0
  %319 = vmatmul.mubr.f32.gmra.mxu0 %v249
  %v320 = vpop.f32.mrf.mxu0
  %v321 = vadd.f32 %v245, %v320
  %v322 = vpop.f32.mrf.mxu0
  %323 = vmatprep.mubr.f32.mxu0 0.0
  %324 = vmatmul.mubr.f32.gmra.mxu0 %v252
  %v325 = vpop.f32.mrf.mxu0
  %v326 = vadd.f32 %v245, %v325
  %v327 = vpop.f32.mrf.mxu0
  %328 = vdwg.mxu0
  %v329 = vld [vmem:[%s2] sm:$0xff]
  %v330 = vld [vmem:[%s2 + $0x8] sm:$0xff]
  %v331 = vadd.f32 %v321, %v329
  %v332 = vadd.f32 %v326, %v330
  %v333 = vld [vmem:[%s6] sm:$0x1]
  %v334 = vld [vmem:[%s7] sm:$0x1]
  %vm335 = vcmask 261120
  %v336 = vsel %vm335, %v331, 0.0
  %337 = vadd.xlane.f32.xlu0 %v336
  %v338 = vpop.xlane.xlu0 %337
  %v339 = vsel %vm335, %v332, 0.0
  %340 = vadd.xlane.f32.xlu0 %v339
  %v341 = vpop.xlane.xlu0 %340
  %v342 = vrcp.pop 32.0
  %v343 = vmul.f32 %v338, %v342
  %v344 = vmul.f32 %v341, %v342
  %v345 = vsub.f32 %v331, %v343
  %v346 = vsub.f32 %v332, %v344
  %v347 = vmul.f32 %v345, %v345
  %v348 = vmul.f32 %v346, %v346
  %v349 = vsel %vm335, %v347, 0.0
  %350 = vadd.xlane.f32.xlu0 %v349
  %v351 = vpop.xlane.xlu0 %350
  %v352 = vsel %vm335, %v348, 0.0
  %353 = vadd.xlane.f32.xlu0 %v352
  %v354 = vpop.xlane.xlu0 %353
  %v355 = vmul.f32 %v351, %v342
  %v356 = vmul.f32 %v354, %v342
  %v357 = vadd.f32 %v355, 1e-12
  %v358 = vadd.f32 %v356, 1e-12
  %v359 = vrsqrt.pop %v357
  %v360 = vrsqrt.pop %v358
  %v361 = vmul.f32 %v345, %v359
  %v362 = vmul.f32 %v346, %v360
  %v364 = vlaneseq
  %v365 = vshrl.u32 %v364, 7
  %v366 = vsub.s32 0, %v365
  %v367 = vrot.slane %v333, %v366
  %v369 = vmul.f32 %v361, %v367
  %v370 = vmul.f32 %v362, %v367
  %v372 = vlaneseq
  %v373 = vshrl.u32 %v372, 7
  %v374 = vsub.s32 0, %v373
  %v375 = vrot.slane %v334, %v374
  %v377 = vadd.f32 %v369, %v375
  %v378 = vadd.f32 %v370, %v375
  %v379 = vld [vmem:[%s1] sm:$0x3]
  %vm380 = vcmp.gt.f32.partialorder %v379, 0.5
  %v381 = vsel %vm380, 0.0, -10000.0
  %v382 = vld [vmem:[%s8] sm:$0xff]
  %v383 = vld [vmem:[%s8 + $0x8] sm:$0xff]
  %v384 = vld [vmem:[%s8 + $0x10] sm:$0xff]
  %v385 = vld [vmem:[%s8 + $0x18] sm:$0xff]
  %v386 = vld [vmem:[%s10] sm:$0xff]
  %v387 = vld [vmem:[%s10 + $0x8] sm:$0xff]
  %v388 = vld [vmem:[%s10 + $0x10] sm:$0xff]
  %v389 = vld [vmem:[%s10 + $0x18] sm:$0xff]
  %v390 = vld [vmem:[%s9] sm:$0x1]
  %v392 = vlaneseq
  %v393 = vshrl.u32 %v392, 7
  %v394 = vsub.s32 0, %v393
  %v395 = vrot.slane %v390, %v394
  %v398 = vsel %vm335, %v377, 0
  %v401 = vsel %vm335, %v378, 0
  %403 = vmatprep.subr.mxu0 0.0
  %404 = vmatpush1.msra.mxu0 0.0
  %405 = vmatprep.subr.mxu0 0.0
  %406 = vmatpush1.msra.mxu0 0.0
  %407 = vmatprep.subr.mxu0 0.0
  %408 = vmatpush1.msra.mxu0 0.0
  %409 = vmatprep.subr.mxu0 0.0
  %410 = vmatpush1.msra.mxu0 0.0
  %411 = vmatprep.subr.mxu0 0.0
  %412 = vmatpush1.msra.mxu0 0.0
  %413 = vmatprep.subr.mxu0 0.0
  %414 = vmatpush1.msra.mxu0 0.0
  %415 = vmatprep.subr.mxu0 0.0
  %416 = vmatpush1.msra.mxu0 0.0
  %417 = vmatprep.subr.mxu0 0.0
  %418 = vmatpush1.msra.mxu0 0.0
  %419 = vmatprep.subr.mxu0 0.0
  %420 = vmatpush1.msra.mxu0 0.0
  %421 = vmatprep.subr.mxu0 0.0
  %422 = vmatpush1.msra.mxu0 0.0
  %423 = vmatprep.subr.mxu0 0.0
  %424 = vmatpush1.msra.mxu0 0.0
  %425 = vmatprep.subr.mxu0 0.0
  %426 = vmatpush1.msra.mxu0 0.0
  %427 = vmatprep.subr.mxu0 0.0
  %428 = vmatpush1.msra.mxu0 %v385
  %429 = vmatprep.subr.mxu0 0.0
  %430 = vmatpush1.msra.mxu0 %v384
  %431 = vmatprep.subr.mxu0 0.0
  %432 = vmatpush1.msra.mxu0 %v383
  %433 = vmatprep.subr.mxu0 0.0
  %434 = vmatpush1.msra.mxu0 %v382
  %435 = vmatprep.subr.mxu0 0.0
  %436 = vmatpush2.msra.mxu0 0.0
  %437 = vmatprep.subr.mxu0 0.0
  %438 = vmatpush2.msra.mxu0 0.0
  %439 = vmatprep.subr.mxu0 0.0
  %440 = vmatpush2.msra.mxu0 0.0
  %441 = vmatprep.subr.mxu0 0.0
  %442 = vmatpush2.msra.mxu0 0.0
  %443 = vmatprep.subr.mxu0 0.0
  %444 = vmatpush2.msra.mxu0 0.0
  %445 = vmatprep.subr.mxu0 0.0
  %446 = vmatpush2.msra.mxu0 0.0
  %447 = vmatprep.subr.mxu0 0.0
  %448 = vmatpush2.msra.mxu0 0.0
  %449 = vmatprep.subr.mxu0 0.0
  %450 = vmatpush2.msra.mxu0 0.0
  %451 = vmatprep.subr.mxu0 0.0
  %452 = vmatpush2.msra.mxu0 0.0
  %453 = vmatprep.subr.mxu0 0.0
  %454 = vmatpush2.msra.mxu0 0.0
  %455 = vmatprep.subr.mxu0 0.0
  %456 = vmatpush2.msra.mxu0 0.0
  %457 = vmatprep.subr.mxu0 0.0
  %458 = vmatpush2.msra.mxu0 0.0
  %459 = vmatprep.subr.mxu0 0.0
  %460 = vmatpush2.msra.mxu0 0.0
  %461 = vmatprep.subr.mxu0 0.0
  %462 = vmatpush2.msra.mxu0 0.0
  %463 = vmatprep.subr.mxu0 0.0
  %464 = vmatpush2.msra.mxu0 0.0
  %465 = vmatprep.subr.mxu0 0.0
  %466 = vmatpush2.msra.mxu0 0.0
  %467 = vmatprep.mubr.f32.mxu0 0.0
  %468 = vmatmul.mubr.f32.gmra.mxu0 %v398
  %v469 = vpop.f32.mrf.mxu0
  %v470 = vadd.f32 %v395, %v469
  %v471 = vpop.f32.mrf.mxu0
  %472 = vmatprep.mubr.f32.mxu0 0.0
  %473 = vmatmul.mubr.f32.gmra.mxu0 %v401
  %v474 = vpop.f32.mrf.mxu0
  %v475 = vadd.f32 %v395, %v474
  %v476 = vpop.f32.mrf.mxu0
  %477 = vdwg.mxu0
  %479 = vrot.lane.b32.xlu0 %v470, 96
  %v480 = vpop.permute.xlu0 %479
  %vm481 = vcmask 64512
  %v482 = vsel %vm481, %v470, 0
  %v484 = vsel %vm481, %v480, 0
  %486 = vmatprep.subr.mxu0 0.0
  %487 = vmatpush1.xpose.msra.mxu0 0.0
  %488 = vmatprep.subr.mxu0 0.0
  %489 = vmatpush1.xpose.msra.mxu0 0.0
  %490 = vmatprep.subr.mxu0 0.0
  %491 = vmatpush1.xpose.msra.mxu0 0.0
  %492 = vmatprep.subr.mxu0 0.0
  %493 = vmatpush1.xpose.msra.mxu0 0.0
  %494 = vmatprep.subr.mxu0 0.0
  %495 = vmatpush1.xpose.msra.mxu0 0.0
  %496 = vmatprep.subr.mxu0 0.0
  %497 = vmatpush1.xpose.msra.mxu0 0.0
  %498 = vmatprep.subr.mxu0 0.0
  %499 = vmatpush1.xpose.msra.mxu0 0.0
  %500 = vmatprep.subr.mxu0 0.0
  %501 = vmatpush1.xpose.msra.mxu0 0.0
  %502 = vmatprep.subr.mxu0 0.0
  %503 = vmatpush1.xpose.msra.mxu0 0.0
  %504 = vmatprep.subr.mxu0 0.0
  %505 = vmatpush1.xpose.msra.mxu0 0.0
  %506 = vmatprep.subr.mxu0 0.0
  %507 = vmatpush1.xpose.msra.mxu0 0.0
  %508 = vmatprep.subr.mxu0 0.0
  %509 = vmatpush1.xpose.msra.mxu0 0.0
  %510 = vmatprep.subr.mxu0 0.0
  %511 = vmatpush1.xpose.msra.mxu0 0.0
  %512 = vmatprep.subr.mxu0 0.0
  %513 = vmatpush1.xpose.msra.mxu0 0.0
  %514 = vmatprep.subr.mxu0 0.0
  %515 = vmatpush1.xpose.msra.mxu0 0.0
  %516 = vmatprep.subr.mxu0 0.0
  %517 = vmatpush1.xpose.msra.mxu0 %v484
  %518 = vmatprep.subr.mxu0 0.0
  %519 = vmatpush2.xpose.msra.mxu0 0.0
  %520 = vmatprep.subr.mxu0 0.0
  %521 = vmatpush2.xpose.msra.mxu0 0.0
  %522 = vmatprep.subr.mxu0 0.0
  %523 = vmatpush2.xpose.msra.mxu0 0.0
  %524 = vmatprep.subr.mxu0 0.0
  %525 = vmatpush2.xpose.msra.mxu0 0.0
  %526 = vmatprep.subr.mxu0 0.0
  %527 = vmatpush2.xpose.msra.mxu0 0.0
  %528 = vmatprep.subr.mxu0 0.0
  %529 = vmatpush2.xpose.msra.mxu0 0.0
  %530 = vmatprep.subr.mxu0 0.0
  %531 = vmatpush2.xpose.msra.mxu0 0.0
  %532 = vmatprep.subr.mxu0 0.0
  %533 = vmatpush2.xpose.msra.mxu0 0.0
  %534 = vmatprep.subr.mxu0 0.0
  %535 = vmatpush2.xpose.msra.mxu0 0.0
  %536 = vmatprep.subr.mxu0 0.0
  %537 = vmatpush2.xpose.msra.mxu0 0.0
  %538 = vmatprep.subr.mxu0 0.0
  %539 = vmatpush2.xpose.msra.mxu0 0.0
  %540 = vmatprep.subr.mxu0 0.0
  %541 = vmatpush2.xpose.msra.mxu0 0.0
  %542 = vmatprep.subr.mxu0 0.0
  %543 = vmatpush2.xpose.msra.mxu0 0.0
  %544 = vmatprep.subr.mxu0 0.0
  %545 = vmatpush2.xpose.msra.mxu0 0.0
  %546 = vmatprep.subr.mxu0 0.0
  %547 = vmatpush2.xpose.msra.mxu0 0.0
  %548 = vmatprep.subr.mxu0 0.0
  %549 = vmatpush2.xpose.msra.mxu0 0.0
  %550 = vmatprep.mubr.f32.mxu0 0.0
  %551 = vmatmul.mubr.f32.gmra.mxu0 %v482
  %v552 = vpop.f32.mrf.mxu0
  %v553 = vadd.f32 0.0, %v552
  %v554 = vpop.f32.mrf.mxu0
  %555 = vdwg.mxu0
  %v556 = vmul.f32 %v553, 0.35355338
  %v557 = vlaneseq
  %v558 = vshrl.u32 %v557, 7
  %v559 = vsub.s32 0, %v558
  %v560 = vrot.slane %v381, %v559
  %v561 = vadd.f32 %v556, %v560
  %v562 = vsel %vm481, %v561, -inf
  %563 = vmax.xlane.f32.xlu0 %v562
  %v564 = vpop.xlane.xlu0 %563
  %v565 = vsub.f32 %v561, %v564
  %v566 = vmul.f32 %v565, 1.442695
  %v567 = vpow.pop %v566
  %v568 = vsel %vm481, %v567, 0.0
  %569 = vadd.xlane.f32.xlu0 %v568
  %v570 = vpop.xlane.xlu0 %569
  %v571 = vrcp.pop %v570
  %v572 = vmul.f32 %v567, %v571
  %573 = vrot.lane.b32.xlu0 %v470, 64
  %v574 = vpop.permute.xlu0 %573
  %v577 = vsel %vm481, %v572, 0
  %579 = vmatprep.subr.mxu0 0.0
  %580 = vmatpush1.msra.mxu0 0.0
  %581 = vmatprep.subr.mxu0 0.0
  %582 = vmatpush1.msra.mxu0 0.0
  %583 = vmatprep.subr.mxu0 0.0
  %584 = vmatpush1.msra.mxu0 0.0
  %585 = vmatprep.subr.mxu0 0.0
  %586 = vmatpush1.msra.mxu0 0.0
  %587 = vmatprep.subr.mxu0 0.0
  %588 = vmatpush1.msra.mxu0 0.0
  %589 = vmatprep.subr.mxu0 0.0
  %590 = vmatpush1.msra.mxu0 0.0
  %591 = vmatprep.subr.mxu0 0.0
  %592 = vmatpush1.msra.mxu0 0.0
  %593 = vmatprep.subr.mxu0 0.0
  %594 = vmatpush1.msra.mxu0 0.0
  %595 = vmatprep.subr.mxu0 0.0
  %596 = vmatpush1.msra.mxu0 0.0
  %597 = vmatprep.subr.mxu0 0.0
  %598 = vmatpush1.msra.mxu0 0.0
  %599 = vmatprep.subr.mxu0 0.0
  %600 = vmatpush1.msra.mxu0 0.0
  %601 = vmatprep.subr.mxu0 0.0
  %602 = vmatpush1.msra.mxu0 0.0
  %603 = vmatprep.subr.mxu0 0.0
  %604 = vmatpush1.msra.mxu0 0.0
  %605 = vmatprep.subr.mxu0 0.0
  %606 = vmatpush1.msra.mxu0 0.0
  %607 = vmatprep.subr.mxu0 0.0
  %608 = vmatpush1.msra.mxu0 0.0
  %609 = vmatprep.subr.mxu0 0.0
  %610 = vmatpush1.msra.mxu0 %v574
  %611 = vmatprep.subr.mxu0 0.0
  %612 = vmatpush2.msra.mxu0 0.0
  %613 = vmatprep.subr.mxu0 0.0
  %614 = vmatpush2.msra.mxu0 0.0
  %615 = vmatprep.subr.mxu0 0.0
  %616 = vmatpush2.msra.mxu0 0.0
  %617 = vmatprep.subr.mxu0 0.0
  %618 = vmatpush2.msra.mxu0 0.0
  %619 = vmatprep.subr.mxu0 0.0
  %620 = vmatpush2.msra.mxu0 0.0
  %621 = vmatprep.subr.mxu0 0.0
  %622 = vmatpush2.msra.mxu0 0.0
  %623 = vmatprep.subr.mxu0 0.0
  %624 = vmatpush2.msra.mxu0 0.0
  %625 = vmatprep.subr.mxu0 0.0
  %626 = vmatpush2.msra.mxu0 0.0
  %627 = vmatprep.subr.mxu0 0.0
  %628 = vmatpush2.msra.mxu0 0.0
  %629 = vmatprep.subr.mxu0 0.0
  %630 = vmatpush2.msra.mxu0 0.0
  %631 = vmatprep.subr.mxu0 0.0
  %632 = vmatpush2.msra.mxu0 0.0
  %633 = vmatprep.subr.mxu0 0.0
  %634 = vmatpush2.msra.mxu0 0.0
  %635 = vmatprep.subr.mxu0 0.0
  %636 = vmatpush2.msra.mxu0 0.0
  %637 = vmatprep.subr.mxu0 0.0
  %638 = vmatpush2.msra.mxu0 0.0
  %639 = vmatprep.subr.mxu0 0.0
  %640 = vmatpush2.msra.mxu0 0.0
  %641 = vmatprep.subr.mxu0 0.0
  %642 = vmatpush2.msra.mxu0 0.0
  %643 = vmatprep.mubr.f32.mxu0 0.0
  %644 = vmatmul.mubr.f32.gmra.mxu0 %v577
  %v645 = vpop.f32.mrf.mxu0
  %v646 = vadd.f32 0.0, %v645
  %v647 = vpop.f32.mrf.mxu0
  %648 = vdwg.mxu0
  %649 = vrot.lane.b32.xlu0 %v470, 120
  %v650 = vpop.permute.xlu0 %649
  %651 = vrot.lane.b32.xlu0 %v470, 88
  %v652 = vpop.permute.xlu0 %651
  %v653 = vsel %vm481, %v650, 0
  %v655 = vsel %vm481, %v652, 0
  %657 = vmatprep.subr.mxu0 0.0
  %658 = vmatpush1.xpose.msra.mxu0 0.0
  %659 = vmatprep.subr.mxu0 0.0
  %660 = vmatpush1.xpose.msra.mxu0 0.0
  %661 = vmatprep.subr.mxu0 0.0
  %662 = vmatpush1.xpose.msra.mxu0 0.0
  %663 = vmatprep.subr.mxu0 0.0
  %664 = vmatpush1.xpose.msra.mxu0 0.0
  %665 = vmatprep.subr.mxu0 0.0
  %666 = vmatpush1.xpose.msra.mxu0 0.0
  %667 = vmatprep.subr.mxu0 0.0
  %668 = vmatpush1.xpose.msra.mxu0 0.0
  %669 = vmatprep.subr.mxu0 0.0
  %670 = vmatpush1.xpose.msra.mxu0 0.0
  %671 = vmatprep.subr.mxu0 0.0
  %672 = vmatpush1.xpose.msra.mxu0 0.0
  %673 = vmatprep.subr.mxu0 0.0
  %674 = vmatpush1.xpose.msra.mxu0 0.0
  %675 = vmatprep.subr.mxu0 0.0
  %676 = vmatpush1.xpose.msra.mxu0 0.0
  %677 = vmatprep.subr.mxu0 0.0
  %678 = vmatpush1.xpose.msra.mxu0 0.0
  %679 = vmatprep.subr.mxu0 0.0
  %680 = vmatpush1.xpose.msra.mxu0 0.0
  %681 = vmatprep.subr.mxu0 0.0
  %682 = vmatpush1.xpose.msra.mxu0 0.0
  %683 = vmatprep.subr.mxu0 0.0
  %684 = vmatpush1.xpose.msra.mxu0 0.0
  %685 = vmatprep.subr.mxu0 0.0
  %686 = vmatpush1.xpose.msra.mxu0 0.0
  %687 = vmatprep.subr.mxu0 0.0
  %688 = vmatpush1.xpose.msra.mxu0 %v655
  %689 = vmatprep.subr.mxu0 0.0
  %690 = vmatpush2.xpose.msra.mxu0 0.0
  %691 = vmatprep.subr.mxu0 0.0
  %692 = vmatpush2.xpose.msra.mxu0 0.0
  %693 = vmatprep.subr.mxu0 0.0
  %694 = vmatpush2.xpose.msra.mxu0 0.0
  %695 = vmatprep.subr.mxu0 0.0
  %696 = vmatpush2.xpose.msra.mxu0 0.0
  %697 = vmatprep.subr.mxu0 0.0
  %698 = vmatpush2.xpose.msra.mxu0 0.0
  %699 = vmatprep.subr.mxu0 0.0
  %700 = vmatpush2.xpose.msra.mxu0 0.0
  %701 = vmatprep.subr.mxu0 0.0
  %702 = vmatpush2.xpose.msra.mxu0 0.0
  %703 = vmatprep.subr.mxu0 0.0
  %704 = vmatpush2.xpose.msra.mxu0 0.0
  %705 = vmatprep.subr.mxu0 0.0
  %706 = vmatpush2.xpose.msra.mxu0 0.0
  %707 = vmatprep.subr.mxu0 0.0
  %708 = vmatpush2.xpose.msra.mxu0 0.0
  %709 = vmatprep.subr.mxu0 0.0
  %710 = vmatpush2.xpose.msra.mxu0 0.0
  %711 = vmatprep.subr.mxu0 0.0
  %712 = vmatpush2.xpose.msra.mxu0 0.0
  %713 = vmatprep.subr.mxu0 0.0
  %714 = vmatpush2.xpose.msra.mxu0 0.0
  %715 = vmatprep.subr.mxu0 0.0
  %716 = vmatpush2.xpose.msra.mxu0 0.0
  %717 = vmatprep.subr.mxu0 0.0
  %718 = vmatpush2.xpose.msra.mxu0 0.0
  %719 = vmatprep.subr.mxu0 0.0
  %720 = vmatpush2.xpose.msra.mxu0 0.0
  %721 = vmatprep.mubr.f32.mxu0 0.0
  %722 = vmatmul.mubr.f32.gmra.mxu0 %v653
  %v723 = vpop.f32.mrf.mxu0
  %v724 = vadd.f32 0.0, %v723
  %v725 = vpop.f32.mrf.mxu0
  %726 = vdwg.mxu0
  %v727 = vmul.f32 %v724, 0.35355338
  %v728 = vadd.f32 %v727, %v560
  %v729 = vsel %vm481, %v728, -inf
  %730 = vmax.xlane.f32.xlu0 %v729
  %v731 = vpop.xlane.xlu0 %730
  %v732 = vsub.f32 %v728, %v731
  %v733 = vmul.f32 %v732, 1.442695
  %v734 = vpow.pop %v733
  %v735 = vsel %vm481, %v734, 0.0
  %736 = vadd.xlane.f32.xlu0 %v735
  %v737 = vpop.xlane.xlu0 %736
  %v738 = vrcp.pop %v737
  %v739 = vmul.f32 %v734, %v738
  %740 = vrot.lane.b32.xlu0 %v470, 56
  %v741 = vpop.permute.xlu0 %740
  %v744 = vsel %vm481, %v739, 0
  %746 = vmatprep.subr.mxu0 0.0
  %747 = vmatpush1.msra.mxu0 0.0
  %748 = vmatprep.subr.mxu0 0.0
  %749 = vmatpush1.msra.mxu0 0.0
  %750 = vmatprep.subr.mxu0 0.0
  %751 = vmatpush1.msra.mxu0 0.0
  %752 = vmatprep.subr.mxu0 0.0
  %753 = vmatpush1.msra.mxu0 0.0
  %754 = vmatprep.subr.mxu0 0.0
  %755 = vmatpush1.msra.mxu0 0.0
  %756 = vmatprep.subr.mxu0 0.0
  %757 = vmatpush1.msra.mxu0 0.0
  %758 = vmatprep.subr.mxu0 0.0
  %759 = vmatpush1.msra.mxu0 0.0
  %760 = vmatprep.subr.mxu0 0.0
  %761 = vmatpush1.msra.mxu0 0.0
  %762 = vmatprep.subr.mxu0 0.0
  %763 = vmatpush1.msra.mxu0 0.0
  %764 = vmatprep.subr.mxu0 0.0
  %765 = vmatpush1.msra.mxu0 0.0
  %766 = vmatprep.subr.mxu0 0.0
  %767 = vmatpush1.msra.mxu0 0.0
  %768 = vmatprep.subr.mxu0 0.0
  %769 = vmatpush1.msra.mxu0 0.0
  %770 = vmatprep.subr.mxu0 0.0
  %771 = vmatpush1.msra.mxu0 0.0
  %772 = vmatprep.subr.mxu0 0.0
  %773 = vmatpush1.msra.mxu0 0.0
  %774 = vmatprep.subr.mxu0 0.0
  %775 = vmatpush1.msra.mxu0 0.0
  %776 = vmatprep.subr.mxu0 0.0
  %777 = vmatpush1.msra.mxu0 %v741
  %778 = vmatprep.subr.mxu0 0.0
  %779 = vmatpush2.msra.mxu0 0.0
  %780 = vmatprep.subr.mxu0 0.0
  %781 = vmatpush2.msra.mxu0 0.0
  %782 = vmatprep.subr.mxu0 0.0
  %783 = vmatpush2.msra.mxu0 0.0
  %784 = vmatprep.subr.mxu0 0.0
  %785 = vmatpush2.msra.mxu0 0.0
  %786 = vmatprep.subr.mxu0 0.0
  %787 = vmatpush2.msra.mxu0 0.0
  %788 = vmatprep.subr.mxu0 0.0
  %789 = vmatpush2.msra.mxu0 0.0
  %790 = vmatprep.subr.mxu0 0.0
  %791 = vmatpush2.msra.mxu0 0.0
  %792 = vmatprep.subr.mxu0 0.0
  %793 = vmatpush2.msra.mxu0 0.0
  %794 = vmatprep.subr.mxu0 0.0
  %795 = vmatpush2.msra.mxu0 0.0
  %796 = vmatprep.subr.mxu0 0.0
  %797 = vmatpush2.msra.mxu0 0.0
  %798 = vmatprep.subr.mxu0 0.0
  %799 = vmatpush2.msra.mxu0 0.0
  %800 = vmatprep.subr.mxu0 0.0
  %801 = vmatpush2.msra.mxu0 0.0
  %802 = vmatprep.subr.mxu0 0.0
  %803 = vmatpush2.msra.mxu0 0.0
  %804 = vmatprep.subr.mxu0 0.0
  %805 = vmatpush2.msra.mxu0 0.0
  %806 = vmatprep.subr.mxu0 0.0
  %807 = vmatpush2.msra.mxu0 0.0
  %808 = vmatprep.subr.mxu0 0.0
  %809 = vmatpush2.msra.mxu0 0.0
  %810 = vmatprep.mubr.f32.mxu0 0.0
  %811 = vmatmul.mubr.f32.gmra.mxu0 %v744
  %v812 = vpop.f32.mrf.mxu0
  %v813 = vadd.f32 0.0, %v812
  %v814 = vpop.f32.mrf.mxu0
  %815 = vdwg.mxu0
  %v817 = vsel %vm481, %v813, 0
  %819 = vmatprep.subr.mxu0 0.0
  %820 = vmatpush1.msra.mxu0 0.0
  %821 = vmatprep.subr.mxu0 0.0
  %822 = vmatpush1.msra.mxu0 0.0
  %823 = vmatprep.subr.mxu0 0.0
  %824 = vmatpush1.msra.mxu0 0.0
  %825 = vmatprep.subr.mxu0 0.0
  %826 = vmatpush1.msra.mxu0 0.0
  %827 = vmatprep.subr.mxu0 0.0
  %828 = vmatpush1.msra.mxu0 0.0
  %829 = vmatprep.subr.mxu0 0.0
  %830 = vmatpush1.msra.mxu0 0.0
  %831 = vmatprep.subr.mxu0 0.0
  %832 = vmatpush1.msra.mxu0 0.0
  %833 = vmatprep.subr.mxu0 0.0
  %834 = vmatpush1.msra.mxu0 0.0
  %835 = vmatprep.subr.mxu0 0.0
  %836 = vmatpush1.msra.mxu0 0.0
  %837 = vmatprep.subr.mxu0 0.0
  %838 = vmatpush1.msra.mxu0 0.0
  %839 = vmatprep.subr.mxu0 0.0
  %840 = vmatpush1.msra.mxu0 0.0
  %841 = vmatprep.subr.mxu0 0.0
  %842 = vmatpush1.msra.mxu0 0.0
  %843 = vmatprep.subr.mxu0 0.0
  %844 = vmatpush1.msra.mxu0 0.0
  %845 = vmatprep.subr.mxu0 0.0
  %846 = vmatpush1.msra.mxu0 0.0
  %847 = vmatprep.subr.mxu0 0.0
  %848 = vmatpush1.msra.mxu0 0.0
  %849 = vmatprep.subr.mxu0 0.0
  %850 = vmatpush1.msra.mxu0 %v387
  %851 = vmatprep.subr.mxu0 0.0
  %852 = vmatpush2.msra.mxu0 0.0
  %853 = vmatprep.subr.mxu0 0.0
  %854 = vmatpush2.msra.mxu0 0.0
  %855 = vmatprep.subr.mxu0 0.0
  %856 = vmatpush2.msra.mxu0 0.0
  %857 = vmatprep.subr.mxu0 0.0
  %858 = vmatpush2.msra.mxu0 0.0
  %859 = vmatprep.subr.mxu0 0.0
  %860 = vmatpush2.msra.mxu0 0.0
  %861 = vmatprep.subr.mxu0 0.0
  %862 = vmatpush2.msra.mxu0 0.0
  %863 = vmatprep.subr.mxu0 0.0
  %864 = vmatpush2.msra.mxu0 0.0
  %865 = vmatprep.subr.mxu0 0.0
  %866 = vmatpush2.msra.mxu0 0.0
  %867 = vmatprep.subr.mxu0 0.0
  %868 = vmatpush2.msra.mxu0 0.0
  %869 = vmatprep.subr.mxu0 0.0
  %870 = vmatpush2.msra.mxu0 0.0
  %871 = vmatprep.subr.mxu0 0.0
  %872 = vmatpush2.msra.mxu0 0.0
  %873 = vmatprep.subr.mxu0 0.0
  %874 = vmatpush2.msra.mxu0 0.0
  %875 = vmatprep.subr.mxu0 0.0
  %876 = vmatpush2.msra.mxu0 0.0
  %877 = vmatprep.subr.mxu0 0.0
  %878 = vmatpush2.msra.mxu0 0.0
  %879 = vmatprep.subr.mxu0 0.0
  %880 = vmatpush2.msra.mxu0 0.0
  %881 = vmatprep.subr.mxu0 0.0
  %882 = vmatpush2.msra.mxu0 0.0
  %883 = vmatprep.mubr.f32.mxu0 0.0
  %884 = vmatmul.mubr.f32.gmra.mxu0 %v817
  %v885 = vpop.f32.mrf.mxu0
  %v886 = vadd.f32 0.0, %v885
  %v887 = vpop.f32.mrf.mxu0
  %888 = vdwg.mxu0
  %v890 = vsel %vm481, %v646, 0
  %892 = vmatprep.subr.mxu0 0.0
  %893 = vmatpush1.msra.mxu0 0.0
  %894 = vmatprep.subr.mxu0 0.0
  %895 = vmatpush1.msra.mxu0 0.0
  %896 = vmatprep.subr.mxu0 0.0
  %897 = vmatpush1.msra.mxu0 0.0
  %898 = vmatprep.subr.mxu0 0.0
  %899 = vmatpush1.msra.mxu0 0.0
  %900 = vmatprep.subr.mxu0 0.0
  %901 = vmatpush1.msra.mxu0 0.0
  %902 = vmatprep.subr.mxu0 0.0
  %903 = vmatpush1.msra.mxu0 0.0
  %904 = vmatprep.subr.mxu0 0.0
  %905 = vmatpush1.msra.mxu0 0.0
  %906 = vmatprep.subr.mxu0 0.0
  %907 = vmatpush1.msra.mxu0 0.0
  %908 = vmatprep.subr.mxu0 0.0
  %909 = vmatpush1.msra.mxu0 0.0
  %910 = vmatprep.subr.mxu0 0.0
  %911 = vmatpush1.msra.mxu0 0.0
  %912 = vmatprep.subr.mxu0 0.0
  %913 = vmatpush1.msra.mxu0 0.0
  %914 = vmatprep.subr.mxu0 0.0
  %915 = vmatpush1.msra.mxu0 0.0
  %916 = vmatprep.subr.mxu0 0.0
  %917 = vmatpush1.msra.mxu0 0.0
  %918 = vmatprep.subr.mxu0 0.0
  %919 = vmatpush1.msra.mxu0 0.0
  %920 = vmatprep.subr.mxu0 0.0
  %921 = vmatpush1.msra.mxu0 0.0
  %922 = vmatprep.subr.mxu0 0.0
  %923 = vmatpush1.msra.mxu0 %v386
  %924 = vmatprep.subr.mxu0 0.0
  %925 = vmatpush2.msra.mxu0 0.0
  %926 = vmatprep.subr.mxu0 0.0
  %927 = vmatpush2.msra.mxu0 0.0
  %928 = vmatprep.subr.mxu0 0.0
  %929 = vmatpush2.msra.mxu0 0.0
  %930 = vmatprep.subr.mxu0 0.0
  %931 = vmatpush2.msra.mxu0 0.0
  %932 = vmatprep.subr.mxu0 0.0
  %933 = vmatpush2.msra.mxu0 0.0
  %934 = vmatprep.subr.mxu0 0.0
  %935 = vmatpush2.msra.mxu0 0.0
  %936 = vmatprep.subr.mxu0 0.0
  %937 = vmatpush2.msra.mxu0 0.0
  %938 = vmatprep.subr.mxu0 0.0
  %939 = vmatpush2.msra.mxu0 0.0
  %940 = vmatprep.subr.mxu0 0.0
  %941 = vmatpush2.msra.mxu0 0.0
  %942 = vmatprep.subr.mxu0 0.0
  %943 = vmatpush2.msra.mxu0 0.0
  %944 = vmatprep.subr.mxu0 0.0
  %945 = vmatpush2.msra.mxu0 0.0
  %946 = vmatprep.subr.mxu0 0.0
  %947 = vmatpush2.msra.mxu0 0.0
  %948 = vmatprep.subr.mxu0 0.0
  %949 = vmatpush2.msra.mxu0 0.0
  %950 = vmatprep.subr.mxu0 0.0
  %951 = vmatpush2.msra.mxu0 0.0
  %952 = vmatprep.subr.mxu0 0.0
  %953 = vmatpush2.msra.mxu0 0.0
  %954 = vmatprep.subr.mxu0 0.0
  %955 = vmatpush2.msra.mxu0 0.0
  %956 = vmatprep.mubr.f32.mxu0 0.0
  %957 = vmatmul.mubr.f32.gmra.mxu0 %v890
  %v958 = vpop.f32.mrf.mxu0
  %v959 = vadd.f32 %v886, %v958
  %v960 = vpop.f32.mrf.mxu0
  %961 = vdwg.mxu0
  %962 = vrot.lane.b32.xlu0 %v470, 112
  %v963 = vpop.permute.xlu0 %962
  %964 = vrot.lane.b32.xlu0 %v470, 80
  %v965 = vpop.permute.xlu0 %964
  %v966 = vsel %vm481, %v963, 0
  %v968 = vsel %vm481, %v965, 0
  %970 = vmatprep.subr.mxu0 0.0
  %971 = vmatpush1.xpose.msra.mxu0 0.0
  %972 = vmatprep.subr.mxu0 0.0
  %973 = vmatpush1.xpose.msra.mxu0 0.0
  %974 = vmatprep.subr.mxu0 0.0
  %975 = vmatpush1.xpose.msra.mxu0 0.0
  %976 = vmatprep.subr.mxu0 0.0
  %977 = vmatpush1.xpose.msra.mxu0 0.0
  %978 = vmatprep.subr.mxu0 0.0
  %979 = vmatpush1.xpose.msra.mxu0 0.0
  %980 = vmatprep.subr.mxu0 0.0
  %981 = vmatpush1.xpose.msra.mxu0 0.0
  %982 = vmatprep.subr.mxu0 0.0
  %983 = vmatpush1.xpose.msra.mxu0 0.0
  %984 = vmatprep.subr.mxu0 0.0
  %985 = vmatpush1.xpose.msra.mxu0 0.0
  %986 = vmatprep.subr.mxu0 0.0
  %987 = vmatpush1.xpose.msra.mxu0 0.0
  %988 = vmatprep.subr.mxu0 0.0
  %989 = vmatpush1.xpose.msra.mxu0 0.0
  %990 = vmatprep.subr.mxu0 0.0
  %991 = vmatpush1.xpose.msra.mxu0 0.0
  %992 = vmatprep.subr.mxu0 0.0
  %993 = vmatpush1.xpose.msra.mxu0 0.0
  %994 = vmatprep.subr.mxu0 0.0
  %995 = vmatpush1.xpose.msra.mxu0 0.0
  %996 = vmatprep.subr.mxu0 0.0
  %997 = vmatpush1.xpose.msra.mxu0 0.0
  %998 = vmatprep.subr.mxu0 0.0
  %999 = vmatpush1.xpose.msra.mxu0 0.0
  %1000 = vmatprep.subr.mxu0 0.0
  %1001 = vmatpush1.xpose.msra.mxu0 %v968
  %1002 = vmatprep.subr.mxu0 0.0
  %1003 = vmatpush2.xpose.msra.mxu0 0.0
  %1004 = vmatprep.subr.mxu0 0.0
  %1005 = vmatpush2.xpose.msra.mxu0 0.0
  %1006 = vmatprep.subr.mxu0 0.0
  %1007 = vmatpush2.xpose.msra.mxu0 0.0
  %1008 = vmatprep.subr.mxu0 0.0
  %1009 = vmatpush2.xpose.msra.mxu0 0.0
  %1010 = vmatprep.subr.mxu0 0.0
  %1011 = vmatpush2.xpose.msra.mxu0 0.0
  %1012 = vmatprep.subr.mxu0 0.0
  %1013 = vmatpush2.xpose.msra.mxu0 0.0
  %1014 = vmatprep.subr.mxu0 0.0
  %1015 = vmatpush2.xpose.msra.mxu0 0.0
  %1016 = vmatprep.subr.mxu0 0.0
  %1017 = vmatpush2.xpose.msra.mxu0 0.0
  %1018 = vmatprep.subr.mxu0 0.0
  %1019 = vmatpush2.xpose.msra.mxu0 0.0
  %1020 = vmatprep.subr.mxu0 0.0
  %1021 = vmatpush2.xpose.msra.mxu0 0.0
  %1022 = vmatprep.subr.mxu0 0.0
  %1023 = vmatpush2.xpose.msra.mxu0 0.0
  %1024 = vmatprep.subr.mxu0 0.0
  %1025 = vmatpush2.xpose.msra.mxu0 0.0
  %1026 = vmatprep.subr.mxu0 0.0
  %1027 = vmatpush2.xpose.msra.mxu0 0.0
  %1028 = vmatprep.subr.mxu0 0.0
  %1029 = vmatpush2.xpose.msra.mxu0 0.0
  %1030 = vmatprep.subr.mxu0 0.0
  %1031 = vmatpush2.xpose.msra.mxu0 0.0
  %1032 = vmatprep.subr.mxu0 0.0
  %1033 = vmatpush2.xpose.msra.mxu0 0.0
  %1034 = vmatprep.mubr.f32.mxu0 0.0
  %1035 = vmatmul.mubr.f32.gmra.mxu0 %v966
  %v1036 = vpop.f32.mrf.mxu0
  %v1037 = vadd.f32 0.0, %v1036
  %v1038 = vpop.f32.mrf.mxu0
  %1039 = vdwg.mxu0
  %v1040 = vmul.f32 %v1037, 0.35355338
  %v1041 = vadd.f32 %v1040, %v560
  %v1042 = vsel %vm481, %v1041, -inf
  %1043 = vmax.xlane.f32.xlu0 %v1042
  %v1044 = vpop.xlane.xlu0 %1043
  %v1045 = vsub.f32 %v1041, %v1044
  %v1046 = vmul.f32 %v1045, 1.442695
  %v1047 = vpow.pop %v1046
  %v1048 = vsel %vm481, %v1047, 0.0
  %1049 = vadd.xlane.f32.xlu0 %v1048
  %v1050 = vpop.xlane.xlu0 %1049
  %v1051 = vrcp.pop %v1050
  %v1052 = vmul.f32 %v1047, %v1051
  %1053 = vrot.lane.b32.xlu0 %v470, 48
  %v1054 = vpop.permute.xlu0 %1053
  %v1057 = vsel %vm481, %v1052, 0
  %1059 = vmatprep.subr.mxu0 0.0
  %1060 = vmatpush1.msra.mxu0 0.0
  %1061 = vmatprep.subr.mxu0 0.0
  %1062 = vmatpush1.msra.mxu0 0.0
  %1063 = vmatprep.subr.mxu0 0.0
  %1064 = vmatpush1.msra.mxu0 0.0
  %1065 = vmatprep.subr.mxu0 0.0
  %1066 = vmatpush1.msra.mxu0 0.0
  %1067 = vmatprep.subr.mxu0 0.0
  %1068 = vmatpush1.msra.mxu0 0.0
  %1069 = vmatprep.subr.mxu0 0.0
  %1070 = vmatpush1.msra.mxu0 0.0
  %1071 = vmatprep.subr.mxu0 0.0
  %1072 = vmatpush1.msra.mxu0 0.0
  %1073 = vmatprep.subr.mxu0 0.0
  %1074 = vmatpush1.msra.mxu0 0.0
  %1075 = vmatprep.subr.mxu0 0.0
  %1076 = vmatpush1.msra.mxu0 0.0
  %1077 = vmatprep.subr.mxu0 0.0
  %1078 = vmatpush1.msra.mxu0 0.0
  %1079 = vmatprep.subr.mxu0 0.0
  %1080 = vmatpush1.msra.mxu0 0.0
  %1081 = vmatprep.subr.mxu0 0.0
  %1082 = vmatpush1.msra.mxu0 0.0
  %1083 = vmatprep.subr.mxu0 0.0
  %1084 = vmatpush1.msra.mxu0 0.0
  %1085 = vmatprep.subr.mxu0 0.0
  %1086 = vmatpush1.msra.mxu0 0.0
  %1087 = vmatprep.subr.mxu0 0.0
  %1088 = vmatpush1.msra.mxu0 0.0
  %1089 = vmatprep.subr.mxu0 0.0
  %1090 = vmatpush1.msra.mxu0 %v1054
  %1091 = vmatprep.subr.mxu0 0.0
  %1092 = vmatpush2.msra.mxu0 0.0
  %1093 = vmatprep.subr.mxu0 0.0
  %1094 = vmatpush2.msra.mxu0 0.0
  %1095 = vmatprep.subr.mxu0 0.0
  %1096 = vmatpush2.msra.mxu0 0.0
  %1097 = vmatprep.subr.mxu0 0.0
  %1098 = vmatpush2.msra.mxu0 0.0
  %1099 = vmatprep.subr.mxu0 0.0
  %1100 = vmatpush2.msra.mxu0 0.0
  %1101 = vmatprep.subr.mxu0 0.0
  %1102 = vmatpush2.msra.mxu0 0.0
  %1103 = vmatprep.subr.mxu0 0.0
  %1104 = vmatpush2.msra.mxu0 0.0
  %1105 = vmatprep.subr.mxu0 0.0
  %1106 = vmatpush2.msra.mxu0 0.0
  %1107 = vmatprep.subr.mxu0 0.0
  %1108 = vmatpush2.msra.mxu0 0.0
  %1109 = vmatprep.subr.mxu0 0.0
  %1110 = vmatpush2.msra.mxu0 0.0
  %1111 = vmatprep.subr.mxu0 0.0
  %1112 = vmatpush2.msra.mxu0 0.0
  %1113 = vmatprep.subr.mxu0 0.0
  %1114 = vmatpush2.msra.mxu0 0.0
  %1115 = vmatprep.subr.mxu0 0.0
  %1116 = vmatpush2.msra.mxu0 0.0
  %1117 = vmatprep.subr.mxu0 0.0
  %1118 = vmatpush2.msra.mxu0 0.0
  %1119 = vmatprep.subr.mxu0 0.0
  %1120 = vmatpush2.msra.mxu0 0.0
  %1121 = vmatprep.subr.mxu0 0.0
  %1122 = vmatpush2.msra.mxu0 0.0
  %1123 = vmatprep.mubr.f32.mxu0 0.0
  %1124 = vmatmul.mubr.f32.gmra.mxu0 %v1057
  %v1125 = vpop.f32.mrf.mxu0
  %v1126 = vadd.f32 0.0, %v1125
  %v1127 = vpop.f32.mrf.mxu0
  %1128 = vdwg.mxu0
  %v1130 = vsel %vm481, %v1126, 0
  %1132 = vmatprep.subr.mxu0 0.0
  %1133 = vmatpush1.msra.mxu0 0.0
  %1134 = vmatprep.subr.mxu0 0.0
  %1135 = vmatpush1.msra.mxu0 0.0
  %1136 = vmatprep.subr.mxu0 0.0
  %1137 = vmatpush1.msra.mxu0 0.0
  %1138 = vmatprep.subr.mxu0 0.0
  %1139 = vmatpush1.msra.mxu0 0.0
  %1140 = vmatprep.subr.mxu0 0.0
  %1141 = vmatpush1.msra.mxu0 0.0
  %1142 = vmatprep.subr.mxu0 0.0
  %1143 = vmatpush1.msra.mxu0 0.0
  %1144 = vmatprep.subr.mxu0 0.0
  %1145 = vmatpush1.msra.mxu0 0.0
  %1146 = vmatprep.subr.mxu0 0.0
  %1147 = vmatpush1.msra.mxu0 0.0
  %1148 = vmatprep.subr.mxu0 0.0
  %1149 = vmatpush1.msra.mxu0 0.0
  %1150 = vmatprep.subr.mxu0 0.0
  %1151 = vmatpush1.msra.mxu0 0.0
  %1152 = vmatprep.subr.mxu0 0.0
  %1153 = vmatpush1.msra.mxu0 0.0
  %1154 = vmatprep.subr.mxu0 0.0
  %1155 = vmatpush1.msra.mxu0 0.0
  %1156 = vmatprep.subr.mxu0 0.0
  %1157 = vmatpush1.msra.mxu0 0.0
  %1158 = vmatprep.subr.mxu0 0.0
  %1159 = vmatpush1.msra.mxu0 0.0
  %1160 = vmatprep.subr.mxu0 0.0
  %1161 = vmatpush1.msra.mxu0 0.0
  %1162 = vmatprep.subr.mxu0 0.0
  %1163 = vmatpush1.msra.mxu0 %v388
  %1164 = vmatprep.subr.mxu0 0.0
  %1165 = vmatpush2.msra.mxu0 0.0
  %1166 = vmatprep.subr.mxu0 0.0
  %1167 = vmatpush2.msra.mxu0 0.0
  %1168 = vmatprep.subr.mxu0 0.0
  %1169 = vmatpush2.msra.mxu0 0.0
  %1170 = vmatprep.subr.mxu0 0.0
  %1171 = vmatpush2.msra.mxu0 0.0
  %1172 = vmatprep.subr.mxu0 0.0
  %1173 = vmatpush2.msra.mxu0 0.0
  %1174 = vmatprep.subr.mxu0 0.0
  %1175 = vmatpush2.msra.mxu0 0.0
  %1176 = vmatprep.subr.mxu0 0.0
  %1177 = vmatpush2.msra.mxu0 0.0
  %1178 = vmatprep.subr.mxu0 0.0
  %1179 = vmatpush2.msra.mxu0 0.0
  %1180 = vmatprep.subr.mxu0 0.0
  %1181 = vmatpush2.msra.mxu0 0.0
  %1182 = vmatprep.subr.mxu0 0.0
  %1183 = vmatpush2.msra.mxu0 0.0
  %1184 = vmatprep.subr.mxu0 0.0
  %1185 = vmatpush2.msra.mxu0 0.0
  %1186 = vmatprep.subr.mxu0 0.0
  %1187 = vmatpush2.msra.mxu0 0.0
  %1188 = vmatprep.subr.mxu0 0.0
  %1189 = vmatpush2.msra.mxu0 0.0
  %1190 = vmatprep.subr.mxu0 0.0
  %1191 = vmatpush2.msra.mxu0 0.0
  %1192 = vmatprep.subr.mxu0 0.0
  %1193 = vmatpush2.msra.mxu0 0.0
  %1194 = vmatprep.subr.mxu0 0.0
  %1195 = vmatpush2.msra.mxu0 0.0
  %1196 = vmatprep.mubr.f32.mxu0 0.0
  %1197 = vmatmul.mubr.f32.gmra.mxu0 %v1130
  %v1198 = vpop.f32.mrf.mxu0
  %v1199 = vadd.f32 0.0, %v1198
  %v1200 = vpop.f32.mrf.mxu0
  %1201 = vdwg.mxu0
  %v1202 = vadd.f32 %v959, %v1199
  %1203 = vrot.lane.b32.xlu0 %v470, 104
  %v1204 = vpop.permute.xlu0 %1203
  %1205 = vrot.lane.b32.xlu0 %v470, 72
  %v1206 = vpop.permute.xlu0 %1205
  %v1207 = vsel %vm481, %v1204, 0
  %v1209 = vsel %vm481, %v1206, 0
  %1211 = vmatprep.subr.mxu0 0.0
  %1212 = vmatpush1.xpose.msra.mxu0 0.0
  %1213 = vmatprep.subr.mxu0 0.0
  %1214 = vmatpush1.xpose.msra.mxu0 0.0
  %1215 = vmatprep.subr.mxu0 0.0
  %1216 = vmatpush1.xpose.msra.mxu0 0.0
  %1217 = vmatprep.subr.mxu0 0.0
  %1218 = vmatpush1.xpose.msra.mxu0 0.0
  %1219 = vmatprep.subr.mxu0 0.0
  %1220 = vmatpush1.xpose.msra.mxu0 0.0
  %1221 = vmatprep.subr.mxu0 0.0
  %1222 = vmatpush1.xpose.msra.mxu0 0.0
  %1223 = vmatprep.subr.mxu0 0.0
  %1224 = vmatpush1.xpose.msra.mxu0 0.0
  %1225 = vmatprep.subr.mxu0 0.0
  %1226 = vmatpush1.xpose.msra.mxu0 0.0
  %1227 = vmatprep.subr.mxu0 0.0
  %1228 = vmatpush1.xpose.msra.mxu0 0.0
  %1229 = vmatprep.subr.mxu0 0.0
  %1230 = vmatpush1.xpose.msra.mxu0 0.0
  %1231 = vmatprep.subr.mxu0 0.0
  %1232 = vmatpush1.xpose.msra.mxu0 0.0
  %1233 = vmatprep.subr.mxu0 0.0
  %1234 = vmatpush1.xpose.msra.mxu0 0.0
  %1235 = vmatprep.subr.mxu0 0.0
  %1236 = vmatpush1.xpose.msra.mxu0 0.0
  %1237 = vmatprep.subr.mxu0 0.0
  %1238 = vmatpush1.xpose.msra.mxu0 0.0
  %1239 = vmatprep.subr.mxu0 0.0
  %1240 = vmatpush1.xpose.msra.mxu0 0.0
  %1241 = vmatprep.subr.mxu0 0.0
  %1242 = vmatpush1.xpose.msra.mxu0 %v1209
  %1243 = vmatprep.subr.mxu0 0.0
  %1244 = vmatpush2.xpose.msra.mxu0 0.0
  %1245 = vmatprep.subr.mxu0 0.0
  %1246 = vmatpush2.xpose.msra.mxu0 0.0
  %1247 = vmatprep.subr.mxu0 0.0
  %1248 = vmatpush2.xpose.msra.mxu0 0.0
  %1249 = vmatprep.subr.mxu0 0.0
  %1250 = vmatpush2.xpose.msra.mxu0 0.0
  %1251 = vmatprep.subr.mxu0 0.0
  %1252 = vmatpush2.xpose.msra.mxu0 0.0
  %1253 = vmatprep.subr.mxu0 0.0
  %1254 = vmatpush2.xpose.msra.mxu0 0.0
  %1255 = vmatprep.subr.mxu0 0.0
  %1256 = vmatpush2.xpose.msra.mxu0 0.0
  %1257 = vmatprep.subr.mxu0 0.0
  %1258 = vmatpush2.xpose.msra.mxu0 0.0
  %1259 = vmatprep.subr.mxu0 0.0
  %1260 = vmatpush2.xpose.msra.mxu0 0.0
  %1261 = vmatprep.subr.mxu0 0.0
  %1262 = vmatpush2.xpose.msra.mxu0 0.0
  %1263 = vmatprep.subr.mxu0 0.0
  %1264 = vmatpush2.xpose.msra.mxu0 0.0
  %1265 = vmatprep.subr.mxu0 0.0
  %1266 = vmatpush2.xpose.msra.mxu0 0.0
  %1267 = vmatprep.subr.mxu0 0.0
  %1268 = vmatpush2.xpose.msra.mxu0 0.0
  %1269 = vmatprep.subr.mxu0 0.0
  %1270 = vmatpush2.xpose.msra.mxu0 0.0
  %1271 = vmatprep.subr.mxu0 0.0
  %1272 = vmatpush2.xpose.msra.mxu0 0.0
  %1273 = vmatprep.subr.mxu0 0.0
  %1274 = vmatpush2.xpose.msra.mxu0 0.0
  %1275 = vmatprep.mubr.f32.mxu0 0.0
  %1276 = vmatmul.mubr.f32.gmra.mxu0 %v1207
  %v1277 = vpop.f32.mrf.mxu0
  %v1278 = vadd.f32 0.0, %v1277
  %v1279 = vpop.f32.mrf.mxu0
  %1280 = vdwg.mxu0
  %v1281 = vmul.f32 %v1278, 0.35355338
  %v1282 = vadd.f32 %v1281, %v560
  %v1283 = vsel %vm481, %v1282, -inf
  %1284 = vmax.xlane.f32.xlu0 %v1283
  %v1285 = vpop.xlane.xlu0 %1284
  %v1286 = vsub.f32 %v1282, %v1285
  %v1287 = vmul.f32 %v1286, 1.442695
  %v1288 = vpow.pop %v1287
  %v1289 = vsel %vm481, %v1288, 0.0
  %1290 = vadd.xlane.f32.xlu0 %v1289
  %v1291 = vpop.xlane.xlu0 %1290
  %v1292 = vrcp.pop %v1291
  %v1293 = vmul.f32 %v1288, %v1292
  %1294 = vrot.lane.b32.xlu0 %v470, 40
  %v1295 = vpop.permute.xlu0 %1294
  %v1298 = vsel %vm481, %v1293, 0
  %1300 = vmatprep.subr.mxu0 0.0
  %1301 = vmatpush1.msra.mxu0 0.0
  %1302 = vmatprep.subr.mxu0 0.0
  %1303 = vmatpush1.msra.mxu0 0.0
  %1304 = vmatprep.subr.mxu0 0.0
  %1305 = vmatpush1.msra.mxu0 0.0
  %1306 = vmatprep.subr.mxu0 0.0
  %1307 = vmatpush1.msra.mxu0 0.0
  %1308 = vmatprep.subr.mxu0 0.0
  %1309 = vmatpush1.msra.mxu0 0.0
  %1310 = vmatprep.subr.mxu0 0.0
  %1311 = vmatpush1.msra.mxu0 0.0
  %1312 = vmatprep.subr.mxu0 0.0
  %1313 = vmatpush1.msra.mxu0 0.0
  %1314 = vmatprep.subr.mxu0 0.0
  %1315 = vmatpush1.msra.mxu0 0.0
  %1316 = vmatprep.subr.mxu0 0.0
  %1317 = vmatpush1.msra.mxu0 0.0
  %1318 = vmatprep.subr.mxu0 0.0
  %1319 = vmatpush1.msra.mxu0 0.0
  %1320 = vmatprep.subr.mxu0 0.0
  %1321 = vmatpush1.msra.mxu0 0.0
  %1322 = vmatprep.subr.mxu0 0.0
  %1323 = vmatpush1.msra.mxu0 0.0
  %1324 = vmatprep.subr.mxu0 0.0
  %1325 = vmatpush1.msra.mxu0 0.0
  %1326 = vmatprep.subr.mxu0 0.0
  %1327 = vmatpush1.msra.mxu0 0.0
  %1328 = vmatprep.subr.mxu0 0.0
  %1329 = vmatpush1.msra.mxu0 0.0
  %1330 = vmatprep.subr.mxu0 0.0
  %1331 = vmatpush1.msra.mxu0 %v1295
  %1332 = vmatprep.subr.mxu0 0.0
  %1333 = vmatpush2.msra.mxu0 0.0
  %1334 = vmatprep.subr.mxu0 0.0
  %1335 = vmatpush2.msra.mxu0 0.0
  %1336 = vmatprep.subr.mxu0 0.0
  %1337 = vmatpush2.msra.mxu0 0.0
  %1338 = vmatprep.subr.mxu0 0.0
  %1339 = vmatpush2.msra.mxu0 0.0
  %1340 = vmatprep.subr.mxu0 0.0
  %1341 = vmatpush2.msra.mxu0 0.0
  %1342 = vmatprep.subr.mxu0 0.0
  %1343 = vmatpush2.msra.mxu0 0.0
  %1344 = vmatprep.subr.mxu0 0.0
  %1345 = vmatpush2.msra.mxu0 0.0
  %1346 = vmatprep.subr.mxu0 0.0
  %1347 = vmatpush2.msra.mxu0 0.0
  %1348 = vmatprep.subr.mxu0 0.0
  %1349 = vmatpush2.msra.mxu0 0.0
  %1350 = vmatprep.subr.mxu0 0.0
  %1351 = vmatpush2.msra.mxu0 0.0
  %1352 = vmatprep.subr.mxu0 0.0
  %1353 = vmatpush2.msra.mxu0 0.0
  %1354 = vmatprep.subr.mxu0 0.0
  %1355 = vmatpush2.msra.mxu0 0.0
  %1356 = vmatprep.subr.mxu0 0.0
  %1357 = vmatpush2.msra.mxu0 0.0
  %1358 = vmatprep.subr.mxu0 0.0
  %1359 = vmatpush2.msra.mxu0 0.0
  %1360 = vmatprep.subr.mxu0 0.0
  %1361 = vmatpush2.msra.mxu0 0.0
  %1362 = vmatprep.subr.mxu0 0.0
  %1363 = vmatpush2.msra.mxu0 0.0
  %1364 = vmatprep.mubr.f32.mxu0 0.0
  %1365 = vmatmul.mubr.f32.gmra.mxu0 %v1298
  %v1366 = vpop.f32.mrf.mxu0
  %v1367 = vadd.f32 0.0, %v1366
  %v1368 = vpop.f32.mrf.mxu0
  %1369 = vdwg.mxu0
  %v1371 = vsel %vm481, %v1367, 0
  %1373 = vmatprep.subr.mxu0 0.0
  %1374 = vmatpush1.msra.mxu0 0.0
  %1375 = vmatprep.subr.mxu0 0.0
  %1376 = vmatpush1.msra.mxu0 0.0
  %1377 = vmatprep.subr.mxu0 0.0
  %1378 = vmatpush1.msra.mxu0 0.0
  %1379 = vmatprep.subr.mxu0 0.0
  %1380 = vmatpush1.msra.mxu0 0.0
  %1381 = vmatprep.subr.mxu0 0.0
  %1382 = vmatpush1.msra.mxu0 0.0
  %1383 = vmatprep.subr.mxu0 0.0
  %1384 = vmatpush1.msra.mxu0 0.0
  %1385 = vmatprep.subr.mxu0 0.0
  %1386 = vmatpush1.msra.mxu0 0.0
  %1387 = vmatprep.subr.mxu0 0.0
  %1388 = vmatpush1.msra.mxu0 0.0
  %1389 = vmatprep.subr.mxu0 0.0
  %1390 = vmatpush1.msra.mxu0 0.0
  %1391 = vmatprep.subr.mxu0 0.0
  %1392 = vmatpush1.msra.mxu0 0.0
  %1393 = vmatprep.subr.mxu0 0.0
  %1394 = vmatpush1.msra.mxu0 0.0
  %1395 = vmatprep.subr.mxu0 0.0
  %1396 = vmatpush1.msra.mxu0 0.0
  %1397 = vmatprep.subr.mxu0 0.0
  %1398 = vmatpush1.msra.mxu0 0.0
  %1399 = vmatprep.subr.mxu0 0.0
  %1400 = vmatpush1.msra.mxu0 0.0
  %1401 = vmatprep.subr.mxu0 0.0
  %1402 = vmatpush1.msra.mxu0 0.0
  %1403 = vmatprep.subr.mxu0 0.0
  %1404 = vmatpush1.msra.mxu0 %v389
  %1405 = vmatprep.subr.mxu0 0.0
  %1406 = vmatpush2.msra.mxu0 0.0
  %1407 = vmatprep.subr.mxu0 0.0
  %1408 = vmatpush2.msra.mxu0 0.0
  %1409 = vmatprep.subr.mxu0 0.0
  %1410 = vmatpush2.msra.mxu0 0.0
  %1411 = vmatprep.subr.mxu0 0.0
  %1412 = vmatpush2.msra.mxu0 0.0
  %1413 = vmatprep.subr.mxu0 0.0
  %1414 = vmatpush2.msra.mxu0 0.0
  %1415 = vmatprep.subr.mxu0 0.0
  %1416 = vmatpush2.msra.mxu0 0.0
  %1417 = vmatprep.subr.mxu0 0.0
  %1418 = vmatpush2.msra.mxu0 0.0
  %1419 = vmatprep.subr.mxu0 0.0
  %1420 = vmatpush2.msra.mxu0 0.0
  %1421 = vmatprep.subr.mxu0 0.0
  %1422 = vmatpush2.msra.mxu0 0.0
  %1423 = vmatprep.subr.mxu0 0.0
  %1424 = vmatpush2.msra.mxu0 0.0
  %1425 = vmatprep.subr.mxu0 0.0
  %1426 = vmatpush2.msra.mxu0 0.0
  %1427 = vmatprep.subr.mxu0 0.0
  %1428 = vmatpush2.msra.mxu0 0.0
  %1429 = vmatprep.subr.mxu0 0.0
  %1430 = vmatpush2.msra.mxu0 0.0
  %1431 = vmatprep.subr.mxu0 0.0
  %1432 = vmatpush2.msra.mxu0 0.0
  %1433 = vmatprep.subr.mxu0 0.0
  %1434 = vmatpush2.msra.mxu0 0.0
  %1435 = vmatprep.subr.mxu0 0.0
  %1436 = vmatpush2.msra.mxu0 0.0
  %1437 = vmatprep.mubr.f32.mxu0 0.0
  %1438 = vmatmul.mubr.f32.gmra.mxu0 %v1371
  %v1439 = vpop.f32.mrf.mxu0
  %v1440 = vadd.f32 0.0, %v1439
  %v1441 = vpop.f32.mrf.mxu0
  %1442 = vdwg.mxu0
  %v1443 = vadd.f32 %v1202, %v1440
  %1445 = vrot.lane.b32.xlu0 %v475, 96
  %v1446 = vpop.permute.xlu0 %1445
  %v1447 = vsel %vm481, %v475, 0
  %v1449 = vsel %vm481, %v1446, 0
  %1451 = vmatprep.subr.mxu0 0.0
  %1452 = vmatpush1.xpose.msra.mxu0 0.0
  %1453 = vmatprep.subr.mxu0 0.0
  %1454 = vmatpush1.xpose.msra.mxu0 0.0
  %1455 = vmatprep.subr.mxu0 0.0
  %1456 = vmatpush1.xpose.msra.mxu0 0.0
  %1457 = vmatprep.subr.mxu0 0.0
  %1458 = vmatpush1.xpose.msra.mxu0 0.0
  %1459 = vmatprep.subr.mxu0 0.0
  %1460 = vmatpush1.xpose.msra.mxu0 0.0
  %1461 = vmatprep.subr.mxu0 0.0
  %1462 = vmatpush1.xpose.msra.mxu0 0.0
  %1463 = vmatprep.subr.mxu0 0.0
  %1464 = vmatpush1.xpose.msra.mxu0 0.0
  %1465 = vmatprep.subr.mxu0 0.0
  %1466 = vmatpush1.xpose.msra.mxu0 0.0
  %1467 = vmatprep.subr.mxu0 0.0
  %1468 = vmatpush1.xpose.msra.mxu0 0.0
  %1469 = vmatprep.subr.mxu0 0.0
  %1470 = vmatpush1.xpose.msra.mxu0 0.0
  %1471 = vmatprep.subr.mxu0 0.0
  %1472 = vmatpush1.xpose.msra.mxu0 0.0
  %1473 = vmatprep.subr.mxu0 0.0
  %1474 = vmatpush1.xpose.msra.mxu0 0.0
  %1475 = vmatprep.subr.mxu0 0.0
  %1476 = vmatpush1.xpose.msra.mxu0 0.0
  %1477 = vmatprep.subr.mxu0 0.0
  %1478 = vmatpush1.xpose.msra.mxu0 0.0
  %1479 = vmatprep.subr.mxu0 0.0
  %1480 = vmatpush1.xpose.msra.mxu0 0.0
  %1481 = vmatprep.subr.mxu0 0.0
  %1482 = vmatpush1.xpose.msra.mxu0 %v1449
  %1483 = vmatprep.subr.mxu0 0.0
  %1484 = vmatpush2.xpose.msra.mxu0 0.0
  %1485 = vmatprep.subr.mxu0 0.0
  %1486 = vmatpush2.xpose.msra.mxu0 0.0
  %1487 = vmatprep.subr.mxu0 0.0
  %1488 = vmatpush2.xpose.msra.mxu0 0.0
  %1489 = vmatprep.subr.mxu0 0.0
  %1490 = vmatpush2.xpose.msra.mxu0 0.0
  %1491 = vmatprep.subr.mxu0 0.0
  %1492 = vmatpush2.xpose.msra.mxu0 0.0
  %1493 = vmatprep.subr.mxu0 0.0
  %1494 = vmatpush2.xpose.msra.mxu0 0.0
  %1495 = vmatprep.subr.mxu0 0.0
  %1496 = vmatpush2.xpose.msra.mxu0 0.0
  %1497 = vmatprep.subr.mxu0 0.0
  %1498 = vmatpush2.xpose.msra.mxu0 0.0
  %1499 = vmatprep.subr.mxu0 0.0
  %1500 = vmatpush2.xpose.msra.mxu0 0.0
  %1501 = vmatprep.subr.mxu0 0.0
  %1502 = vmatpush2.xpose.msra.mxu0 0.0
  %1503 = vmatprep.subr.mxu0 0.0
  %1504 = vmatpush2.xpose.msra.mxu0 0.0
  %1505 = vmatprep.subr.mxu0 0.0
  %1506 = vmatpush2.xpose.msra.mxu0 0.0
  %1507 = vmatprep.subr.mxu0 0.0
  %1508 = vmatpush2.xpose.msra.mxu0 0.0
  %1509 = vmatprep.subr.mxu0 0.0
  %1510 = vmatpush2.xpose.msra.mxu0 0.0
  %1511 = vmatprep.subr.mxu0 0.0
  %1512 = vmatpush2.xpose.msra.mxu0 0.0
  %1513 = vmatprep.subr.mxu0 0.0
  %1514 = vmatpush2.xpose.msra.mxu0 0.0
  %1515 = vmatprep.mubr.f32.mxu0 0.0
  %1516 = vmatmul.mubr.f32.gmra.mxu0 %v1447
  %v1517 = vpop.f32.mrf.mxu0
  %v1518 = vadd.f32 0.0, %v1517
  %v1519 = vpop.f32.mrf.mxu0
  %1520 = vdwg.mxu0
  %v1521 = vmul.f32 %v1518, 0.35355338
  %v1522 = vlaneseq
  %v1523 = vshrl.u32 %v1522, 7
  %v1524 = vsub.s32 1, %v1523
  %v1525 = vrot.slane %v381, %v1524
  %v1526 = vadd.f32 %v1521, %v1525
  %v1527 = vsel %vm481, %v1526, -inf
  %1528 = vmax.xlane.f32.xlu0 %v1527
  %v1529 = vpop.xlane.xlu0 %1528
  %v1530 = vsub.f32 %v1526, %v1529
  %v1531 = vmul.f32 %v1530, 1.442695
  %v1532 = vpow.pop %v1531
  %v1533 = vsel %vm481, %v1532, 0.0
  %1534 = vadd.xlane.f32.xlu0 %v1533
  %v1535 = vpop.xlane.xlu0 %1534
  %v1536 = vrcp.pop %v1535
  %v1537 = vmul.f32 %v1532, %v1536
  %1538 = vrot.lane.b32.xlu0 %v475, 64
  %v1539 = vpop.permute.xlu0 %1538
  %v1542 = vsel %vm481, %v1537, 0
  %1544 = vmatprep.subr.mxu0 0.0
  %1545 = vmatpush1.msra.mxu0 0.0
  %1546 = vmatprep.subr.mxu0 0.0
  %1547 = vmatpush1.msra.mxu0 0.0
  %1548 = vmatprep.subr.mxu0 0.0
  %1549 = vmatpush1.msra.mxu0 0.0
  %1550 = vmatprep.subr.mxu0 0.0
  %1551 = vmatpush1.msra.mxu0 0.0
  %1552 = vmatprep.subr.mxu0 0.0
  %1553 = vmatpush1.msra.mxu0 0.0
  %1554 = vmatprep.subr.mxu0 0.0
  %1555 = vmatpush1.msra.mxu0 0.0
  %1556 = vmatprep.subr.mxu0 0.0
  %1557 = vmatpush1.msra.mxu0 0.0
  %1558 = vmatprep.subr.mxu0 0.0
  %1559 = vmatpush1.msra.mxu0 0.0
  %1560 = vmatprep.subr.mxu0 0.0
  %1561 = vmatpush1.msra.mxu0 0.0
  %1562 = vmatprep.subr.mxu0 0.0
  %1563 = vmatpush1.msra.mxu0 0.0
  %1564 = vmatprep.subr.mxu0 0.0
  %1565 = vmatpush1.msra.mxu0 0.0
  %1566 = vmatprep.subr.mxu0 0.0
  %1567 = vmatpush1.msra.mxu0 0.0
  %1568 = vmatprep.subr.mxu0 0.0
  %1569 = vmatpush1.msra.mxu0 0.0
  %1570 = vmatprep.subr.mxu0 0.0
  %1571 = vmatpush1.msra.mxu0 0.0
  %1572 = vmatprep.subr.mxu0 0.0
  %1573 = vmatpush1.msra.mxu0 0.0
  %1574 = vmatprep.subr.mxu0 0.0
  %1575 = vmatpush1.msra.mxu0 %v1539
  %1576 = vmatprep.subr.mxu0 0.0
  %1577 = vmatpush2.msra.mxu0 0.0
  %1578 = vmatprep.subr.mxu0 0.0
  %1579 = vmatpush2.msra.mxu0 0.0
  %1580 = vmatprep.subr.mxu0 0.0
  %1581 = vmatpush2.msra.mxu0 0.0
  %1582 = vmatprep.subr.mxu0 0.0
  %1583 = vmatpush2.msra.mxu0 0.0
  %1584 = vmatprep.subr.mxu0 0.0
  %1585 = vmatpush2.msra.mxu0 0.0
  %1586 = vmatprep.subr.mxu0 0.0
  %1587 = vmatpush2.msra.mxu0 0.0
  %1588 = vmatprep.subr.mxu0 0.0
  %1589 = vmatpush2.msra.mxu0 0.0
  %1590 = vmatprep.subr.mxu0 0.0
  %1591 = vmatpush2.msra.mxu0 0.0
  %1592 = vmatprep.subr.mxu0 0.0
  %1593 = vmatpush2.msra.mxu0 0.0
  %1594 = vmatprep.subr.mxu0 0.0
  %1595 = vmatpush2.msra.mxu0 0.0
  %1596 = vmatprep.subr.mxu0 0.0
  %1597 = vmatpush2.msra.mxu0 0.0
  %1598 = vmatprep.subr.mxu0 0.0
  %1599 = vmatpush2.msra.mxu0 0.0
  %1600 = vmatprep.subr.mxu0 0.0
  %1601 = vmatpush2.msra.mxu0 0.0
  %1602 = vmatprep.subr.mxu0 0.0
  %1603 = vmatpush2.msra.mxu0 0.0
  %1604 = vmatprep.subr.mxu0 0.0
  %1605 = vmatpush2.msra.mxu0 0.0
  %1606 = vmatprep.subr.mxu0 0.0
  %1607 = vmatpush2.msra.mxu0 0.0
  %1608 = vmatprep.mubr.f32.mxu0 0.0
  %1609 = vmatmul.mubr.f32.gmra.mxu0 %v1542
  %v1610 = vpop.f32.mrf.mxu0
  %v1611 = vadd.f32 0.0, %v1610
  %v1612 = vpop.f32.mrf.mxu0
  %1613 = vdwg.mxu0
  %1614 = vrot.lane.b32.xlu0 %v475, 120
  %v1615 = vpop.permute.xlu0 %1614
  %1616 = vrot.lane.b32.xlu0 %v475, 88
  %v1617 = vpop.permute.xlu0 %1616
  %v1618 = vsel %vm481, %v1615, 0
  %v1620 = vsel %vm481, %v1617, 0
  %1622 = vmatprep.subr.mxu0 0.0
  %1623 = vmatpush1.xpose.msra.mxu0 0.0
  %1624 = vmatprep.subr.mxu0 0.0
  %1625 = vmatpush1.xpose.msra.mxu0 0.0
  %1626 = vmatprep.subr.mxu0 0.0
  %1627 = vmatpush1.xpose.msra.mxu0 0.0
  %1628 = vmatprep.subr.mxu0 0.0
  %1629 = vmatpush1.xpose.msra.mxu0 0.0
  %1630 = vmatprep.subr.mxu0 0.0
  %1631 = vmatpush1.xpose.msra.mxu0 0.0
  %1632 = vmatprep.subr.mxu0 0.0
  %1633 = vmatpush1.xpose.msra.mxu0 0.0
  %1634 = vmatprep.subr.mxu0 0.0
  %1635 = vmatpush1.xpose.msra.mxu0 0.0
  %1636 = vmatprep.subr.mxu0 0.0
  %1637 = vmatpush1.xpose.msra.mxu0 0.0
  %1638 = vmatprep.subr.mxu0 0.0
  %1639 = vmatpush1.xpose.msra.mxu0 0.0
  %1640 = vmatprep.subr.mxu0 0.0
  %1641 = vmatpush1.xpose.msra.mxu0 0.0
  %1642 = vmatprep.subr.mxu0 0.0
  %1643 = vmatpush1.xpose.msra.mxu0 0.0
  %1644 = vmatprep.subr.mxu0 0.0
  %1645 = vmatpush1.xpose.msra.mxu0 0.0
  %1646 = vmatprep.subr.mxu0 0.0
  %1647 = vmatpush1.xpose.msra.mxu0 0.0
  %1648 = vmatprep.subr.mxu0 0.0
  %1649 = vmatpush1.xpose.msra.mxu0 0.0
  %1650 = vmatprep.subr.mxu0 0.0
  %1651 = vmatpush1.xpose.msra.mxu0 0.0
  %1652 = vmatprep.subr.mxu0 0.0
  %1653 = vmatpush1.xpose.msra.mxu0 %v1620
  %1654 = vmatprep.subr.mxu0 0.0
  %1655 = vmatpush2.xpose.msra.mxu0 0.0
  %1656 = vmatprep.subr.mxu0 0.0
  %1657 = vmatpush2.xpose.msra.mxu0 0.0
  %1658 = vmatprep.subr.mxu0 0.0
  %1659 = vmatpush2.xpose.msra.mxu0 0.0
  %1660 = vmatprep.subr.mxu0 0.0
  %1661 = vmatpush2.xpose.msra.mxu0 0.0
  %1662 = vmatprep.subr.mxu0 0.0
  %1663 = vmatpush2.xpose.msra.mxu0 0.0
  %1664 = vmatprep.subr.mxu0 0.0
  %1665 = vmatpush2.xpose.msra.mxu0 0.0
  %1666 = vmatprep.subr.mxu0 0.0
  %1667 = vmatpush2.xpose.msra.mxu0 0.0
  %1668 = vmatprep.subr.mxu0 0.0
  %1669 = vmatpush2.xpose.msra.mxu0 0.0
  %1670 = vmatprep.subr.mxu0 0.0
  %1671 = vmatpush2.xpose.msra.mxu0 0.0
  %1672 = vmatprep.subr.mxu0 0.0
  %1673 = vmatpush2.xpose.msra.mxu0 0.0
  %1674 = vmatprep.subr.mxu0 0.0
  %1675 = vmatpush2.xpose.msra.mxu0 0.0
  %1676 = vmatprep.subr.mxu0 0.0
  %1677 = vmatpush2.xpose.msra.mxu0 0.0
  %1678 = vmatprep.subr.mxu0 0.0
  %1679 = vmatpush2.xpose.msra.mxu0 0.0
  %1680 = vmatprep.subr.mxu0 0.0
  %1681 = vmatpush2.xpose.msra.mxu0 0.0
  %1682 = vmatprep.subr.mxu0 0.0
  %1683 = vmatpush2.xpose.msra.mxu0 0.0
  %1684 = vmatprep.subr.mxu0 0.0
  %1685 = vmatpush2.xpose.msra.mxu0 0.0
  %1686 = vmatprep.mubr.f32.mxu0 0.0
  %1687 = vmatmul.mubr.f32.gmra.mxu0 %v1618
  %v1688 = vpop.f32.mrf.mxu0
  %v1689 = vadd.f32 0.0, %v1688
  %v1690 = vpop.f32.mrf.mxu0
  %1691 = vdwg.mxu0
  %v1692 = vmul.f32 %v1689, 0.35355338
  %v1693 = vadd.f32 %v1692, %v1525
  %v1694 = vsel %vm481, %v1693, -inf
  %1695 = vmax.xlane.f32.xlu0 %v1694
  %v1696 = vpop.xlane.xlu0 %1695
  %v1697 = vsub.f32 %v1693, %v1696
  %v1698 = vmul.f32 %v1697, 1.442695
  %v1699 = vpow.pop %v1698
  %v1700 = vsel %vm481, %v1699, 0.0
  %1701 = vadd.xlane.f32.xlu0 %v1700
  %v1702 = vpop.xlane.xlu0 %1701
  %v1703 = vrcp.pop %v1702
  %v1704 = vmul.f32 %v1699, %v1703
  %1705 = vrot.lane.b32.xlu0 %v475, 56
  %v1706 = vpop.permute.xlu0 %1705
  %v1709 = vsel %vm481, %v1704, 0
  %1711 = vmatprep.subr.mxu0 0.0
  %1712 = vmatpush1.msra.mxu0 0.0
  %1713 = vmatprep.subr.mxu0 0.0
  %1714 = vmatpush1.msra.mxu0 0.0
  %1715 = vmatprep.subr.mxu0 0.0
  %1716 = vmatpush1.msra.mxu0 0.0
  %1717 = vmatprep.subr.mxu0 0.0
  %1718 = vmatpush1.msra.mxu0 0.0
  %1719 = vmatprep.subr.mxu0 0.0
  %1720 = vmatpush1.msra.mxu0 0.0
  %1721 = vmatprep.subr.mxu0 0.0
  %1722 = vmatpush1.msra.mxu0 0.0
  %1723 = vmatprep.subr.mxu0 0.0
  %1724 = vmatpush1.msra.mxu0 0.0
  %1725 = vmatprep.subr.mxu0 0.0
  %1726 = vmatpush1.msra.mxu0 0.0
  %1727 = vmatprep.subr.mxu0 0.0
  %1728 = vmatpush1.msra.mxu0 0.0
  %1729 = vmatprep.subr.mxu0 0.0
  %1730 = vmatpush1.msra.mxu0 0.0
  %1731 = vmatprep.subr.mxu0 0.0
  %1732 = vmatpush1.msra.mxu0 0.0
  %1733 = vmatprep.subr.mxu0 0.0
  %1734 = vmatpush1.msra.mxu0 0.0
  %1735 = vmatprep.subr.mxu0 0.0
  %1736 = vmatpush1.msra.mxu0 0.0
  %1737 = vmatprep.subr.mxu0 0.0
  %1738 = vmatpush1.msra.mxu0 0.0
  %1739 = vmatprep.subr.mxu0 0.0
  %1740 = vmatpush1.msra.mxu0 0.0
  %1741 = vmatprep.subr.mxu0 0.0
  %1742 = vmatpush1.msra.mxu0 %v1706
  %1743 = vmatprep.subr.mxu0 0.0
  %1744 = vmatpush2.msra.mxu0 0.0
  %1745 = vmatprep.subr.mxu0 0.0
  %1746 = vmatpush2.msra.mxu0 0.0
  %1747 = vmatprep.subr.mxu0 0.0
  %1748 = vmatpush2.msra.mxu0 0.0
  %1749 = vmatprep.subr.mxu0 0.0
  %1750 = vmatpush2.msra.mxu0 0.0
  %1751 = vmatprep.subr.mxu0 0.0
  %1752 = vmatpush2.msra.mxu0 0.0
  %1753 = vmatprep.subr.mxu0 0.0
  %1754 = vmatpush2.msra.mxu0 0.0
  %1755 = vmatprep.subr.mxu0 0.0
  %1756 = vmatpush2.msra.mxu0 0.0
  %1757 = vmatprep.subr.mxu0 0.0
  %1758 = vmatpush2.msra.mxu0 0.0
  %1759 = vmatprep.subr.mxu0 0.0
  %1760 = vmatpush2.msra.mxu0 0.0
  %1761 = vmatprep.subr.mxu0 0.0
  %1762 = vmatpush2.msra.mxu0 0.0
  %1763 = vmatprep.subr.mxu0 0.0
  %1764 = vmatpush2.msra.mxu0 0.0
  %1765 = vmatprep.subr.mxu0 0.0
  %1766 = vmatpush2.msra.mxu0 0.0
  %1767 = vmatprep.subr.mxu0 0.0
  %1768 = vmatpush2.msra.mxu0 0.0
  %1769 = vmatprep.subr.mxu0 0.0
  %1770 = vmatpush2.msra.mxu0 0.0
  %1771 = vmatprep.subr.mxu0 0.0
  %1772 = vmatpush2.msra.mxu0 0.0
  %1773 = vmatprep.subr.mxu0 0.0
  %1774 = vmatpush2.msra.mxu0 0.0
  %1775 = vmatprep.mubr.f32.mxu0 0.0
  %1776 = vmatmul.mubr.f32.gmra.mxu0 %v1709
  %v1777 = vpop.f32.mrf.mxu0
  %v1778 = vadd.f32 0.0, %v1777
  %v1779 = vpop.f32.mrf.mxu0
  %1780 = vdwg.mxu0
  %v1782 = vsel %vm481, %v1778, 0
  %1784 = vmatprep.subr.mxu0 0.0
  %1785 = vmatpush1.msra.mxu0 0.0
  %1786 = vmatprep.subr.mxu0 0.0
  %1787 = vmatpush1.msra.mxu0 0.0
  %1788 = vmatprep.subr.mxu0 0.0
  %1789 = vmatpush1.msra.mxu0 0.0
  %1790 = vmatprep.subr.mxu0 0.0
  %1791 = vmatpush1.msra.mxu0 0.0
  %1792 = vmatprep.subr.mxu0 0.0
  %1793 = vmatpush1.msra.mxu0 0.0
  %1794 = vmatprep.subr.mxu0 0.0
  %1795 = vmatpush1.msra.mxu0 0.0
  %1796 = vmatprep.subr.mxu0 0.0
  %1797 = vmatpush1.msra.mxu0 0.0
  %1798 = vmatprep.subr.mxu0 0.0
  %1799 = vmatpush1.msra.mxu0 0.0
  %1800 = vmatprep.subr.mxu0 0.0
  %1801 = vmatpush1.msra.mxu0 0.0
  %1802 = vmatprep.subr.mxu0 0.0
  %1803 = vmatpush1.msra.mxu0 0.0
  %1804 = vmatprep.subr.mxu0 0.0
  %1805 = vmatpush1.msra.mxu0 0.0
  %1806 = vmatprep.subr.mxu0 0.0
  %1807 = vmatpush1.msra.mxu0 0.0
  %1808 = vmatprep.subr.mxu0 0.0
  %1809 = vmatpush1.msra.mxu0 0.0
  %1810 = vmatprep.subr.mxu0 0.0
  %1811 = vmatpush1.msra.mxu0 0.0
  %1812 = vmatprep.subr.mxu0 0.0
  %1813 = vmatpush1.msra.mxu0 0.0
  %1814 = vmatprep.subr.mxu0 0.0
  %1815 = vmatpush1.msra.mxu0 %v387
  %1816 = vmatprep.subr.mxu0 0.0
  %1817 = vmatpush2.msra.mxu0 0.0
  %1818 = vmatprep.subr.mxu0 0.0
  %1819 = vmatpush2.msra.mxu0 0.0
  %1820 = vmatprep.subr.mxu0 0.0
  %1821 = vmatpush2.msra.mxu0 0.0
  %1822 = vmatprep.subr.mxu0 0.0
  %1823 = vmatpush2.msra.mxu0 0.0
  %1824 = vmatprep.subr.mxu0 0.0
  %1825 = vmatpush2.msra.mxu0 0.0
  %1826 = vmatprep.subr.mxu0 0.0
  %1827 = vmatpush2.msra.mxu0 0.0
  %1828 = vmatprep.subr.mxu0 0.0
  %1829 = vmatpush2.msra.mxu0 0.0
  %1830 = vmatprep.subr.mxu0 0.0
  %1831 = vmatpush2.msra.mxu0 0.0
  %1832 = vmatprep.subr.mxu0 0.0
  %1833 = vmatpush2.msra.mxu0 0.0
  %1834 = vmatprep.subr.mxu0 0.0
  %1835 = vmatpush2.msra.mxu0 0.0
  %1836 = vmatprep.subr.mxu0 0.0
  %1837 = vmatpush2.msra.mxu0 0.0
  %1838 = vmatprep.subr.mxu0 0.0
  %1839 = vmatpush2.msra.mxu0 0.0
  %1840 = vmatprep.subr.mxu0 0.0
  %1841 = vmatpush2.msra.mxu0 0.0
  %1842 = vmatprep.subr.mxu0 0.0
  %1843 = vmatpush2.msra.mxu0 0.0
  %1844 = vmatprep.subr.mxu0 0.0
  %1845 = vmatpush2.msra.mxu0 0.0
  %1846 = vmatprep.subr.mxu0 0.0
  %1847 = vmatpush2.msra.mxu0 0.0
  %1848 = vmatprep.mubr.f32.mxu0 0.0
  %1849 = vmatmul.mubr.f32.gmra.mxu0 %v1782
  %v1850 = vpop.f32.mrf.mxu0
  %v1851 = vadd.f32 0.0, %v1850
  %v1852 = vpop.f32.mrf.mxu0
  %1853 = vdwg.mxu0
  %v1855 = vsel %vm481, %v1611, 0
  %1857 = vmatprep.subr.mxu0 0.0
  %1858 = vmatpush1.msra.mxu0 0.0
  %1859 = vmatprep.subr.mxu0 0.0
  %1860 = vmatpush1.msra.mxu0 0.0
  %1861 = vmatprep.subr.mxu0 0.0
  %1862 = vmatpush1.msra.mxu0 0.0
  %1863 = vmatprep.subr.mxu0 0.0
  %1864 = vmatpush1.msra.mxu0 0.0
  %1865 = vmatprep.subr.mxu0 0.0
  %1866 = vmatpush1.msra.mxu0 0.0
  %1867 = vmatprep.subr.mxu0 0.0
  %1868 = vmatpush1.msra.mxu0 0.0
  %1869 = vmatprep.subr.mxu0 0.0
  %1870 = vmatpush1.msra.mxu0 0.0
  %1871 = vmatprep.subr.mxu0 0.0
  %1872 = vmatpush1.msra.mxu0 0.0
  %1873 = vmatprep.subr.mxu0 0.0
  %1874 = vmatpush1.msra.mxu0 0.0
  %1875 = vmatprep.subr.mxu0 0.0
  %1876 = vmatpush1.msra.mxu0 0.0
  %1877 = vmatprep.subr.mxu0 0.0
  %1878 = vmatpush1.msra.mxu0 0.0
  %1879 = vmatprep.subr.mxu0 0.0
  %1880 = vmatpush1.msra.mxu0 0.0
  %1881 = vmatprep.subr.mxu0 0.0
  %1882 = vmatpush1.msra.mxu0 0.0
  %1883 = vmatprep.subr.mxu0 0.0
  %1884 = vmatpush1.msra.mxu0 0.0
  %1885 = vmatprep.subr.mxu0 0.0
  %1886 = vmatpush1.msra.mxu0 0.0
  %1887 = vmatprep.subr.mxu0 0.0
  %1888 = vmatpush1.msra.mxu0 %v386
  %1889 = vmatprep.subr.mxu0 0.0
  %1890 = vmatpush2.msra.mxu0 0.0
  %1891 = vmatprep.subr.mxu0 0.0
  %1892 = vmatpush2.msra.mxu0 0.0
  %1893 = vmatprep.subr.mxu0 0.0
  %1894 = vmatpush2.msra.mxu0 0.0
  %1895 = vmatprep.subr.mxu0 0.0
  %1896 = vmatpush2.msra.mxu0 0.0
  %1897 = vmatprep.subr.mxu0 0.0
  %1898 = vmatpush2.msra.mxu0 0.0
  %1899 = vmatprep.subr.mxu0 0.0
  %1900 = vmatpush2.msra.mxu0 0.0
  %1901 = vmatprep.subr.mxu0 0.0
  %1902 = vmatpush2.msra.mxu0 0.0
  %1903 = vmatprep.subr.mxu0 0.0
  %1904 = vmatpush2.msra.mxu0 0.0
  %1905 = vmatprep.subr.mxu0 0.0
  %1906 = vmatpush2.msra.mxu0 0.0
  %1907 = vmatprep.subr.mxu0 0.0
  %1908 = vmatpush2.msra.mxu0 0.0
  %1909 = vmatprep.subr.mxu0 0.0
  %1910 = vmatpush2.msra.mxu0 0.0
  %1911 = vmatprep.subr.mxu0 0.0
  %1912 = vmatpush2.msra.mxu0 0.0
  %1913 = vmatprep.subr.mxu0 0.0
  %1914 = vmatpush2.msra.mxu0 0.0
  %1915 = vmatprep.subr.mxu0 0.0
  %1916 = vmatpush2.msra.mxu0 0.0
  %1917 = vmatprep.subr.mxu0 0.0
  %1918 = vmatpush2.msra.mxu0 0.0
  %1919 = vmatprep.subr.mxu0 0.0
  %1920 = vmatpush2.msra.mxu0 0.0
  %1921 = vmatprep.mubr.f32.mxu0 0.0
  %1922 = vmatmul.mubr.f32.gmra.mxu0 %v1855
  %v1923 = vpop.f32.mrf.mxu0
  %v1924 = vadd.f32 %v1851, %v1923
  %v1925 = vpop.f32.mrf.mxu0
  %1926 = vdwg.mxu0
  %1927 = vrot.lane.b32.xlu0 %v475, 112
  %v1928 = vpop.permute.xlu0 %1927
  %1929 = vrot.lane.b32.xlu0 %v475, 80
  %v1930 = vpop.permute.xlu0 %1929
  %v1931 = vsel %vm481, %v1928, 0
  %v1933 = vsel %vm481, %v1930, 0
  %1935 = vmatprep.subr.mxu0 0.0
  %1936 = vmatpush1.xpose.msra.mxu0 0.0
  %1937 = vmatprep.subr.mxu0 0.0
  %1938 = vmatpush1.xpose.msra.mxu0 0.0
  %1939 = vmatprep.subr.mxu0 0.0
  %1940 = vmatpush1.xpose.msra.mxu0 0.0
  %1941 = vmatprep.subr.mxu0 0.0
  %1942 = vmatpush1.xpose.msra.mxu0 0.0
  %1943 = vmatprep.subr.mxu0 0.0
  %1944 = vmatpush1.xpose.msra.mxu0 0.0
  %1945 = vmatprep.subr.mxu0 0.0
  %1946 = vmatpush1.xpose.msra.mxu0 0.0
  %1947 = vmatprep.subr.mxu0 0.0
  %1948 = vmatpush1.xpose.msra.mxu0 0.0
  %1949 = vmatprep.subr.mxu0 0.0
  %1950 = vmatpush1.xpose.msra.mxu0 0.0
  %1951 = vmatprep.subr.mxu0 0.0
  %1952 = vmatpush1.xpose.msra.mxu0 0.0
  %1953 = vmatprep.subr.mxu0 0.0
  %1954 = vmatpush1.xpose.msra.mxu0 0.0
  %1955 = vmatprep.subr.mxu0 0.0
  %1956 = vmatpush1.xpose.msra.mxu0 0.0
  %1957 = vmatprep.subr.mxu0 0.0
  %1958 = vmatpush1.xpose.msra.mxu0 0.0
  %1959 = vmatprep.subr.mxu0 0.0
  %1960 = vmatpush1.xpose.msra.mxu0 0.0
  %1961 = vmatprep.subr.mxu0 0.0
  %1962 = vmatpush1.xpose.msra.mxu0 0.0
  %1963 = vmatprep.subr.mxu0 0.0
  %1964 = vmatpush1.xpose.msra.mxu0 0.0
  %1965 = vmatprep.subr.mxu0 0.0
  %1966 = vmatpush1.xpose.msra.mxu0 %v1933
  %1967 = vmatprep.subr.mxu0 0.0
  %1968 = vmatpush2.xpose.msra.mxu0 0.0
  %1969 = vmatprep.subr.mxu0 0.0
  %1970 = vmatpush2.xpose.msra.mxu0 0.0
  %1971 = vmatprep.subr.mxu0 0.0
  %1972 = vmatpush2.xpose.msra.mxu0 0.0
  %1973 = vmatprep.subr.mxu0 0.0
  %1974 = vmatpush2.xpose.msra.mxu0 0.0
  %1975 = vmatprep.subr.mxu0 0.0
  %1976 = vmatpush2.xpose.msra.mxu0 0.0
  %1977 = vmatprep.subr.mxu0 0.0
  %1978 = vmatpush2.xpose.msra.mxu0 0.0
  %1979 = vmatprep.subr.mxu0 0.0
  %1980 = vmatpush2.xpose.msra.mxu0 0.0
  %1981 = vmatprep.subr.mxu0 0.0
  %1982 = vmatpush2.xpose.msra.mxu0 0.0
  %1983 = vmatprep.subr.mxu0 0.0
  %1984 = vmatpush2.xpose.msra.mxu0 0.0
  %1985 = vmatprep.subr.mxu0 0.0
  %1986 = vmatpush2.xpose.msra.mxu0 0.0
  %1987 = vmatprep.subr.mxu0 0.0
  %1988 = vmatpush2.xpose.msra.mxu0 0.0
  %1989 = vmatprep.subr.mxu0 0.0
  %1990 = vmatpush2.xpose.msra.mxu0 0.0
  %1991 = vmatprep.subr.mxu0 0.0
  %1992 = vmatpush2.xpose.msra.mxu0 0.0
  %1993 = vmatprep.subr.mxu0 0.0
  %1994 = vmatpush2.xpose.msra.mxu0 0.0
  %1995 = vmatprep.subr.mxu0 0.0
  %1996 = vmatpush2.xpose.msra.mxu0 0.0
  %1997 = vmatprep.subr.mxu0 0.0
  %1998 = vmatpush2.xpose.msra.mxu0 0.0
  %1999 = vmatprep.mubr.f32.mxu0 0.0
  %2000 = vmatmul.mubr.f32.gmra.mxu0 %v1931
  %v2001 = vpop.f32.mrf.mxu0
  %v2002 = vadd.f32 0.0, %v2001
  %v2003 = vpop.f32.mrf.mxu0
  %2004 = vdwg.mxu0
  %v2005 = vmul.f32 %v2002, 0.35355338
  %v2006 = vadd.f32 %v2005, %v1525
  %v2007 = vsel %vm481, %v2006, -inf
  %2008 = vmax.xlane.f32.xlu0 %v2007
  %v2009 = vpop.xlane.xlu0 %2008
  %v2010 = vsub.f32 %v2006, %v2009
  %v2011 = vmul.f32 %v2010, 1.442695
  %v2012 = vpow.pop %v2011
  %v2013 = vsel %vm481, %v2012, 0.0
  %2014 = vadd.xlane.f32.xlu0 %v2013
  %v2015 = vpop.xlane.xlu0 %2014
  %v2016 = vrcp.pop %v2015
  %v2017 = vmul.f32 %v2012, %v2016
  %2018 = vrot.lane.b32.xlu0 %v475, 48
  %v2019 = vpop.permute.xlu0 %2018
  %v2022 = vsel %vm481, %v2017, 0
  %2024 = vmatprep.subr.mxu0 0.0
  %2025 = vmatpush1.msra.mxu0 0.0
  %2026 = vmatprep.subr.mxu0 0.0
  %2027 = vmatpush1.msra.mxu0 0.0
  %2028 = vmatprep.subr.mxu0 0.0
  %2029 = vmatpush1.msra.mxu0 0.0
  %2030 = vmatprep.subr.mxu0 0.0
  %2031 = vmatpush1.msra.mxu0 0.0
  %2032 = vmatprep.subr.mxu0 0.0
  %2033 = vmatpush1.msra.mxu0 0.0
  %2034 = vmatprep.subr.mxu0 0.0
  %2035 = vmatpush1.msra.mxu0 0.0
  %2036 = vmatprep.subr.mxu0 0.0
  %2037 = vmatpush1.msra.mxu0 0.0
  %2038 = vmatprep.subr.mxu0 0.0
  %2039 = vmatpush1.msra.mxu0 0.0
  %2040 = vmatprep.subr.mxu0 0.0
  %2041 = vmatpush1.msra.mxu0 0.0
  %2042 = vmatprep.subr.mxu0 0.0
  %2043 = vmatpush1.msra.mxu0 0.0
  %2044 = vmatprep.subr.mxu0 0.0
  %2045 = vmatpush1.msra.mxu0 0.0
  %2046 = vmatprep.subr.mxu0 0.0
  %2047 = vmatpush1.msra.mxu0 0.0
  %2048 = vmatprep.subr.mxu0 0.0
  %2049 = vmatpush1.msra.mxu0 0.0
  %2050 = vmatprep.subr.mxu0 0.0
  %2051 = vmatpush1.msra.mxu0 0.0
  %2052 = vmatprep.subr.mxu0 0.0
  %2053 = vmatpush1.msra.mxu0 0.0
  %2054 = vmatprep.subr.mxu0 0.0
  %2055 = vmatpush1.msra.mxu0 %v2019
  %2056 = vmatprep.subr.mxu0 0.0
  %2057 = vmatpush2.msra.mxu0 0.0
  %2058 = vmatprep.subr.mxu0 0.0
  %2059 = vmatpush2.msra.mxu0 0.0
  %2060 = vmatprep.subr.mxu0 0.0
  %2061 = vmatpush2.msra.mxu0 0.0
  %2062 = vmatprep.subr.mxu0 0.0
  %2063 = vmatpush2.msra.mxu0 0.0
  %2064 = vmatprep.subr.mxu0 0.0
  %2065 = vmatpush2.msra.mxu0 0.0
  %2066 = vmatprep.subr.mxu0 0.0
  %2067 = vmatpush2.msra.mxu0 0.0
  %2068 = vmatprep.subr.mxu0 0.0
  %2069 = vmatpush2.msra.mxu0 0.0
  %2070 = vmatprep.subr.mxu0 0.0
  %2071 = vmatpush2.msra.mxu0 0.0
  %2072 = vmatprep.subr.mxu0 0.0
  %2073 = vmatpush2.msra.mxu0 0.0
  %2074 = vmatprep.subr.mxu0 0.0
  %2075 = vmatpush2.msra.mxu0 0.0
  %2076 = vmatprep.subr.mxu0 0.0
  %2077 = vmatpush2.msra.mxu0 0.0
  %2078 = vmatprep.subr.mxu0 0.0
  %2079 = vmatpush2.msra.mxu0 0.0
  %2080 = vmatprep.subr.mxu0 0.0
  %2081 = vmatpush2.msra.mxu0 0.0
  %2082 = vmatprep.subr.mxu0 0.0
  %2083 = vmatpush2.msra.mxu0 0.0
  %2084 = vmatprep.subr.mxu0 0.0
  %2085 = vmatpush2.msra.mxu0 0.0
  %2086 = vmatprep.subr.mxu0 0.0
  %2087 = vmatpush2.msra.mxu0 0.0
  %2088 = vmatprep.mubr.f32.mxu0 0.0
  %2089 = vmatmul.mubr.f32.gmra.mxu0 %v2022
  %v2090 = vpop.f32.mrf.mxu0
  %v2091 = vadd.f32 0.0, %v2090
  %v2092 = vpop.f32.mrf.mxu0
  %2093 = vdwg.mxu0
  %v2095 = vsel %vm481, %v2091, 0
  %2097 = vmatprep.subr.mxu0 0.0
  %2098 = vmatpush1.msra.mxu0 0.0
  %2099 = vmatprep.subr.mxu0 0.0
  %2100 = vmatpush1.msra.mxu0 0.0
  %2101 = vmatprep.subr.mxu0 0.0
  %2102 = vmatpush1.msra.mxu0 0.0
  %2103 = vmatprep.subr.mxu0 0.0
  %2104 = vmatpush1.msra.mxu0 0.0
  %2105 = vmatprep.subr.mxu0 0.0
  %2106 = vmatpush1.msra.mxu0 0.0
  %2107 = vmatprep.subr.mxu0 0.0
  %2108 = vmatpush1.msra.mxu0 0.0
  %2109 = vmatprep.subr.mxu0 0.0
  %2110 = vmatpush1.msra.mxu0 0.0
  %2111 = vmatprep.subr.mxu0 0.0
  %2112 = vmatpush1.msra.mxu0 0.0
  %2113 = vmatprep.subr.mxu0 0.0
  %2114 = vmatpush1.msra.mxu0 0.0
  %2115 = vmatprep.subr.mxu0 0.0
  %2116 = vmatpush1.msra.mxu0 0.0
  %2117 = vmatprep.subr.mxu0 0.0
  %2118 = vmatpush1.msra.mxu0 0.0
  %2119 = vmatprep.subr.mxu0 0.0
  %2120 = vmatpush1.msra.mxu0 0.0
  %2121 = vmatprep.subr.mxu0 0.0
  %2122 = vmatpush1.msra.mxu0 0.0
  %2123 = vmatprep.subr.mxu0 0.0
  %2124 = vmatpush1.msra.mxu0 0.0
  %2125 = vmatprep.subr.mxu0 0.0
  %2126 = vmatpush1.msra.mxu0 0.0
  %2127 = vmatprep.subr.mxu0 0.0
  %2128 = vmatpush1.msra.mxu0 %v388
  %2129 = vmatprep.subr.mxu0 0.0
  %2130 = vmatpush2.msra.mxu0 0.0
  %2131 = vmatprep.subr.mxu0 0.0
  %2132 = vmatpush2.msra.mxu0 0.0
  %2133 = vmatprep.subr.mxu0 0.0
  %2134 = vmatpush2.msra.mxu0 0.0
  %2135 = vmatprep.subr.mxu0 0.0
  %2136 = vmatpush2.msra.mxu0 0.0
  %2137 = vmatprep.subr.mxu0 0.0
  %2138 = vmatpush2.msra.mxu0 0.0
  %2139 = vmatprep.subr.mxu0 0.0
  %2140 = vmatpush2.msra.mxu0 0.0
  %2141 = vmatprep.subr.mxu0 0.0
  %2142 = vmatpush2.msra.mxu0 0.0
  %2143 = vmatprep.subr.mxu0 0.0
  %2144 = vmatpush2.msra.mxu0 0.0
  %2145 = vmatprep.subr.mxu0 0.0
  %2146 = vmatpush2.msra.mxu0 0.0
  %2147 = vmatprep.subr.mxu0 0.0
  %2148 = vmatpush2.msra.mxu0 0.0
  %2149 = vmatprep.subr.mxu0 0.0
  %2150 = vmatpush2.msra.mxu0 0.0
  %2151 = vmatprep.subr.mxu0 0.0
  %2152 = vmatpush2.msra.mxu0 0.0
  %2153 = vmatprep.subr.mxu0 0.0
  %2154 = vmatpush2.msra.mxu0 0.0
  %2155 = vmatprep.subr.mxu0 0.0
  %2156 = vmatpush2.msra.mxu0 0.0
  %2157 = vmatprep.subr.mxu0 0.0
  %2158 = vmatpush2.msra.mxu0 0.0
  %2159 = vmatprep.subr.mxu0 0.0
  %2160 = vmatpush2.msra.mxu0 0.0
  %2161 = vmatprep.mubr.f32.mxu0 0.0
  %2162 = vmatmul.mubr.f32.gmra.mxu0 %v2095
  %v2163 = vpop.f32.mrf.mxu0
  %v2164 = vadd.f32 0.0, %v2163
  %v2165 = vpop.f32.mrf.mxu0
  %2166 = vdwg.mxu0
  %v2167 = vadd.f32 %v1924, %v2164
  %2168 = vrot.lane.b32.xlu0 %v475, 104
  %v2169 = vpop.permute.xlu0 %2168
  %2170 = vrot.lane.b32.xlu0 %v475, 72
  %v2171 = vpop.permute.xlu0 %2170
  %v2172 = vsel %vm481, %v2169, 0
  %v2174 = vsel %vm481, %v2171, 0
  %2176 = vmatprep.subr.mxu0 0.0
  %2177 = vmatpush1.xpose.msra.mxu0 0.0
  %2178 = vmatprep.subr.mxu0 0.0
  %2179 = vmatpush1.xpose.msra.mxu0 0.0
  %2180 = vmatprep.subr.mxu0 0.0
  %2181 = vmatpush1.xpose.msra.mxu0 0.0
  %2182 = vmatprep.subr.mxu0 0.0
  %2183 = vmatpush1.xpose.msra.mxu0 0.0
  %2184 = vmatprep.subr.mxu0 0.0
  %2185 = vmatpush1.xpose.msra.mxu0 0.0
  %2186 = vmatprep.subr.mxu0 0.0
  %2187 = vmatpush1.xpose.msra.mxu0 0.0
  %2188 = vmatprep.subr.mxu0 0.0
  %2189 = vmatpush1.xpose.msra.mxu0 0.0
  %2190 = vmatprep.subr.mxu0 0.0
  %2191 = vmatpush1.xpose.msra.mxu0 0.0
  %2192 = vmatprep.subr.mxu0 0.0
  %2193 = vmatpush1.xpose.msra.mxu0 0.0
  %2194 = vmatprep.subr.mxu0 0.0
  %2195 = vmatpush1.xpose.msra.mxu0 0.0
  %2196 = vmatprep.subr.mxu0 0.0
  %2197 = vmatpush1.xpose.msra.mxu0 0.0
  %2198 = vmatprep.subr.mxu0 0.0
  %2199 = vmatpush1.xpose.msra.mxu0 0.0
  %2200 = vmatprep.subr.mxu0 0.0
  %2201 = vmatpush1.xpose.msra.mxu0 0.0
  %2202 = vmatprep.subr.mxu0 0.0
  %2203 = vmatpush1.xpose.msra.mxu0 0.0
  %2204 = vmatprep.subr.mxu0 0.0
  %2205 = vmatpush1.xpose.msra.mxu0 0.0
  %2206 = vmatprep.subr.mxu0 0.0
  %2207 = vmatpush1.xpose.msra.mxu0 %v2174
  %2208 = vmatprep.subr.mxu0 0.0
  %2209 = vmatpush2.xpose.msra.mxu0 0.0
  %2210 = vmatprep.subr.mxu0 0.0
  %2211 = vmatpush2.xpose.msra.mxu0 0.0
  %2212 = vmatprep.subr.mxu0 0.0
  %2213 = vmatpush2.xpose.msra.mxu0 0.0
  %2214 = vmatprep.subr.mxu0 0.0
  %2215 = vmatpush2.xpose.msra.mxu0 0.0
  %2216 = vmatprep.subr.mxu0 0.0
  %2217 = vmatpush2.xpose.msra.mxu0 0.0
  %2218 = vmatprep.subr.mxu0 0.0
  %2219 = vmatpush2.xpose.msra.mxu0 0.0
  %2220 = vmatprep.subr.mxu0 0.0
  %2221 = vmatpush2.xpose.msra.mxu0 0.0
  %2222 = vmatprep.subr.mxu0 0.0
  %2223 = vmatpush2.xpose.msra.mxu0 0.0
  %2224 = vmatprep.subr.mxu0 0.0
  %2225 = vmatpush2.xpose.msra.mxu0 0.0
  %2226 = vmatprep.subr.mxu0 0.0
  %2227 = vmatpush2.xpose.msra.mxu0 0.0
  %2228 = vmatprep.subr.mxu0 0.0
  %2229 = vmatpush2.xpose.msra.mxu0 0.0
  %2230 = vmatprep.subr.mxu0 0.0
  %2231 = vmatpush2.xpose.msra.mxu0 0.0
  %2232 = vmatprep.subr.mxu0 0.0
  %2233 = vmatpush2.xpose.msra.mxu0 0.0
  %2234 = vmatprep.subr.mxu0 0.0
  %2235 = vmatpush2.xpose.msra.mxu0 0.0
  %2236 = vmatprep.subr.mxu0 0.0
  %2237 = vmatpush2.xpose.msra.mxu0 0.0
  %2238 = vmatprep.subr.mxu0 0.0
  %2239 = vmatpush2.xpose.msra.mxu0 0.0
  %2240 = vmatprep.mubr.f32.mxu0 0.0
  %2241 = vmatmul.mubr.f32.gmra.mxu0 %v2172
  %v2242 = vpop.f32.mrf.mxu0
  %v2243 = vadd.f32 0.0, %v2242
  %v2244 = vpop.f32.mrf.mxu0
  %2245 = vdwg.mxu0
  %v2246 = vmul.f32 %v2243, 0.35355338
  %v2247 = vadd.f32 %v2246, %v1525
  %v2248 = vsel %vm481, %v2247, -inf
  %2249 = vmax.xlane.f32.xlu0 %v2248
  %v2250 = vpop.xlane.xlu0 %2249
  %v2251 = vsub.f32 %v2247, %v2250
  %v2252 = vmul.f32 %v2251, 1.442695
  %v2253 = vpow.pop %v2252
  %v2254 = vsel %vm481, %v2253, 0.0
  %2255 = vadd.xlane.f32.xlu0 %v2254
  %v2256 = vpop.xlane.xlu0 %2255
  %v2257 = vrcp.pop %v2256
  %v2258 = vmul.f32 %v2253, %v2257
  %2259 = vrot.lane.b32.xlu0 %v475, 40
  %v2260 = vpop.permute.xlu0 %2259
  %v2263 = vsel %vm481, %v2258, 0
  %2265 = vmatprep.subr.mxu0 0.0
  %2266 = vmatpush1.msra.mxu0 0.0
  %2267 = vmatprep.subr.mxu0 0.0
  %2268 = vmatpush1.msra.mxu0 0.0
  %2269 = vmatprep.subr.mxu0 0.0
  %2270 = vmatpush1.msra.mxu0 0.0
  %2271 = vmatprep.subr.mxu0 0.0
  %2272 = vmatpush1.msra.mxu0 0.0
  %2273 = vmatprep.subr.mxu0 0.0
  %2274 = vmatpush1.msra.mxu0 0.0
  %2275 = vmatprep.subr.mxu0 0.0
  %2276 = vmatpush1.msra.mxu0 0.0
  %2277 = vmatprep.subr.mxu0 0.0
  %2278 = vmatpush1.msra.mxu0 0.0
  %2279 = vmatprep.subr.mxu0 0.0
  %2280 = vmatpush1.msra.mxu0 0.0
  %2281 = vmatprep.subr.mxu0 0.0
  %2282 = vmatpush1.msra.mxu0 0.0
  %2283 = vmatprep.subr.mxu0 0.0
  %2284 = vmatpush1.msra.mxu0 0.0
  %2285 = vmatprep.subr.mxu0 0.0
  %2286 = vmatpush1.msra.mxu0 0.0
  %2287 = vmatprep.subr.mxu0 0.0
  %2288 = vmatpush1.msra.mxu0 0.0
  %2289 = vmatprep.subr.mxu0 0.0
  %2290 = vmatpush1.msra.mxu0 0.0
  %2291 = vmatprep.subr.mxu0 0.0
  %2292 = vmatpush1.msra.mxu0 0.0
  %2293 = vmatprep.subr.mxu0 0.0
  %2294 = vmatpush1.msra.mxu0 0.0
  %2295 = vmatprep.subr.mxu0 0.0
  %2296 = vmatpush1.msra.mxu0 %v2260
  %2297 = vmatprep.subr.mxu0 0.0
  %2298 = vmatpush2.msra.mxu0 0.0
  %2299 = vmatprep.subr.mxu0 0.0
  %2300 = vmatpush2.msra.mxu0 0.0
  %2301 = vmatprep.subr.mxu0 0.0
  %2302 = vmatpush2.msra.mxu0 0.0
  %2303 = vmatprep.subr.mxu0 0.0
  %2304 = vmatpush2.msra.mxu0 0.0
  %2305 = vmatprep.subr.mxu0 0.0
  %2306 = vmatpush2.msra.mxu0 0.0
  %2307 = vmatprep.subr.mxu0 0.0
  %2308 = vmatpush2.msra.mxu0 0.0
  %2309 = vmatprep.subr.mxu0 0.0
  %2310 = vmatpush2.msra.mxu0 0.0
  %2311 = vmatprep.subr.mxu0 0.0
  %2312 = vmatpush2.msra.mxu0 0.0
  %2313 = vmatprep.subr.mxu0 0.0
  %2314 = vmatpush2.msra.mxu0 0.0
  %2315 = vmatprep.subr.mxu0 0.0
  %2316 = vmatpush2.msra.mxu0 0.0
  %2317 = vmatprep.subr.mxu0 0.0
  %2318 = vmatpush2.msra.mxu0 0.0
  %2319 = vmatprep.subr.mxu0 0.0
  %2320 = vmatpush2.msra.mxu0 0.0
  %2321 = vmatprep.subr.mxu0 0.0
  %2322 = vmatpush2.msra.mxu0 0.0
  %2323 = vmatprep.subr.mxu0 0.0
  %2324 = vmatpush2.msra.mxu0 0.0
  %2325 = vmatprep.subr.mxu0 0.0
  %2326 = vmatpush2.msra.mxu0 0.0
  %2327 = vmatprep.subr.mxu0 0.0
  %2328 = vmatpush2.msra.mxu0 0.0
  %2329 = vmatprep.mubr.f32.mxu0 0.0
  %2330 = vmatmul.mubr.f32.gmra.mxu0 %v2263
  %v2331 = vpop.f32.mrf.mxu0
  %v2332 = vadd.f32 0.0, %v2331
  %v2333 = vpop.f32.mrf.mxu0
  %2334 = vdwg.mxu0
  %v2336 = vsel %vm481, %v2332, 0
  %2338 = vmatprep.subr.mxu0 0.0
  %2339 = vmatpush1.msra.mxu0 0.0
  %2340 = vmatprep.subr.mxu0 0.0
  %2341 = vmatpush1.msra.mxu0 0.0
  %2342 = vmatprep.subr.mxu0 0.0
  %2343 = vmatpush1.msra.mxu0 0.0
  %2344 = vmatprep.subr.mxu0 0.0
  %2345 = vmatpush1.msra.mxu0 0.0
  %2346 = vmatprep.subr.mxu0 0.0
  %2347 = vmatpush1.msra.mxu0 0.0
  %2348 = vmatprep.subr.mxu0 0.0
  %2349 = vmatpush1.msra.mxu0 0.0
  %2350 = vmatprep.subr.mxu0 0.0
  %2351 = vmatpush1.msra.mxu0 0.0
  %2352 = vmatprep.subr.mxu0 0.0
  %2353 = vmatpush1.msra.mxu0 0.0
  %2354 = vmatprep.subr.mxu0 0.0
  %2355 = vmatpush1.msra.mxu0 0.0
  %2356 = vmatprep.subr.mxu0 0.0
  %2357 = vmatpush1.msra.mxu0 0.0
  %2358 = vmatprep.subr.mxu0 0.0
  %2359 = vmatpush1.msra.mxu0 0.0
  %2360 = vmatprep.subr.mxu0 0.0
  %2361 = vmatpush1.msra.mxu0 0.0
  %2362 = vmatprep.subr.mxu0 0.0
  %2363 = vmatpush1.msra.mxu0 0.0
  %2364 = vmatprep.subr.mxu0 0.0
  %2365 = vmatpush1.msra.mxu0 0.0
  %2366 = vmatprep.subr.mxu0 0.0
  %2367 = vmatpush1.msra.mxu0 0.0
  %2368 = vmatprep.subr.mxu0 0.0
  %2369 = vmatpush1.msra.mxu0 %v389
  %2370 = vmatprep.subr.mxu0 0.0
  %2371 = vmatpush2.msra.mxu0 0.0
  %2372 = vmatprep.subr.mxu0 0.0
  %2373 = vmatpush2.msra.mxu0 0.0
  %2374 = vmatprep.subr.mxu0 0.0
  %2375 = vmatpush2.msra.mxu0 0.0
  %2376 = vmatprep.subr.mxu0 0.0
  %2377 = vmatpush2.msra.mxu0 0.0
  %2378 = vmatprep.subr.mxu0 0.0
  %2379 = vmatpush2.msra.mxu0 0.0
  %2380 = vmatprep.subr.mxu0 0.0
  %2381 = vmatpush2.msra.mxu0 0.0
  %2382 = vmatprep.subr.mxu0 0.0
  %2383 = vmatpush2.msra.mxu0 0.0
  %2384 = vmatprep.subr.mxu0 0.0
  %2385 = vmatpush2.msra.mxu0 0.0
  %2386 = vmatprep.subr.mxu0 0.0
  %2387 = vmatpush2.msra.mxu0 0.0
  %2388 = vmatprep.subr.mxu0 0.0
  %2389 = vmatpush2.msra.mxu0 0.0
  %2390 = vmatprep.subr.mxu0 0.0
  %2391 = vmatpush2.msra.mxu0 0.0
  %2392 = vmatprep.subr.mxu0 0.0
  %2393 = vmatpush2.msra.mxu0 0.0
  %2394 = vmatprep.subr.mxu0 0.0
  %2395 = vmatpush2.msra.mxu0 0.0
  %2396 = vmatprep.subr.mxu0 0.0
  %2397 = vmatpush2.msra.mxu0 0.0
  %2398 = vmatprep.subr.mxu0 0.0
  %2399 = vmatpush2.msra.mxu0 0.0
  %2400 = vmatprep.subr.mxu0 0.0
  %2401 = vmatpush2.msra.mxu0 0.0
  %2402 = vmatprep.mubr.f32.mxu0 0.0
  %2403 = vmatmul.mubr.f32.gmra.mxu0 %v2336
  %v2404 = vpop.f32.mrf.mxu0
  %v2405 = vadd.f32 0.0, %v2404
  %v2406 = vpop.f32.mrf.mxu0
  %2407 = vdwg.mxu0
  %v2408 = vadd.f32 %v2167, %v2405
  %v2409 = vld [vmem:[%s11] sm:$0x1]
  %v2411 = vlaneseq
  %v2412 = vshrl.u32 %v2411, 7
  %v2413 = vsub.s32 0, %v2412
  %v2414 = vrot.slane %v2409, %v2413
  %v2416 = vadd.f32 %v1443, %v2414
  %v2417 = vadd.f32 %v2408, %v2414
  %v2418 = vadd.f32 %v377, %v2416
  %v2419 = vadd.f32 %v378, %v2417
  %v2420 = vld [vmem:[%s12] sm:$0x1]
  %v2421 = vld [vmem:[%s13] sm:$0x1]
  %v2422 = vsel %vm335, %v2418, 0.0
  %2423 = vadd.xlane.f32.xlu0 %v2422
  %v2424 = vpop.xlane.xlu0 %2423
  %v2425 = vsel %vm335, %v2419, 0.0
  %2426 = vadd.xlane.f32.xlu0 %v2425
  %v2427 = vpop.xlane.xlu0 %2426
  %v2428 = vmul.f32 %v2424, %v342
  %v2429 = vmul.f32 %v2427, %v342
  %v2430 = vsub.f32 %v2418, %v2428
  %v2431 = vsub.f32 %v2419, %v2429
  %v2432 = vmul.f32 %v2430, %v2430
  %v2433 = vmul.f32 %v2431, %v2431
  %v2434 = vsel %vm335, %v2432, 0.0
  %2435 = vadd.xlane.f32.xlu0 %v2434
  %v2436 = vpop.xlane.xlu0 %2435
  %v2437 = vsel %vm335, %v2433, 0.0
  %2438 = vadd.xlane.f32.xlu0 %v2437
  %v2439 = vpop.xlane.xlu0 %2438
  %v2440 = vmul.f32 %v2436, %v342
  %v2441 = vmul.f32 %v2439, %v342
  %v2442 = vadd.f32 %v2440, 1e-12
  %v2443 = vadd.f32 %v2441, 1e-12
  %v2444 = vrsqrt.pop %v2442
  %v2445 = vrsqrt.pop %v2443
  %v2446 = vmul.f32 %v2430, %v2444
  %v2447 = vmul.f32 %v2431, %v2445
  %v2449 = vlaneseq
  %v2450 = vshrl.u32 %v2449, 7
  %v2451 = vsub.s32 0, %v2450
  %v2452 = vrot.slane %v2420, %v2451
  %v2454 = vmul.f32 %v2446, %v2452
  %v2455 = vmul.f32 %v2447, %v2452
  %v2457 = vlaneseq
  %v2458 = vshrl.u32 %v2457, 7
  %v2459 = vsub.s32 0, %v2458
  %v2460 = vrot.slane %v2421, %v2459
  %v2462 = vadd.f32 %v2454, %v2460
  %v2463 = vadd.f32 %v2455, %v2460
  %v2464 = vld [vmem:[%s14] sm:$0xff]
  %v2465 = vld [vmem:[%s14 + $0x8] sm:$0xff]
  %v2466 = vld [vmem:[%s14 + $0x10] sm:$0xff]
  %v2467 = vld [vmem:[%s14 + $0x18] sm:$0xff]
  %v2468 = vld [vmem:[%s15] sm:$0x1]
  %v2470 = vlaneseq
  %v2471 = vshrl.u32 %v2470, 7
  %v2472 = vsub.s32 0, %v2471
  %v2473 = vrot.slane %v2468, %v2472
  %v2476 = vsel %vm335, %v2462, 0
  %v2479 = vsel %vm335, %v2463, 0
  %2481 = vmatprep.subr.mxu0 0.0
  %2482 = vmatpush1.msra.mxu0 0.0
  %2483 = vmatprep.subr.mxu0 0.0
  %2484 = vmatpush1.msra.mxu0 0.0
  %2485 = vmatprep.subr.mxu0 0.0
  %2486 = vmatpush1.msra.mxu0 0.0
  %2487 = vmatprep.subr.mxu0 0.0
  %2488 = vmatpush1.msra.mxu0 0.0
  %2489 = vmatprep.subr.mxu0 0.0
  %2490 = vmatpush1.msra.mxu0 0.0
  %2491 = vmatprep.subr.mxu0 0.0
  %2492 = vmatpush1.msra.mxu0 0.0
  %2493 = vmatprep.subr.mxu0 0.0
  %2494 = vmatpush1.msra.mxu0 0.0
  %2495 = vmatprep.subr.mxu0 0.0
  %2496 = vmatpush1.msra.mxu0 0.0
  %2497 = vmatprep.subr.mxu0 0.0
  %2498 = vmatpush1.msra.mxu0 0.0
  %2499 = vmatprep.subr.mxu0 0.0
  %2500 = vmatpush1.msra.mxu0 0.0
  %2501 = vmatprep.subr.mxu0 0.0
  %2502 = vmatpush1.msra.mxu0 0.0
  %2503 = vmatprep.subr.mxu0 0.0
  %2504 = vmatpush1.msra.mxu0 0.0
  %2505 = vmatprep.subr.mxu0 0.0
  %2506 = vmatpush1.msra.mxu0 %v2467
  %2507 = vmatprep.subr.mxu0 0.0
  %2508 = vmatpush1.msra.mxu0 %v2466
  %2509 = vmatprep.subr.mxu0 0.0
  %2510 = vmatpush1.msra.mxu0 %v2465
  %2511 = vmatprep.subr.mxu0 0.0
  %2512 = vmatpush1.msra.mxu0 %v2464
  %2513 = vmatprep.subr.mxu0 0.0
  %2514 = vmatpush2.msra.mxu0 0.0
  %2515 = vmatprep.subr.mxu0 0.0
  %2516 = vmatpush2.msra.mxu0 0.0
  %2517 = vmatprep.subr.mxu0 0.0
  %2518 = vmatpush2.msra.mxu0 0.0
  %2519 = vmatprep.subr.mxu0 0.0
  %2520 = vmatpush2.msra.mxu0 0.0
  %2521 = vmatprep.subr.mxu0 0.0
  %2522 = vmatpush2.msra.mxu0 0.0
  %2523 = vmatprep.subr.mxu0 0.0
  %2524 = vmatpush2.msra.mxu0 0.0
  %2525 = vmatprep.subr.mxu0 0.0
  %2526 = vmatpush2.msra.mxu0 0.0
  %2527 = vmatprep.subr.mxu0 0.0
  %2528 = vmatpush2.msra.mxu0 0.0
  %2529 = vmatprep.subr.mxu0 0.0
  %2530 = vmatpush2.msra.mxu0 0.0
  %2531 = vmatprep.subr.mxu0 0.0
  %2532 = vmatpush2.msra.mxu0 0.0
  %2533 = vmatprep.subr.mxu0 0.0
  %2534 = vmatpush2.msra.mxu0 0.0
  %2535 = vmatprep.subr.mxu0 0.0
  %2536 = vmatpush2.msra.mxu0 0.0
  %2537 = vmatprep.subr.mxu0 0.0
  %2538 = vmatpush2.msra.mxu0 0.0
  %2539 = vmatprep.subr.mxu0 0.0
  %2540 = vmatpush2.msra.mxu0 0.0
  %2541 = vmatprep.subr.mxu0 0.0
  %2542 = vmatpush2.msra.mxu0 0.0
  %2543 = vmatprep.subr.mxu0 0.0
  %2544 = vmatpush2.msra.mxu0 0.0
  %2545 = vmatprep.mubr.f32.mxu0 0.0
  %2546 = vmatmul.mubr.f32.gmra.mxu0 %v2476
  %v2547 = vpop.f32.mrf.mxu0
  %v2548 = vadd.f32 %v2473, %v2547
  %v2549 = vpop.f32.mrf.mxu0
  %2550 = vmatprep.mubr.f32.mxu0 0.0
  %2551 = vmatmul.mubr.f32.gmra.mxu0 %v2479
  %v2552 = vpop.f32.mrf.mxu0
  %v2553 = vadd.f32 %v2473, %v2552
  %v2554 = vpop.f32.mrf.mxu0
  %2555 = vdwg.mxu0
  %v2556 = vmul.f32 %v2548, 0.5
  %v2557 = vmul.f32 %v2553, 0.5
  %v2558 = vmul.f32 %v2548, 0.70710677
  %v2559 = vmul.f32 %v2553, 0.70710677
  %v2560 = vand.u32 2147483647, %v2558
  %v2561 = vand.u32 2147483647, %v2559
  %v2562 = vmul.f32 %v2560, 0.3275911
  %v2563 = vmul.f32 %v2561, 0.3275911
  %v2564 = vadd.f32 %v2562, 1.0
  %v2565 = vadd.f32 %v2563, 1.0
  %v2566 = vrcp.pop %v2564
  %v2567 = vmul.f32 1.0, %v2566
  %v2568 = vrcp.pop %v2565
  %v2569 = vmul.f32 1.0, %v2568
  %v2570 = vmul.f32 %v2567, 1.0614054
  %v2571 = vmul.f32 %v2569, 1.0614054
  %v2572 = vadd.f32 %v2570, -1.4531521
  %v2573 = vadd.f32 %v2571, -1.4531521
  %v2574 = vmul.f32 %v2572, %v2567
  %v2575 = vmul.f32 %v2573, %v2569
  %v2576 = vadd.f32 %v2574, 1.4214138
  %v2577 = vadd.f32 %v2575, 1.4214138
  %v2578 = vmul.f32 %v2576, %v2567
  %v2579 = vmul.f32 %v2577, %v2569
  %v2580 = vadd.f32 %v2578, -0.28449672
  %v2581 = vadd.f32 %v2579, -0.28449672
  %v2582 = vmul.f32 %v2580, %v2567
  %v2583 = vmul.f32 %v2581, %v2569
  %v2584 = vadd.f32 %v2582, 0.2548296
  %v2585 = vadd.f32 %v2583, 0.2548296
  %v2586 = vmul.f32 %v2584, %v2567
  %v2587 = vmul.f32 %v2585, %v2569
  %v2588 = vsub.f32 0.0, %v2560
  %v2589 = vsub.f32 0.0, %v2561
  %v2590 = vmul.f32 %v2588, %v2560
  %v2591 = vmul.f32 %v2589, %v2561
  %v2592 = vmul.f32 %v2590, 1.442695
  %v2593 = vpow.pop %v2592
  %v2594 = vmul.f32 %v2591, 1.442695
  %v2595 = vpow.pop %v2594
  %v2596 = vmul.f32 %v2586, %v2593
  %v2597 = vmul.f32 %v2587, %v2595
  %v2598 = vsub.f32 1.0, %v2596
  %v2599 = vsub.f32 1.0, %v2597
  %vm2600 = vcmp.lt.f32.partialorder %v2558, 0.0
  %vm2601 = vcmp.lt.f32.partialorder %v2559, 0.0
  %v2602 = vsub.f32 0.0, %v2598
  %v2603 = vsub.f32 0.0, %v2599
  %v2604 = vsel %vm2600, %v2602, %v2598
  %v2605 = vsel %vm2601, %v2603, %v2599
  %v2606 = vadd.f32 %v2604, 1.0
  %v2607 = vadd.f32 %v2605, 1.0
  %v2608 = vmul.f32 %v2556, %v2606
  %v2609 = vmul.f32 %v2557, %v2607
  %v2610 = vld [vmem:[%s16] sm:$0xff]
  %v2611 = vld [vmem:[%s16 + $0x8] sm:$0xff]
  %v2612 = vld [vmem:[%s16 + $0x10] sm:$0xff]
  %v2613 = vld [vmem:[%s16 + $0x18] sm:$0xff]
  %v2614 = vld [vmem:[%s16 + $0x20] sm:$0xff]
  %v2615 = vld [vmem:[%s16 + $0x28] sm:$0xff]
  %v2616 = vld [vmem:[%s16 + $0x30] sm:$0xff]
  %v2617 = vld [vmem:[%s16 + $0x38] sm:$0xff]
  %v2618 = vld [vmem:[%s17] sm:$0x1]
  %v2620 = vlaneseq
  %v2621 = vshrl.u32 %v2620, 7
  %v2622 = vsub.s32 0, %v2621
  %v2623 = vrot.slane %v2618, %v2622
  %v2626 = vsel %vm247, %v2608, 0
  %v2629 = vsel %vm247, %v2609, 0
  %2631 = vmatprep.subr.mxu0 0.0
  %2632 = vmatpush1.msra.mxu0 0.0
  %2633 = vmatprep.subr.mxu0 0.0
  %2634 = vmatpush1.msra.mxu0 0.0
  %2635 = vmatprep.subr.mxu0 0.0
  %2636 = vmatpush1.msra.mxu0 0.0
  %2637 = vmatprep.subr.mxu0 0.0
  %2638 = vmatpush1.msra.mxu0 0.0
  %2639 = vmatprep.subr.mxu0 0.0
  %2640 = vmatpush1.msra.mxu0 0.0
  %2641 = vmatprep.subr.mxu0 0.0
  %2642 = vmatpush1.msra.mxu0 0.0
  %2643 = vmatprep.subr.mxu0 0.0
  %2644 = vmatpush1.msra.mxu0 0.0
  %2645 = vmatprep.subr.mxu0 0.0
  %2646 = vmatpush1.msra.mxu0 0.0
  %2647 = vmatprep.subr.mxu0 0.0
  %2648 = vmatpush1.msra.mxu0 %v2617
  %2649 = vmatprep.subr.mxu0 0.0
  %2650 = vmatpush1.msra.mxu0 %v2616
  %2651 = vmatprep.subr.mxu0 0.0
  %2652 = vmatpush1.msra.mxu0 %v2615
  %2653 = vmatprep.subr.mxu0 0.0
  %2654 = vmatpush1.msra.mxu0 %v2614
  %2655 = vmatprep.subr.mxu0 0.0
  %2656 = vmatpush1.msra.mxu0 %v2613
  %2657 = vmatprep.subr.mxu0 0.0
  %2658 = vmatpush1.msra.mxu0 %v2612
  %2659 = vmatprep.subr.mxu0 0.0
  %2660 = vmatpush1.msra.mxu0 %v2611
  %2661 = vmatprep.subr.mxu0 0.0
  %2662 = vmatpush1.msra.mxu0 %v2610
  %2663 = vmatprep.subr.mxu0 0.0
  %2664 = vmatpush2.msra.mxu0 0.0
  %2665 = vmatprep.subr.mxu0 0.0
  %2666 = vmatpush2.msra.mxu0 0.0
  %2667 = vmatprep.subr.mxu0 0.0
  %2668 = vmatpush2.msra.mxu0 0.0
  %2669 = vmatprep.subr.mxu0 0.0
  %2670 = vmatpush2.msra.mxu0 0.0
  %2671 = vmatprep.subr.mxu0 0.0
  %2672 = vmatpush2.msra.mxu0 0.0
  %2673 = vmatprep.subr.mxu0 0.0
  %2674 = vmatpush2.msra.mxu0 0.0
  %2675 = vmatprep.subr.mxu0 0.0
  %2676 = vmatpush2.msra.mxu0 0.0
  %2677 = vmatprep.subr.mxu0 0.0
  %2678 = vmatpush2.msra.mxu0 0.0
  %2679 = vmatprep.subr.mxu0 0.0
  %2680 = vmatpush2.msra.mxu0 0.0
  %2681 = vmatprep.subr.mxu0 0.0
  %2682 = vmatpush2.msra.mxu0 0.0
  %2683 = vmatprep.subr.mxu0 0.0
  %2684 = vmatpush2.msra.mxu0 0.0
  %2685 = vmatprep.subr.mxu0 0.0
  %2686 = vmatpush2.msra.mxu0 0.0
  %2687 = vmatprep.subr.mxu0 0.0
  %2688 = vmatpush2.msra.mxu0 0.0
  %2689 = vmatprep.subr.mxu0 0.0
  %2690 = vmatpush2.msra.mxu0 0.0
  %2691 = vmatprep.subr.mxu0 0.0
  %2692 = vmatpush2.msra.mxu0 0.0
  %2693 = vmatprep.subr.mxu0 0.0
  %2694 = vmatpush2.msra.mxu0 0.0
  %2695 = vmatprep.mubr.f32.mxu0 0.0
  %2696 = vmatmul.mubr.f32.gmra.mxu0 %v2626
  %v2697 = vpop.f32.mrf.mxu0
  %v2698 = vadd.f32 %v2623, %v2697
  %v2699 = vpop.f32.mrf.mxu0
  %2700 = vmatprep.mubr.f32.mxu0 0.0
  %2701 = vmatmul.mubr.f32.gmra.mxu0 %v2629
  %v2702 = vpop.f32.mrf.mxu0
  %v2703 = vadd.f32 %v2623, %v2702
  %v2704 = vpop.f32.mrf.mxu0
  %2705 = vdwg.mxu0
  %v2706 = vadd.f32 %v2462, %v2698
  %v2707 = vadd.f32 %v2463, %v2703
  %v2708 = vld [vmem:[%s18] sm:$0x1]
  %v2709 = vld [vmem:[%s19] sm:$0x1]
  %v2710 = vsel %vm335, %v2706, 0.0
  %2711 = vadd.xlane.f32.xlu0 %v2710
  %v2712 = vpop.xlane.xlu0 %2711
  %v2713 = vsel %vm335, %v2707, 0.0
  %2714 = vadd.xlane.f32.xlu0 %v2713
  %v2715 = vpop.xlane.xlu0 %2714
  %v2716 = vmul.f32 %v2712, %v342
  %v2717 = vmul.f32 %v2715, %v342
  %v2718 = vsub.f32 %v2706, %v2716
  %v2719 = vsub.f32 %v2707, %v2717
  %v2720 = vmul.f32 %v2718, %v2718
  %v2721 = vmul.f32 %v2719, %v2719
  %v2722 = vsel %vm335, %v2720, 0.0
  %2723 = vadd.xlane.f32.xlu0 %v2722
  %v2724 = vpop.xlane.xlu0 %2723
  %v2725 = vsel %vm335, %v2721, 0.0
  %2726 = vadd.xlane.f32.xlu0 %v2725
  %v2727 = vpop.xlane.xlu0 %2726
  %v2728 = vmul.f32 %v2724, %v342
  %v2729 = vmul.f32 %v2727, %v342
  %v2730 = vadd.f32 %v2728, 1e-12
  %v2731 = vadd.f32 %v2729, 1e-12
  %v2732 = vrsqrt.pop %v2730
  %v2733 = vrsqrt.pop %v2731
  %v2734 = vmul.f32 %v2718, %v2732
  %v2735 = vmul.f32 %v2719, %v2733
  %v2737 = vlaneseq
  %v2738 = vshrl.u32 %v2737, 7
  %v2739 = vsub.s32 0, %v2738
  %v2740 = vrot.slane %v2708, %v2739
  %v2742 = vmul.f32 %v2734, %v2740
  %v2743 = vmul.f32 %v2735, %v2740
  %v2745 = vlaneseq
  %v2746 = vshrl.u32 %v2745, 7
  %v2747 = vsub.s32 0, %v2746
  %v2748 = vrot.slane %v2709, %v2747
  %v2750 = vadd.f32 %v2742, %v2748
  %v2751 = vadd.f32 %v2743, %v2748
  %s2752 = scalar_lea.vmem %s8, 32
  %v2753 = vld [vmem:[%s2752] sm:$0xff]
  %v2754 = vld [vmem:[%s2752 + $0x8] sm:$0xff]
  %v2755 = vld [vmem:[%s2752 + $0x10] sm:$0xff]
  %v2756 = vld [vmem:[%s2752 + $0x18] sm:$0xff]
  %s2757 = scalar_lea.vmem %s10, 32
  %v2758 = vld [vmem:[%s2757] sm:$0xff]
  %v2759 = vld [vmem:[%s2757 + $0x8] sm:$0xff]
  %v2760 = vld [vmem:[%s2757 + $0x10] sm:$0xff]
  %v2761 = vld [vmem:[%s2757 + $0x18] sm:$0xff]
  %s2762 = scalar_lea.vmem %s9, 1
  %v2763 = vld [vmem:[%s2762] sm:$0x1]
  %v2765 = vlaneseq
  %v2766 = vshrl.u32 %v2765, 7
  %v2767 = vsub.s32 0, %v2766
  %v2768 = vrot.slane %v2763, %v2767
  %v2771 = vsel %vm335, %v2750, 0
  %v2774 = vsel %vm335, %v2751, 0
  %2776 = vmatprep.subr.mxu0 0.0
  %2777 = vmatpush1.msra.mxu0 0.0
  %2778 = vmatprep.subr.mxu0 0.0
  %2779 = vmatpush1.msra.mxu0 0.0
  %2780 = vmatprep.subr.mxu0 0.0
  %2781 = vmatpush1.msra.mxu0 0.0
  %2782 = vmatprep.subr.mxu0 0.0
  %2783 = vmatpush1.msra.mxu0 0.0
  %2784 = vmatprep.subr.mxu0 0.0
  %2785 = vmatpush1.msra.mxu0 0.0
  %2786 = vmatprep.subr.mxu0 0.0
  %2787 = vmatpush1.msra.mxu0 0.0
  %2788 = vmatprep.subr.mxu0 0.0
  %2789 = vmatpush1.msra.mxu0 0.0
  %2790 = vmatprep.subr.mxu0 0.0
  %2791 = vmatpush1.msra.mxu0 0.0
  %2792 = vmatprep.subr.mxu0 0.0
  %2793 = vmatpush1.msra.mxu0 0.0
  %2794 = vmatprep.subr.mxu0 0.0
  %2795 = vmatpush1.msra.mxu0 0.0
  %2796 = vmatprep.subr.mxu0 0.0
  %2797 = vmatpush1.msra.mxu0 0.0
  %2798 = vmatprep.subr.mxu0 0.0
  %2799 = vmatpush1.msra.mxu0 0.0
  %2800 = vmatprep.subr.mxu0 0.0
  %2801 = vmatpush1.msra.mxu0 %v2756
  %2802 = vmatprep.subr.mxu0 0.0
  %2803 = vmatpush1.msra.mxu0 %v2755
  %2804 = vmatprep.subr.mxu0 0.0
  %2805 = vmatpush1.msra.mxu0 %v2754
  %2806 = vmatprep.subr.mxu0 0.0
  %2807 = vmatpush1.msra.mxu0 %v2753
  %2808 = vmatprep.subr.mxu0 0.0
  %2809 = vmatpush2.msra.mxu0 0.0
  %2810 = vmatprep.subr.mxu0 0.0
  %2811 = vmatpush2.msra.mxu0 0.0
  %2812 = vmatprep.subr.mxu0 0.0
  %2813 = vmatpush2.msra.mxu0 0.0
  %2814 = vmatprep.subr.mxu0 0.0
  %2815 = vmatpush2.msra.mxu0 0.0
  %2816 = vmatprep.subr.mxu0 0.0
  %2817 = vmatpush2.msra.mxu0 0.0
  %2818 = vmatprep.subr.mxu0 0.0
  %2819 = vmatpush2.msra.mxu0 0.0
  %2820 = vmatprep.subr.mxu0 0.0
  %2821 = vmatpush2.msra.mxu0 0.0
  %2822 = vmatprep.subr.mxu0 0.0
  %2823 = vmatpush2.msra.mxu0 0.0
  %2824 = vmatprep.subr.mxu0 0.0
  %2825 = vmatpush2.msra.mxu0 0.0
  %2826 = vmatprep.subr.mxu0 0.0
  %2827 = vmatpush2.msra.mxu0 0.0
  %2828 = vmatprep.subr.mxu0 0.0
  %2829 = vmatpush2.msra.mxu0 0.0
  %2830 = vmatprep.subr.mxu0 0.0
  %2831 = vmatpush2.msra.mxu0 0.0
  %2832 = vmatprep.subr.mxu0 0.0
  %2833 = vmatpush2.msra.mxu0 0.0
  %2834 = vmatprep.subr.mxu0 0.0
  %2835 = vmatpush2.msra.mxu0 0.0
  %2836 = vmatprep.subr.mxu0 0.0
  %2837 = vmatpush2.msra.mxu0 0.0
  %2838 = vmatprep.subr.mxu0 0.0
  %2839 = vmatpush2.msra.mxu0 0.0
  %2840 = vmatprep.mubr.f32.mxu0 0.0
  %2841 = vmatmul.mubr.f32.gmra.mxu0 %v2771
  %v2842 = vpop.f32.mrf.mxu0
  %v2843 = vadd.f32 %v2768, %v2842
  %v2844 = vpop.f32.mrf.mxu0
  %2845 = vmatprep.mubr.f32.mxu0 0.0
  %2846 = vmatmul.mubr.f32.gmra.mxu0 %v2774
  %v2847 = vpop.f32.mrf.mxu0
  %v2848 = vadd.f32 %v2768, %v2847
  %v2849 = vpop.f32.mrf.mxu0
  %2850 = vdwg.mxu0
  %2852 = vrot.lane.b32.xlu0 %v2843, 96
  %v2853 = vpop.permute.xlu0 %2852
  %v2854 = vsel %vm481, %v2843, 0
  %v2856 = vsel %vm481, %v2853, 0
  %2858 = vmatprep.subr.mxu0 0.0
  %2859 = vmatpush1.xpose.msra.mxu0 0.0
  %2860 = vmatprep.subr.mxu0 0.0
  %2861 = vmatpush1.xpose.msra.mxu0 0.0
  %2862 = vmatprep.subr.mxu0 0.0
  %2863 = vmatpush1.xpose.msra.mxu0 0.0
  %2864 = vmatprep.subr.mxu0 0.0
  %2865 = vmatpush1.xpose.msra.mxu0 0.0
  %2866 = vmatprep.subr.mxu0 0.0
  %2867 = vmatpush1.xpose.msra.mxu0 0.0
  %2868 = vmatprep.subr.mxu0 0.0
  %2869 = vmatpush1.xpose.msra.mxu0 0.0
  %2870 = vmatprep.subr.mxu0 0.0
  %2871 = vmatpush1.xpose.msra.mxu0 0.0
  %2872 = vmatprep.subr.mxu0 0.0
  %2873 = vmatpush1.xpose.msra.mxu0 0.0
  %2874 = vmatprep.subr.mxu0 0.0
  %2875 = vmatpush1.xpose.msra.mxu0 0.0
  %2876 = vmatprep.subr.mxu0 0.0
  %2877 = vmatpush1.xpose.msra.mxu0 0.0
  %2878 = vmatprep.subr.mxu0 0.0
  %2879 = vmatpush1.xpose.msra.mxu0 0.0
  %2880 = vmatprep.subr.mxu0 0.0
  %2881 = vmatpush1.xpose.msra.mxu0 0.0
  %2882 = vmatprep.subr.mxu0 0.0
  %2883 = vmatpush1.xpose.msra.mxu0 0.0
  %2884 = vmatprep.subr.mxu0 0.0
  %2885 = vmatpush1.xpose.msra.mxu0 0.0
  %2886 = vmatprep.subr.mxu0 0.0
  %2887 = vmatpush1.xpose.msra.mxu0 0.0
  %2888 = vmatprep.subr.mxu0 0.0
  %2889 = vmatpush1.xpose.msra.mxu0 %v2856
  %2890 = vmatprep.subr.mxu0 0.0
  %2891 = vmatpush2.xpose.msra.mxu0 0.0
  %2892 = vmatprep.subr.mxu0 0.0
  %2893 = vmatpush2.xpose.msra.mxu0 0.0
  %2894 = vmatprep.subr.mxu0 0.0
  %2895 = vmatpush2.xpose.msra.mxu0 0.0
  %2896 = vmatprep.subr.mxu0 0.0
  %2897 = vmatpush2.xpose.msra.mxu0 0.0
  %2898 = vmatprep.subr.mxu0 0.0
  %2899 = vmatpush2.xpose.msra.mxu0 0.0
  %2900 = vmatprep.subr.mxu0 0.0
  %2901 = vmatpush2.xpose.msra.mxu0 0.0
  %2902 = vmatprep.subr.mxu0 0.0
  %2903 = vmatpush2.xpose.msra.mxu0 0.0
  %2904 = vmatprep.subr.mxu0 0.0
  %2905 = vmatpush2.xpose.msra.mxu0 0.0
  %2906 = vmatprep.subr.mxu0 0.0
  %2907 = vmatpush2.xpose.msra.mxu0 0.0
  %2908 = vmatprep.subr.mxu0 0.0
  %2909 = vmatpush2.xpose.msra.mxu0 0.0
  %2910 = vmatprep.subr.mxu0 0.0
  %2911 = vmatpush2.xpose.msra.mxu0 0.0
  %2912 = vmatprep.subr.mxu0 0.0
  %2913 = vmatpush2.xpose.msra.mxu0 0.0
  %2914 = vmatprep.subr.mxu0 0.0
  %2915 = vmatpush2.xpose.msra.mxu0 0.0
  %2916 = vmatprep.subr.mxu0 0.0
  %2917 = vmatpush2.xpose.msra.mxu0 0.0
  %2918 = vmatprep.subr.mxu0 0.0
  %2919 = vmatpush2.xpose.msra.mxu0 0.0
  %2920 = vmatprep.subr.mxu0 0.0
  %2921 = vmatpush2.xpose.msra.mxu0 0.0
  %2922 = vmatprep.mubr.f32.mxu0 0.0
  %2923 = vmatmul.mubr.f32.gmra.mxu0 %v2854
  %v2924 = vpop.f32.mrf.mxu0
  %v2925 = vadd.f32 0.0, %v2924
  %v2926 = vpop.f32.mrf.mxu0
  %2927 = vdwg.mxu0
  %v2928 = vmul.f32 %v2925, 0.35355338
  %v2929 = vadd.f32 %v2928, %v560
  %v2930 = vsel %vm481, %v2929, -inf
  %2931 = vmax.xlane.f32.xlu0 %v2930
  %v2932 = vpop.xlane.xlu0 %2931
  %v2933 = vsub.f32 %v2929, %v2932
  %v2934 = vmul.f32 %v2933, 1.442695
  %v2935 = vpow.pop %v2934
  %v2936 = vsel %vm481, %v2935, 0.0
  %2937 = vadd.xlane.f32.xlu0 %v2936
  %v2938 = vpop.xlane.xlu0 %2937
  %v2939 = vrcp.pop %v2938
  %v2940 = vmul.f32 %v2935, %v2939
  %2941 = vrot.lane.b32.xlu0 %v2843, 64
  %v2942 = vpop.permute.xlu0 %2941
  %v2945 = vsel %vm481, %v2940, 0
  %2947 = vmatprep.subr.mxu0 0.0
  %2948 = vmatpush1.msra.mxu0 0.0
  %2949 = vmatprep.subr.mxu0 0.0
  %2950 = vmatpush1.msra.mxu0 0.0
  %2951 = vmatprep.subr.mxu0 0.0
  %2952 = vmatpush1.msra.mxu0 0.0
  %2953 = vmatprep.subr.mxu0 0.0
  %2954 = vmatpush1.msra.mxu0 0.0
  %2955 = vmatprep.subr.mxu0 0.0
  %2956 = vmatpush1.msra.mxu0 0.0
  %2957 = vmatprep.subr.mxu0 0.0
  %2958 = vmatpush1.msra.mxu0 0.0
  %2959 = vmatprep.subr.mxu0 0.0
  %2960 = vmatpush1.msra.mxu0 0.0
  %2961 = vmatprep.subr.mxu0 0.0
  %2962 = vmatpush1.msra.mxu0 0.0
  %2963 = vmatprep.subr.mxu0 0.0
  %2964 = vmatpush1.msra.mxu0 0.0
  %2965 = vmatprep.subr.mxu0 0.0
  %2966 = vmatpush1.msra.mxu0 0.0
  %2967 = vmatprep.subr.mxu0 0.0
  %2968 = vmatpush1.msra.mxu0 0.0
  %2969 = vmatprep.subr.mxu0 0.0
  %2970 = vmatpush1.msra.mxu0 0.0
  %2971 = vmatprep.subr.mxu0 0.0
  %2972 = vmatpush1.msra.mxu0 0.0
  %2973 = vmatprep.subr.mxu0 0.0
  %2974 = vmatpush1.msra.mxu0 0.0
  %2975 = vmatprep.subr.mxu0 0.0
  %2976 = vmatpush1.msra.mxu0 0.0
  %2977 = vmatprep.subr.mxu0 0.0
  %2978 = vmatpush1.msra.mxu0 %v2942
  %2979 = vmatprep.subr.mxu0 0.0
  %2980 = vmatpush2.msra.mxu0 0.0
  %2981 = vmatprep.subr.mxu0 0.0
  %2982 = vmatpush2.msra.mxu0 0.0
  %2983 = vmatprep.subr.mxu0 0.0
  %2984 = vmatpush2.msra.mxu0 0.0
  %2985 = vmatprep.subr.mxu0 0.0
  %2986 = vmatpush2.msra.mxu0 0.0
  %2987 = vmatprep.subr.mxu0 0.0
  %2988 = vmatpush2.msra.mxu0 0.0
  %2989 = vmatprep.subr.mxu0 0.0
  %2990 = vmatpush2.msra.mxu0 0.0
  %2991 = vmatprep.subr.mxu0 0.0
  %2992 = vmatpush2.msra.mxu0 0.0
  %2993 = vmatprep.subr.mxu0 0.0
  %2994 = vmatpush2.msra.mxu0 0.0
  %2995 = vmatprep.subr.mxu0 0.0
  %2996 = vmatpush2.msra.mxu0 0.0
  %2997 = vmatprep.subr.mxu0 0.0
  %2998 = vmatpush2.msra.mxu0 0.0
  %2999 = vmatprep.subr.mxu0 0.0
  %3000 = vmatpush2.msra.mxu0 0.0
  %3001 = vmatprep.subr.mxu0 0.0
  %3002 = vmatpush2.msra.mxu0 0.0
  %3003 = vmatprep.subr.mxu0 0.0
  %3004 = vmatpush2.msra.mxu0 0.0
  %3005 = vmatprep.subr.mxu0 0.0
  %3006 = vmatpush2.msra.mxu0 0.0
  %3007 = vmatprep.subr.mxu0 0.0
  %3008 = vmatpush2.msra.mxu0 0.0
  %3009 = vmatprep.subr.mxu0 0.0
  %3010 = vmatpush2.msra.mxu0 0.0
  %3011 = vmatprep.mubr.f32.mxu0 0.0
  %3012 = vmatmul.mubr.f32.gmra.mxu0 %v2945
  %v3013 = vpop.f32.mrf.mxu0
  %v3014 = vadd.f32 0.0, %v3013
  %v3015 = vpop.f32.mrf.mxu0
  %3016 = vdwg.mxu0
  %3017 = vrot.lane.b32.xlu0 %v2843, 120
  %v3018 = vpop.permute.xlu0 %3017
  %3019 = vrot.lane.b32.xlu0 %v2843, 88
  %v3020 = vpop.permute.xlu0 %3019
  %v3021 = vsel %vm481, %v3018, 0
  %v3023 = vsel %vm481, %v3020, 0
  %3025 = vmatprep.subr.mxu0 0.0
  %3026 = vmatpush1.xpose.msra.mxu0 0.0
  %3027 = vmatprep.subr.mxu0 0.0
  %3028 = vmatpush1.xpose.msra.mxu0 0.0
  %3029 = vmatprep.subr.mxu0 0.0
  %3030 = vmatpush1.xpose.msra.mxu0 0.0
  %3031 = vmatprep.subr.mxu0 0.0
  %3032 = vmatpush1.xpose.msra.mxu0 0.0
  %3033 = vmatprep.subr.mxu0 0.0
  %3034 = vmatpush1.xpose.msra.mxu0 0.0
  %3035 = vmatprep.subr.mxu0 0.0
  %3036 = vmatpush1.xpose.msra.mxu0 0.0
  %3037 = vmatprep.subr.mxu0 0.0
  %3038 = vmatpush1.xpose.msra.mxu0 0.0
  %3039 = vmatprep.subr.mxu0 0.0
  %3040 = vmatpush1.xpose.msra.mxu0 0.0
  %3041 = vmatprep.subr.mxu0 0.0
  %3042 = vmatpush1.xpose.msra.mxu0 0.0
  %3043 = vmatprep.subr.mxu0 0.0
  %3044 = vmatpush1.xpose.msra.mxu0 0.0
  %3045 = vmatprep.subr.mxu0 0.0
  %3046 = vmatpush1.xpose.msra.mxu0 0.0
  %3047 = vmatprep.subr.mxu0 0.0
  %3048 = vmatpush1.xpose.msra.mxu0 0.0
  %3049 = vmatprep.subr.mxu0 0.0
  %3050 = vmatpush1.xpose.msra.mxu0 0.0
  %3051 = vmatprep.subr.mxu0 0.0
  %3052 = vmatpush1.xpose.msra.mxu0 0.0
  %3053 = vmatprep.subr.mxu0 0.0
  %3054 = vmatpush1.xpose.msra.mxu0 0.0
  %3055 = vmatprep.subr.mxu0 0.0
  %3056 = vmatpush1.xpose.msra.mxu0 %v3023
  %3057 = vmatprep.subr.mxu0 0.0
  %3058 = vmatpush2.xpose.msra.mxu0 0.0
  %3059 = vmatprep.subr.mxu0 0.0
  %3060 = vmatpush2.xpose.msra.mxu0 0.0
  %3061 = vmatprep.subr.mxu0 0.0
  %3062 = vmatpush2.xpose.msra.mxu0 0.0
  %3063 = vmatprep.subr.mxu0 0.0
  %3064 = vmatpush2.xpose.msra.mxu0 0.0
  %3065 = vmatprep.subr.mxu0 0.0
  %3066 = vmatpush2.xpose.msra.mxu0 0.0
  %3067 = vmatprep.subr.mxu0 0.0
  %3068 = vmatpush2.xpose.msra.mxu0 0.0
  %3069 = vmatprep.subr.mxu0 0.0
  %3070 = vmatpush2.xpose.msra.mxu0 0.0
  %3071 = vmatprep.subr.mxu0 0.0
  %3072 = vmatpush2.xpose.msra.mxu0 0.0
  %3073 = vmatprep.subr.mxu0 0.0
  %3074 = vmatpush2.xpose.msra.mxu0 0.0
  %3075 = vmatprep.subr.mxu0 0.0
  %3076 = vmatpush2.xpose.msra.mxu0 0.0
  %3077 = vmatprep.subr.mxu0 0.0
  %3078 = vmatpush2.xpose.msra.mxu0 0.0
  %3079 = vmatprep.subr.mxu0 0.0
  %3080 = vmatpush2.xpose.msra.mxu0 0.0
  %3081 = vmatprep.subr.mxu0 0.0
  %3082 = vmatpush2.xpose.msra.mxu0 0.0
  %3083 = vmatprep.subr.mxu0 0.0
  %3084 = vmatpush2.xpose.msra.mxu0 0.0
  %3085 = vmatprep.subr.mxu0 0.0
  %3086 = vmatpush2.xpose.msra.mxu0 0.0
  %3087 = vmatprep.subr.mxu0 0.0
  %3088 = vmatpush2.xpose.msra.mxu0 0.0
  %3089 = vmatprep.mubr.f32.mxu0 0.0
  %3090 = vmatmul.mubr.f32.gmra.mxu0 %v3021
  %v3091 = vpop.f32.mrf.mxu0
  %v3092 = vadd.f32 0.0, %v3091
  %v3093 = vpop.f32.mrf.mxu0
  %3094 = vdwg.mxu0
  %v3095 = vmul.f32 %v3092, 0.35355338
  %v3096 = vadd.f32 %v3095, %v560
  %v3097 = vsel %vm481, %v3096, -inf
  %3098 = vmax.xlane.f32.xlu0 %v3097
  %v3099 = vpop.xlane.xlu0 %3098
  %v3100 = vsub.f32 %v3096, %v3099
  %v3101 = vmul.f32 %v3100, 1.442695
  %v3102 = vpow.pop %v3101
  %v3103 = vsel %vm481, %v3102, 0.0
  %3104 = vadd.xlane.f32.xlu0 %v3103
  %v3105 = vpop.xlane.xlu0 %3104
  %v3106 = vrcp.pop %v3105
  %v3107 = vmul.f32 %v3102, %v3106
  %3108 = vrot.lane.b32.xlu0 %v2843, 56
  %v3109 = vpop.permute.xlu0 %3108
  %v3112 = vsel %vm481, %v3107, 0
  %3114 = vmatprep.subr.mxu0 0.0
  %3115 = vmatpush1.msra.mxu0 0.0
  %3116 = vmatprep.subr.mxu0 0.0
  %3117 = vmatpush1.msra.mxu0 0.0
  %3118 = vmatprep.subr.mxu0 0.0
  %3119 = vmatpush1.msra.mxu0 0.0
  %3120 = vmatprep.subr.mxu0 0.0
  %3121 = vmatpush1.msra.mxu0 0.0
  %3122 = vmatprep.subr.mxu0 0.0
  %3123 = vmatpush1.msra.mxu0 0.0
  %3124 = vmatprep.subr.mxu0 0.0
  %3125 = vmatpush1.msra.mxu0 0.0
  %3126 = vmatprep.subr.mxu0 0.0
  %3127 = vmatpush1.msra.mxu0 0.0
  %3128 = vmatprep.subr.mxu0 0.0
  %3129 = vmatpush1.msra.mxu0 0.0
  %3130 = vmatprep.subr.mxu0 0.0
  %3131 = vmatpush1.msra.mxu0 0.0
  %3132 = vmatprep.subr.mxu0 0.0
  %3133 = vmatpush1.msra.mxu0 0.0
  %3134 = vmatprep.subr.mxu0 0.0
  %3135 = vmatpush1.msra.mxu0 0.0
  %3136 = vmatprep.subr.mxu0 0.0
  %3137 = vmatpush1.msra.mxu0 0.0
  %3138 = vmatprep.subr.mxu0 0.0
  %3139 = vmatpush1.msra.mxu0 0.0
  %3140 = vmatprep.subr.mxu0 0.0
  %3141 = vmatpush1.msra.mxu0 0.0
  %3142 = vmatprep.subr.mxu0 0.0
  %3143 = vmatpush1.msra.mxu0 0.0
  %3144 = vmatprep.subr.mxu0 0.0
  %3145 = vmatpush1.msra.mxu0 %v3109
  %3146 = vmatprep.subr.mxu0 0.0
  %3147 = vmatpush2.msra.mxu0 0.0
  %3148 = vmatprep.subr.mxu0 0.0
  %3149 = vmatpush2.msra.mxu0 0.0
  %3150 = vmatprep.subr.mxu0 0.0
  %3151 = vmatpush2.msra.mxu0 0.0
  %3152 = vmatprep.subr.mxu0 0.0
  %3153 = vmatpush2.msra.mxu0 0.0
  %3154 = vmatprep.subr.mxu0 0.0
  %3155 = vmatpush2.msra.mxu0 0.0
  %3156 = vmatprep.subr.mxu0 0.0
  %3157 = vmatpush2.msra.mxu0 0.0
  %3158 = vmatprep.subr.mxu0 0.0
  %3159 = vmatpush2.msra.mxu0 0.0
  %3160 = vmatprep.subr.mxu0 0.0
  %3161 = vmatpush2.msra.mxu0 0.0
  %3162 = vmatprep.subr.mxu0 0.0
  %3163 = vmatpush2.msra.mxu0 0.0
  %3164 = vmatprep.subr.mxu0 0.0
  %3165 = vmatpush2.msra.mxu0 0.0
  %3166 = vmatprep.subr.mxu0 0.0
  %3167 = vmatpush2.msra.mxu0 0.0
  %3168 = vmatprep.subr.mxu0 0.0
  %3169 = vmatpush2.msra.mxu0 0.0
  %3170 = vmatprep.subr.mxu0 0.0
  %3171 = vmatpush2.msra.mxu0 0.0
  %3172 = vmatprep.subr.mxu0 0.0
  %3173 = vmatpush2.msra.mxu0 0.0
  %3174 = vmatprep.subr.mxu0 0.0
  %3175 = vmatpush2.msra.mxu0 0.0
  %3176 = vmatprep.subr.mxu0 0.0
  %3177 = vmatpush2.msra.mxu0 0.0
  %3178 = vmatprep.mubr.f32.mxu0 0.0
  %3179 = vmatmul.mubr.f32.gmra.mxu0 %v3112
  %v3180 = vpop.f32.mrf.mxu0
  %v3181 = vadd.f32 0.0, %v3180
  %v3182 = vpop.f32.mrf.mxu0
  %3183 = vdwg.mxu0
  %v3185 = vsel %vm481, %v3181, 0
  %3187 = vmatprep.subr.mxu0 0.0
  %3188 = vmatpush1.msra.mxu0 0.0
  %3189 = vmatprep.subr.mxu0 0.0
  %3190 = vmatpush1.msra.mxu0 0.0
  %3191 = vmatprep.subr.mxu0 0.0
  %3192 = vmatpush1.msra.mxu0 0.0
  %3193 = vmatprep.subr.mxu0 0.0
  %3194 = vmatpush1.msra.mxu0 0.0
  %3195 = vmatprep.subr.mxu0 0.0
  %3196 = vmatpush1.msra.mxu0 0.0
  %3197 = vmatprep.subr.mxu0 0.0
  %3198 = vmatpush1.msra.mxu0 0.0
  %3199 = vmatprep.subr.mxu0 0.0
  %3200 = vmatpush1.msra.mxu0 0.0
  %3201 = vmatprep.subr.mxu0 0.0
  %3202 = vmatpush1.msra.mxu0 0.0
  %3203 = vmatprep.subr.mxu0 0.0
  %3204 = vmatpush1.msra.mxu0 0.0
  %3205 = vmatprep.subr.mxu0 0.0
  %3206 = vmatpush1.msra.mxu0 0.0
  %3207 = vmatprep.subr.mxu0 0.0
  %3208 = vmatpush1.msra.mxu0 0.0
  %3209 = vmatprep.subr.mxu0 0.0
  %3210 = vmatpush1.msra.mxu0 0.0
  %3211 = vmatprep.subr.mxu0 0.0
  %3212 = vmatpush1.msra.mxu0 0.0
  %3213 = vmatprep.subr.mxu0 0.0
  %3214 = vmatpush1.msra.mxu0 0.0
  %3215 = vmatprep.subr.mxu0 0.0
  %3216 = vmatpush1.msra.mxu0 0.0
  %3217 = vmatprep.subr.mxu0 0.0
  %3218 = vmatpush1.msra.mxu0 %v2759
  %3219 = vmatprep.subr.mxu0 0.0
  %3220 = vmatpush2.msra.mxu0 0.0
  %3221 = vmatprep.subr.mxu0 0.0
  %3222 = vmatpush2.msra.mxu0 0.0
  %3223 = vmatprep.subr.mxu0 0.0
  %3224 = vmatpush2.msra.mxu0 0.0
  %3225 = vmatprep.subr.mxu0 0.0
  %3226 = vmatpush2.msra.mxu0 0.0
  %3227 = vmatprep.subr.mxu0 0.0
  %3228 = vmatpush2.msra.mxu0 0.0
  %3229 = vmatprep.subr.mxu0 0.0
  %3230 = vmatpush2.msra.mxu0 0.0
  %3231 = vmatprep.subr.mxu0 0.0
  %3232 = vmatpush2.msra.mxu0 0.0
  %3233 = vmatprep.subr.mxu0 0.0
  %3234 = vmatpush2.msra.mxu0 0.0
  %3235 = vmatprep.subr.mxu0 0.0
  %3236 = vmatpush2.msra.mxu0 0.0
  %3237 = vmatprep.subr.mxu0 0.0
  %3238 = vmatpush2.msra.mxu0 0.0
  %3239 = vmatprep.subr.mxu0 0.0
  %3240 = vmatpush2.msra.mxu0 0.0
  %3241 = vmatprep.subr.mxu0 0.0
  %3242 = vmatpush2.msra.mxu0 0.0
  %3243 = vmatprep.subr.mxu0 0.0
  %3244 = vmatpush2.msra.mxu0 0.0
  %3245 = vmatprep.subr.mxu0 0.0
  %3246 = vmatpush2.msra.mxu0 0.0
  %3247 = vmatprep.subr.mxu0 0.0
  %3248 = vmatpush2.msra.mxu0 0.0
  %3249 = vmatprep.subr.mxu0 0.0
  %3250 = vmatpush2.msra.mxu0 0.0
  %3251 = vmatprep.mubr.f32.mxu0 0.0
  %3252 = vmatmul.mubr.f32.gmra.mxu0 %v3185
  %v3253 = vpop.f32.mrf.mxu0
  %v3254 = vadd.f32 0.0, %v3253
  %v3255 = vpop.f32.mrf.mxu0
  %3256 = vdwg.mxu0
  %v3258 = vsel %vm481, %v3014, 0
  %3260 = vmatprep.subr.mxu0 0.0
  %3261 = vmatpush1.msra.mxu0 0.0
  %3262 = vmatprep.subr.mxu0 0.0
  %3263 = vmatpush1.msra.mxu0 0.0
  %3264 = vmatprep.subr.mxu0 0.0
  %3265 = vmatpush1.msra.mxu0 0.0
  %3266 = vmatprep.subr.mxu0 0.0
  %3267 = vmatpush1.msra.mxu0 0.0
  %3268 = vmatprep.subr.mxu0 0.0
  %3269 = vmatpush1.msra.mxu0 0.0
  %3270 = vmatprep.subr.mxu0 0.0
  %3271 = vmatpush1.msra.mxu0 0.0
  %3272 = vmatprep.subr.mxu0 0.0
  %3273 = vmatpush1.msra.mxu0 0.0
  %3274 = vmatprep.subr.mxu0 0.0
  %3275 = vmatpush1.msra.mxu0 0.0
  %3276 = vmatprep.subr.mxu0 0.0
  %3277 = vmatpush1.msra.mxu0 0.0
  %3278 = vmatprep.subr.mxu0 0.0
  %3279 = vmatpush1.msra.mxu0 0.0
  %3280 = vmatprep.subr.mxu0 0.0
  %3281 = vmatpush1.msra.mxu0 0.0
  %3282 = vmatprep.subr.mxu0 0.0
  %3283 = vmatpush1.msra.mxu0 0.0
  %3284 = vmatprep.subr.mxu0 0.0
  %3285 = vmatpush1.msra.mxu0 0.0
  %3286 = vmatprep.subr.mxu0 0.0
  %3287 = vmatpush1.msra.mxu0 0.0
  %3288 = vmatprep.subr.mxu0 0.0
  %3289 = vmatpush1.msra.mxu0 0.0
  %3290 = vmatprep.subr.mxu0 0.0
  %3291 = vmatpush1.msra.mxu0 %v2758
  %3292 = vmatprep.subr.mxu0 0.0
  %3293 = vmatpush2.msra.mxu0 0.0
  %3294 = vmatprep.subr.mxu0 0.0
  %3295 = vmatpush2.msra.mxu0 0.0
  %3296 = vmatprep.subr.mxu0 0.0
  %3297 = vmatpush2.msra.mxu0 0.0
  %3298 = vmatprep.subr.mxu0 0.0
  %3299 = vmatpush2.msra.mxu0 0.0
  %3300 = vmatprep.subr.mxu0 0.0
  %3301 = vmatpush2.msra.mxu0 0.0
  %3302 = vmatprep.subr.mxu0 0.0
  %3303 = vmatpush2.msra.mxu0 0.0
  %3304 = vmatprep.subr.mxu0 0.0
  %3305 = vmatpush2.msra.mxu0 0.0
  %3306 = vmatprep.subr.mxu0 0.0
  %3307 = vmatpush2.msra.mxu0 0.0
  %3308 = vmatprep.subr.mxu0 0.0
  %3309 = vmatpush2.msra.mxu0 0.0
  %3310 = vmatprep.subr.mxu0 0.0
  %3311 = vmatpush2.msra.mxu0 0.0
  %3312 = vmatprep.subr.mxu0 0.0
  %3313 = vmatpush2.msra.mxu0 0.0
  %3314 = vmatprep.subr.mxu0 0.0
  %3315 = vmatpush2.msra.mxu0 0.0
  %3316 = vmatprep.subr.mxu0 0.0
  %3317 = vmatpush2.msra.mxu0 0.0
  %3318 = vmatprep.subr.mxu0 0.0
  %3319 = vmatpush2.msra.mxu0 0.0
  %3320 = vmatprep.subr.mxu0 0.0
  %3321 = vmatpush2.msra.mxu0 0.0
  %3322 = vmatprep.subr.mxu0 0.0
  %3323 = vmatpush2.msra.mxu0 0.0
  %3324 = vmatprep.mubr.f32.mxu0 0.0
  %3325 = vmatmul.mubr.f32.gmra.mxu0 %v3258
  %v3326 = vpop.f32.mrf.mxu0
  %v3327 = vadd.f32 %v3254, %v3326
  %v3328 = vpop.f32.mrf.mxu0
  %3329 = vdwg.mxu0
  %3330 = vrot.lane.b32.xlu0 %v2843, 112
  %v3331 = vpop.permute.xlu0 %3330
  %3332 = vrot.lane.b32.xlu0 %v2843, 80
  %v3333 = vpop.permute.xlu0 %3332
  %v3334 = vsel %vm481, %v3331, 0
  %v3336 = vsel %vm481, %v3333, 0
  %3338 = vmatprep.subr.mxu0 0.0
  %3339 = vmatpush1.xpose.msra.mxu0 0.0
  %3340 = vmatprep.subr.mxu0 0.0
  %3341 = vmatpush1.xpose.msra.mxu0 0.0
  %3342 = vmatprep.subr.mxu0 0.0
  %3343 = vmatpush1.xpose.msra.mxu0 0.0
  %3344 = vmatprep.subr.mxu0 0.0
  %3345 = vmatpush1.xpose.msra.mxu0 0.0
  %3346 = vmatprep.subr.mxu0 0.0
  %3347 = vmatpush1.xpose.msra.mxu0 0.0
  %3348 = vmatprep.subr.mxu0 0.0
  %3349 = vmatpush1.xpose.msra.mxu0 0.0
  %3350 = vmatprep.subr.mxu0 0.0
  %3351 = vmatpush1.xpose.msra.mxu0 0.0
  %3352 = vmatprep.subr.mxu0 0.0
  %3353 = vmatpush1.xpose.msra.mxu0 0.0
  %3354 = vmatprep.subr.mxu0 0.0
  %3355 = vmatpush1.xpose.msra.mxu0 0.0
  %3356 = vmatprep.subr.mxu0 0.0
  %3357 = vmatpush1.xpose.msra.mxu0 0.0
  %3358 = vmatprep.subr.mxu0 0.0
  %3359 = vmatpush1.xpose.msra.mxu0 0.0
  %3360 = vmatprep.subr.mxu0 0.0
  %3361 = vmatpush1.xpose.msra.mxu0 0.0
  %3362 = vmatprep.subr.mxu0 0.0
  %3363 = vmatpush1.xpose.msra.mxu0 0.0
  %3364 = vmatprep.subr.mxu0 0.0
  %3365 = vmatpush1.xpose.msra.mxu0 0.0
  %3366 = vmatprep.subr.mxu0 0.0
  %3367 = vmatpush1.xpose.msra.mxu0 0.0
  %3368 = vmatprep.subr.mxu0 0.0
  %3369 = vmatpush1.xpose.msra.mxu0 %v3336
  %3370 = vmatprep.subr.mxu0 0.0
  %3371 = vmatpush2.xpose.msra.mxu0 0.0
  %3372 = vmatprep.subr.mxu0 0.0
  %3373 = vmatpush2.xpose.msra.mxu0 0.0
  %3374 = vmatprep.subr.mxu0 0.0
  %3375 = vmatpush2.xpose.msra.mxu0 0.0
  %3376 = vmatprep.subr.mxu0 0.0
  %3377 = vmatpush2.xpose.msra.mxu0 0.0
  %3378 = vmatprep.subr.mxu0 0.0
  %3379 = vmatpush2.xpose.msra.mxu0 0.0
  %3380 = vmatprep.subr.mxu0 0.0
  %3381 = vmatpush2.xpose.msra.mxu0 0.0
  %3382 = vmatprep.subr.mxu0 0.0
  %3383 = vmatpush2.xpose.msra.mxu0 0.0
  %3384 = vmatprep.subr.mxu0 0.0
  %3385 = vmatpush2.xpose.msra.mxu0 0.0
  %3386 = vmatprep.subr.mxu0 0.0
  %3387 = vmatpush2.xpose.msra.mxu0 0.0
  %3388 = vmatprep.subr.mxu0 0.0
  %3389 = vmatpush2.xpose.msra.mxu0 0.0
  %3390 = vmatprep.subr.mxu0 0.0
  %3391 = vmatpush2.xpose.msra.mxu0 0.0
  %3392 = vmatprep.subr.mxu0 0.0
  %3393 = vmatpush2.xpose.msra.mxu0 0.0
  %3394 = vmatprep.subr.mxu0 0.0
  %3395 = vmatpush2.xpose.msra.mxu0 0.0
  %3396 = vmatprep.subr.mxu0 0.0
  %3397 = vmatpush2.xpose.msra.mxu0 0.0
  %3398 = vmatprep.subr.mxu0 0.0
  %3399 = vmatpush2.xpose.msra.mxu0 0.0
  %3400 = vmatprep.subr.mxu0 0.0
  %3401 = vmatpush2.xpose.msra.mxu0 0.0
  %3402 = vmatprep.mubr.f32.mxu0 0.0
  %3403 = vmatmul.mubr.f32.gmra.mxu0 %v3334
  %v3404 = vpop.f32.mrf.mxu0
  %v3405 = vadd.f32 0.0, %v3404
  %v3406 = vpop.f32.mrf.mxu0
  %3407 = vdwg.mxu0
  %v3408 = vmul.f32 %v3405, 0.35355338
  %v3409 = vadd.f32 %v3408, %v560
  %v3410 = vsel %vm481, %v3409, -inf
  %3411 = vmax.xlane.f32.xlu0 %v3410
  %v3412 = vpop.xlane.xlu0 %3411
  %v3413 = vsub.f32 %v3409, %v3412
  %v3414 = vmul.f32 %v3413, 1.442695
  %v3415 = vpow.pop %v3414
  %v3416 = vsel %vm481, %v3415, 0.0
  %3417 = vadd.xlane.f32.xlu0 %v3416
  %v3418 = vpop.xlane.xlu0 %3417
  %v3419 = vrcp.pop %v3418
  %v3420 = vmul.f32 %v3415, %v3419
  %3421 = vrot.lane.b32.xlu0 %v2843, 48
  %v3422 = vpop.permute.xlu0 %3421
  %v3425 = vsel %vm481, %v3420, 0
  %3427 = vmatprep.subr.mxu0 0.0
  %3428 = vmatpush1.msra.mxu0 0.0
  %3429 = vmatprep.subr.mxu0 0.0
  %3430 = vmatpush1.msra.mxu0 0.0
  %3431 = vmatprep.subr.mxu0 0.0
  %3432 = vmatpush1.msra.mxu0 0.0
  %3433 = vmatprep.subr.mxu0 0.0
  %3434 = vmatpush1.msra.mxu0 0.0
  %3435 = vmatprep.subr.mxu0 0.0
  %3436 = vmatpush1.msra.mxu0 0.0
  %3437 = vmatprep.subr.mxu0 0.0
  %3438 = vmatpush1.msra.mxu0 0.0
  %3439 = vmatprep.subr.mxu0 0.0
  %3440 = vmatpush1.msra.mxu0 0.0
  %3441 = vmatprep.subr.mxu0 0.0
  %3442 = vmatpush1.msra.mxu0 0.0
  %3443 = vmatprep.subr.mxu0 0.0
  %3444 = vmatpush1.msra.mxu0 0.0
  %3445 = vmatprep.subr.mxu0 0.0
  %3446 = vmatpush1.msra.mxu0 0.0
  %3447 = vmatprep.subr.mxu0 0.0
  %3448 = vmatpush1.msra.mxu0 0.0
  %3449 = vmatprep.subr.mxu0 0.0
  %3450 = vmatpush1.msra.mxu0 0.0
  %3451 = vmatprep.subr.mxu0 0.0
  %3452 = vmatpush1.msra.mxu0 0.0
  %3453 = vmatprep.subr.mxu0 0.0
  %3454 = vmatpush1.msra.mxu0 0.0
  %3455 = vmatprep.subr.mxu0 0.0
  %3456 = vmatpush1.msra.mxu0 0.0
  %3457 = vmatprep.subr.mxu0 0.0
  %3458 = vmatpush1.msra.mxu0 %v3422
  %3459 = vmatprep.subr.mxu0 0.0
  %3460 = vmatpush2.msra.mxu0 0.0
  %3461 = vmatprep.subr.mxu0 0.0
  %3462 = vmatpush2.msra.mxu0 0.0
  %3463 = vmatprep.subr.mxu0 0.0
  %3464 = vmatpush2.msra.mxu0 0.0
  %3465 = vmatprep.subr.mxu0 0.0
  %3466 = vmatpush2.msra.mxu0 0.0
  %3467 = vmatprep.subr.mxu0 0.0
  %3468 = vmatpush2.msra.mxu0 0.0
  %3469 = vmatprep.subr.mxu0 0.0
  %3470 = vmatpush2.msra.mxu0 0.0
  %3471 = vmatprep.subr.mxu0 0.0
  %3472 = vmatpush2.msra.mxu0 0.0
  %3473 = vmatprep.subr.mxu0 0.0
  %3474 = vmatpush2.msra.mxu0 0.0
  %3475 = vmatprep.subr.mxu0 0.0
  %3476 = vmatpush2.msra.mxu0 0.0
  %3477 = vmatprep.subr.mxu0 0.0
  %3478 = vmatpush2.msra.mxu0 0.0
  %3479 = vmatprep.subr.mxu0 0.0
  %3480 = vmatpush2.msra.mxu0 0.0
  %3481 = vmatprep.subr.mxu0 0.0
  %3482 = vmatpush2.msra.mxu0 0.0
  %3483 = vmatprep.subr.mxu0 0.0
  %3484 = vmatpush2.msra.mxu0 0.0
  %3485 = vmatprep.subr.mxu0 0.0
  %3486 = vmatpush2.msra.mxu0 0.0
  %3487 = vmatprep.subr.mxu0 0.0
  %3488 = vmatpush2.msra.mxu0 0.0
  %3489 = vmatprep.subr.mxu0 0.0
  %3490 = vmatpush2.msra.mxu0 0.0
  %3491 = vmatprep.mubr.f32.mxu0 0.0
  %3492 = vmatmul.mubr.f32.gmra.mxu0 %v3425
  %v3493 = vpop.f32.mrf.mxu0
  %v3494 = vadd.f32 0.0, %v3493
  %v3495 = vpop.f32.mrf.mxu0
  %3496 = vdwg.mxu0
  %v3498 = vsel %vm481, %v3494, 0
  %3500 = vmatprep.subr.mxu0 0.0
  %3501 = vmatpush1.msra.mxu0 0.0
  %3502 = vmatprep.subr.mxu0 0.0
  %3503 = vmatpush1.msra.mxu0 0.0
  %3504 = vmatprep.subr.mxu0 0.0
  %3505 = vmatpush1.msra.mxu0 0.0
  %3506 = vmatprep.subr.mxu0 0.0
  %3507 = vmatpush1.msra.mxu0 0.0
  %3508 = vmatprep.subr.mxu0 0.0
  %3509 = vmatpush1.msra.mxu0 0.0
  %3510 = vmatprep.subr.mxu0 0.0
  %3511 = vmatpush1.msra.mxu0 0.0
  %3512 = vmatprep.subr.mxu0 0.0
  %3513 = vmatpush1.msra.mxu0 0.0
  %3514 = vmatprep.subr.mxu0 0.0
  %3515 = vmatpush1.msra.mxu0 0.0
  %3516 = vmatprep.subr.mxu0 0.0
  %3517 = vmatpush1.msra.mxu0 0.0
  %3518 = vmatprep.subr.mxu0 0.0
  %3519 = vmatpush1.msra.mxu0 0.0
  %3520 = vmatprep.subr.mxu0 0.0
  %3521 = vmatpush1.msra.mxu0 0.0
  %3522 = vmatprep.subr.mxu0 0.0
  %3523 = vmatpush1.msra.mxu0 0.0
  %3524 = vmatprep.subr.mxu0 0.0
  %3525 = vmatpush1.msra.mxu0 0.0
  %3526 = vmatprep.subr.mxu0 0.0
  %3527 = vmatpush1.msra.mxu0 0.0
  %3528 = vmatprep.subr.mxu0 0.0
  %3529 = vmatpush1.msra.mxu0 0.0
  %3530 = vmatprep.subr.mxu0 0.0
  %3531 = vmatpush1.msra.mxu0 %v2760
  %3532 = vmatprep.subr.mxu0 0.0
  %3533 = vmatpush2.msra.mxu0 0.0
  %3534 = vmatprep.subr.mxu0 0.0
  %3535 = vmatpush2.msra.mxu0 0.0
  %3536 = vmatprep.subr.mxu0 0.0
  %3537 = vmatpush2.msra.mxu0 0.0
  %3538 = vmatprep.subr.mxu0 0.0
  %3539 = vmatpush2.msra.mxu0 0.0
  %3540 = vmatprep.subr.mxu0 0.0
  %3541 = vmatpush2.msra.mxu0 0.0
  %3542 = vmatprep.subr.mxu0 0.0
  %3543 = vmatpush2.msra.mxu0 0.0
  %3544 = vmatprep.subr.mxu0 0.0
  %3545 = vmatpush2.msra.mxu0 0.0
  %3546 = vmatprep.subr.mxu0 0.0
  %3547 = vmatpush2.msra.mxu0 0.0
  %3548 = vmatprep.subr.mxu0 0.0
  %3549 = vmatpush2.msra.mxu0 0.0
  %3550 = vmatprep.subr.mxu0 0.0
  %3551 = vmatpush2.msra.mxu0 0.0
  %3552 = vmatprep.subr.mxu0 0.0
  %3553 = vmatpush2.msra.mxu0 0.0
  %3554 = vmatprep.subr.mxu0 0.0
  %3555 = vmatpush2.msra.mxu0 0.0
  %3556 = vmatprep.subr.mxu0 0.0
  %3557 = vmatpush2.msra.mxu0 0.0
  %3558 = vmatprep.subr.mxu0 0.0
  %3559 = vmatpush2.msra.mxu0 0.0
  %3560 = vmatprep.subr.mxu0 0.0
  %3561 = vmatpush2.msra.mxu0 0.0
  %3562 = vmatprep.subr.mxu0 0.0
  %3563 = vmatpush2.msra.mxu0 0.0
  %3564 = vmatprep.mubr.f32.mxu0 0.0
  %3565 = vmatmul.mubr.f32.gmra.mxu0 %v3498
  %v3566 = vpop.f32.mrf.mxu0
  %v3567 = vadd.f32 0.0, %v3566
  %v3568 = vpop.f32.mrf.mxu0
  %3569 = vdwg.mxu0
  %v3570 = vadd.f32 %v3327, %v3567
  %3571 = vrot.lane.b32.xlu0 %v2843, 104
  %v3572 = vpop.permute.xlu0 %3571
  %3573 = vrot.lane.b32.xlu0 %v2843, 72
  %v3574 = vpop.permute.xlu0 %3573
  %v3575 = vsel %vm481, %v3572, 0
  %v3577 = vsel %vm481, %v3574, 0
  %3579 = vmatprep.subr.mxu0 0.0
  %3580 = vmatpush1.xpose.msra.mxu0 0.0
  %3581 = vmatprep.subr.mxu0 0.0
  %3582 = vmatpush1.xpose.msra.mxu0 0.0
  %3583 = vmatprep.subr.mxu0 0.0
  %3584 = vmatpush1.xpose.msra.mxu0 0.0
  %3585 = vmatprep.subr.mxu0 0.0
  %3586 = vmatpush1.xpose.msra.mxu0 0.0
  %3587 = vmatprep.subr.mxu0 0.0
  %3588 = vmatpush1.xpose.msra.mxu0 0.0
  %3589 = vmatprep.subr.mxu0 0.0
  %3590 = vmatpush1.xpose.msra.mxu0 0.0
  %3591 = vmatprep.subr.mxu0 0.0
  %3592 = vmatpush1.xpose.msra.mxu0 0.0
  %3593 = vmatprep.subr.mxu0 0.0
  %3594 = vmatpush1.xpose.msra.mxu0 0.0
  %3595 = vmatprep.subr.mxu0 0.0
  %3596 = vmatpush1.xpose.msra.mxu0 0.0
  %3597 = vmatprep.subr.mxu0 0.0
  %3598 = vmatpush1.xpose.msra.mxu0 0.0
  %3599 = vmatprep.subr.mxu0 0.0
  %3600 = vmatpush1.xpose.msra.mxu0 0.0
  %3601 = vmatprep.subr.mxu0 0.0
  %3602 = vmatpush1.xpose.msra.mxu0 0.0
  %3603 = vmatprep.subr.mxu0 0.0
  %3604 = vmatpush1.xpose.msra.mxu0 0.0
  %3605 = vmatprep.subr.mxu0 0.0
  %3606 = vmatpush1.xpose.msra.mxu0 0.0
  %3607 = vmatprep.subr.mxu0 0.0
  %3608 = vmatpush1.xpose.msra.mxu0 0.0
  %3609 = vmatprep.subr.mxu0 0.0
  %3610 = vmatpush1.xpose.msra.mxu0 %v3577
  %3611 = vmatprep.subr.mxu0 0.0
  %3612 = vmatpush2.xpose.msra.mxu0 0.0
  %3613 = vmatprep.subr.mxu0 0.0
  %3614 = vmatpush2.xpose.msra.mxu0 0.0
  %3615 = vmatprep.subr.mxu0 0.0
  %3616 = vmatpush2.xpose.msra.mxu0 0.0
  %3617 = vmatprep.subr.mxu0 0.0
  %3618 = vmatpush2.xpose.msra.mxu0 0.0
  %3619 = vmatprep.subr.mxu0 0.0
  %3620 = vmatpush2.xpose.msra.mxu0 0.0
  %3621 = vmatprep.subr.mxu0 0.0
  %3622 = vmatpush2.xpose.msra.mxu0 0.0
  %3623 = vmatprep.subr.mxu0 0.0
  %3624 = vmatpush2.xpose.msra.mxu0 0.0
  %3625 = vmatprep.subr.mxu0 0.0
  %3626 = vmatpush2.xpose.msra.mxu0 0.0
  %3627 = vmatprep.subr.mxu0 0.0
  %3628 = vmatpush2.xpose.msra.mxu0 0.0
  %3629 = vmatprep.subr.mxu0 0.0
  %3630 = vmatpush2.xpose.msra.mxu0 0.0
  %3631 = vmatprep.subr.mxu0 0.0
  %3632 = vmatpush2.xpose.msra.mxu0 0.0
  %3633 = vmatprep.subr.mxu0 0.0
  %3634 = vmatpush2.xpose.msra.mxu0 0.0
  %3635 = vmatprep.subr.mxu0 0.0
  %3636 = vmatpush2.xpose.msra.mxu0 0.0
  %3637 = vmatprep.subr.mxu0 0.0
  %3638 = vmatpush2.xpose.msra.mxu0 0.0
  %3639 = vmatprep.subr.mxu0 0.0
  %3640 = vmatpush2.xpose.msra.mxu0 0.0
  %3641 = vmatprep.subr.mxu0 0.0
  %3642 = vmatpush2.xpose.msra.mxu0 0.0
  %3643 = vmatprep.mubr.f32.mxu0 0.0
  %3644 = vmatmul.mubr.f32.gmra.mxu0 %v3575
  %v3645 = vpop.f32.mrf.mxu0
  %v3646 = vadd.f32 0.0, %v3645
  %v3647 = vpop.f32.mrf.mxu0
  %3648 = vdwg.mxu0
  %v3649 = vmul.f32 %v3646, 0.35355338
  %v3650 = vadd.f32 %v3649, %v560
  %v3651 = vsel %vm481, %v3650, -inf
  %3652 = vmax.xlane.f32.xlu0 %v3651
  %v3653 = vpop.xlane.xlu0 %3652
  %v3654 = vsub.f32 %v3650, %v3653
  %v3655 = vmul.f32 %v3654, 1.442695
  %v3656 = vpow.pop %v3655
  %v3657 = vsel %vm481, %v3656, 0.0
  %3658 = vadd.xlane.f32.xlu0 %v3657
  %v3659 = vpop.xlane.xlu0 %3658
  %v3660 = vrcp.pop %v3659
  %v3661 = vmul.f32 %v3656, %v3660
  %3662 = vrot.lane.b32.xlu0 %v2843, 40
  %v3663 = vpop.permute.xlu0 %3662
  %v3666 = vsel %vm481, %v3661, 0
  %3668 = vmatprep.subr.mxu0 0.0
  %3669 = vmatpush1.msra.mxu0 0.0
  %3670 = vmatprep.subr.mxu0 0.0
  %3671 = vmatpush1.msra.mxu0 0.0
  %3672 = vmatprep.subr.mxu0 0.0
  %3673 = vmatpush1.msra.mxu0 0.0
  %3674 = vmatprep.subr.mxu0 0.0
  %3675 = vmatpush1.msra.mxu0 0.0
  %3676 = vmatprep.subr.mxu0 0.0
  %3677 = vmatpush1.msra.mxu0 0.0
  %3678 = vmatprep.subr.mxu0 0.0
  %3679 = vmatpush1.msra.mxu0 0.0
  %3680 = vmatprep.subr.mxu0 0.0
  %3681 = vmatpush1.msra.mxu0 0.0
  %3682 = vmatprep.subr.mxu0 0.0
  %3683 = vmatpush1.msra.mxu0 0.0
  %3684 = vmatprep.subr.mxu0 0.0
  %3685 = vmatpush1.msra.mxu0 0.0
  %3686 = vmatprep.subr.mxu0 0.0
  %3687 = vmatpush1.msra.mxu0 0.0
  %3688 = vmatprep.subr.mxu0 0.0
  %3689 = vmatpush1.msra.mxu0 0.0
  %3690 = vmatprep.subr.mxu0 0.0
  %3691 = vmatpush1.msra.mxu0 0.0
  %3692 = vmatprep.subr.mxu0 0.0
  %3693 = vmatpush1.msra.mxu0 0.0
  %3694 = vmatprep.subr.mxu0 0.0
  %3695 = vmatpush1.msra.mxu0 0.0
  %3696 = vmatprep.subr.mxu0 0.0
  %3697 = vmatpush1.msra.mxu0 0.0
  %3698 = vmatprep.subr.mxu0 0.0
  %3699 = vmatpush1.msra.mxu0 %v3663
  %3700 = vmatprep.subr.mxu0 0.0
  %3701 = vmatpush2.msra.mxu0 0.0
  %3702 = vmatprep.subr.mxu0 0.0
  %3703 = vmatpush2.msra.mxu0 0.0
  %3704 = vmatprep.subr.mxu0 0.0
  %3705 = vmatpush2.msra.mxu0 0.0
  %3706 = vmatprep.subr.mxu0 0.0
  %3707 = vmatpush2.msra.mxu0 0.0
  %3708 = vmatprep.subr.mxu0 0.0
  %3709 = vmatpush2.msra.mxu0 0.0
  %3710 = vmatprep.subr.mxu0 0.0
  %3711 = vmatpush2.msra.mxu0 0.0
  %3712 = vmatprep.subr.mxu0 0.0
  %3713 = vmatpush2.msra.mxu0 0.0
  %3714 = vmatprep.subr.mxu0 0.0
  %3715 = vmatpush2.msra.mxu0 0.0
  %3716 = vmatprep.subr.mxu0 0.0
  %3717 = vmatpush2.msra.mxu0 0.0
  %3718 = vmatprep.subr.mxu0 0.0
  %3719 = vmatpush2.msra.mxu0 0.0
  %3720 = vmatprep.subr.mxu0 0.0
  %3721 = vmatpush2.msra.mxu0 0.0
  %3722 = vmatprep.subr.mxu0 0.0
  %3723 = vmatpush2.msra.mxu0 0.0
  %3724 = vmatprep.subr.mxu0 0.0
  %3725 = vmatpush2.msra.mxu0 0.0
  %3726 = vmatprep.subr.mxu0 0.0
  %3727 = vmatpush2.msra.mxu0 0.0
  %3728 = vmatprep.subr.mxu0 0.0
  %3729 = vmatpush2.msra.mxu0 0.0
  %3730 = vmatprep.subr.mxu0 0.0
  %3731 = vmatpush2.msra.mxu0 0.0
  %3732 = vmatprep.mubr.f32.mxu0 0.0
  %3733 = vmatmul.mubr.f32.gmra.mxu0 %v3666
  %v3734 = vpop.f32.mrf.mxu0
  %v3735 = vadd.f32 0.0, %v3734
  %v3736 = vpop.f32.mrf.mxu0
  %3737 = vdwg.mxu0
  %v3739 = vsel %vm481, %v3735, 0
  %3741 = vmatprep.subr.mxu0 0.0
  %3742 = vmatpush1.msra.mxu0 0.0
  %3743 = vmatprep.subr.mxu0 0.0
  %3744 = vmatpush1.msra.mxu0 0.0
  %3745 = vmatprep.subr.mxu0 0.0
  %3746 = vmatpush1.msra.mxu0 0.0
  %3747 = vmatprep.subr.mxu0 0.0
  %3748 = vmatpush1.msra.mxu0 0.0
  %3749 = vmatprep.subr.mxu0 0.0
  %3750 = vmatpush1.msra.mxu0 0.0
  %3751 = vmatprep.subr.mxu0 0.0
  %3752 = vmatpush1.msra.mxu0 0.0
  %3753 = vmatprep.subr.mxu0 0.0
  %3754 = vmatpush1.msra.mxu0 0.0
  %3755 = vmatprep.subr.mxu0 0.0
  %3756 = vmatpush1.msra.mxu0 0.0
  %3757 = vmatprep.subr.mxu0 0.0
  %3758 = vmatpush1.msra.mxu0 0.0
  %3759 = vmatprep.subr.mxu0 0.0
  %3760 = vmatpush1.msra.mxu0 0.0
  %3761 = vmatprep.subr.mxu0 0.0
  %3762 = vmatpush1.msra.mxu0 0.0
  %3763 = vmatprep.subr.mxu0 0.0
  %3764 = vmatpush1.msra.mxu0 0.0
  %3765 = vmatprep.subr.mxu0 0.0
  %3766 = vmatpush1.msra.mxu0 0.0
  %3767 = vmatprep.subr.mxu0 0.0
  %3768 = vmatpush1.msra.mxu0 0.0
  %3769 = vmatprep.subr.mxu0 0.0
  %3770 = vmatpush1.msra.mxu0 0.0
  %3771 = vmatprep.subr.mxu0 0.0
  %3772 = vmatpush1.msra.mxu0 %v2761
  %3773 = vmatprep.subr.mxu0 0.0
  %3774 = vmatpush2.msra.mxu0 0.0
  %3775 = vmatprep.subr.mxu0 0.0
  %3776 = vmatpush2.msra.mxu0 0.0
  %3777 = vmatprep.subr.mxu0 0.0
  %3778 = vmatpush2.msra.mxu0 0.0
  %3779 = vmatprep.subr.mxu0 0.0
  %3780 = vmatpush2.msra.mxu0 0.0
  %3781 = vmatprep.subr.mxu0 0.0
  %3782 = vmatpush2.msra.mxu0 0.0
  %3783 = vmatprep.subr.mxu0 0.0
  %3784 = vmatpush2.msra.mxu0 0.0
  %3785 = vmatprep.subr.mxu0 0.0
  %3786 = vmatpush2.msra.mxu0 0.0
  %3787 = vmatprep.subr.mxu0 0.0
  %3788 = vmatpush2.msra.mxu0 0.0
  %3789 = vmatprep.subr.mxu0 0.0
  %3790 = vmatpush2.msra.mxu0 0.0
  %3791 = vmatprep.subr.mxu0 0.0
  %3792 = vmatpush2.msra.mxu0 0.0
  %3793 = vmatprep.subr.mxu0 0.0
  %3794 = vmatpush2.msra.mxu0 0.0
  %3795 = vmatprep.subr.mxu0 0.0
  %3796 = vmatpush2.msra.mxu0 0.0
  %3797 = vmatprep.subr.mxu0 0.0
  %3798 = vmatpush2.msra.mxu0 0.0
  %3799 = vmatprep.subr.mxu0 0.0
  %3800 = vmatpush2.msra.mxu0 0.0
  %3801 = vmatprep.subr.mxu0 0.0
  %3802 = vmatpush2.msra.mxu0 0.0
  %3803 = vmatprep.subr.mxu0 0.0
  %3804 = vmatpush2.msra.mxu0 0.0
  %3805 = vmatprep.mubr.f32.mxu0 0.0
  %3806 = vmatmul.mubr.f32.gmra.mxu0 %v3739
  %v3807 = vpop.f32.mrf.mxu0
  %v3808 = vadd.f32 0.0, %v3807
  %v3809 = vpop.f32.mrf.mxu0
  %3810 = vdwg.mxu0
  %v3811 = vadd.f32 %v3570, %v3808
  %3813 = vrot.lane.b32.xlu0 %v2848, 96
  %v3814 = vpop.permute.xlu0 %3813
  %v3815 = vsel %vm481, %v2848, 0
  %v3817 = vsel %vm481, %v3814, 0
  %3819 = vmatprep.subr.mxu0 0.0
  %3820 = vmatpush1.xpose.msra.mxu0 0.0
  %3821 = vmatprep.subr.mxu0 0.0
  %3822 = vmatpush1.xpose.msra.mxu0 0.0
  %3823 = vmatprep.subr.mxu0 0.0
  %3824 = vmatpush1.xpose.msra.mxu0 0.0
  %3825 = vmatprep.subr.mxu0 0.0
  %3826 = vmatpush1.xpose.msra.mxu0 0.0
  %3827 = vmatprep.subr.mxu0 0.0
  %3828 = vmatpush1.xpose.msra.mxu0 0.0
  %3829 = vmatprep.subr.mxu0 0.0
  %3830 = vmatpush1.xpose.msra.mxu0 0.0
  %3831 = vmatprep.subr.mxu0 0.0
  %3832 = vmatpush1.xpose.msra.mxu0 0.0
  %3833 = vmatprep.subr.mxu0 0.0
  %3834 = vmatpush1.xpose.msra.mxu0 0.0
  %3835 = vmatprep.subr.mxu0 0.0
  %3836 = vmatpush1.xpose.msra.mxu0 0.0
  %3837 = vmatprep.subr.mxu0 0.0
  %3838 = vmatpush1.xpose.msra.mxu0 0.0
  %3839 = vmatprep.subr.mxu0 0.0
  %3840 = vmatpush1.xpose.msra.mxu0 0.0
  %3841 = vmatprep.subr.mxu0 0.0
  %3842 = vmatpush1.xpose.msra.mxu0 0.0
  %3843 = vmatprep.subr.mxu0 0.0
  %3844 = vmatpush1.xpose.msra.mxu0 0.0
  %3845 = vmatprep.subr.mxu0 0.0
  %3846 = vmatpush1.xpose.msra.mxu0 0.0
  %3847 = vmatprep.subr.mxu0 0.0
  %3848 = vmatpush1.xpose.msra.mxu0 0.0
  %3849 = vmatprep.subr.mxu0 0.0
  %3850 = vmatpush1.xpose.msra.mxu0 %v3817
  %3851 = vmatprep.subr.mxu0 0.0
  %3852 = vmatpush2.xpose.msra.mxu0 0.0
  %3853 = vmatprep.subr.mxu0 0.0
  %3854 = vmatpush2.xpose.msra.mxu0 0.0
  %3855 = vmatprep.subr.mxu0 0.0
  %3856 = vmatpush2.xpose.msra.mxu0 0.0
  %3857 = vmatprep.subr.mxu0 0.0
  %3858 = vmatpush2.xpose.msra.mxu0 0.0
  %3859 = vmatprep.subr.mxu0 0.0
  %3860 = vmatpush2.xpose.msra.mxu0 0.0
  %3861 = vmatprep.subr.mxu0 0.0
  %3862 = vmatpush2.xpose.msra.mxu0 0.0
  %3863 = vmatprep.subr.mxu0 0.0
  %3864 = vmatpush2.xpose.msra.mxu0 0.0
  %3865 = vmatprep.subr.mxu0 0.0
  %3866 = vmatpush2.xpose.msra.mxu0 0.0
  %3867 = vmatprep.subr.mxu0 0.0
  %3868 = vmatpush2.xpose.msra.mxu0 0.0
  %3869 = vmatprep.subr.mxu0 0.0
  %3870 = vmatpush2.xpose.msra.mxu0 0.0
  %3871 = vmatprep.subr.mxu0 0.0
  %3872 = vmatpush2.xpose.msra.mxu0 0.0
  %3873 = vmatprep.subr.mxu0 0.0
  %3874 = vmatpush2.xpose.msra.mxu0 0.0
  %3875 = vmatprep.subr.mxu0 0.0
  %3876 = vmatpush2.xpose.msra.mxu0 0.0
  %3877 = vmatprep.subr.mxu0 0.0
  %3878 = vmatpush2.xpose.msra.mxu0 0.0
  %3879 = vmatprep.subr.mxu0 0.0
  %3880 = vmatpush2.xpose.msra.mxu0 0.0
  %3881 = vmatprep.subr.mxu0 0.0
  %3882 = vmatpush2.xpose.msra.mxu0 0.0
  %3883 = vmatprep.mubr.f32.mxu0 0.0
  %3884 = vmatmul.mubr.f32.gmra.mxu0 %v3815
  %v3885 = vpop.f32.mrf.mxu0
  %v3886 = vadd.f32 0.0, %v3885
  %v3887 = vpop.f32.mrf.mxu0
  %3888 = vdwg.mxu0
  %v3889 = vmul.f32 %v3886, 0.35355338
  %v3890 = vadd.f32 %v3889, %v1525
  %v3891 = vsel %vm481, %v3890, -inf
  %3892 = vmax.xlane.f32.xlu0 %v3891
  %v3893 = vpop.xlane.xlu0 %3892
  %v3894 = vsub.f32 %v3890, %v3893
  %v3895 = vmul.f32 %v3894, 1.442695
  %v3896 = vpow.pop %v3895
  %v3897 = vsel %vm481, %v3896, 0.0
  %3898 = vadd.xlane.f32.xlu0 %v3897
  %v3899 = vpop.xlane.xlu0 %3898
  %v3900 = vrcp.pop %v3899
  %v3901 = vmul.f32 %v3896, %v3900
  %3902 = vrot.lane.b32.xlu0 %v2848, 64
  %v3903 = vpop.permute.xlu0 %3902
  %v3906 = vsel %vm481, %v3901, 0
  %3908 = vmatprep.subr.mxu0 0.0
  %3909 = vmatpush1.msra.mxu0 0.0
  %3910 = vmatprep.subr.mxu0 0.0
  %3911 = vmatpush1.msra.mxu0 0.0
  %3912 = vmatprep.subr.mxu0 0.0
  %3913 = vmatpush1.msra.mxu0 0.0
  %3914 = vmatprep.subr.mxu0 0.0
  %3915 = vmatpush1.msra.mxu0 0.0
  %3916 = vmatprep.subr.mxu0 0.0
  %3917 = vmatpush1.msra.mxu0 0.0
  %3918 = vmatprep.subr.mxu0 0.0
  %3919 = vmatpush1.msra.mxu0 0.0
  %3920 = vmatprep.subr.mxu0 0.0
  %3921 = vmatpush1.msra.mxu0 0.0
  %3922 = vmatprep.subr.mxu0 0.0
  %3923 = vmatpush1.msra.mxu0 0.0
  %3924 = vmatprep.subr.mxu0 0.0
  %3925 = vmatpush1.msra.mxu0 0.0
  %3926 = vmatprep.subr.mxu0 0.0
  %3927 = vmatpush1.msra.mxu0 0.0
  %3928 = vmatprep.subr.mxu0 0.0
  %3929 = vmatpush1.msra.mxu0 0.0
  %3930 = vmatprep.subr.mxu0 0.0
  %3931 = vmatpush1.msra.mxu0 0.0
  %3932 = vmatprep.subr.mxu0 0.0
  %3933 = vmatpush1.msra.mxu0 0.0
  %3934 = vmatprep.subr.mxu0 0.0
  %3935 = vmatpush1.msra.mxu0 0.0
  %3936 = vmatprep.subr.mxu0 0.0
  %3937 = vmatpush1.msra.mxu0 0.0
  %3938 = vmatprep.subr.mxu0 0.0
  %3939 = vmatpush1.msra.mxu0 %v3903
  %3940 = vmatprep.subr.mxu0 0.0
  %3941 = vmatpush2.msra.mxu0 0.0
  %3942 = vmatprep.subr.mxu0 0.0
  %3943 = vmatpush2.msra.mxu0 0.0
  %3944 = vmatprep.subr.mxu0 0.0
  %3945 = vmatpush2.msra.mxu0 0.0
  %3946 = vmatprep.subr.mxu0 0.0
  %3947 = vmatpush2.msra.mxu0 0.0
  %3948 = vmatprep.subr.mxu0 0.0
  %3949 = vmatpush2.msra.mxu0 0.0
  %3950 = vmatprep.subr.mxu0 0.0
  %3951 = vmatpush2.msra.mxu0 0.0
  %3952 = vmatprep.subr.mxu0 0.0
  %3953 = vmatpush2.msra.mxu0 0.0
  %3954 = vmatprep.subr.mxu0 0.0
  %3955 = vmatpush2.msra.mxu0 0.0
  %3956 = vmatprep.subr.mxu0 0.0
  %3957 = vmatpush2.msra.mxu0 0.0
  %3958 = vmatprep.subr.mxu0 0.0
  %3959 = vmatpush2.msra.mxu0 0.0
  %3960 = vmatprep.subr.mxu0 0.0
  %3961 = vmatpush2.msra.mxu0 0.0
  %3962 = vmatprep.subr.mxu0 0.0
  %3963 = vmatpush2.msra.mxu0 0.0
  %3964 = vmatprep.subr.mxu0 0.0
  %3965 = vmatpush2.msra.mxu0 0.0
  %3966 = vmatprep.subr.mxu0 0.0
  %3967 = vmatpush2.msra.mxu0 0.0
  %3968 = vmatprep.subr.mxu0 0.0
  %3969 = vmatpush2.msra.mxu0 0.0
  %3970 = vmatprep.subr.mxu0 0.0
  %3971 = vmatpush2.msra.mxu0 0.0
  %3972 = vmatprep.mubr.f32.mxu0 0.0
  %3973 = vmatmul.mubr.f32.gmra.mxu0 %v3906
  %v3974 = vpop.f32.mrf.mxu0
  %v3975 = vadd.f32 0.0, %v3974
  %v3976 = vpop.f32.mrf.mxu0
  %3977 = vdwg.mxu0
  %3978 = vrot.lane.b32.xlu0 %v2848, 120
  %v3979 = vpop.permute.xlu0 %3978
  %3980 = vrot.lane.b32.xlu0 %v2848, 88
  %v3981 = vpop.permute.xlu0 %3980
  %v3982 = vsel %vm481, %v3979, 0
  %v3984 = vsel %vm481, %v3981, 0
  %3986 = vmatprep.subr.mxu0 0.0
  %3987 = vmatpush1.xpose.msra.mxu0 0.0
  %3988 = vmatprep.subr.mxu0 0.0
  %3989 = vmatpush1.xpose.msra.mxu0 0.0
  %3990 = vmatprep.subr.mxu0 0.0
  %3991 = vmatpush1.xpose.msra.mxu0 0.0
  %3992 = vmatprep.subr.mxu0 0.0
  %3993 = vmatpush1.xpose.msra.mxu0 0.0
  %3994 = vmatprep.subr.mxu0 0.0
  %3995 = vmatpush1.xpose.msra.mxu0 0.0
  %3996 = vmatprep.subr.mxu0 0.0
  %3997 = vmatpush1.xpose.msra.mxu0 0.0
  %3998 = vmatprep.subr.mxu0 0.0
  %3999 = vmatpush1.xpose.msra.mxu0 0.0
  %4000 = vmatprep.subr.mxu0 0.0
  %4001 = vmatpush1.xpose.msra.mxu0 0.0
  %4002 = vmatprep.subr.mxu0 0.0
  %4003 = vmatpush1.xpose.msra.mxu0 0.0
  %4004 = vmatprep.subr.mxu0 0.0
  %4005 = vmatpush1.xpose.msra.mxu0 0.0
  %4006 = vmatprep.subr.mxu0 0.0
  %4007 = vmatpush1.xpose.msra.mxu0 0.0
  %4008 = vmatprep.subr.mxu0 0.0
  %4009 = vmatpush1.xpose.msra.mxu0 0.0
  %4010 = vmatprep.subr.mxu0 0.0
  %4011 = vmatpush1.xpose.msra.mxu0 0.0
  %4012 = vmatprep.subr.mxu0 0.0
  %4013 = vmatpush1.xpose.msra.mxu0 0.0
  %4014 = vmatprep.subr.mxu0 0.0
  %4015 = vmatpush1.xpose.msra.mxu0 0.0
  %4016 = vmatprep.subr.mxu0 0.0
  %4017 = vmatpush1.xpose.msra.mxu0 %v3984
  %4018 = vmatprep.subr.mxu0 0.0
  %4019 = vmatpush2.xpose.msra.mxu0 0.0
  %4020 = vmatprep.subr.mxu0 0.0
  %4021 = vmatpush2.xpose.msra.mxu0 0.0
  %4022 = vmatprep.subr.mxu0 0.0
  %4023 = vmatpush2.xpose.msra.mxu0 0.0
  %4024 = vmatprep.subr.mxu0 0.0
  %4025 = vmatpush2.xpose.msra.mxu0 0.0
  %4026 = vmatprep.subr.mxu0 0.0
  %4027 = vmatpush2.xpose.msra.mxu0 0.0
  %4028 = vmatprep.subr.mxu0 0.0
  %4029 = vmatpush2.xpose.msra.mxu0 0.0
  %4030 = vmatprep.subr.mxu0 0.0
  %4031 = vmatpush2.xpose.msra.mxu0 0.0
  %4032 = vmatprep.subr.mxu0 0.0
  %4033 = vmatpush2.xpose.msra.mxu0 0.0
  %4034 = vmatprep.subr.mxu0 0.0
  %4035 = vmatpush2.xpose.msra.mxu0 0.0
  %4036 = vmatprep.subr.mxu0 0.0
  %4037 = vmatpush2.xpose.msra.mxu0 0.0
  %4038 = vmatprep.subr.mxu0 0.0
  %4039 = vmatpush2.xpose.msra.mxu0 0.0
  %4040 = vmatprep.subr.mxu0 0.0
  %4041 = vmatpush2.xpose.msra.mxu0 0.0
  %4042 = vmatprep.subr.mxu0 0.0
  %4043 = vmatpush2.xpose.msra.mxu0 0.0
  %4044 = vmatprep.subr.mxu0 0.0
  %4045 = vmatpush2.xpose.msra.mxu0 0.0
  %4046 = vmatprep.subr.mxu0 0.0
  %4047 = vmatpush2.xpose.msra.mxu0 0.0
  %4048 = vmatprep.subr.mxu0 0.0
  %4049 = vmatpush2.xpose.msra.mxu0 0.0
  %4050 = vmatprep.mubr.f32.mxu0 0.0
  %4051 = vmatmul.mubr.f32.gmra.mxu0 %v3982
  %v4052 = vpop.f32.mrf.mxu0
  %v4053 = vadd.f32 0.0, %v4052
  %v4054 = vpop.f32.mrf.mxu0
  %4055 = vdwg.mxu0
  %v4056 = vmul.f32 %v4053, 0.35355338
  %v4057 = vadd.f32 %v4056, %v1525
  %v4058 = vsel %vm481, %v4057, -inf
  %4059 = vmax.xlane.f32.xlu0 %v4058
  %v4060 = vpop.xlane.xlu0 %4059
  %v4061 = vsub.f32 %v4057, %v4060
  %v4062 = vmul.f32 %v4061, 1.442695
  %v4063 = vpow.pop %v4062
  %v4064 = vsel %vm481, %v4063, 0.0
  %4065 = vadd.xlane.f32.xlu0 %v4064
  %v4066 = vpop.xlane.xlu0 %4065
  %v4067 = vrcp.pop %v4066
  %v4068 = vmul.f32 %v4063, %v4067
  %4069 = vrot.lane.b32.xlu0 %v2848, 56
  %v4070 = vpop.permute.xlu0 %4069
  %v4073 = vsel %vm481, %v4068, 0
  %4075 = vmatprep.subr.mxu0 0.0
  %4076 = vmatpush1.msra.mxu0 0.0
  %4077 = vmatprep.subr.mxu0 0.0
  %4078 = vmatpush1.msra.mxu0 0.0
  %4079 = vmatprep.subr.mxu0 0.0
  %4080 = vmatpush1.msra.mxu0 0.0
  %4081 = vmatprep.subr.mxu0 0.0
  %4082 = vmatpush1.msra.mxu0 0.0
  %4083 = vmatprep.subr.mxu0 0.0
  %4084 = vmatpush1.msra.mxu0 0.0
  %4085 = vmatprep.subr.mxu0 0.0
  %4086 = vmatpush1.msra.mxu0 0.0
  %4087 = vmatprep.subr.mxu0 0.0
  %4088 = vmatpush1.msra.mxu0 0.0
  %4089 = vmatprep.subr.mxu0 0.0
  %4090 = vmatpush1.msra.mxu0 0.0
  %4091 = vmatprep.subr.mxu0 0.0
  %4092 = vmatpush1.msra.mxu0 0.0
  %4093 = vmatprep.subr.mxu0 0.0
  %4094 = vmatpush1.msra.mxu0 0.0
  %4095 = vmatprep.subr.mxu0 0.0
  %4096 = vmatpush1.msra.mxu0 0.0
  %4097 = vmatprep.subr.mxu0 0.0
  %4098 = vmatpush1.msra.mxu0 0.0
  %4099 = vmatprep.subr.mxu0 0.0
  %4100 = vmatpush1.msra.mxu0 0.0
  %4101 = vmatprep.subr.mxu0 0.0
  %4102 = vmatpush1.msra.mxu0 0.0
  %4103 = vmatprep.subr.mxu0 0.0
  %4104 = vmatpush1.msra.mxu0 0.0
  %4105 = vmatprep.subr.mxu0 0.0
  %4106 = vmatpush1.msra.mxu0 %v4070
  %4107 = vmatprep.subr.mxu0 0.0
  %4108 = vmatpush2.msra.mxu0 0.0
  %4109 = vmatprep.subr.mxu0 0.0
  %4110 = vmatpush2.msra.mxu0 0.0
  %4111 = vmatprep.subr.mxu0 0.0
  %4112 = vmatpush2.msra.mxu0 0.0
  %4113 = vmatprep.subr.mxu0 0.0
  %4114 = vmatpush2.msra.mxu0 0.0
  %4115 = vmatprep.subr.mxu0 0.0
  %4116 = vmatpush2.msra.mxu0 0.0
  %4117 = vmatprep.subr.mxu0 0.0
  %4118 = vmatpush2.msra.mxu0 0.0
  %4119 = vmatprep.subr.mxu0 0.0
  %4120 = vmatpush2.msra.mxu0 0.0
  %4121 = vmatprep.subr.mxu0 0.0
  %4122 = vmatpush2.msra.mxu0 0.0
  %4123 = vmatprep.subr.mxu0 0.0
  %4124 = vmatpush2.msra.mxu0 0.0
  %4125 = vmatprep.subr.mxu0 0.0
  %4126 = vmatpush2.msra.mxu0 0.0
  %4127 = vmatprep.subr.mxu0 0.0
  %4128 = vmatpush2.msra.mxu0 0.0
  %4129 = vmatprep.subr.mxu0 0.0
  %4130 = vmatpush2.msra.mxu0 0.0
  %4131 = vmatprep.subr.mxu0 0.0
  %4132 = vmatpush2.msra.mxu0 0.0
  %4133 = vmatprep.subr.mxu0 0.0
  %4134 = vmatpush2.msra.mxu0 0.0
  %4135 = vmatprep.subr.mxu0 0.0
  %4136 = vmatpush2.msra.mxu0 0.0
  %4137 = vmatprep.subr.mxu0 0.0
  %4138 = vmatpush2.msra.mxu0 0.0
  %4139 = vmatprep.mubr.f32.mxu0 0.0
  %4140 = vmatmul.mubr.f32.gmra.mxu0 %v4073
  %v4141 = vpop.f32.mrf.mxu0
  %v4142 = vadd.f32 0.0, %v4141
  %v4143 = vpop.f32.mrf.mxu0
  %4144 = vdwg.mxu0
  %v4146 = vsel %vm481, %v4142, 0
  %4148 = vmatprep.subr.mxu0 0.0
  %4149 = vmatpush1.msra.mxu0 0.0
  %4150 = vmatprep.subr.mxu0 0.0
  %4151 = vmatpush1.msra.mxu0 0.0
  %4152 = vmatprep.subr.mxu0 0.0
  %4153 = vmatpush1.msra.mxu0 0.0
  %4154 = vmatprep.subr.mxu0 0.0
  %4155 = vmatpush1.msra.mxu0 0.0
  %4156 = vmatprep.subr.mxu0 0.0
  %4157 = vmatpush1.msra.mxu0 0.0
  %4158 = vmatprep.subr.mxu0 0.0
  %4159 = vmatpush1.msra.mxu0 0.0
  %4160 = vmatprep.subr.mxu0 0.0
  %4161 = vmatpush1.msra.mxu0 0.0
  %4162 = vmatprep.subr.mxu0 0.0
  %4163 = vmatpush1.msra.mxu0 0.0
  %4164 = vmatprep.subr.mxu0 0.0
  %4165 = vmatpush1.msra.mxu0 0.0
  %4166 = vmatprep.subr.mxu0 0.0
  %4167 = vmatpush1.msra.mxu0 0.0
  %4168 = vmatprep.subr.mxu0 0.0
  %4169 = vmatpush1.msra.mxu0 0.0
  %4170 = vmatprep.subr.mxu0 0.0
  %4171 = vmatpush1.msra.mxu0 0.0
  %4172 = vmatprep.subr.mxu0 0.0
  %4173 = vmatpush1.msra.mxu0 0.0
  %4174 = vmatprep.subr.mxu0 0.0
  %4175 = vmatpush1.msra.mxu0 0.0
  %4176 = vmatprep.subr.mxu0 0.0
  %4177 = vmatpush1.msra.mxu0 0.0
  %4178 = vmatprep.subr.mxu0 0.0
  %4179 = vmatpush1.msra.mxu0 %v2759
  %4180 = vmatprep.subr.mxu0 0.0
  %4181 = vmatpush2.msra.mxu0 0.0
  %4182 = vmatprep.subr.mxu0 0.0
  %4183 = vmatpush2.msra.mxu0 0.0
  %4184 = vmatprep.subr.mxu0 0.0
  %4185 = vmatpush2.msra.mxu0 0.0
  %4186 = vmatprep.subr.mxu0 0.0
  %4187 = vmatpush2.msra.mxu0 0.0
  %4188 = vmatprep.subr.mxu0 0.0
  %4189 = vmatpush2.msra.mxu0 0.0
  %4190 = vmatprep.subr.mxu0 0.0
  %4191 = vmatpush2.msra.mxu0 0.0
  %4192 = vmatprep.subr.mxu0 0.0
  %4193 = vmatpush2.msra.mxu0 0.0
  %4194 = vmatprep.subr.mxu0 0.0
  %4195 = vmatpush2.msra.mxu0 0.0
  %4196 = vmatprep.subr.mxu0 0.0
  %4197 = vmatpush2.msra.mxu0 0.0
  %4198 = vmatprep.subr.mxu0 0.0
  %4199 = vmatpush2.msra.mxu0 0.0
  %4200 = vmatprep.subr.mxu0 0.0
  %4201 = vmatpush2.msra.mxu0 0.0
  %4202 = vmatprep.subr.mxu0 0.0
  %4203 = vmatpush2.msra.mxu0 0.0
  %4204 = vmatprep.subr.mxu0 0.0
  %4205 = vmatpush2.msra.mxu0 0.0
  %4206 = vmatprep.subr.mxu0 0.0
  %4207 = vmatpush2.msra.mxu0 0.0
  %4208 = vmatprep.subr.mxu0 0.0
  %4209 = vmatpush2.msra.mxu0 0.0
  %4210 = vmatprep.subr.mxu0 0.0
  %4211 = vmatpush2.msra.mxu0 0.0
  %4212 = vmatprep.mubr.f32.mxu0 0.0
  %4213 = vmatmul.mubr.f32.gmra.mxu0 %v4146
  %v4214 = vpop.f32.mrf.mxu0
  %v4215 = vadd.f32 0.0, %v4214
  %v4216 = vpop.f32.mrf.mxu0
  %4217 = vdwg.mxu0
  %v4219 = vsel %vm481, %v3975, 0
  %4221 = vmatprep.subr.mxu0 0.0
  %4222 = vmatpush1.msra.mxu0 0.0
  %4223 = vmatprep.subr.mxu0 0.0
  %4224 = vmatpush1.msra.mxu0 0.0
  %4225 = vmatprep.subr.mxu0 0.0
  %4226 = vmatpush1.msra.mxu0 0.0
  %4227 = vmatprep.subr.mxu0 0.0
  %4228 = vmatpush1.msra.mxu0 0.0
  %4229 = vmatprep.subr.mxu0 0.0
  %4230 = vmatpush1.msra.mxu0 0.0
  %4231 = vmatprep.subr.mxu0 0.0
  %4232 = vmatpush1.msra.mxu0 0.0
  %4233 = vmatprep.subr.mxu0 0.0
  %4234 = vmatpush1.msra.mxu0 0.0
  %4235 = vmatprep.subr.mxu0 0.0
  %4236 = vmatpush1.msra.mxu0 0.0
  %4237 = vmatprep.subr.mxu0 0.0
  %4238 = vmatpush1.msra.mxu0 0.0
  %4239 = vmatprep.subr.mxu0 0.0
  %4240 = vmatpush1.msra.mxu0 0.0
  %4241 = vmatprep.subr.mxu0 0.0
  %4242 = vmatpush1.msra.mxu0 0.0
  %4243 = vmatprep.subr.mxu0 0.0
  %4244 = vmatpush1.msra.mxu0 0.0
  %4245 = vmatprep.subr.mxu0 0.0
  %4246 = vmatpush1.msra.mxu0 0.0
  %4247 = vmatprep.subr.mxu0 0.0
  %4248 = vmatpush1.msra.mxu0 0.0
  %4249 = vmatprep.subr.mxu0 0.0
  %4250 = vmatpush1.msra.mxu0 0.0
  %4251 = vmatprep.subr.mxu0 0.0
  %4252 = vmatpush1.msra.mxu0 %v2758
  %4253 = vmatprep.subr.mxu0 0.0
  %4254 = vmatpush2.msra.mxu0 0.0
  %4255 = vmatprep.subr.mxu0 0.0
  %4256 = vmatpush2.msra.mxu0 0.0
  %4257 = vmatprep.subr.mxu0 0.0
  %4258 = vmatpush2.msra.mxu0 0.0
  %4259 = vmatprep.subr.mxu0 0.0
  %4260 = vmatpush2.msra.mxu0 0.0
  %4261 = vmatprep.subr.mxu0 0.0
  %4262 = vmatpush2.msra.mxu0 0.0
  %4263 = vmatprep.subr.mxu0 0.0
  %4264 = vmatpush2.msra.mxu0 0.0
  %4265 = vmatprep.subr.mxu0 0.0
  %4266 = vmatpush2.msra.mxu0 0.0
  %4267 = vmatprep.subr.mxu0 0.0
  %4268 = vmatpush2.msra.mxu0 0.0
  %4269 = vmatprep.subr.mxu0 0.0
  %4270 = vmatpush2.msra.mxu0 0.0
  %4271 = vmatprep.subr.mxu0 0.0
  %4272 = vmatpush2.msra.mxu0 0.0
  %4273 = vmatprep.subr.mxu0 0.0
  %4274 = vmatpush2.msra.mxu0 0.0
  %4275 = vmatprep.subr.mxu0 0.0
  %4276 = vmatpush2.msra.mxu0 0.0
  %4277 = vmatprep.subr.mxu0 0.0
  %4278 = vmatpush2.msra.mxu0 0.0
  %4279 = vmatprep.subr.mxu0 0.0
  %4280 = vmatpush2.msra.mxu0 0.0
  %4281 = vmatprep.subr.mxu0 0.0
  %4282 = vmatpush2.msra.mxu0 0.0
  %4283 = vmatprep.subr.mxu0 0.0
  %4284 = vmatpush2.msra.mxu0 0.0
  %4285 = vmatprep.mubr.f32.mxu0 0.0
  %4286 = vmatmul.mubr.f32.gmra.mxu0 %v4219
  %v4287 = vpop.f32.mrf.mxu0
  %v4288 = vadd.f32 %v4215, %v4287
  %v4289 = vpop.f32.mrf.mxu0
  %4290 = vdwg.mxu0
  %4291 = vrot.lane.b32.xlu0 %v2848, 112
  %v4292 = vpop.permute.xlu0 %4291
  %4293 = vrot.lane.b32.xlu0 %v2848, 80
  %v4294 = vpop.permute.xlu0 %4293
  %v4295 = vsel %vm481, %v4292, 0
  %v4297 = vsel %vm481, %v4294, 0
  %4299 = vmatprep.subr.mxu0 0.0
  %4300 = vmatpush1.xpose.msra.mxu0 0.0
  %4301 = vmatprep.subr.mxu0 0.0
  %4302 = vmatpush1.xpose.msra.mxu0 0.0
  %4303 = vmatprep.subr.mxu0 0.0
  %4304 = vmatpush1.xpose.msra.mxu0 0.0
  %4305 = vmatprep.subr.mxu0 0.0
  %4306 = vmatpush1.xpose.msra.mxu0 0.0
  %4307 = vmatprep.subr.mxu0 0.0
  %4308 = vmatpush1.xpose.msra.mxu0 0.0
  %4309 = vmatprep.subr.mxu0 0.0
  %4310 = vmatpush1.xpose.msra.mxu0 0.0
  %4311 = vmatprep.subr.mxu0 0.0
  %4312 = vmatpush1.xpose.msra.mxu0 0.0
  %4313 = vmatprep.subr.mxu0 0.0
  %4314 = vmatpush1.xpose.msra.mxu0 0.0
  %4315 = vmatprep.subr.mxu0 0.0
  %4316 = vmatpush1.xpose.msra.mxu0 0.0
  %4317 = vmatprep.subr.mxu0 0.0
  %4318 = vmatpush1.xpose.msra.mxu0 0.0
  %4319 = vmatprep.subr.mxu0 0.0
  %4320 = vmatpush1.xpose.msra.mxu0 0.0
  %4321 = vmatprep.subr.mxu0 0.0
  %4322 = vmatpush1.xpose.msra.mxu0 0.0
  %4323 = vmatprep.subr.mxu0 0.0
  %4324 = vmatpush1.xpose.msra.mxu0 0.0
  %4325 = vmatprep.subr.mxu0 0.0
  %4326 = vmatpush1.xpose.msra.mxu0 0.0
  %4327 = vmatprep.subr.mxu0 0.0
  %4328 = vmatpush1.xpose.msra.mxu0 0.0
  %4329 = vmatprep.subr.mxu0 0.0
  %4330 = vmatpush1.xpose.msra.mxu0 %v4297
  %4331 = vmatprep.subr.mxu0 0.0
  %4332 = vmatpush2.xpose.msra.mxu0 0.0
  %4333 = vmatprep.subr.mxu0 0.0
  %4334 = vmatpush2.xpose.msra.mxu0 0.0
  %4335 = vmatprep.subr.mxu0 0.0
  %4336 = vmatpush2.xpose.msra.mxu0 0.0
  %4337 = vmatprep.subr.mxu0 0.0
  %4338 = vmatpush2.xpose.msra.mxu0 0.0
  %4339 = vmatprep.subr.mxu0 0.0
  %4340 = vmatpush2.xpose.msra.mxu0 0.0
  %4341 = vmatprep.subr.mxu0 0.0
  %4342 = vmatpush2.xpose.msra.mxu0 0.0
  %4343 = vmatprep.subr.mxu0 0.0
  %4344 = vmatpush2.xpose.msra.mxu0 0.0
  %4345 = vmatprep.subr.mxu0 0.0
  %4346 = vmatpush2.xpose.msra.mxu0 0.0
  %4347 = vmatprep.subr.mxu0 0.0
  %4348 = vmatpush2.xpose.msra.mxu0 0.0
  %4349 = vmatprep.subr.mxu0 0.0
  %4350 = vmatpush2.xpose.msra.mxu0 0.0
  %4351 = vmatprep.subr.mxu0 0.0
  %4352 = vmatpush2.xpose.msra.mxu0 0.0
  %4353 = vmatprep.subr.mxu0 0.0
  %4354 = vmatpush2.xpose.msra.mxu0 0.0
  %4355 = vmatprep.subr.mxu0 0.0
  %4356 = vmatpush2.xpose.msra.mxu0 0.0
  %4357 = vmatprep.subr.mxu0 0.0
  %4358 = vmatpush2.xpose.msra.mxu0 0.0
  %4359 = vmatprep.subr.mxu0 0.0
  %4360 = vmatpush2.xpose.msra.mxu0 0.0
  %4361 = vmatprep.subr.mxu0 0.0
  %4362 = vmatpush2.xpose.msra.mxu0 0.0
  %4363 = vmatprep.mubr.f32.mxu0 0.0
  %4364 = vmatmul.mubr.f32.gmra.mxu0 %v4295
  %v4365 = vpop.f32.mrf.mxu0
  %v4366 = vadd.f32 0.0, %v4365
  %v4367 = vpop.f32.mrf.mxu0
  %4368 = vdwg.mxu0
  %v4369 = vmul.f32 %v4366, 0.35355338
  %v4370 = vadd.f32 %v4369, %v1525
  %v4371 = vsel %vm481, %v4370, -inf
  %4372 = vmax.xlane.f32.xlu0 %v4371
  %v4373 = vpop.xlane.xlu0 %4372
  %v4374 = vsub.f32 %v4370, %v4373
  %v4375 = vmul.f32 %v4374, 1.442695
  %v4376 = vpow.pop %v4375
  %v4377 = vsel %vm481, %v4376, 0.0
  %4378 = vadd.xlane.f32.xlu0 %v4377
  %v4379 = vpop.xlane.xlu0 %4378
  %v4380 = vrcp.pop %v4379
  %v4381 = vmul.f32 %v4376, %v4380
  %4382 = vrot.lane.b32.xlu0 %v2848, 48
  %v4383 = vpop.permute.xlu0 %4382
  %v4386 = vsel %vm481, %v4381, 0
  %4388 = vmatprep.subr.mxu0 0.0
  %4389 = vmatpush1.msra.mxu0 0.0
  %4390 = vmatprep.subr.mxu0 0.0
  %4391 = vmatpush1.msra.mxu0 0.0
  %4392 = vmatprep.subr.mxu0 0.0
  %4393 = vmatpush1.msra.mxu0 0.0
  %4394 = vmatprep.subr.mxu0 0.0
  %4395 = vmatpush1.msra.mxu0 0.0
  %4396 = vmatprep.subr.mxu0 0.0
  %4397 = vmatpush1.msra.mxu0 0.0
  %4398 = vmatprep.subr.mxu0 0.0
  %4399 = vmatpush1.msra.mxu0 0.0
  %4400 = vmatprep.subr.mxu0 0.0
  %4401 = vmatpush1.msra.mxu0 0.0
  %4402 = vmatprep.subr.mxu0 0.0
  %4403 = vmatpush1.msra.mxu0 0.0
  %4404 = vmatprep.subr.mxu0 0.0
  %4405 = vmatpush1.msra.mxu0 0.0
  %4406 = vmatprep.subr.mxu0 0.0
  %4407 = vmatpush1.msra.mxu0 0.0
  %4408 = vmatprep.subr.mxu0 0.0
  %4409 = vmatpush1.msra.mxu0 0.0
  %4410 = vmatprep.subr.mxu0 0.0
  %4411 = vmatpush1.msra.mxu0 0.0
  %4412 = vmatprep.subr.mxu0 0.0
  %4413 = vmatpush1.msra.mxu0 0.0
  %4414 = vmatprep.subr.mxu0 0.0
  %4415 = vmatpush1.msra.mxu0 0.0
  %4416 = vmatprep.subr.mxu0 0.0
  %4417 = vmatpush1.msra.mxu0 0.0
  %4418 = vmatprep.subr.mxu0 0.0
  %4419 = vmatpush1.msra.mxu0 %v4383
  %4420 = vmatprep.subr.mxu0 0.0
  %4421 = vmatpush2.msra.mxu0 0.0
  %4422 = vmatprep.subr.mxu0 0.0
  %4423 = vmatpush2.msra.mxu0 0.0
  %4424 = vmatprep.subr.mxu0 0.0
  %4425 = vmatpush2.msra.mxu0 0.0
  %4426 = vmatprep.subr.mxu0 0.0
  %4427 = vmatpush2.msra.mxu0 0.0
  %4428 = vmatprep.subr.mxu0 0.0
  %4429 = vmatpush2.msra.mxu0 0.0
  %4430 = vmatprep.subr.mxu0 0.0
  %4431 = vmatpush2.msra.mxu0 0.0
  %4432 = vmatprep.subr.mxu0 0.0
  %4433 = vmatpush2.msra.mxu0 0.0
  %4434 = vmatprep.subr.mxu0 0.0
  %4435 = vmatpush2.msra.mxu0 0.0
  %4436 = vmatprep.subr.mxu0 0.0
  %4437 = vmatpush2.msra.mxu0 0.0
  %4438 = vmatprep.subr.mxu0 0.0
  %4439 = vmatpush2.msra.mxu0 0.0
  %4440 = vmatprep.subr.mxu0 0.0
  %4441 = vmatpush2.msra.mxu0 0.0
  %4442 = vmatprep.subr.mxu0 0.0
  %4443 = vmatpush2.msra.mxu0 0.0
  %4444 = vmatprep.subr.mxu0 0.0
  %4445 = vmatpush2.msra.mxu0 0.0
  %4446 = vmatprep.subr.mxu0 0.0
  %4447 = vmatpush2.msra.mxu0 0.0
  %4448 = vmatprep.subr.mxu0 0.0
  %4449 = vmatpush2.msra.mxu0 0.0
  %4450 = vmatprep.subr.mxu0 0.0
  %4451 = vmatpush2.msra.mxu0 0.0
  %4452 = vmatprep.mubr.f32.mxu0 0.0
  %4453 = vmatmul.mubr.f32.gmra.mxu0 %v4386
  %v4454 = vpop.f32.mrf.mxu0
  %v4455 = vadd.f32 0.0, %v4454
  %v4456 = vpop.f32.mrf.mxu0
  %4457 = vdwg.mxu0
  %v4459 = vsel %vm481, %v4455, 0
  %4461 = vmatprep.subr.mxu0 0.0
  %4462 = vmatpush1.msra.mxu0 0.0
  %4463 = vmatprep.subr.mxu0 0.0
  %4464 = vmatpush1.msra.mxu0 0.0
  %4465 = vmatprep.subr.mxu0 0.0
  %4466 = vmatpush1.msra.mxu0 0.0
  %4467 = vmatprep.subr.mxu0 0.0
  %4468 = vmatpush1.msra.mxu0 0.0
  %4469 = vmatprep.subr.mxu0 0.0
  %4470 = vmatpush1.msra.mxu0 0.0
  %4471 = vmatprep.subr.mxu0 0.0
  %4472 = vmatpush1.msra.mxu0 0.0
  %4473 = vmatprep.subr.mxu0 0.0
  %4474 = vmatpush1.msra.mxu0 0.0
  %4475 = vmatprep.subr.mxu0 0.0
  %4476 = vmatpush1.msra.mxu0 0.0
  %4477 = vmatprep.subr.mxu0 0.0
  %4478 = vmatpush1.msra.mxu0 0.0
  %4479 = vmatprep.subr.mxu0 0.0
  %4480 = vmatpush1.msra.mxu0 0.0
  %4481 = vmatprep.subr.mxu0 0.0
  %4482 = vmatpush1.msra.mxu0 0.0
  %4483 = vmatprep.subr.mxu0 0.0
  %4484 = vmatpush1.msra.mxu0 0.0
  %4485 = vmatprep.subr.mxu0 0.0
  %4486 = vmatpush1.msra.mxu0 0.0
  %4487 = vmatprep.subr.mxu0 0.0
  %4488 = vmatpush1.msra.mxu0 0.0
  %4489 = vmatprep.subr.mxu0 0.0
  %4490 = vmatpush1.msra.mxu0 0.0
  %4491 = vmatprep.subr.mxu0 0.0
  %4492 = vmatpush1.msra.mxu0 %v2760
  %4493 = vmatprep.subr.mxu0 0.0
  %4494 = vmatpush2.msra.mxu0 0.0
  %4495 = vmatprep.subr.mxu0 0.0
  %4496 = vmatpush2.msra.mxu0 0.0
  %4497 = vmatprep.subr.mxu0 0.0
  %4498 = vmatpush2.msra.mxu0 0.0
  %4499 = vmatprep.subr.mxu0 0.0
  %4500 = vmatpush2.msra.mxu0 0.0
  %4501 = vmatprep.subr.mxu0 0.0
  %4502 = vmatpush2.msra.mxu0 0.0
  %4503 = vmatprep.subr.mxu0 0.0
  %4504 = vmatpush2.msra.mxu0 0.0
  %4505 = vmatprep.subr.mxu0 0.0
  %4506 = vmatpush2.msra.mxu0 0.0
  %4507 = vmatprep.subr.mxu0 0.0
  %4508 = vmatpush2.msra.mxu0 0.0
  %4509 = vmatprep.subr.mxu0 0.0
  %4510 = vmatpush2.msra.mxu0 0.0
  %4511 = vmatprep.subr.mxu0 0.0
  %4512 = vmatpush2.msra.mxu0 0.0
  %4513 = vmatprep.subr.mxu0 0.0
  %4514 = vmatpush2.msra.mxu0 0.0
  %4515 = vmatprep.subr.mxu0 0.0
  %4516 = vmatpush2.msra.mxu0 0.0
  %4517 = vmatprep.subr.mxu0 0.0
  %4518 = vmatpush2.msra.mxu0 0.0
  %4519 = vmatprep.subr.mxu0 0.0
  %4520 = vmatpush2.msra.mxu0 0.0
  %4521 = vmatprep.subr.mxu0 0.0
  %4522 = vmatpush2.msra.mxu0 0.0
  %4523 = vmatprep.subr.mxu0 0.0
  %4524 = vmatpush2.msra.mxu0 0.0
  %4525 = vmatprep.mubr.f32.mxu0 0.0
  %4526 = vmatmul.mubr.f32.gmra.mxu0 %v4459
  %v4527 = vpop.f32.mrf.mxu0
  %v4528 = vadd.f32 0.0, %v4527
  %v4529 = vpop.f32.mrf.mxu0
  %4530 = vdwg.mxu0
  %v4531 = vadd.f32 %v4288, %v4528
  %4532 = vrot.lane.b32.xlu0 %v2848, 104
  %v4533 = vpop.permute.xlu0 %4532
  %4534 = vrot.lane.b32.xlu0 %v2848, 72
  %v4535 = vpop.permute.xlu0 %4534
  %v4536 = vsel %vm481, %v4533, 0
  %v4538 = vsel %vm481, %v4535, 0
  %4540 = vmatprep.subr.mxu0 0.0
  %4541 = vmatpush1.xpose.msra.mxu0 0.0
  %4542 = vmatprep.subr.mxu0 0.0
  %4543 = vmatpush1.xpose.msra.mxu0 0.0
  %4544 = vmatprep.subr.mxu0 0.0
  %4545 = vmatpush1.xpose.msra.mxu0 0.0
  %4546 = vmatprep.subr.mxu0 0.0
  %4547 = vmatpush1.xpose.msra.mxu0 0.0
  %4548 = vmatprep.subr.mxu0 0.0
  %4549 = vmatpush1.xpose.msra.mxu0 0.0
  %4550 = vmatprep.subr.mxu0 0.0
  %4551 = vmatpush1.xpose.msra.mxu0 0.0
  %4552 = vmatprep.subr.mxu0 0.0
  %4553 = vmatpush1.xpose.msra.mxu0 0.0
  %4554 = vmatprep.subr.mxu0 0.0
  %4555 = vmatpush1.xpose.msra.mxu0 0.0
  %4556 = vmatprep.subr.mxu0 0.0
  %4557 = vmatpush1.xpose.msra.mxu0 0.0
  %4558 = vmatprep.subr.mxu0 0.0
  %4559 = vmatpush1.xpose.msra.mxu0 0.0
  %4560 = vmatprep.subr.mxu0 0.0
  %4561 = vmatpush1.xpose.msra.mxu0 0.0
  %4562 = vmatprep.subr.mxu0 0.0
  %4563 = vmatpush1.xpose.msra.mxu0 0.0
  %4564 = vmatprep.subr.mxu0 0.0
  %4565 = vmatpush1.xpose.msra.mxu0 0.0
  %4566 = vmatprep.subr.mxu0 0.0
  %4567 = vmatpush1.xpose.msra.mxu0 0.0
  %4568 = vmatprep.subr.mxu0 0.0
  %4569 = vmatpush1.xpose.msra.mxu0 0.0
  %4570 = vmatprep.subr.mxu0 0.0
  %4571 = vmatpush1.xpose.msra.mxu0 %v4538
  %4572 = vmatprep.subr.mxu0 0.0
  %4573 = vmatpush2.xpose.msra.mxu0 0.0
  %4574 = vmatprep.subr.mxu0 0.0
  %4575 = vmatpush2.xpose.msra.mxu0 0.0
  %4576 = vmatprep.subr.mxu0 0.0
  %4577 = vmatpush2.xpose.msra.mxu0 0.0
  %4578 = vmatprep.subr.mxu0 0.0
  %4579 = vmatpush2.xpose.msra.mxu0 0.0
  %4580 = vmatprep.subr.mxu0 0.0
  %4581 = vmatpush2.xpose.msra.mxu0 0.0
  %4582 = vmatprep.subr.mxu0 0.0
  %4583 = vmatpush2.xpose.msra.mxu0 0.0
  %4584 = vmatprep.subr.mxu0 0.0
  %4585 = vmatpush2.xpose.msra.mxu0 0.0
  %4586 = vmatprep.subr.mxu0 0.0
  %4587 = vmatpush2.xpose.msra.mxu0 0.0
  %4588 = vmatprep.subr.mxu0 0.0
  %4589 = vmatpush2.xpose.msra.mxu0 0.0
  %4590 = vmatprep.subr.mxu0 0.0
  %4591 = vmatpush2.xpose.msra.mxu0 0.0
  %4592 = vmatprep.subr.mxu0 0.0
  %4593 = vmatpush2.xpose.msra.mxu0 0.0
  %4594 = vmatprep.subr.mxu0 0.0
  %4595 = vmatpush2.xpose.msra.mxu0 0.0
  %4596 = vmatprep.subr.mxu0 0.0
  %4597 = vmatpush2.xpose.msra.mxu0 0.0
  %4598 = vmatprep.subr.mxu0 0.0
  %4599 = vmatpush2.xpose.msra.mxu0 0.0
  %4600 = vmatprep.subr.mxu0 0.0
  %4601 = vmatpush2.xpose.msra.mxu0 0.0
  %4602 = vmatprep.subr.mxu0 0.0
  %4603 = vmatpush2.xpose.msra.mxu0 0.0
  %4604 = vmatprep.mubr.f32.mxu0 0.0
  %4605 = vmatmul.mubr.f32.gmra.mxu0 %v4536
  %v4606 = vpop.f32.mrf.mxu0
  %v4607 = vadd.f32 0.0, %v4606
  %v4608 = vpop.f32.mrf.mxu0
  %4609 = vdwg.mxu0
  %v4610 = vmul.f32 %v4607, 0.35355338
  %v4611 = vadd.f32 %v4610, %v1525
  %v4612 = vsel %vm481, %v4611, -inf
  %4613 = vmax.xlane.f32.xlu0 %v4612
  %v4614 = vpop.xlane.xlu0 %4613
  %v4615 = vsub.f32 %v4611, %v4614
  %v4616 = vmul.f32 %v4615, 1.442695
  %v4617 = vpow.pop %v4616
  %v4618 = vsel %vm481, %v4617, 0.0
  %4619 = vadd.xlane.f32.xlu0 %v4618
  %v4620 = vpop.xlane.xlu0 %4619
  %v4621 = vrcp.pop %v4620
  %v4622 = vmul.f32 %v4617, %v4621
  %4623 = vrot.lane.b32.xlu0 %v2848, 40
  %v4624 = vpop.permute.xlu0 %4623
  %v4627 = vsel %vm481, %v4622, 0
  %4629 = vmatprep.subr.mxu0 0.0
  %4630 = vmatpush1.msra.mxu0 0.0
  %4631 = vmatprep.subr.mxu0 0.0
  %4632 = vmatpush1.msra.mxu0 0.0
  %4633 = vmatprep.subr.mxu0 0.0
  %4634 = vmatpush1.msra.mxu0 0.0
  %4635 = vmatprep.subr.mxu0 0.0
  %4636 = vmatpush1.msra.mxu0 0.0
  %4637 = vmatprep.subr.mxu0 0.0
  %4638 = vmatpush1.msra.mxu0 0.0
  %4639 = vmatprep.subr.mxu0 0.0
  %4640 = vmatpush1.msra.mxu0 0.0
  %4641 = vmatprep.subr.mxu0 0.0
  %4642 = vmatpush1.msra.mxu0 0.0
  %4643 = vmatprep.subr.mxu0 0.0
  %4644 = vmatpush1.msra.mxu0 0.0
  %4645 = vmatprep.subr.mxu0 0.0
  %4646 = vmatpush1.msra.mxu0 0.0
  %4647 = vmatprep.subr.mxu0 0.0
  %4648 = vmatpush1.msra.mxu0 0.0
  %4649 = vmatprep.subr.mxu0 0.0
  %4650 = vmatpush1.msra.mxu0 0.0
  %4651 = vmatprep.subr.mxu0 0.0
  %4652 = vmatpush1.msra.mxu0 0.0
  %4653 = vmatprep.subr.mxu0 0.0
  %4654 = vmatpush1.msra.mxu0 0.0
  %4655 = vmatprep.subr.mxu0 0.0
  %4656 = vmatpush1.msra.mxu0 0.0
  %4657 = vmatprep.subr.mxu0 0.0
  %4658 = vmatpush1.msra.mxu0 0.0
  %4659 = vmatprep.subr.mxu0 0.0
  %4660 = vmatpush1.msra.mxu0 %v4624
  %4661 = vmatprep.subr.mxu0 0.0
  %4662 = vmatpush2.msra.mxu0 0.0
  %4663 = vmatprep.subr.mxu0 0.0
  %4664 = vmatpush2.msra.mxu0 0.0
  %4665 = vmatprep.subr.mxu0 0.0
  %4666 = vmatpush2.msra.mxu0 0.0
  %4667 = vmatprep.subr.mxu0 0.0
  %4668 = vmatpush2.msra.mxu0 0.0
  %4669 = vmatprep.subr.mxu0 0.0
  %4670 = vmatpush2.msra.mxu0 0.0
  %4671 = vmatprep.subr.mxu0 0.0
  %4672 = vmatpush2.msra.mxu0 0.0
  %4673 = vmatprep.subr.mxu0 0.0
  %4674 = vmatpush2.msra.mxu0 0.0
  %4675 = vmatprep.subr.mxu0 0.0
  %4676 = vmatpush2.msra.mxu0 0.0
  %4677 = vmatprep.subr.mxu0 0.0
  %4678 = vmatpush2.msra.mxu0 0.0
  %4679 = vmatprep.subr.mxu0 0.0
  %4680 = vmatpush2.msra.mxu0 0.0
  %4681 = vmatprep.subr.mxu0 0.0
  %4682 = vmatpush2.msra.mxu0 0.0
  %4683 = vmatprep.subr.mxu0 0.0
  %4684 = vmatpush2.msra.mxu0 0.0
  %4685 = vmatprep.subr.mxu0 0.0
  %4686 = vmatpush2.msra.mxu0 0.0
  %4687 = vmatprep.subr.mxu0 0.0
  %4688 = vmatpush2.msra.mxu0 0.0
  %4689 = vmatprep.subr.mxu0 0.0
  %4690 = vmatpush2.msra.mxu0 0.0
  %4691 = vmatprep.subr.mxu0 0.0
  %4692 = vmatpush2.msra.mxu0 0.0
  %4693 = vmatprep.mubr.f32.mxu0 0.0
  %4694 = vmatmul.mubr.f32.gmra.mxu0 %v4627
  %v4695 = vpop.f32.mrf.mxu0
  %v4696 = vadd.f32 0.0, %v4695
  %v4697 = vpop.f32.mrf.mxu0
  %4698 = vdwg.mxu0
  %v4700 = vsel %vm481, %v4696, 0
  %4702 = vmatprep.subr.mxu0 0.0
  %4703 = vmatpush1.msra.mxu0 0.0
  %4704 = vmatprep.subr.mxu0 0.0
  %4705 = vmatpush1.msra.mxu0 0.0
  %4706 = vmatprep.subr.mxu0 0.0
  %4707 = vmatpush1.msra.mxu0 0.0
  %4708 = vmatprep.subr.mxu0 0.0
  %4709 = vmatpush1.msra.mxu0 0.0
  %4710 = vmatprep.subr.mxu0 0.0
  %4711 = vmatpush1.msra.mxu0 0.0
  %4712 = vmatprep.subr.mxu0 0.0
  %4713 = vmatpush1.msra.mxu0 0.0
  %4714 = vmatprep.subr.mxu0 0.0
  %4715 = vmatpush1.msra.mxu0 0.0
  %4716 = vmatprep.subr.mxu0 0.0
  %4717 = vmatpush1.msra.mxu0 0.0
  %4718 = vmatprep.subr.mxu0 0.0
  %4719 = vmatpush1.msra.mxu0 0.0
  %4720 = vmatprep.subr.mxu0 0.0
  %4721 = vmatpush1.msra.mxu0 0.0
  %4722 = vmatprep.subr.mxu0 0.0
  %4723 = vmatpush1.msra.mxu0 0.0
  %4724 = vmatprep.subr.mxu0 0.0
  %4725 = vmatpush1.msra.mxu0 0.0
  %4726 = vmatprep.subr.mxu0 0.0
  %4727 = vmatpush1.msra.mxu0 0.0
  %4728 = vmatprep.subr.mxu0 0.0
  %4729 = vmatpush1.msra.mxu0 0.0
  %4730 = vmatprep.subr.mxu0 0.0
  %4731 = vmatpush1.msra.mxu0 0.0
  %4732 = vmatprep.subr.mxu0 0.0
  %4733 = vmatpush1.msra.mxu0 %v2761
  %4734 = vmatprep.subr.mxu0 0.0
  %4735 = vmatpush2.msra.mxu0 0.0
  %4736 = vmatprep.subr.mxu0 0.0
  %4737 = vmatpush2.msra.mxu0 0.0
  %4738 = vmatprep.subr.mxu0 0.0
  %4739 = vmatpush2.msra.mxu0 0.0
  %4740 = vmatprep.subr.mxu0 0.0
  %4741 = vmatpush2.msra.mxu0 0.0
  %4742 = vmatprep.subr.mxu0 0.0
  %4743 = vmatpush2.msra.mxu0 0.0
  %4744 = vmatprep.subr.mxu0 0.0
  %4745 = vmatpush2.msra.mxu0 0.0
  %4746 = vmatprep.subr.mxu0 0.0
  %4747 = vmatpush2.msra.mxu0 0.0
  %4748 = vmatprep.subr.mxu0 0.0
  %4749 = vmatpush2.msra.mxu0 0.0
  %4750 = vmatprep.subr.mxu0 0.0
  %4751 = vmatpush2.msra.mxu0 0.0
  %4752 = vmatprep.subr.mxu0 0.0
  %4753 = vmatpush2.msra.mxu0 0.0
  %4754 = vmatprep.subr.mxu0 0.0
  %4755 = vmatpush2.msra.mxu0 0.0
  %4756 = vmatprep.subr.mxu0 0.0
  %4757 = vmatpush2.msra.mxu0 0.0
  %4758 = vmatprep.subr.mxu0 0.0
  %4759 = vmatpush2.msra.mxu0 0.0
  %4760 = vmatprep.subr.mxu0 0.0
  %4761 = vmatpush2.msra.mxu0 0.0
  %4762 = vmatprep.subr.mxu0 0.0
  %4763 = vmatpush2.msra.mxu0 0.0
  %4764 = vmatprep.subr.mxu0 0.0
  %4765 = vmatpush2.msra.mxu0 0.0
  %4766 = vmatprep.mubr.f32.mxu0 0.0
  %4767 = vmatmul.mubr.f32.gmra.mxu0 %v4700
  %v4768 = vpop.f32.mrf.mxu0
  %v4769 = vadd.f32 0.0, %v4768
  %v4770 = vpop.f32.mrf.mxu0
  %4771 = vdwg.mxu0
  %v4772 = vadd.f32 %v4531, %v4769
  %s4773 = scalar_lea.vmem %s11, 1
  %v4774 = vld [vmem:[%s4773] sm:$0x1]
  %v4776 = vlaneseq
  %v4777 = vshrl.u32 %v4776, 7
  %v4778 = vsub.s32 0, %v4777
  %v4779 = vrot.slane %v4774, %v4778
  %v4781 = vadd.f32 %v3811, %v4779
  %v4782 = vadd.f32 %v4772, %v4779
  %v4783 = vadd.f32 %v2750, %v4781
  %v4784 = vadd.f32 %v2751, %v4782
  %s4785 = scalar_lea.vmem %s12, 1
  %v4786 = vld [vmem:[%s4785] sm:$0x1]
  %s4787 = scalar_lea.vmem %s13, 1
  %v4788 = vld [vmem:[%s4787] sm:$0x1]
  %v4789 = vsel %vm335, %v4783, 0.0
  %4790 = vadd.xlane.f32.xlu0 %v4789
  %v4791 = vpop.xlane.xlu0 %4790
  %v4792 = vsel %vm335, %v4784, 0.0
  %4793 = vadd.xlane.f32.xlu0 %v4792
  %v4794 = vpop.xlane.xlu0 %4793
  %v4795 = vmul.f32 %v4791, %v342
  %v4796 = vmul.f32 %v4794, %v342
  %v4797 = vsub.f32 %v4783, %v4795
  %v4798 = vsub.f32 %v4784, %v4796
  %v4799 = vmul.f32 %v4797, %v4797
  %v4800 = vmul.f32 %v4798, %v4798
  %v4801 = vsel %vm335, %v4799, 0.0
  %4802 = vadd.xlane.f32.xlu0 %v4801
  %v4803 = vpop.xlane.xlu0 %4802
  %v4804 = vsel %vm335, %v4800, 0.0
  %4805 = vadd.xlane.f32.xlu0 %v4804
  %v4806 = vpop.xlane.xlu0 %4805
  %v4807 = vmul.f32 %v4803, %v342
  %v4808 = vmul.f32 %v4806, %v342
  %v4809 = vadd.f32 %v4807, 1e-12
  %v4810 = vadd.f32 %v4808, 1e-12
  %v4811 = vrsqrt.pop %v4809
  %v4812 = vrsqrt.pop %v4810
  %v4813 = vmul.f32 %v4797, %v4811
  %v4814 = vmul.f32 %v4798, %v4812
  %v4816 = vlaneseq
  %v4817 = vshrl.u32 %v4816, 7
  %v4818 = vsub.s32 0, %v4817
  %v4819 = vrot.slane %v4786, %v4818
  %v4821 = vmul.f32 %v4813, %v4819
  %v4822 = vmul.f32 %v4814, %v4819
  %v4824 = vlaneseq
  %v4825 = vshrl.u32 %v4824, 7
  %v4826 = vsub.s32 0, %v4825
  %v4827 = vrot.slane %v4788, %v4826
  %v4829 = vadd.f32 %v4821, %v4827
  %v4830 = vadd.f32 %v4822, %v4827
  %s4831 = scalar_lea.vmem %s14, 32
  %v4832 = vld [vmem:[%s4831] sm:$0xff]
  %v4833 = vld [vmem:[%s4831 + $0x8] sm:$0xff]
  %v4834 = vld [vmem:[%s4831 + $0x10] sm:$0xff]
  %v4835 = vld [vmem:[%s4831 + $0x18] sm:$0xff]
  %s4836 = scalar_lea.vmem %s15, 1
  %v4837 = vld [vmem:[%s4836] sm:$0x1]
  %v4839 = vlaneseq
  %v4840 = vshrl.u32 %v4839, 7
  %v4841 = vsub.s32 0, %v4840
  %v4842 = vrot.slane %v4837, %v4841
  %v4845 = vsel %vm335, %v4829, 0
  %v4848 = vsel %vm335, %v4830, 0
  %4850 = vmatprep.subr.mxu0 0.0
  %4851 = vmatpush1.msra.mxu0 0.0
  %4852 = vmatprep.subr.mxu0 0.0
  %4853 = vmatpush1.msra.mxu0 0.0
  %4854 = vmatprep.subr.mxu0 0.0
  %4855 = vmatpush1.msra.mxu0 0.0
  %4856 = vmatprep.subr.mxu0 0.0
  %4857 = vmatpush1.msra.mxu0 0.0
  %4858 = vmatprep.subr.mxu0 0.0
  %4859 = vmatpush1.msra.mxu0 0.0
  %4860 = vmatprep.subr.mxu0 0.0
  %4861 = vmatpush1.msra.mxu0 0.0
  %4862 = vmatprep.subr.mxu0 0.0
  %4863 = vmatpush1.msra.mxu0 0.0
  %4864 = vmatprep.subr.mxu0 0.0
  %4865 = vmatpush1.msra.mxu0 0.0
  %4866 = vmatprep.subr.mxu0 0.0
  %4867 = vmatpush1.msra.mxu0 0.0
  %4868 = vmatprep.subr.mxu0 0.0
  %4869 = vmatpush1.msra.mxu0 0.0
  %4870 = vmatprep.subr.mxu0 0.0
  %4871 = vmatpush1.msra.mxu0 0.0
  %4872 = vmatprep.subr.mxu0 0.0
  %4873 = vmatpush1.msra.mxu0 0.0
  %4874 = vmatprep.subr.mxu0 0.0
  %4875 = vmatpush1.msra.mxu0 %v4835
  %4876 = vmatprep.subr.mxu0 0.0
  %4877 = vmatpush1.msra.mxu0 %v4834
  %4878 = vmatprep.subr.mxu0 0.0
  %4879 = vmatpush1.msra.mxu0 %v4833
  %4880 = vmatprep.subr.mxu0 0.0
  %4881 = vmatpush1.msra.mxu0 %v4832
  %4882 = vmatprep.subr.mxu0 0.0
  %4883 = vmatpush2.msra.mxu0 0.0
  %4884 = vmatprep.subr.mxu0 0.0
  %4885 = vmatpush2.msra.mxu0 0.0
  %4886 = vmatprep.subr.mxu0 0.0
  %4887 = vmatpush2.msra.mxu0 0.0
  %4888 = vmatprep.subr.mxu0 0.0
  %4889 = vmatpush2.msra.mxu0 0.0
  %4890 = vmatprep.subr.mxu0 0.0
  %4891 = vmatpush2.msra.mxu0 0.0
  %4892 = vmatprep.subr.mxu0 0.0
  %4893 = vmatpush2.msra.mxu0 0.0
  %4894 = vmatprep.subr.mxu0 0.0
  %4895 = vmatpush2.msra.mxu0 0.0
  %4896 = vmatprep.subr.mxu0 0.0
  %4897 = vmatpush2.msra.mxu0 0.0
  %4898 = vmatprep.subr.mxu0 0.0
  %4899 = vmatpush2.msra.mxu0 0.0
  %4900 = vmatprep.subr.mxu0 0.0
  %4901 = vmatpush2.msra.mxu0 0.0
  %4902 = vmatprep.subr.mxu0 0.0
  %4903 = vmatpush2.msra.mxu0 0.0
  %4904 = vmatprep.subr.mxu0 0.0
  %4905 = vmatpush2.msra.mxu0 0.0
  %4906 = vmatprep.subr.mxu0 0.0
  %4907 = vmatpush2.msra.mxu0 0.0
  %4908 = vmatprep.subr.mxu0 0.0
  %4909 = vmatpush2.msra.mxu0 0.0
  %4910 = vmatprep.subr.mxu0 0.0
  %4911 = vmatpush2.msra.mxu0 0.0
  %4912 = vmatprep.subr.mxu0 0.0
  %4913 = vmatpush2.msra.mxu0 0.0
  %4914 = vmatprep.mubr.f32.mxu0 0.0
  %4915 = vmatmul.mubr.f32.gmra.mxu0 %v4845
  %v4916 = vpop.f32.mrf.mxu0
  %v4917 = vadd.f32 %v4842, %v4916
  %v4918 = vpop.f32.mrf.mxu0
  %4919 = vmatprep.mubr.f32.mxu0 0.0
  %4920 = vmatmul.mubr.f32.gmra.mxu0 %v4848
  %v4921 = vpop.f32.mrf.mxu0
  %v4922 = vadd.f32 %v4842, %v4921
  %v4923 = vpop.f32.mrf.mxu0
  %4924 = vdwg.mxu0
  %v4925 = vmul.f32 %v4917, 0.5
  %v4926 = vmul.f32 %v4922, 0.5
  %v4927 = vmul.f32 %v4917, 0.70710677
  %v4928 = vmul.f32 %v4922, 0.70710677
  %v4929 = vand.u32 2147483647, %v4927
  %v4930 = vand.u32 2147483647, %v4928
  %v4931 = vmul.f32 %v4929, 0.3275911
  %v4932 = vmul.f32 %v4930, 0.3275911
  %v4933 = vadd.f32 %v4931, 1.0
  %v4934 = vadd.f32 %v4932, 1.0
  %v4935 = vrcp.pop %v4933
  %v4936 = vmul.f32 1.0, %v4935
  %v4937 = vrcp.pop %v4934
  %v4938 = vmul.f32 1.0, %v4937
  %v4939 = vmul.f32 %v4936, 1.0614054
  %v4940 = vmul.f32 %v4938, 1.0614054
  %v4941 = vadd.f32 %v4939, -1.4531521
  %v4942 = vadd.f32 %v4940, -1.4531521
  %v4943 = vmul.f32 %v4941, %v4936
  %v4944 = vmul.f32 %v4942, %v4938
  %v4945 = vadd.f32 %v4943, 1.4214138
  %v4946 = vadd.f32 %v4944, 1.4214138
  %v4947 = vmul.f32 %v4945, %v4936
  %v4948 = vmul.f32 %v4946, %v4938
  %v4949 = vadd.f32 %v4947, -0.28449672
  %v4950 = vadd.f32 %v4948, -0.28449672
  %v4951 = vmul.f32 %v4949, %v4936
  %v4952 = vmul.f32 %v4950, %v4938
  %v4953 = vadd.f32 %v4951, 0.2548296
  %v4954 = vadd.f32 %v4952, 0.2548296
  %v4955 = vmul.f32 %v4953, %v4936
  %v4956 = vmul.f32 %v4954, %v4938
  %v4957 = vsub.f32 0.0, %v4929
  %v4958 = vsub.f32 0.0, %v4930
  %v4959 = vmul.f32 %v4957, %v4929
  %v4960 = vmul.f32 %v4958, %v4930
  %v4961 = vmul.f32 %v4959, 1.442695
  %v4962 = vpow.pop %v4961
  %v4963 = vmul.f32 %v4960, 1.442695
  %v4964 = vpow.pop %v4963
  %v4965 = vmul.f32 %v4955, %v4962
  %v4966 = vmul.f32 %v4956, %v4964
  %v4967 = vsub.f32 1.0, %v4965
  %v4968 = vsub.f32 1.0, %v4966
  %vm4969 = vcmp.lt.f32.partialorder %v4927, 0.0
  %vm4970 = vcmp.lt.f32.partialorder %v4928, 0.0
  %v4971 = vsub.f32 0.0, %v4967
  %v4972 = vsub.f32 0.0, %v4968
  %v4973 = vsel %vm4969, %v4971, %v4967
  %v4974 = vsel %vm4970, %v4972, %v4968
  %v4975 = vadd.f32 %v4973, 1.0
  %v4976 = vadd.f32 %v4974, 1.0
  %v4977 = vmul.f32 %v4925, %v4975
  %v4978 = vmul.f32 %v4926, %v4976
  %s4979 = scalar_lea.vmem %s16, 64
  %v4980 = vld [vmem:[%s4979] sm:$0xff]
  %v4981 = vld [vmem:[%s4979 + $0x8] sm:$0xff]
  %v4982 = vld [vmem:[%s4979 + $0x10] sm:$0xff]
  %v4983 = vld [vmem:[%s4979 + $0x18] sm:$0xff]
  %v4984 = vld [vmem:[%s4979 + $0x20] sm:$0xff]
  %v4985 = vld [vmem:[%s4979 + $0x28] sm:$0xff]
  %v4986 = vld [vmem:[%s4979 + $0x30] sm:$0xff]
  %v4987 = vld [vmem:[%s4979 + $0x38] sm:$0xff]
  %s4988 = scalar_lea.vmem %s17, 1
  %v4989 = vld [vmem:[%s4988] sm:$0x1]
  %v4991 = vlaneseq
  %v4992 = vshrl.u32 %v4991, 7
  %v4993 = vsub.s32 0, %v4992
  %v4994 = vrot.slane %v4989, %v4993
  %v4997 = vsel %vm247, %v4977, 0
  %v5000 = vsel %vm247, %v4978, 0
  %5002 = vmatprep.subr.mxu0 0.0
  %5003 = vmatpush1.msra.mxu0 0.0
  %5004 = vmatprep.subr.mxu0 0.0
  %5005 = vmatpush1.msra.mxu0 0.0
  %5006 = vmatprep.subr.mxu0 0.0
  %5007 = vmatpush1.msra.mxu0 0.0
  %5008 = vmatprep.subr.mxu0 0.0
  %5009 = vmatpush1.msra.mxu0 0.0
  %5010 = vmatprep.subr.mxu0 0.0
  %5011 = vmatpush1.msra.mxu0 0.0
  %5012 = vmatprep.subr.mxu0 0.0
  %5013 = vmatpush1.msra.mxu0 0.0
  %5014 = vmatprep.subr.mxu0 0.0
  %5015 = vmatpush1.msra.mxu0 0.0
  %5016 = vmatprep.subr.mxu0 0.0
  %5017 = vmatpush1.msra.mxu0 0.0
  %5018 = vmatprep.subr.mxu0 0.0
  %5019 = vmatpush1.msra.mxu0 %v4987
  %5020 = vmatprep.subr.mxu0 0.0
  %5021 = vmatpush1.msra.mxu0 %v4986
  %5022 = vmatprep.subr.mxu0 0.0
  %5023 = vmatpush1.msra.mxu0 %v4985
  %5024 = vmatprep.subr.mxu0 0.0
  %5025 = vmatpush1.msra.mxu0 %v4984
  %5026 = vmatprep.subr.mxu0 0.0
  %5027 = vmatpush1.msra.mxu0 %v4983
  %5028 = vmatprep.subr.mxu0 0.0
  %5029 = vmatpush1.msra.mxu0 %v4982
  %5030 = vmatprep.subr.mxu0 0.0
  %5031 = vmatpush1.msra.mxu0 %v4981
  %5032 = vmatprep.subr.mxu0 0.0
  %5033 = vmatpush1.msra.mxu0 %v4980
  %5034 = vmatprep.subr.mxu0 0.0
  %5035 = vmatpush2.msra.mxu0 0.0
  %5036 = vmatprep.subr.mxu0 0.0
  %5037 = vmatpush2.msra.mxu0 0.0
  %5038 = vmatprep.subr.mxu0 0.0
  %5039 = vmatpush2.msra.mxu0 0.0
  %5040 = vmatprep.subr.mxu0 0.0
  %5041 = vmatpush2.msra.mxu0 0.0
  %5042 = vmatprep.subr.mxu0 0.0
  %5043 = vmatpush2.msra.mxu0 0.0
  %5044 = vmatprep.subr.mxu0 0.0
  %5045 = vmatpush2.msra.mxu0 0.0
  %5046 = vmatprep.subr.mxu0 0.0
  %5047 = vmatpush2.msra.mxu0 0.0
  %5048 = vmatprep.subr.mxu0 0.0
  %5049 = vmatpush2.msra.mxu0 0.0
  %5050 = vmatprep.subr.mxu0 0.0
  %5051 = vmatpush2.msra.mxu0 0.0
  %5052 = vmatprep.subr.mxu0 0.0
  %5053 = vmatpush2.msra.mxu0 0.0
  %5054 = vmatprep.subr.mxu0 0.0
  %5055 = vmatpush2.msra.mxu0 0.0
  %5056 = vmatprep.subr.mxu0 0.0
  %5057 = vmatpush2.msra.mxu0 0.0
  %5058 = vmatprep.subr.mxu0 0.0
  %5059 = vmatpush2.msra.mxu0 0.0
  %5060 = vmatprep.subr.mxu0 0.0
  %5061 = vmatpush2.msra.mxu0 0.0
  %5062 = vmatprep.subr.mxu0 0.0
  %5063 = vmatpush2.msra.mxu0 0.0
  %5064 = vmatprep.subr.mxu0 0.0
  %5065 = vmatpush2.msra.mxu0 0.0
  %5066 = vmatprep.mubr.f32.mxu0 0.0
  %5067 = vmatmul.mubr.f32.gmra.mxu0 %v4997
  %v5068 = vpop.f32.mrf.mxu0
  %v5069 = vadd.f32 %v4994, %v5068
  %v5070 = vpop.f32.mrf.mxu0
  %5071 = vmatprep.mubr.f32.mxu0 0.0
  %5072 = vmatmul.mubr.f32.gmra.mxu0 %v5000
  %v5073 = vpop.f32.mrf.mxu0
  %v5074 = vadd.f32 %v4994, %v5073
  %v5075 = vpop.f32.mrf.mxu0
  %5076 = vdwg.mxu0
  %v5077 = vadd.f32 %v4829, %v5069
  %v5078 = vadd.f32 %v4830, %v5074
  %s5079 = scalar_lea.vmem %s18, 1
  %v5080 = vld [vmem:[%s5079] sm:$0x1]
  %s5081 = scalar_lea.vmem %s19, 1
  %v5082 = vld [vmem:[%s5081] sm:$0x1]
  %v5083 = vsel %vm335, %v5077, 0.0
  %5084 = vadd.xlane.f32.xlu0 %v5083
  %v5085 = vpop.xlane.xlu0 %5084
  %v5086 = vsel %vm335, %v5078, 0.0
  %5087 = vadd.xlane.f32.xlu0 %v5086
  %v5088 = vpop.xlane.xlu0 %5087
  %v5089 = vmul.f32 %v5085, %v342
  %v5090 = vmul.f32 %v5088, %v342
  %v5091 = vsub.f32 %v5077, %v5089
  %v5092 = vsub.f32 %v5078, %v5090
  %v5093 = vmul.f32 %v5091, %v5091
  %v5094 = vmul.f32 %v5092, %v5092
  %v5095 = vsel %vm335, %v5093, 0.0
  %5096 = vadd.xlane.f32.xlu0 %v5095
  %v5097 = vpop.xlane.xlu0 %5096
  %v5098 = vsel %vm335, %v5094, 0.0
  %5099 = vadd.xlane.f32.xlu0 %v5098
  %v5100 = vpop.xlane.xlu0 %5099
  %v5101 = vmul.f32 %v5097, %v342
  %v5102 = vmul.f32 %v5100, %v342
  %v5103 = vadd.f32 %v5101, 1e-12
  %v5104 = vadd.f32 %v5102, 1e-12
  %v5105 = vrsqrt.pop %v5103
  %v5106 = vrsqrt.pop %v5104
  %v5107 = vmul.f32 %v5091, %v5105
  %v5108 = vmul.f32 %v5092, %v5106
  %v5110 = vlaneseq
  %v5111 = vshrl.u32 %v5110, 7
  %v5112 = vsub.s32 0, %v5111
  %v5113 = vrot.slane %v5080, %v5112
  %v5115 = vmul.f32 %v5107, %v5113
  %v5116 = vmul.f32 %v5108, %v5113
  %v5118 = vlaneseq
  %v5119 = vshrl.u32 %v5118, 7
  %v5120 = vsub.s32 0, %v5119
  %v5121 = vrot.slane %v5082, %v5120
  %v5123 = vadd.f32 %v5115, %v5121
  %v5124 = vadd.f32 %v5116, %v5121
  %v5125 = vld [vmem:[%s20] sm:$0xff]
  %v5126 = vld [vmem:[%s20 + $0x8] sm:$0xff]
  %v5127 = vld [vmem:[%s20 + $0x10] sm:$0xff]
  %v5128 = vld [vmem:[%s20 + $0x18] sm:$0xff]
  %v5129 = vld [vmem:[%s21] sm:$0x1]
  %v5131 = vlaneseq
  %v5132 = vshrl.u32 %v5131, 7
  %v5133 = vsub.s32 0, %v5132
  %v5134 = vrot.slane %v5129, %v5133
  %v5137 = vsel %vm335, %v5123, 0
  %v5140 = vsel %vm335, %v5124, 0
  %5142 = vmatprep.subr.mxu0 0.0
  %5143 = vmatpush1.msra.mxu0 0.0
  %5144 = vmatprep.subr.mxu0 0.0
  %5145 = vmatpush1.msra.mxu0 0.0
  %5146 = vmatprep.subr.mxu0 0.0
  %5147 = vmatpush1.msra.mxu0 0.0
  %5148 = vmatprep.subr.mxu0 0.0
  %5149 = vmatpush1.msra.mxu0 0.0
  %5150 = vmatprep.subr.mxu0 0.0
  %5151 = vmatpush1.msra.mxu0 0.0
  %5152 = vmatprep.subr.mxu0 0.0
  %5153 = vmatpush1.msra.mxu0 0.0
  %5154 = vmatprep.subr.mxu0 0.0
  %5155 = vmatpush1.msra.mxu0 0.0
  %5156 = vmatprep.subr.mxu0 0.0
  %5157 = vmatpush1.msra.mxu0 0.0
  %5158 = vmatprep.subr.mxu0 0.0
  %5159 = vmatpush1.msra.mxu0 0.0
  %5160 = vmatprep.subr.mxu0 0.0
  %5161 = vmatpush1.msra.mxu0 0.0
  %5162 = vmatprep.subr.mxu0 0.0
  %5163 = vmatpush1.msra.mxu0 0.0
  %5164 = vmatprep.subr.mxu0 0.0
  %5165 = vmatpush1.msra.mxu0 0.0
  %5166 = vmatprep.subr.mxu0 0.0
  %5167 = vmatpush1.msra.mxu0 %v5128
  %5168 = vmatprep.subr.mxu0 0.0
  %5169 = vmatpush1.msra.mxu0 %v5127
  %5170 = vmatprep.subr.mxu0 0.0
  %5171 = vmatpush1.msra.mxu0 %v5126
  %5172 = vmatprep.subr.mxu0 0.0
  %5173 = vmatpush1.msra.mxu0 %v5125
  %5174 = vmatprep.subr.mxu0 0.0
  %5175 = vmatpush2.msra.mxu0 0.0
  %5176 = vmatprep.subr.mxu0 0.0
  %5177 = vmatpush2.msra.mxu0 0.0
  %5178 = vmatprep.subr.mxu0 0.0
  %5179 = vmatpush2.msra.mxu0 0.0
  %5180 = vmatprep.subr.mxu0 0.0
  %5181 = vmatpush2.msra.mxu0 0.0
  %5182 = vmatprep.subr.mxu0 0.0
  %5183 = vmatpush2.msra.mxu0 0.0
  %5184 = vmatprep.subr.mxu0 0.0
  %5185 = vmatpush2.msra.mxu0 0.0
  %5186 = vmatprep.subr.mxu0 0.0
  %5187 = vmatpush2.msra.mxu0 0.0
  %5188 = vmatprep.subr.mxu0 0.0
  %5189 = vmatpush2.msra.mxu0 0.0
  %5190 = vmatprep.subr.mxu0 0.0
  %5191 = vmatpush2.msra.mxu0 0.0
  %5192 = vmatprep.subr.mxu0 0.0
  %5193 = vmatpush2.msra.mxu0 0.0
  %5194 = vmatprep.subr.mxu0 0.0
  %5195 = vmatpush2.msra.mxu0 0.0
  %5196 = vmatprep.subr.mxu0 0.0
  %5197 = vmatpush2.msra.mxu0 0.0
  %5198 = vmatprep.subr.mxu0 0.0
  %5199 = vmatpush2.msra.mxu0 0.0
  %5200 = vmatprep.subr.mxu0 0.0
  %5201 = vmatpush2.msra.mxu0 0.0
  %5202 = vmatprep.subr.mxu0 0.0
  %5203 = vmatpush2.msra.mxu0 0.0
  %5204 = vmatprep.subr.mxu0 0.0
  %5205 = vmatpush2.msra.mxu0 0.0
  %5206 = vmatprep.mubr.f32.mxu0 0.0
  %5207 = vmatmul.mubr.f32.gmra.mxu0 %v5137
  %v5208 = vpop.f32.mrf.mxu0
  %v5209 = vadd.f32 %v5134, %v5208
  %v5210 = vpop.f32.mrf.mxu0
  %5211 = vmatprep.mubr.f32.mxu0 0.0
  %5212 = vmatmul.mubr.f32.gmra.mxu0 %v5140
  %v5213 = vpop.f32.mrf.mxu0
  %v5214 = vadd.f32 %v5134, %v5213
  %v5215 = vpop.f32.mrf.mxu0
  %5216 = vdwg.mxu0
  %5217 = vst [vmem:[%s22] sm:$0xff] %v5209
  %5218 = vst [vmem:[%s22 + $0x8] sm:$0xff] %v5214
  // Predicated region
  $region90: #{midiformer_lm_forward.1} parent=0 // pred_check
    _
  $region91: #{midiformer_lm_forward.1} parent=0 // pred_check_branch
    %5220 = sbr.rel (0) target = $region93
  $region92: #{midiformer_lm_forward.1} parent=0 // pred_region
    _
  $region93: #{midiformer_lm_forward.1} parent=0 // pred_fallthru
    _
  // Predicated region
  $region94: #{midiformer_lm_forward.1} parent=0 // pred_check
    _
  $region95: #{midiformer_lm_forward.1} parent=0 // pred_check_branch
    %5222 = sbr.rel (0) target = $region97
  $region96: #{midiformer_lm_forward.1} parent=0 // pred_region
    _
  $region97: #{midiformer_lm_forward.1} parent=0 // pred_fallthru
    _

</llo_original>
